<compile_context>
chip_gen: v6e
topology: v6e:2x2x1
jax: 0.10.0
libtpu: 0.0.40
codegen_flags: <defaults>
</compile_context>

<pallas_src>
import functools

import jax
import jax.numpy as jnp
from jax.experimental import pallas as pl
from jax.experimental.pallas import tpu as pltpu


def _round_up(x, m):
    return (x + m - 1) // m * m


# ----------------------------------------------------------------------------
# Pallas kernels
# ----------------------------------------------------------------------------
def conv_bn_relu_pool_kernel(p_ref, w_ref, scale_ref, shift_ref, o_ref):
    # p_ref:       [BT, 4, K, S]  bf16   (4 = 2x2 pool-window corners)
    # w_ref:       [Cout, K]      bf16
    # scale/shift: [Cout, 1]      f32    (folded BatchNorm + conv bias)
    # o_ref:       [BT, Cout, S]  bf16   (pooled activation, lane-dense in S)
    w = w_ref[...]
    scale = scale_ref[...]
    shift = shift_ref[...]
    bt = p_ref.shape[0]
    for b in range(bt):                       # static unroll over the batch tile
        res = None
        for corner in range(4):               # fused 2x2 max-pool
            y = jnp.dot(w, p_ref[b, corner], preferred_element_type=jnp.float32)
            y = jnp.maximum(y * scale + shift, 0.0)
            res = y if res is None else jnp.maximum(res, y)
        o_ref[b] = res.astype(o_ref.dtype)


def fc_stack_kernel(x_ref, w1_ref, s1_ref, t1_ref, w2_ref, s2_ref, t2_ref,
                    w3_ref, b3_ref, o_ref, *, num_classes):
    # Fused fc1+BN+ReLU, fc2+BN+ReLU, fc3+log_softmax.  All widths padded to
    # 128 lanes; padded classes are masked out of the softmax reduction.
    h = jnp.dot(x_ref[...], w1_ref[...], preferred_element_type=jnp.float32)
    h = jnp.maximum(h * s1_ref[...] + t1_ref[...], 0.0)
    h = jnp.dot(h.astype(jnp.bfloat16), w2_ref[...],
                preferred_element_type=jnp.float32)
    h = jnp.maximum(h * s2_ref[...] + t2_ref[...], 0.0)
    z = jnp.dot(h.astype(jnp.bfloat16), w3_ref[...],
                preferred_element_type=jnp.float32)
    z = z + b3_ref[...]
    col = jax.lax.broadcasted_iota(jnp.int32, z.shape, 1)
    valid = col < num_classes
    zm = jnp.where(valid, z, -1e30)
    m = jnp.max(zm, axis=1, keepdims=True)
    e = jnp.where(valid, jnp.exp(zm - m), 0.0)
    lse = jnp.log(jnp.sum(e, axis=1, keepdims=True)) + m
    o_ref[...] = z - lse                      # padded columns sliced off outside


# ----------------------------------------------------------------------------
# pallas_call wrappers
# ----------------------------------------------------------------------------
def pallas_conv_bn_relu_pool(patches, w, scale, shift, *, block_batch=8):
    n, _, k, s = patches.shape
    cout = w.shape[0]
    assert n % block_batch == 0
    grid = (n // block_batch,)
    flops = 2 * n * 4 * cout * k * s
    bytes_accessed = (patches.size * patches.dtype.itemsize
                      + w.size * w.dtype.itemsize
                      + n * cout * s * 2)
    return pl.pallas_call(
        conv_bn_relu_pool_kernel,
        out_shape=jax.ShapeDtypeStruct((n, cout, s), jnp.bfloat16),
        grid=grid,
        in_specs=[
            pl.BlockSpec((block_batch, 4, k, s), lambda i: (i, 0, 0, 0)),
            pl.BlockSpec((cout, k), lambda i: (0, 0)),
            pl.BlockSpec((cout, 1), lambda i: (0, 0)),
            pl.BlockSpec((cout, 1), lambda i: (0, 0)),
        ],
        out_specs=pl.BlockSpec((block_batch, cout, s), lambda i: (i, 0, 0)),
        compiler_params=pltpu.CompilerParams(
            dimension_semantics=("parallel",),
            vmem_limit_bytes=32 * 1024 * 1024),
        cost_estimate=pl.CostEstimate(flops=flops, transcendentals=0,
                                      bytes_accessed=bytes_accessed),
    )(patches, w, scale, shift)


def pallas_fc_stack(x, w1, s1, t1, w2, s2, t2, w3, b3, *, num_classes):
    m, kdim = x.shape
    pad_w = w1.shape[1]                       # padded lane width (128)
    tm = min(256, _round_up(m, 8))
    mp = _round_up(m, tm)
    if mp != m:
        x = jnp.pad(x, ((0, mp - m), (0, 0)))
    grid = (mp // tm,)
    kernel = functools.partial(fc_stack_kernel, num_classes=num_classes)
    flops = 2 * mp * (kdim * pad_w + pad_w * pad_w + pad_w * pad_w)
    bytes_accessed = (x.size * x.dtype.itemsize
                      + (w1.size + w2.size + w3.size) * 2
                      + mp * pad_w * 4)
    out = pl.pallas_call(
        kernel,
        out_shape=jax.ShapeDtypeStruct((mp, pad_w), jnp.float32),
        grid=grid,
        in_specs=[
            pl.BlockSpec((tm, kdim), lambda i: (i, 0)),
            pl.BlockSpec((kdim, pad_w), lambda i: (0, 0)),
            pl.BlockSpec((1, pad_w), lambda i: (0, 0)),
            pl.BlockSpec((1, pad_w), lambda i: (0, 0)),
            pl.BlockSpec((pad_w, pad_w), lambda i: (0, 0)),
            pl.BlockSpec((1, pad_w), lambda i: (0, 0)),
            pl.BlockSpec((1, pad_w), lambda i: (0, 0)),
            pl.BlockSpec((pad_w, pad_w), lambda i: (0, 0)),
            pl.BlockSpec((1, pad_w), lambda i: (0, 0)),
        ],
        out_specs=pl.BlockSpec((tm, pad_w), lambda i: (i, 0)),
        compiler_params=pltpu.CompilerParams(
            dimension_semantics=("parallel",),
            vmem_limit_bytes=32 * 1024 * 1024),
        cost_estimate=pl.CostEstimate(flops=flops, transcendentals=mp * pad_w,
                                      bytes_accessed=bytes_accessed),
    )(x, w1, s1, t1, w2, s2, t2, w3, b3)
    return out[:m, :num_classes]


# ----------------------------------------------------------------------------
# Glue: corner-split im2col, BN folding, padding helpers, parameter init
# ----------------------------------------------------------------------------
def _im2col_pooled(x_nchw, k, pad):
    """Corner-split im2col -> [N, 4, C*k*k, (Ho//2)*(Wo//2)].

    Feature order is (c, ki, kj) to match PyTorch's weight.reshape(O, -1);
    axis 1 enumerates the 2x2 max-pool window corners so pooling can be fused
    into the conv kernel as a max over 4 matmul results."""
    if pad:
        x_nchw = jnp.pad(x_nchw, ((0, 0), (0, 0), (pad, pad), (pad, pad)))
    n, c, h, w = x_nchw.shape
    ho, wo = h - k + 1, w - k + 1
    hp, wp = ho // 2, wo // 2
    slabs = [x_nchw[:, :, ki:ki + ho, kj:kj + wo]
             for ki in range(k) for kj in range(k)]
    pch = jnp.stack(slabs, axis=2)                         # [N, C, k*k, Ho, Wo]
    pch = pch.reshape(n, c * k * k, ho, wo)
    pch = pch.reshape(n, c * k * k, hp, 2, wp, 2)
    pch = pch.transpose(0, 3, 5, 1, 2, 4)                  # [N, 2, 2, CKK, Hp, Wp]
    return pch.reshape(n, 4, c * k * k, hp * wp)


def fold_bn(bias, gamma, beta, mean, var, eps=1e-5):
    s = gamma * jax.lax.rsqrt(var + eps)
    return s.astype(jnp.float32), ((bias - mean) * s + beta).astype(jnp.float32)


def _col(v):
    return v.reshape(-1, 1).astype(jnp.float32)


def _pad_row(v, width):
    return jnp.pad(v, (0, width - v.shape[0])).reshape(1, -1).astype(jnp.float32)


def _pad_mat(a, rows, cols):
    return jnp.pad(a, ((0, rows - a.shape[0]), (0, cols - a.shape[1])))


def init_params(key, num_classes=10):
    ks = jax.random.split(key, 16)
    u = lambda k, shape, s=0.1: (jax.random.normal(k, shape, jnp.float32) * s)
    p = {
        # PrunedConv / PruneLinear: pruning masks are identity (all ones) here.
        "w_conv1": u(ks[0], (6, 1, 5, 5)),   "b_conv1": u(ks[1], (6,)),
        "w_conv2": u(ks[2], (16, 6, 5, 5)),  "b_conv2": u(ks[3], (16,)),
        "w_fc1": u(ks[4], (400, 120), 0.05), "b_fc1": u(ks[5], (120,)),
        "w_fc2": u(ks[6], (120, 84), 0.05),  "b_fc2": u(ks[7], (84,)),
        "w_fc3": u(ks[8], (84, num_classes), 0.05), "b_fc3": u(ks[9], (num_classes,)),
    }
    def bn(k, c):
        k1, k2, k3, k4 = jax.random.split(k, 4)
        return dict(
            gamma=1.0 + 0.1 * jax.random.normal(k1, (c,), jnp.float32),
            beta=0.1 * jax.random.normal(k2, (c,), jnp.float32),
            mean=0.1 * jax.random.normal(k3, (c,), jnp.float32),
            var=0.5 + jax.random.uniform(k4, (c,), jnp.float32),
        )
    p["bn2d_1"] = bn(ks[10], 6)
    p["bn2d_2"] = bn(ks[11], 16)
    p["bn1d_1"] = bn(ks[12], 120)
    p["bn1d_2"] = bn(ks[13], 84)
    return p


# ----------------------------------------------------------------------------
# Forward pass
# ----------------------------------------------------------------------------
@jax.jit
def lenet5_forward(x_nchw, p):
    n = x_nchw.shape[0]
    num_classes = p["w_fc3"].shape[1]
    bt = 8                                            # images per conv grid step
    npad = _round_up(n, bt)

    x = x_nchw.astype(jnp.bfloat16)
    if npad != n:
        x = jnp.pad(x, ((0, npad - n), (0, 0), (0, 0), (0, 0)))

    # conv1 (1->6, k=5, pad=2) + BN2d_1 + ReLU + max_pool(2), fused
    patches = _im2col_pooled(x, k=5, pad=2)                        # [Np,4,25,196]
    w1 = p["w_conv1"].reshape(6, -1).astype(jnp.bfloat16)          # [6,25]
    s1, t1 = fold_bn(p["b_conv1"], **p["bn2d_1"])
    y = pallas_conv_bn_relu_pool(patches, w1, _col(s1), _col(t1),
                                 block_batch=bt)                   # [Np,6,196]

    # conv2 (6->16, k=5, pad=0) + BN2d_2 + ReLU + max_pool(2), fused
    y = y.reshape(npad, 6, 14, 14)                                 # NCHW
    patches = _im2col_pooled(y, k=5, pad=0)                        # [Np,4,150,25]
    w2 = p["w_conv2"].reshape(16, -1).astype(jnp.bfloat16)         # [16,150]
    s2, t2 = fold_bn(p["b_conv2"], **p["bn2d_2"])
    y = pallas_conv_bn_relu_pool(patches, w2, _col(s2), _col(t2),
                                 block_batch=bt)                   # [Np,16,25]

    # flatten in NCHW (c, h, w) order == PyTorch out.view(N, -1)
    feats = y.reshape(npad, 16 * 5 * 5)                            # [Np,400]

    # fc1+BN+ReLU, fc2+BN+ReLU, fc3+log_softmax — one fused kernel
    width = _round_up(max(num_classes, 120, 84), 128)              # 128
    s3, t3 = fold_bn(p["b_fc1"], **p["bn1d_1"])
    s4, t4 = fold_bn(p["b_fc2"], **p["bn1d_2"])
    w_fc1 = _pad_mat(p["w_fc1"], 400, width).astype(jnp.bfloat16)
    w_fc2 = _pad_mat(p["w_fc2"], width, width).astype(jnp.bfloat16)
    w_fc3 = _pad_mat(p["w_fc3"], width, width).astype(jnp.bfloat16)
    logp = pallas_fc_stack(
        feats, w_fc1, _pad_row(s3, width), _pad_row(t3, width),
        w_fc2, _pad_row(s4, width), _pad_row(t4, width),
        w_fc3, _pad_row(p["b_fc3"], width),
        num_classes=num_classes)                                   # [Np, nc]
    return logp[:n]


# ----------------------------------------------------------------------------
# Pure-JAX reference (f32) for a loose numerical check
# ----------------------------------------------------------------------------
def lenet5_reference(x, p, eps=1e-5):
    def bn(y, bnp, axis):
        shape = [1] * y.ndim
        shape[axis] = -1
        return ((y - bnp["mean"].reshape(shape))
                / jnp.sqrt(bnp["var"].reshape(shape) + eps)
                * bnp["gamma"].reshape(shape) + bnp["beta"].reshape(shape))

    def conv(y, w, b, pad):
        out = jax.lax.conv_general_dilated(
            y, w, (1, 1), [(pad, pad), (pad, pad)],
            dimension_numbers=("NCHW", "OIHW", "NCHW"))
        return out + b.reshape(1, -1, 1, 1)

    def pool(y):
        n, c, h, w = y.shape
        return y.reshape(n, c, h // 2, 2, w // 2, 2).max(axis=(3, 5))

    y = pool(jax.nn.relu(bn(conv(x, p["w_conv1"], p["b_conv1"], 2), p["bn2d_1"], 1)))
    y = pool(jax.nn.relu(bn(conv(y, p["w_conv2"], p["b_conv2"], 0), p["bn2d_2"], 1)))
    y = y.reshape(y.shape[0], -1)
    y = jax.nn.relu(bn(y @ p["w_fc1"] + p["b_fc1"], p["bn1d_1"], 1))
    y = jax.nn.relu(bn(y @ p["w_fc2"] + p["b_fc2"], p["bn1d_2"], 1))
    z = y @ p["w_fc3"] + p["b_fc3"]
    return jax.nn.log_softmax(z, axis=1)


if __name__ == "__main__":
    key = jax.random.PRNGKey(0)
    k_x, k_p = jax.random.split(key)
    # MNIST-shaped input (spatial 28 is required by the 16*5*5 flatten).
    x = jax.random.normal(k_x, (2, 1, 28, 28), jnp.float32)
    params = init_params(k_p, num_classes=10)

    logp = jax.block_until_ready(lenet5_forward(x, params))

    assert logp.shape == (2, 10)
    assert bool(jnp.all(jnp.isfinite(logp)))
    # log_softmax rows must sum (in prob space) to ~1
    assert jnp.allclose(jnp.sum(jnp.exp(logp), axis=1), 1.0, atol=1e-4)
    # loose check against a pure-JAX f32 reference (kernel uses bf16 matmuls)
    ref = lenet5_reference(x, params)
    assert float(jnp.max(jnp.abs(logp - ref))) < 0.1
    print("KERNEL_OK")
</pallas_src>

<mosaic_0001>
module attributes {stable_mosaic.version = 11 : i64} {
  func.func @conv_bn_relu_pool_kernel(%arg0: i32, %arg1: memref<8x4x25x196xbf16, #tpu.memory_space<vmem>>, %arg2: memref<6x25xbf16, #tpu.memory_space<vmem>>, %arg3: memref<6x1xf32, #tpu.memory_space<vmem>>, %arg4: memref<6x1xf32, #tpu.memory_space<vmem>>, %arg5: memref<8x6x196xbf16, #tpu.memory_space<vmem>>) attributes {dimension_semantics = [#tpu.dimension_semantics<parallel>], iteration_bounds = array<i64: 1>, scalar_prefetch = 0 : i64, scratch_operands = 0 : i64, tpu.core_type = #tpu.core_type<tc>, window_params = [{transform_indices = @transform_0, window_bounds = array<i64: 8, 4, 25, 196>}, {pipeline_mode = #tpu.pipeline_mode<synchronous>, transform_indices = @transform_1, window_bounds = array<i64: 6, 25>}, {pipeline_mode = #tpu.pipeline_mode<synchronous>, transform_indices = @transform_2, window_bounds = array<i64: 6, 1>}, {pipeline_mode = #tpu.pipeline_mode<synchronous>, transform_indices = @transform_3, window_bounds = array<i64: 6, 1>}, {transform_indices = @transform_4, window_bounds = array<i64: 8, 6, 196>}]} {
    %c0 = arith.constant 0 : index
    %c0_0 = arith.constant 0 : index
    %0 = vector.load %arg2[%c0, %c0_0] : memref<6x25xbf16, #tpu.memory_space<vmem>>, vector<6x25xbf16>
    %c0_1 = arith.constant 0 : index
    %c0_2 = arith.constant 0 : index
    %1 = vector.load %arg3[%c0_1, %c0_2] : memref<6x1xf32, #tpu.memory_space<vmem>>, vector<6x1xf32>
    %c0_3 = arith.constant 0 : index
    %c0_4 = arith.constant 0 : index
    %2 = vector.load %arg4[%c0_3, %c0_4] : memref<6x1xf32, #tpu.memory_space<vmem>>, vector<6x1xf32>
    %c0_5 = arith.constant 0 : index
    %c0_6 = arith.constant 0 : index
    %c0_7 = arith.constant 0 : index
    %c0_8 = arith.constant 0 : index
    %3 = vector.load %arg1[%c0_5, %c0_6, %c0_7, %c0_8] : memref<8x4x25x196xbf16, #tpu.memory_space<vmem>>, vector<1x1x25x196xbf16>
    %4 = vector.shape_cast %3 : vector<1x1x25x196xbf16> to vector<25x196xbf16>
    %cst = arith.constant dense<0.000000e+00> : vector<6x196xf32>
    %5 = tpu.matmul %0, %4, %cst {dimension_numbers = #tpu.dot_dimension_numbers<[1], [0], [0], [1], [0, 0, 1, 1], [], []>} : vector<6x25xbf16>, vector<25x196xbf16>, vector<6x196xf32> -> vector<6x196xf32>
    %6 = vector.broadcast %1 : vector<6x1xf32> to vector<6x196xf32>
    %7 = arith.mulf %5, %6 : vector<6x196xf32>
    %8 = vector.broadcast %2 : vector<6x1xf32> to vector<6x196xf32>
    %9 = arith.addf %7, %8 : vector<6x196xf32>
    %cst_9 = arith.constant 0.000000e+00 : f32
    %10 = vector.broadcast %cst_9 : f32 to vector<6x196xf32>
    %11 = arith.maximumf %9, %10 : vector<6x196xf32>
    %c0_10 = arith.constant 0 : index
    %c1 = arith.constant 1 : index
    %c0_11 = arith.constant 0 : index
    %c0_12 = arith.constant 0 : index
    %12 = vector.load %arg1[%c0_10, %c1, %c0_11, %c0_12] : memref<8x4x25x196xbf16, #tpu.memory_space<vmem>>, vector<1x1x25x196xbf16>
    %13 = vector.shape_cast %12 : vector<1x1x25x196xbf16> to vector<25x196xbf16>
    %cst_13 = arith.constant dense<0.000000e+00> : vector<6x196xf32>
    %14 = tpu.matmul %0, %13, %cst_13 {dimension_numbers = #tpu.dot_dimension_numbers<[1], [0], [0], [1], [0, 0, 1, 1], [], []>} : vector<6x25xbf16>, vector<25x196xbf16>, vector<6x196xf32> -> vector<6x196xf32>
    %15 = vector.broadcast %1 : vector<6x1xf32> to vector<6x196xf32>
    %16 = arith.mulf %14, %15 : vector<6x196xf32>
    %17 = vector.broadcast %2 : vector<6x1xf32> to vector<6x196xf32>
    %18 = arith.addf %16, %17 : vector<6x196xf32>
    %cst_14 = arith.constant 0.000000e+00 : f32
    %19 = vector.broadcast %cst_14 : f32 to vector<6x196xf32>
    %20 = arith.maximumf %18, %19 : vector<6x196xf32>
    %21 = arith.maximumf %11, %20 : vector<6x196xf32>
    %c0_15 = arith.constant 0 : index
    %c2 = arith.constant 2 : index
    %c0_16 = arith.constant 0 : index
    %c0_17 = arith.constant 0 : index
    %22 = vector.load %arg1[%c0_15, %c2, %c0_16, %c0_17] : memref<8x4x25x196xbf16, #tpu.memory_space<vmem>>, vector<1x1x25x196xbf16>
    %23 = vector.shape_cast %22 : vector<1x1x25x196xbf16> to vector<25x196xbf16>
    %cst_18 = arith.constant dense<0.000000e+00> : vector<6x196xf32>
    %24 = tpu.matmul %0, %23, %cst_18 {dimension_numbers = #tpu.dot_dimension_numbers<[1], [0], [0], [1], [0, 0, 1, 1], [], []>} : vector<6x25xbf16>, vector<25x196xbf16>, vector<6x196xf32> -> vector<6x196xf32>
    %25 = vector.broadcast %1 : vector<6x1xf32> to vector<6x196xf32>
    %26 = arith.mulf %24, %25 : vector<6x196xf32>
    %27 = vector.broadcast %2 : vector<6x1xf32> to vector<6x196xf32>
    %28 = arith.addf %26, %27 : vector<6x196xf32>
    %cst_19 = arith.constant 0.000000e+00 : f32
    %29 = vector.broadcast %cst_19 : f32 to vector<6x196xf32>
    %30 = arith.maximumf %28, %29 : vector<6x196xf32>
    %31 = arith.maximumf %21, %30 : vector<6x196xf32>
    %c0_20 = arith.constant 0 : index
    %c3 = arith.constant 3 : index
    %c0_21 = arith.constant 0 : index
    %c0_22 = arith.constant 0 : index
    %32 = vector.load %arg1[%c0_20, %c3, %c0_21, %c0_22] : memref<8x4x25x196xbf16, #tpu.memory_space<vmem>>, vector<1x1x25x196xbf16>
    %33 = vector.shape_cast %32 : vector<1x1x25x196xbf16> to vector<25x196xbf16>
    %cst_23 = arith.constant dense<0.000000e+00> : vector<6x196xf32>
    %34 = tpu.matmul %0, %33, %cst_23 {dimension_numbers = #tpu.dot_dimension_numbers<[1], [0], [0], [1], [0, 0, 1, 1], [], []>} : vector<6x25xbf16>, vector<25x196xbf16>, vector<6x196xf32> -> vector<6x196xf32>
    %35 = vector.broadcast %1 : vector<6x1xf32> to vector<6x196xf32>
    %36 = arith.mulf %34, %35 : vector<6x196xf32>
    %37 = vector.broadcast %2 : vector<6x1xf32> to vector<6x196xf32>
    %38 = arith.addf %36, %37 : vector<6x196xf32>
    %cst_24 = arith.constant 0.000000e+00 : f32
    %39 = vector.broadcast %cst_24 : f32 to vector<6x196xf32>
    %40 = arith.maximumf %38, %39 : vector<6x196xf32>
    %41 = arith.maximumf %31, %40 : vector<6x196xf32>
    %42 = arith.truncf %41 : vector<6x196xf32> to vector<6x196xbf16>
    %c0_25 = arith.constant 0 : index
    %c0_26 = arith.constant 0 : index
    %c0_27 = arith.constant 0 : index
    %43 = vector.load %arg5[%c0_25, %c0_26, %c0_27] : memref<8x6x196xbf16, #tpu.memory_space<vmem>>, vector<1x6x196xbf16>
    %44 = vector.shape_cast %43 : vector<1x6x196xbf16> to vector<6x196xbf16>
    %45 = vector.shape_cast %42 : vector<6x196xbf16> to vector<1x6x196xbf16>
    tpu.vector_store %arg5[%c0_25, %c0_26, %c0_27], %45 {strides = array<i32>} : memref<8x6x196xbf16, #tpu.memory_space<vmem>>, vector<1x6x196xbf16>,
    %c1_28 = arith.constant 1 : index
    %c0_29 = arith.constant 0 : index
    %c0_30 = arith.constant 0 : index
    %c0_31 = arith.constant 0 : index
    %46 = vector.load %arg1[%c1_28, %c0_29, %c0_30, %c0_31] : memref<8x4x25x196xbf16, #tpu.memory_space<vmem>>, vector<1x1x25x196xbf16>
    %47 = vector.shape_cast %46 : vector<1x1x25x196xbf16> to vector<25x196xbf16>
    %cst_32 = arith.constant dense<0.000000e+00> : vector<6x196xf32>
    %48 = tpu.matmul %0, %47, %cst_32 {dimension_numbers = #tpu.dot_dimension_numbers<[1], [0], [0], [1], [0, 0, 1, 1], [], []>} : vector<6x25xbf16>, vector<25x196xbf16>, vector<6x196xf32> -> vector<6x196xf32>
    %49 = vector.broadcast %1 : vector<6x1xf32> to vector<6x196xf32>
    %50 = arith.mulf %48, %49 : vector<6x196xf32>
    %51 = vector.broadcast %2 : vector<6x1xf32> to vector<6x196xf32>
    %52 = arith.addf %50, %51 : vector<6x196xf32>
    %cst_33 = arith.constant 0.000000e+00 : f32
    %53 = vector.broadcast %cst_33 : f32 to vector<6x196xf32>
    %54 = arith.maximumf %52, %53 : vector<6x196xf32>
    %c1_34 = arith.constant 1 : index
    %c1_35 = arith.constant 1 : index
    %c0_36 = arith.constant 0 : index
    %c0_37 = arith.constant 0 : index
    %55 = vector.load %arg1[%c1_34, %c1_35, %c0_36, %c0_37] : memref<8x4x25x196xbf16, #tpu.memory_space<vmem>>, vector<1x1x25x196xbf16>
    %56 = vector.shape_cast %55 : vector<1x1x25x196xbf16> to vector<25x196xbf16>
    %cst_38 = arith.constant dense<0.000000e+00> : vector<6x196xf32>
    %57 = tpu.matmul %0, %56, %cst_38 {dimension_numbers = #tpu.dot_dimension_numbers<[1], [0], [0], [1], [0, 0, 1, 1], [], []>} : vector<6x25xbf16>, vector<25x196xbf16>, vector<6x196xf32> -> vector<6x196xf32>
    %58 = vector.broadcast %1 : vector<6x1xf32> to vector<6x196xf32>
    %59 = arith.mulf %57, %58 : vector<6x196xf32>
    %60 = vector.broadcast %2 : vector<6x1xf32> to vector<6x196xf32>
    %61 = arith.addf %59, %60 : vector<6x196xf32>
    %cst_39 = arith.constant 0.000000e+00 : f32
    %62 = vector.broadcast %cst_39 : f32 to vector<6x196xf32>
    %63 = arith.maximumf %61, %62 : vector<6x196xf32>
    %64 = arith.maximumf %54, %63 : vector<6x196xf32>
    %c1_40 = arith.constant 1 : index
    %c2_41 = arith.constant 2 : index
    %c0_42 = arith.constant 0 : index
    %c0_43 = arith.constant 0 : index
    %65 = vector.load %arg1[%c1_40, %c2_41, %c0_42, %c0_43] : memref<8x4x25x196xbf16, #tpu.memory_space<vmem>>, vector<1x1x25x196xbf16>
    %66 = vector.shape_cast %65 : vector<1x1x25x196xbf16> to vector<25x196xbf16>
    %cst_44 = arith.constant dense<0.000000e+00> : vector<6x196xf32>
    %67 = tpu.matmul %0, %66, %cst_44 {dimension_numbers = #tpu.dot_dimension_numbers<[1], [0], [0], [1], [0, 0, 1, 1], [], []>} : vector<6x25xbf16>, vector<25x196xbf16>, vector<6x196xf32> -> vector<6x196xf32>
    %68 = vector.broadcast %1 : vector<6x1xf32> to vector<6x196xf32>
    %69 = arith.mulf %67, %68 : vector<6x196xf32>
    %70 = vector.broadcast %2 : vector<6x1xf32> to vector<6x196xf32>
    %71 = arith.addf %69, %70 : vector<6x196xf32>
    %cst_45 = arith.constant 0.000000e+00 : f32
    %72 = vector.broadcast %cst_45 : f32 to vector<6x196xf32>
    %73 = arith.maximumf %71, %72 : vector<6x196xf32>
    %74 = arith.maximumf %64, %73 : vector<6x196xf32>
    %c1_46 = arith.constant 1 : index
    %c3_47 = arith.constant 3 : index
    %c0_48 = arith.constant 0 : index
    %c0_49 = arith.constant 0 : index
    %75 = vector.load %arg1[%c1_46, %c3_47, %c0_48, %c0_49] : memref<8x4x25x196xbf16, #tpu.memory_space<vmem>>, vector<1x1x25x196xbf16>
    %76 = vector.shape_cast %75 : vector<1x1x25x196xbf16> to vector<25x196xbf16>
    %cst_50 = arith.constant dense<0.000000e+00> : vector<6x196xf32>
    %77 = tpu.matmul %0, %76, %cst_50 {dimension_numbers = #tpu.dot_dimension_numbers<[1], [0], [0], [1], [0, 0, 1, 1], [], []>} : vector<6x25xbf16>, vector<25x196xbf16>, vector<6x196xf32> -> vector<6x196xf32>
    %78 = vector.broadcast %1 : vector<6x1xf32> to vector<6x196xf32>
    %79 = arith.mulf %77, %78 : vector<6x196xf32>
    %80 = vector.broadcast %2 : vector<6x1xf32> to vector<6x196xf32>
    %81 = arith.addf %79, %80 : vector<6x196xf32>
    %cst_51 = arith.constant 0.000000e+00 : f32
    %82 = vector.broadcast %cst_51 : f32 to vector<6x196xf32>
    %83 = arith.maximumf %81, %82 : vector<6x196xf32>
    %84 = arith.maximumf %74, %83 : vector<6x196xf32>
    %85 = arith.truncf %84 : vector<6x196xf32> to vector<6x196xbf16>
    %c1_52 = arith.constant 1 : index
    %c0_53 = arith.constant 0 : index
    %c0_54 = arith.constant 0 : index
    %86 = vector.load %arg5[%c1_52, %c0_53, %c0_54] : memref<8x6x196xbf16, #tpu.memory_space<vmem>>, vector<1x6x196xbf16>
    %87 = vector.shape_cast %86 : vector<1x6x196xbf16> to vector<6x196xbf16>
    %88 = vector.shape_cast %85 : vector<6x196xbf16> to vector<1x6x196xbf16>
    tpu.vector_store %arg5[%c1_52, %c0_53, %c0_54], %88 {strides = array<i32>} : memref<8x6x196xbf16, #tpu.memory_space<vmem>>, vector<1x6x196xbf16>,
    %c2_55 = arith.constant 2 : index
    %c0_56 = arith.constant 0 : index
    %c0_57 = arith.constant 0 : index
    %c0_58 = arith.constant 0 : index
    %89 = vector.load %arg1[%c2_55, %c0_56, %c0_57, %c0_58] : memref<8x4x25x196xbf16, #tpu.memory_space<vmem>>, vector<1x1x25x196xbf16>
    %90 = vector.shape_cast %89 : vector<1x1x25x196xbf16> to vector<25x196xbf16>
    %cst_59 = arith.constant dense<0.000000e+00> : vector<6x196xf32>
    %91 = tpu.matmul %0, %90, %cst_59 {dimension_numbers = #tpu.dot_dimension_numbers<[1], [0], [0], [1], [0, 0, 1, 1], [], []>} : vector<6x25xbf16>, vector<25x196xbf16>, vector<6x196xf32> -> vector<6x196xf32>
    %92 = vector.broadcast %1 : vector<6x1xf32> to vector<6x196xf32>
    %93 = arith.mulf %91, %92 : vector<6x196xf32>
    %94 = vector.broadcast %2 : vector<6x1xf32> to vector<6x196xf32>
    %95 = arith.addf %93, %94 : vector<6x196xf32>
    %cst_60 = arith.constant 0.000000e+00 : f32
    %96 = vector.broadcast %cst_60 : f32 to vector<6x196xf32>
    %97 = arith.maximumf %95, %96 : vector<6x196xf32>
    %c2_61 = arith.constant 2 : index
    %c1_62 = arith.constant 1 : index
    %c0_63 = arith.constant 0 : index
    %c0_64 = arith.constant 0 : index
    %98 = vector.load %arg1[%c2_61, %c1_62, %c0_63, %c0_64] : memref<8x4x25x196xbf16, #tpu.memory_space<vmem>>, vector<1x1x25x196xbf16>
    %99 = vector.shape_cast %98 : vector<1x1x25x196xbf16> to vector<25x196xbf16>
    %cst_65 = arith.constant dense<0.000000e+00> : vector<6x196xf32>
    %100 = tpu.matmul %0, %99, %cst_65 {dimension_numbers = #tpu.dot_dimension_numbers<[1], [0], [0], [1], [0, 0, 1, 1], [], []>} : vector<6x25xbf16>, vector<25x196xbf16>, vector<6x196xf32> -> vector<6x196xf32>
    %101 = vector.broadcast %1 : vector<6x1xf32> to vector<6x196xf32>
    %102 = arith.mulf %100, %101 : vector<6x196xf32>
    %103 = vector.broadcast %2 : vector<6x1xf32> to vector<6x196xf32>
    %104 = arith.addf %102, %103 : vector<6x196xf32>
    %cst_66 = arith.constant 0.000000e+00 : f32
    %105 = vector.broadcast %cst_66 : f32 to vector<6x196xf32>
    %106 = arith.maximumf %104, %105 : vector<6x196xf32>
    %107 = arith.maximumf %97, %106 : vector<6x196xf32>
    %c2_67 = arith.constant 2 : index
    %c2_68 = arith.constant 2 : index
    %c0_69 = arith.constant 0 : index
    %c0_70 = arith.constant 0 : index
    %108 = vector.load %arg1[%c2_67, %c2_68, %c0_69, %c0_70] : memref<8x4x25x196xbf16, #tpu.memory_space<vmem>>, vector<1x1x25x196xbf16>
    %109 = vector.shape_cast %108 : vector<1x1x25x196xbf16> to vector<25x196xbf16>
    %cst_71 = arith.constant dense<0.000000e+00> : vector<6x196xf32>
    %110 = tpu.matmul %0, %109, %cst_71 {dimension_numbers = #tpu.dot_dimension_numbers<[1], [0], [0], [1], [0, 0, 1, 1], [], []>} : vector<6x25xbf16>, vector<25x196xbf16>, vector<6x196xf32> -> vector<6x196xf32>
    %111 = vector.broadcast %1 : vector<6x1xf32> to vector<6x196xf32>
    %112 = arith.mulf %110, %111 : vector<6x196xf32>
    %113 = vector.broadcast %2 : vector<6x1xf32> to vector<6x196xf32>
    %114 = arith.addf %112, %113 : vector<6x196xf32>
    %cst_72 = arith.constant 0.000000e+00 : f32
    %115 = vector.broadcast %cst_72 : f32 to vector<6x196xf32>
    %116 = arith.maximumf %114, %115 : vector<6x196xf32>
    %117 = arith.maximumf %107, %116 : vector<6x196xf32>
    %c2_73 = arith.constant 2 : index
    %c3_74 = arith.constant 3 : index
    %c0_75 = arith.constant 0 : index
    %c0_76 = arith.constant 0 : index
    %118 = vector.load %arg1[%c2_73, %c3_74, %c0_75, %c0_76] : memref<8x4x25x196xbf16, #tpu.memory_space<vmem>>, vector<1x1x25x196xbf16>
    %119 = vector.shape_cast %118 : vector<1x1x25x196xbf16> to vector<25x196xbf16>
    %cst_77 = arith.constant dense<0.000000e+00> : vector<6x196xf32>
    %120 = tpu.matmul %0, %119, %cst_77 {dimension_numbers = #tpu.dot_dimension_numbers<[1], [0], [0], [1], [0, 0, 1, 1], [], []>} : vector<6x25xbf16>, vector<25x196xbf16>, vector<6x196xf32> -> vector<6x196xf32>
    %121 = vector.broadcast %1 : vector<6x1xf32> to vector<6x196xf32>
    %122 = arith.mulf %120, %121 : vector<6x196xf32>
    %123 = vector.broadcast %2 : vector<6x1xf32> to vector<6x196xf32>
    %124 = arith.addf %122, %123 : vector<6x196xf32>
    %cst_78 = arith.constant 0.000000e+00 : f32
    %125 = vector.broadcast %cst_78 : f32 to vector<6x196xf32>
    %126 = arith.maximumf %124, %125 : vector<6x196xf32>
    %127 = arith.maximumf %117, %126 : vector<6x196xf32>
    %128 = arith.truncf %127 : vector<6x196xf32> to vector<6x196xbf16>
    %c2_79 = arith.constant 2 : index
    %c0_80 = arith.constant 0 : index
    %c0_81 = arith.constant 0 : index
    %129 = vector.load %arg5[%c2_79, %c0_80, %c0_81] : memref<8x6x196xbf16, #tpu.memory_space<vmem>>, vector<1x6x196xbf16>
    %130 = vector.shape_cast %129 : vector<1x6x196xbf16> to vector<6x196xbf16>
    %131 = vector.shape_cast %128 : vector<6x196xbf16> to vector<1x6x196xbf16>
    tpu.vector_store %arg5[%c2_79, %c0_80, %c0_81], %131 {strides = array<i32>} : memref<8x6x196xbf16, #tpu.memory_space<vmem>>, vector<1x6x196xbf16>,
    %c3_82 = arith.constant 3 : index
    %c0_83 = arith.constant 0 : index
    %c0_84 = arith.constant 0 : index
    %c0_85 = arith.constant 0 : index
    %132 = vector.load %arg1[%c3_82, %c0_83, %c0_84, %c0_85] : memref<8x4x25x196xbf16, #tpu.memory_space<vmem>>, vector<1x1x25x196xbf16>
    %133 = vector.shape_cast %132 : vector<1x1x25x196xbf16> to vector<25x196xbf16>
    %cst_86 = arith.constant dense<0.000000e+00> : vector<6x196xf32>
    %134 = tpu.matmul %0, %133, %cst_86 {dimension_numbers = #tpu.dot_dimension_numbers<[1], [0], [0], [1], [0, 0, 1, 1], [], []>} : vector<6x25xbf16>, vector<25x196xbf16>, vector<6x196xf32> -> vector<6x196xf32>
    %135 = vector.broadcast %1 : vector<6x1xf32> to vector<6x196xf32>
    %136 = arith.mulf %134, %135 : vector<6x196xf32>
    %137 = vector.broadcast %2 : vector<6x1xf32> to vector<6x196xf32>
    %138 = arith.addf %136, %137 : vector<6x196xf32>
    %cst_87 = arith.constant 0.000000e+00 : f32
    %139 = vector.broadcast %cst_87 : f32 to vector<6x196xf32>
    %140 = arith.maximumf %138, %139 : vector<6x196xf32>
    %c3_88 = arith.constant 3 : index
    %c1_89 = arith.constant 1 : index
    %c0_90 = arith.constant 0 : index
    %c0_91 = arith.constant 0 : index
    %141 = vector.load %arg1[%c3_88, %c1_89, %c0_90, %c0_91] : memref<8x4x25x196xbf16, #tpu.memory_space<vmem>>, vector<1x1x25x196xbf16>
    %142 = vector.shape_cast %141 : vector<1x1x25x196xbf16> to vector<25x196xbf16>
    %cst_92 = arith.constant dense<0.000000e+00> : vector<6x196xf32>
    %143 = tpu.matmul %0, %142, %cst_92 {dimension_numbers = #tpu.dot_dimension_numbers<[1], [0], [0], [1], [0, 0, 1, 1], [], []>} : vector<6x25xbf16>, vector<25x196xbf16>, vector<6x196xf32> -> vector<6x196xf32>
    %144 = vector.broadcast %1 : vector<6x1xf32> to vector<6x196xf32>
    %145 = arith.mulf %143, %144 : vector<6x196xf32>
    %146 = vector.broadcast %2 : vector<6x1xf32> to vector<6x196xf32>
    %147 = arith.addf %145, %146 : vector<6x196xf32>
    %cst_93 = arith.constant 0.000000e+00 : f32
    %148 = vector.broadcast %cst_93 : f32 to vector<6x196xf32>
    %149 = arith.maximumf %147, %148 : vector<6x196xf32>
    %150 = arith.maximumf %140, %149 : vector<6x196xf32>
    %c3_94 = arith.constant 3 : index
    %c2_95 = arith.constant 2 : index
    %c0_96 = arith.constant 0 : index
    %c0_97 = arith.constant 0 : index
    %151 = vector.load %arg1[%c3_94, %c2_95, %c0_96, %c0_97] : memref<8x4x25x196xbf16, #tpu.memory_space<vmem>>, vector<1x1x25x196xbf16>
    %152 = vector.shape_cast %151 : vector<1x1x25x196xbf16> to vector<25x196xbf16>
    %cst_98 = arith.constant dense<0.000000e+00> : vector<6x196xf32>
    %153 = tpu.matmul %0, %152, %cst_98 {dimension_numbers = #tpu.dot_dimension_numbers<[1], [0], [0], [1], [0, 0, 1, 1], [], []>} : vector<6x25xbf16>, vector<25x196xbf16>, vector<6x196xf32> -> vector<6x196xf32>
    %154 = vector.broadcast %1 : vector<6x1xf32> to vector<6x196xf32>
    %155 = arith.mulf %153, %154 : vector<6x196xf32>
    %156 = vector.broadcast %2 : vector<6x1xf32> to vector<6x196xf32>
    %157 = arith.addf %155, %156 : vector<6x196xf32>
    %cst_99 = arith.constant 0.000000e+00 : f32
    %158 = vector.broadcast %cst_99 : f32 to vector<6x196xf32>
    %159 = arith.maximumf %157, %158 : vector<6x196xf32>
    %160 = arith.maximumf %150, %159 : vector<6x196xf32>
    %c3_100 = arith.constant 3 : index
    %c3_101 = arith.constant 3 : index
    %c0_102 = arith.constant 0 : index
    %c0_103 = arith.constant 0 : index
    %161 = vector.load %arg1[%c3_100, %c3_101, %c0_102, %c0_103] : memref<8x4x25x196xbf16, #tpu.memory_space<vmem>>, vector<1x1x25x196xbf16>
    %162 = vector.shape_cast %161 : vector<1x1x25x196xbf16> to vector<25x196xbf16>
    %cst_104 = arith.constant dense<0.000000e+00> : vector<6x196xf32>
    %163 = tpu.matmul %0, %162, %cst_104 {dimension_numbers = #tpu.dot_dimension_numbers<[1], [0], [0], [1], [0, 0, 1, 1], [], []>} : vector<6x25xbf16>, vector<25x196xbf16>, vector<6x196xf32> -> vector<6x196xf32>
    %164 = vector.broadcast %1 : vector<6x1xf32> to vector<6x196xf32>
    %165 = arith.mulf %163, %164 : vector<6x196xf32>
    %166 = vector.broadcast %2 : vector<6x1xf32> to vector<6x196xf32>
    %167 = arith.addf %165, %166 : vector<6x196xf32>
    %cst_105 = arith.constant 0.000000e+00 : f32
    %168 = vector.broadcast %cst_105 : f32 to vector<6x196xf32>
    %169 = arith.maximumf %167, %168 : vector<6x196xf32>
    %170 = arith.maximumf %160, %169 : vector<6x196xf32>
    %171 = arith.truncf %170 : vector<6x196xf32> to vector<6x196xbf16>
    %c3_106 = arith.constant 3 : index
    %c0_107 = arith.constant 0 : index
    %c0_108 = arith.constant 0 : index
    %172 = vector.load %arg5[%c3_106, %c0_107, %c0_108] : memref<8x6x196xbf16, #tpu.memory_space<vmem>>, vector<1x6x196xbf16>
    %173 = vector.shape_cast %172 : vector<1x6x196xbf16> to vector<6x196xbf16>
    %174 = vector.shape_cast %171 : vector<6x196xbf16> to vector<1x6x196xbf16>
    tpu.vector_store %arg5[%c3_106, %c0_107, %c0_108], %174 {strides = array<i32>} : memref<8x6x196xbf16, #tpu.memory_space<vmem>>, vector<1x6x196xbf16>,
    %c4 = arith.constant 4 : index
    %c0_109 = arith.constant 0 : index
    %c0_110 = arith.constant 0 : index
    %c0_111 = arith.constant 0 : index
    %175 = vector.load %arg1[%c4, %c0_109, %c0_110, %c0_111] : memref<8x4x25x196xbf16, #tpu.memory_space<vmem>>, vector<1x1x25x196xbf16>
    %176 = vector.shape_cast %175 : vector<1x1x25x196xbf16> to vector<25x196xbf16>
    %cst_112 = arith.constant dense<0.000000e+00> : vector<6x196xf32>
    %177 = tpu.matmul %0, %176, %cst_112 {dimension_numbers = #tpu.dot_dimension_numbers<[1], [0], [0], [1], [0, 0, 1, 1], [], []>} : vector<6x25xbf16>, vector<25x196xbf16>, vector<6x196xf32> -> vector<6x196xf32>
    %178 = vector.broadcast %1 : vector<6x1xf32> to vector<6x196xf32>
    %179 = arith.mulf %177, %178 : vector<6x196xf32>
    %180 = vector.broadcast %2 : vector<6x1xf32> to vector<6x196xf32>
    %181 = arith.addf %179, %180 : vector<6x196xf32>
    %cst_113 = arith.constant 0.000000e+00 : f32
    %182 = vector.broadcast %cst_113 : f32 to vector<6x196xf32>
    %183 = arith.maximumf %181, %182 : vector<6x196xf32>
    %c4_114 = arith.constant 4 : index
    %c1_115 = arith.constant 1 : index
    %c0_116 = arith.constant 0 : index
    %c0_117 = arith.constant 0 : index
    %184 = vector.load %arg1[%c4_114, %c1_115, %c0_116, %c0_117] : memref<8x4x25x196xbf16, #tpu.memory_space<vmem>>, vector<1x1x25x196xbf16>
    %185 = vector.shape_cast %184 : vector<1x1x25x196xbf16> to vector<25x196xbf16>
    %cst_118 = arith.constant dense<0.000000e+00> : vector<6x196xf32>
    %186 = tpu.matmul %0, %185, %cst_118 {dimension_numbers = #tpu.dot_dimension_numbers<[1], [0], [0], [1], [0, 0, 1, 1], [], []>} : vector<6x25xbf16>, vector<25x196xbf16>, vector<6x196xf32> -> vector<6x196xf32>
    %187 = vector.broadcast %1 : vector<6x1xf32> to vector<6x196xf32>
    %188 = arith.mulf %186, %187 : vector<6x196xf32>
    %189 = vector.broadcast %2 : vector<6x1xf32> to vector<6x196xf32>
    %190 = arith.addf %188, %189 : vector<6x196xf32>
    %cst_119 = arith.constant 0.000000e+00 : f32
    %191 = vector.broadcast %cst_119 : f32 to vector<6x196xf32>
    %192 = arith.maximumf %190, %191 : vector<6x196xf32>
    %193 = arith.maximumf %183, %192 : vector<6x196xf32>
    %c4_120 = arith.constant 4 : index
    %c2_121 = arith.constant 2 : index
    %c0_122 = arith.constant 0 : index
    %c0_123 = arith.constant 0 : index
    %194 = vector.load %arg1[%c4_120, %c2_121, %c0_122, %c0_123] : memref<8x4x25x196xbf16, #tpu.memory_space<vmem>>, vector<1x1x25x196xbf16>
    %195 = vector.shape_cast %194 : vector<1x1x25x196xbf16> to vector<25x196xbf16>
    %cst_124 = arith.constant dense<0.000000e+00> : vector<6x196xf32>
    %196 = tpu.matmul %0, %195, %cst_124 {dimension_numbers = #tpu.dot_dimension_numbers<[1], [0], [0], [1], [0, 0, 1, 1], [], []>} : vector<6x25xbf16>, vector<25x196xbf16>, vector<6x196xf32> -> vector<6x196xf32>
    %197 = vector.broadcast %1 : vector<6x1xf32> to vector<6x196xf32>
    %198 = arith.mulf %196, %197 : vector<6x196xf32>
    %199 = vector.broadcast %2 : vector<6x1xf32> to vector<6x196xf32>
    %200 = arith.addf %198, %199 : vector<6x196xf32>
    %cst_125 = arith.constant 0.000000e+00 : f32
    %201 = vector.broadcast %cst_125 : f32 to vector<6x196xf32>
    %202 = arith.maximumf %200, %201 : vector<6x196xf32>
    %203 = arith.maximumf %193, %202 : vector<6x196xf32>
    %c4_126 = arith.constant 4 : index
    %c3_127 = arith.constant 3 : index
    %c0_128 = arith.constant 0 : index
    %c0_129 = arith.constant 0 : index
    %204 = vector.load %arg1[%c4_126, %c3_127, %c0_128, %c0_129] : memref<8x4x25x196xbf16, #tpu.memory_space<vmem>>, vector<1x1x25x196xbf16>
    %205 = vector.shape_cast %204 : vector<1x1x25x196xbf16> to vector<25x196xbf16>
    %cst_130 = arith.constant dense<0.000000e+00> : vector<6x196xf32>
    %206 = tpu.matmul %0, %205, %cst_130 {dimension_numbers = #tpu.dot_dimension_numbers<[1], [0], [0], [1], [0, 0, 1, 1], [], []>} : vector<6x25xbf16>, vector<25x196xbf16>, vector<6x196xf32> -> vector<6x196xf32>
    %207 = vector.broadcast %1 : vector<6x1xf32> to vector<6x196xf32>
    %208 = arith.mulf %206, %207 : vector<6x196xf32>
    %209 = vector.broadcast %2 : vector<6x1xf32> to vector<6x196xf32>
    %210 = arith.addf %208, %209 : vector<6x196xf32>
    %cst_131 = arith.constant 0.000000e+00 : f32
    %211 = vector.broadcast %cst_131 : f32 to vector<6x196xf32>
    %212 = arith.maximumf %210, %211 : vector<6x196xf32>
    %213 = arith.maximumf %203, %212 : vector<6x196xf32>
    %214 = arith.truncf %213 : vector<6x196xf32> to vector<6x196xbf16>
    %c4_132 = arith.constant 4 : index
    %c0_133 = arith.constant 0 : index
    %c0_134 = arith.constant 0 : index
    %215 = vector.load %arg5[%c4_132, %c0_133, %c0_134] : memref<8x6x196xbf16, #tpu.memory_space<vmem>>, vector<1x6x196xbf16>
    %216 = vector.shape_cast %215 : vector<1x6x196xbf16> to vector<6x196xbf16>
    %217 = vector.shape_cast %214 : vector<6x196xbf16> to vector<1x6x196xbf16>
    tpu.vector_store %arg5[%c4_132, %c0_133, %c0_134], %217 {strides = array<i32>} : memref<8x6x196xbf16, #tpu.memory_space<vmem>>, vector<1x6x196xbf16>,
    %c5 = arith.constant 5 : index
    %c0_135 = arith.constant 0 : index
    %c0_136 = arith.constant 0 : index
    %c0_137 = arith.constant 0 : index
    %218 = vector.load %arg1[%c5, %c0_135, %c0_136, %c0_137] : memref<8x4x25x196xbf16, #tpu.memory_space<vmem>>, vector<1x1x25x196xbf16>
    %219 = vector.shape_cast %218 : vector<1x1x25x196xbf16> to vector<25x196xbf16>
    %cst_138 = arith.constant dense<0.000000e+00> : vector<6x196xf32>
    %220 = tpu.matmul %0, %219, %cst_138 {dimension_numbers = #tpu.dot_dimension_numbers<[1], [0], [0], [1], [0, 0, 1, 1], [], []>} : vector<6x25xbf16>, vector<25x196xbf16>, vector<6x196xf32> -> vector<6x196xf32>
    %221 = vector.broadcast %1 : vector<6x1xf32> to vector<6x196xf32>
    %222 = arith.mulf %220, %221 : vector<6x196xf32>
    %223 = vector.broadcast %2 : vector<6x1xf32> to vector<6x196xf32>
    %224 = arith.addf %222, %223 : vector<6x196xf32>
    %cst_139 = arith.constant 0.000000e+00 : f32
    %225 = vector.broadcast %cst_139 : f32 to vector<6x196xf32>
    %226 = arith.maximumf %224, %225 : vector<6x196xf32>
    %c5_140 = arith.constant 5 : index
    %c1_141 = arith.constant 1 : index
    %c0_142 = arith.constant 0 : index
    %c0_143 = arith.constant 0 : index
    %227 = vector.load %arg1[%c5_140, %c1_141, %c0_142, %c0_143] : memref<8x4x25x196xbf16, #tpu.memory_space<vmem>>, vector<1x1x25x196xbf16>
    %228 = vector.shape_cast %227 : vector<1x1x25x196xbf16> to vector<25x196xbf16>
    %cst_144 = arith.constant dense<0.000000e+00> : vector<6x196xf32>
    %229 = tpu.matmul %0, %228, %cst_144 {dimension_numbers = #tpu.dot_dimension_numbers<[1], [0], [0], [1], [0, 0, 1, 1], [], []>} : vector<6x25xbf16>, vector<25x196xbf16>, vector<6x196xf32> -> vector<6x196xf32>
    %230 = vector.broadcast %1 : vector<6x1xf32> to vector<6x196xf32>
    %231 = arith.mulf %229, %230 : vector<6x196xf32>
    %232 = vector.broadcast %2 : vector<6x1xf32> to vector<6x196xf32>
    %233 = arith.addf %231, %232 : vector<6x196xf32>
    %cst_145 = arith.constant 0.000000e+00 : f32
    %234 = vector.broadcast %cst_145 : f32 to vector<6x196xf32>
    %235 = arith.maximumf %233, %234 : vector<6x196xf32>
    %236 = arith.maximumf %226, %235 : vector<6x196xf32>
    %c5_146 = arith.constant 5 : index
    %c2_147 = arith.constant 2 : index
    %c0_148 = arith.constant 0 : index
    %c0_149 = arith.constant 0 : index
    %237 = vector.load %arg1[%c5_146, %c2_147, %c0_148, %c0_149] : memref<8x4x25x196xbf16, #tpu.memory_space<vmem>>, vector<1x1x25x196xbf16>
    %238 = vector.shape_cast %237 : vector<1x1x25x196xbf16> to vector<25x196xbf16>
    %cst_150 = arith.constant dense<0.000000e+00> : vector<6x196xf32>
    %239 = tpu.matmul %0, %238, %cst_150 {dimension_numbers = #tpu.dot_dimension_numbers<[1], [0], [0], [1], [0, 0, 1, 1], [], []>} : vector<6x25xbf16>, vector<25x196xbf16>, vector<6x196xf32> -> vector<6x196xf32>
    %240 = vector.broadcast %1 : vector<6x1xf32> to vector<6x196xf32>
    %241 = arith.mulf %239, %240 : vector<6x196xf32>
    %242 = vector.broadcast %2 : vector<6x1xf32> to vector<6x196xf32>
    %243 = arith.addf %241, %242 : vector<6x196xf32>
    %cst_151 = arith.constant 0.000000e+00 : f32
    %244 = vector.broadcast %cst_151 : f32 to vector<6x196xf32>
    %245 = arith.maximumf %243, %244 : vector<6x196xf32>
    %246 = arith.maximumf %236, %245 : vector<6x196xf32>
    %c5_152 = arith.constant 5 : index
    %c3_153 = arith.constant 3 : index
    %c0_154 = arith.constant 0 : index
    %c0_155 = arith.constant 0 : index
    %247 = vector.load %arg1[%c5_152, %c3_153, %c0_154, %c0_155] : memref<8x4x25x196xbf16, #tpu.memory_space<vmem>>, vector<1x1x25x196xbf16>
    %248 = vector.shape_cast %247 : vector<1x1x25x196xbf16> to vector<25x196xbf16>
    %cst_156 = arith.constant dense<0.000000e+00> : vector<6x196xf32>
    %249 = tpu.matmul %0, %248, %cst_156 {dimension_numbers = #tpu.dot_dimension_numbers<[1], [0], [0], [1], [0, 0, 1, 1], [], []>} : vector<6x25xbf16>, vector<25x196xbf16>, vector<6x196xf32> -> vector<6x196xf32>
    %250 = vector.broadcast %1 : vector<6x1xf32> to vector<6x196xf32>
    %251 = arith.mulf %249, %250 : vector<6x196xf32>
    %252 = vector.broadcast %2 : vector<6x1xf32> to vector<6x196xf32>
    %253 = arith.addf %251, %252 : vector<6x196xf32>
    %cst_157 = arith.constant 0.000000e+00 : f32
    %254 = vector.broadcast %cst_157 : f32 to vector<6x196xf32>
    %255 = arith.maximumf %253, %254 : vector<6x196xf32>
    %256 = arith.maximumf %246, %255 : vector<6x196xf32>
    %257 = arith.truncf %256 : vector<6x196xf32> to vector<6x196xbf16>
    %c5_158 = arith.constant 5 : index
    %c0_159 = arith.constant 0 : index
    %c0_160 = arith.constant 0 : index
    %258 = vector.load %arg5[%c5_158, %c0_159, %c0_160] : memref<8x6x196xbf16, #tpu.memory_space<vmem>>, vector<1x6x196xbf16>
    %259 = vector.shape_cast %258 : vector<1x6x196xbf16> to vector<6x196xbf16>
    %260 = vector.shape_cast %257 : vector<6x196xbf16> to vector<1x6x196xbf16>
    tpu.vector_store %arg5[%c5_158, %c0_159, %c0_160], %260 {strides = array<i32>} : memref<8x6x196xbf16, #tpu.memory_space<vmem>>, vector<1x6x196xbf16>,
    %c6 = arith.constant 6 : index
    %c0_161 = arith.constant 0 : index
    %c0_162 = arith.constant 0 : index
    %c0_163 = arith.constant 0 : index
    %261 = vector.load %arg1[%c6, %c0_161, %c0_162, %c0_163] : memref<8x4x25x196xbf16, #tpu.memory_space<vmem>>, vector<1x1x25x196xbf16>
    %262 = vector.shape_cast %261 : vector<1x1x25x196xbf16> to vector<25x196xbf16>
    %cst_164 = arith.constant dense<0.000000e+00> : vector<6x196xf32>
    %263 = tpu.matmul %0, %262, %cst_164 {dimension_numbers = #tpu.dot_dimension_numbers<[1], [0], [0], [1], [0, 0, 1, 1], [], []>} : vector<6x25xbf16>, vector<25x196xbf16>, vector<6x196xf32> -> vector<6x196xf32>
    %264 = vector.broadcast %1 : vector<6x1xf32> to vector<6x196xf32>
    %265 = arith.mulf %263, %264 : vector<6x196xf32>
    %266 = vector.broadcast %2 : vector<6x1xf32> to vector<6x196xf32>
    %267 = arith.addf %265, %266 : vector<6x196xf32>
    %cst_165 = arith.constant 0.000000e+00 : f32
    %268 = vector.broadcast %cst_165 : f32 to vector<6x196xf32>
    %269 = arith.maximumf %267, %268 : vector<6x196xf32>
    %c6_166 = arith.constant 6 : index
    %c1_167 = arith.constant 1 : index
    %c0_168 = arith.constant 0 : index
    %c0_169 = arith.constant 0 : index
    %270 = vector.load %arg1[%c6_166, %c1_167, %c0_168, %c0_169] : memref<8x4x25x196xbf16, #tpu.memory_space<vmem>>, vector<1x1x25x196xbf16>
    %271 = vector.shape_cast %270 : vector<1x1x25x196xbf16> to vector<25x196xbf16>
    %cst_170 = arith.constant dense<0.000000e+00> : vector<6x196xf32>
    %272 = tpu.matmul %0, %271, %cst_170 {dimension_numbers = #tpu.dot_dimension_numbers<[1], [0], [0], [1], [0, 0, 1, 1], [], []>} : vector<6x25xbf16>, vector<25x196xbf16>, vector<6x196xf32> -> vector<6x196xf32>
    %273 = vector.broadcast %1 : vector<6x1xf32> to vector<6x196xf32>
    %274 = arith.mulf %272, %273 : vector<6x196xf32>
    %275 = vector.broadcast %2 : vector<6x1xf32> to vector<6x196xf32>
    %276 = arith.addf %274, %275 : vector<6x196xf32>
    %cst_171 = arith.constant 0.000000e+00 : f32
    %277 = vector.broadcast %cst_171 : f32 to vector<6x196xf32>
    %278 = arith.maximumf %276, %277 : vector<6x196xf32>
    %279 = arith.maximumf %269, %278 : vector<6x196xf32>
    %c6_172 = arith.constant 6 : index
    %c2_173 = arith.constant 2 : index
    %c0_174 = arith.constant 0 : index
    %c0_175 = arith.constant 0 : index
    %280 = vector.load %arg1[%c6_172, %c2_173, %c0_174, %c0_175] : memref<8x4x25x196xbf16, #tpu.memory_space<vmem>>, vector<1x1x25x196xbf16>
    %281 = vector.shape_cast %280 : vector<1x1x25x196xbf16> to vector<25x196xbf16>
    %cst_176 = arith.constant dense<0.000000e+00> : vector<6x196xf32>
    %282 = tpu.matmul %0, %281, %cst_176 {dimension_numbers = #tpu.dot_dimension_numbers<[1], [0], [0], [1], [0, 0, 1, 1], [], []>} : vector<6x25xbf16>, vector<25x196xbf16>, vector<6x196xf32> -> vector<6x196xf32>
    %283 = vector.broadcast %1 : vector<6x1xf32> to vector<6x196xf32>
    %284 = arith.mulf %282, %283 : vector<6x196xf32>
    %285 = vector.broadcast %2 : vector<6x1xf32> to vector<6x196xf32>
    %286 = arith.addf %284, %285 : vector<6x196xf32>
    %cst_177 = arith.constant 0.000000e+00 : f32
    %287 = vector.broadcast %cst_177 : f32 to vector<6x196xf32>
    %288 = arith.maximumf %286, %287 : vector<6x196xf32>
    %289 = arith.maximumf %279, %288 : vector<6x196xf32>
    %c6_178 = arith.constant 6 : index
    %c3_179 = arith.constant 3 : index
    %c0_180 = arith.constant 0 : index
    %c0_181 = arith.constant 0 : index
    %290 = vector.load %arg1[%c6_178, %c3_179, %c0_180, %c0_181] : memref<8x4x25x196xbf16, #tpu.memory_space<vmem>>, vector<1x1x25x196xbf16>
    %291 = vector.shape_cast %290 : vector<1x1x25x196xbf16> to vector<25x196xbf16>
    %cst_182 = arith.constant dense<0.000000e+00> : vector<6x196xf32>
    %292 = tpu.matmul %0, %291, %cst_182 {dimension_numbers = #tpu.dot_dimension_numbers<[1], [0], [0], [1], [0, 0, 1, 1], [], []>} : vector<6x25xbf16>, vector<25x196xbf16>, vector<6x196xf32> -> vector<6x196xf32>
    %293 = vector.broadcast %1 : vector<6x1xf32> to vector<6x196xf32>
    %294 = arith.mulf %292, %293 : vector<6x196xf32>
    %295 = vector.broadcast %2 : vector<6x1xf32> to vector<6x196xf32>
    %296 = arith.addf %294, %295 : vector<6x196xf32>
    %cst_183 = arith.constant 0.000000e+00 : f32
    %297 = vector.broadcast %cst_183 : f32 to vector<6x196xf32>
    %298 = arith.maximumf %296, %297 : vector<6x196xf32>
    %299 = arith.maximumf %289, %298 : vector<6x196xf32>
    %300 = arith.truncf %299 : vector<6x196xf32> to vector<6x196xbf16>
    %c6_184 = arith.constant 6 : index
    %c0_185 = arith.constant 0 : index
    %c0_186 = arith.constant 0 : index
    %301 = vector.load %arg5[%c6_184, %c0_185, %c0_186] : memref<8x6x196xbf16, #tpu.memory_space<vmem>>, vector<1x6x196xbf16>
    %302 = vector.shape_cast %301 : vector<1x6x196xbf16> to vector<6x196xbf16>
    %303 = vector.shape_cast %300 : vector<6x196xbf16> to vector<1x6x196xbf16>
    tpu.vector_store %arg5[%c6_184, %c0_185, %c0_186], %303 {strides = array<i32>} : memref<8x6x196xbf16, #tpu.memory_space<vmem>>, vector<1x6x196xbf16>,
    %c7 = arith.constant 7 : index
    %c0_187 = arith.constant 0 : index
    %c0_188 = arith.constant 0 : index
    %c0_189 = arith.constant 0 : index
    %304 = vector.load %arg1[%c7, %c0_187, %c0_188, %c0_189] : memref<8x4x25x196xbf16, #tpu.memory_space<vmem>>, vector<1x1x25x196xbf16>
    %305 = vector.shape_cast %304 : vector<1x1x25x196xbf16> to vector<25x196xbf16>
    %cst_190 = arith.constant dense<0.000000e+00> : vector<6x196xf32>
    %306 = tpu.matmul %0, %305, %cst_190 {dimension_numbers = #tpu.dot_dimension_numbers<[1], [0], [0], [1], [0, 0, 1, 1], [], []>} : vector<6x25xbf16>, vector<25x196xbf16>, vector<6x196xf32> -> vector<6x196xf32>
    %307 = vector.broadcast %1 : vector<6x1xf32> to vector<6x196xf32>
    %308 = arith.mulf %306, %307 : vector<6x196xf32>
    %309 = vector.broadcast %2 : vector<6x1xf32> to vector<6x196xf32>
    %310 = arith.addf %308, %309 : vector<6x196xf32>
    %cst_191 = arith.constant 0.000000e+00 : f32
    %311 = vector.broadcast %cst_191 : f32 to vector<6x196xf32>
    %312 = arith.maximumf %310, %311 : vector<6x196xf32>
    %c7_192 = arith.constant 7 : index
    %c1_193 = arith.constant 1 : index
    %c0_194 = arith.constant 0 : index
    %c0_195 = arith.constant 0 : index
    %313 = vector.load %arg1[%c7_192, %c1_193, %c0_194, %c0_195] : memref<8x4x25x196xbf16, #tpu.memory_space<vmem>>, vector<1x1x25x196xbf16>
    %314 = vector.shape_cast %313 : vector<1x1x25x196xbf16> to vector<25x196xbf16>
    %cst_196 = arith.constant dense<0.000000e+00> : vector<6x196xf32>
    %315 = tpu.matmul %0, %314, %cst_196 {dimension_numbers = #tpu.dot_dimension_numbers<[1], [0], [0], [1], [0, 0, 1, 1], [], []>} : vector<6x25xbf16>, vector<25x196xbf16>, vector<6x196xf32> -> vector<6x196xf32>
    %316 = vector.broadcast %1 : vector<6x1xf32> to vector<6x196xf32>
    %317 = arith.mulf %315, %316 : vector<6x196xf32>
    %318 = vector.broadcast %2 : vector<6x1xf32> to vector<6x196xf32>
    %319 = arith.addf %317, %318 : vector<6x196xf32>
    %cst_197 = arith.constant 0.000000e+00 : f32
    %320 = vector.broadcast %cst_197 : f32 to vector<6x196xf32>
    %321 = arith.maximumf %319, %320 : vector<6x196xf32>
    %322 = arith.maximumf %312, %321 : vector<6x196xf32>
    %c7_198 = arith.constant 7 : index
    %c2_199 = arith.constant 2 : index
    %c0_200 = arith.constant 0 : index
    %c0_201 = arith.constant 0 : index
    %323 = vector.load %arg1[%c7_198, %c2_199, %c0_200, %c0_201] : memref<8x4x25x196xbf16, #tpu.memory_space<vmem>>, vector<1x1x25x196xbf16>
    %324 = vector.shape_cast %323 : vector<1x1x25x196xbf16> to vector<25x196xbf16>
    %cst_202 = arith.constant dense<0.000000e+00> : vector<6x196xf32>
    %325 = tpu.matmul %0, %324, %cst_202 {dimension_numbers = #tpu.dot_dimension_numbers<[1], [0], [0], [1], [0, 0, 1, 1], [], []>} : vector<6x25xbf16>, vector<25x196xbf16>, vector<6x196xf32> -> vector<6x196xf32>
    %326 = vector.broadcast %1 : vector<6x1xf32> to vector<6x196xf32>
    %327 = arith.mulf %325, %326 : vector<6x196xf32>
    %328 = vector.broadcast %2 : vector<6x1xf32> to vector<6x196xf32>
    %329 = arith.addf %327, %328 : vector<6x196xf32>
    %cst_203 = arith.constant 0.000000e+00 : f32
    %330 = vector.broadcast %cst_203 : f32 to vector<6x196xf32>
    %331 = arith.maximumf %329, %330 : vector<6x196xf32>
    %332 = arith.maximumf %322, %331 : vector<6x196xf32>
    %c7_204 = arith.constant 7 : index
    %c3_205 = arith.constant 3 : index
    %c0_206 = arith.constant 0 : index
    %c0_207 = arith.constant 0 : index
    %333 = vector.load %arg1[%c7_204, %c3_205, %c0_206, %c0_207] : memref<8x4x25x196xbf16, #tpu.memory_space<vmem>>, vector<1x1x25x196xbf16>
    %334 = vector.shape_cast %333 : vector<1x1x25x196xbf16> to vector<25x196xbf16>
    %cst_208 = arith.constant dense<0.000000e+00> : vector<6x196xf32>
    %335 = tpu.matmul %0, %334, %cst_208 {dimension_numbers = #tpu.dot_dimension_numbers<[1], [0], [0], [1], [0, 0, 1, 1], [], []>} : vector<6x25xbf16>, vector<25x196xbf16>, vector<6x196xf32> -> vector<6x196xf32>
    %336 = vector.broadcast %1 : vector<6x1xf32> to vector<6x196xf32>
    %337 = arith.mulf %335, %336 : vector<6x196xf32>
    %338 = vector.broadcast %2 : vector<6x1xf32> to vector<6x196xf32>
    %339 = arith.addf %337, %338 : vector<6x196xf32>
    %cst_209 = arith.constant 0.000000e+00 : f32
    %340 = vector.broadcast %cst_209 : f32 to vector<6x196xf32>
    %341 = arith.maximumf %339, %340 : vector<6x196xf32>
    %342 = arith.maximumf %332, %341 : vector<6x196xf32>
    %343 = arith.truncf %342 : vector<6x196xf32> to vector<6x196xbf16>
    %c7_210 = arith.constant 7 : index
    %c0_211 = arith.constant 0 : index
    %c0_212 = arith.constant 0 : index
    %344 = vector.load %arg5[%c7_210, %c0_211, %c0_212] : memref<8x6x196xbf16, #tpu.memory_space<vmem>>, vector<1x6x196xbf16>
    %345 = vector.shape_cast %344 : vector<1x6x196xbf16> to vector<6x196xbf16>
    %346 = vector.shape_cast %343 : vector<6x196xbf16> to vector<1x6x196xbf16>
    tpu.vector_store %arg5[%c7_210, %c0_211, %c0_212], %346 {strides = array<i32>} : memref<8x6x196xbf16, #tpu.memory_space<vmem>>, vector<1x6x196xbf16>,
    return
  }
  func.func @transform_0(%arg0: i32) -> (i32, i32, i32, i32) {
    %c0_i32 = arith.constant 0 : i32
    %c0_i32_0 = arith.constant 0 : i32
    %c0_i32_1 = arith.constant 0 : i32
    %c0_i32_2 = arith.constant 0 : i32
    return %arg0, %c0_i32, %c0_i32_0, %c0_i32_1 : i32, i32, i32, i32
  }
  func.func @transform_1(%arg0: i32) -> (i32, i32) {
    %c0_i32 = arith.constant 0 : i32
    %c0_i32_0 = arith.constant 0 : i32
    %c0_i32_1 = arith.constant 0 : i32
    return %c0_i32, %c0_i32_0 : i32, i32
  }
  func.func @transform_2(%arg0: i32) -> (i32, i32) {
    %c0_i32 = arith.constant 0 : i32
    %c0_i32_0 = arith.constant 0 : i32
    %c0_i32_1 = arith.constant 0 : i32
    return %c0_i32, %c0_i32_0 : i32, i32
  }
  func.func @transform_3(%arg0: i32) -> (i32, i32) {
    %c0_i32 = arith.constant 0 : i32
    %c0_i32_0 = arith.constant 0 : i32
    %c0_i32_1 = arith.constant 0 : i32
    return %c0_i32, %c0_i32_0 : i32, i32
  }
  func.func @transform_4(%arg0: i32) -> (i32, i32, i32) {
    %c0_i32 = arith.constant 0 : i32
    %c0_i32_0 = arith.constant 0 : i32
    %c0_i32_1 = arith.constant 0 : i32
    return %arg0, %c0_i32, %c0_i32_0 : i32, i32, i32
  }
}

module attributes {stable_mosaic.version = 11 : i64} {
  func.func @conv_bn_relu_pool_kernel(%arg0: i32, %arg1: memref<8x4x150x25xbf16, #tpu.memory_space<vmem>>, %arg2: memref<16x150xbf16, #tpu.memory_space<vmem>>, %arg3: memref<16x1xf32, #tpu.memory_space<vmem>>, %arg4: memref<16x1xf32, #tpu.memory_space<vmem>>, %arg5: memref<8x16x25xbf16, #tpu.memory_space<vmem>>) attributes {dimension_semantics = [#tpu.dimension_semantics<parallel>], iteration_bounds = array<i64: 1>, scalar_prefetch = 0 : i64, scratch_operands = 0 : i64, tpu.core_type = #tpu.core_type<tc>, window_params = [{transform_indices = @transform_0, window_bounds = array<i64: 8, 4, 150, 25>}, {pipeline_mode = #tpu.pipeline_mode<synchronous>, transform_indices = @transform_1, window_bounds = array<i64: 16, 150>}, {pipeline_mode = #tpu.pipeline_mode<synchronous>, transform_indices = @transform_2, window_bounds = array<i64: 16, 1>}, {pipeline_mode = #tpu.pipeline_mode<synchronous>, transform_indices = @transform_3, window_bounds = array<i64: 16, 1>}, {transform_indices = @transform_4, window_bounds = array<i64: 8, 16, 25>}]} {
    %c0 = arith.constant 0 : index
    %c0_0 = arith.constant 0 : index
    %0 = vector.load %arg2[%c0, %c0_0] : memref<16x150xbf16, #tpu.memory_space<vmem>>, vector<16x150xbf16>
    %c0_1 = arith.constant 0 : index
    %c0_2 = arith.constant 0 : index
    %1 = vector.load %arg3[%c0_1, %c0_2] : memref<16x1xf32, #tpu.memory_space<vmem>>, vector<16x1xf32>
    %c0_3 = arith.constant 0 : index
    %c0_4 = arith.constant 0 : index
    %2 = vector.load %arg4[%c0_3, %c0_4] : memref<16x1xf32, #tpu.memory_space<vmem>>, vector<16x1xf32>
    %c0_5 = arith.constant 0 : index
    %c0_6 = arith.constant 0 : index
    %c0_7 = arith.constant 0 : index
    %c0_8 = arith.constant 0 : index
    %3 = vector.load %arg1[%c0_5, %c0_6, %c0_7, %c0_8] : memref<8x4x150x25xbf16, #tpu.memory_space<vmem>>, vector<1x1x150x25xbf16>
    %4 = vector.shape_cast %3 : vector<1x1x150x25xbf16> to vector<150x25xbf16>
    %cst = arith.constant dense<0.000000e+00> : vector<16x25xf32>
    %5 = tpu.matmul %0, %4, %cst {dimension_numbers = #tpu.dot_dimension_numbers<[1], [0], [0], [1], [0, 0, 1, 1], [], []>} : vector<16x150xbf16>, vector<150x25xbf16>, vector<16x25xf32> -> vector<16x25xf32>
    %6 = vector.broadcast %1 : vector<16x1xf32> to vector<16x25xf32>
    %7 = arith.mulf %5, %6 : vector<16x25xf32>
    %8 = vector.broadcast %2 : vector<16x1xf32> to vector<16x25xf32>
    %9 = arith.addf %7, %8 : vector<16x25xf32>
    %cst_9 = arith.constant 0.000000e+00 : f32
    %10 = vector.broadcast %cst_9 : f32 to vector<16x25xf32>
    %11 = arith.maximumf %9, %10 : vector<16x25xf32>
    %c0_10 = arith.constant 0 : index
    %c1 = arith.constant 1 : index
    %c0_11 = arith.constant 0 : index
    %c0_12 = arith.constant 0 : index
    %12 = vector.load %arg1[%c0_10, %c1, %c0_11, %c0_12] : memref<8x4x150x25xbf16, #tpu.memory_space<vmem>>, vector<1x1x150x25xbf16>
    %13 = vector.shape_cast %12 : vector<1x1x150x25xbf16> to vector<150x25xbf16>
    %cst_13 = arith.constant dense<0.000000e+00> : vector<16x25xf32>
    %14 = tpu.matmul %0, %13, %cst_13 {dimension_numbers = #tpu.dot_dimension_numbers<[1], [0], [0], [1], [0, 0, 1, 1], [], []>} : vector<16x150xbf16>, vector<150x25xbf16>, vector<16x25xf32> -> vector<16x25xf32>
    %15 = vector.broadcast %1 : vector<16x1xf32> to vector<16x25xf32>
    %16 = arith.mulf %14, %15 : vector<16x25xf32>
    %17 = vector.broadcast %2 : vector<16x1xf32> to vector<16x25xf32>
    %18 = arith.addf %16, %17 : vector<16x25xf32>
    %cst_14 = arith.constant 0.000000e+00 : f32
    %19 = vector.broadcast %cst_14 : f32 to vector<16x25xf32>
    %20 = arith.maximumf %18, %19 : vector<16x25xf32>
    %21 = arith.maximumf %11, %20 : vector<16x25xf32>
    %c0_15 = arith.constant 0 : index
    %c2 = arith.constant 2 : index
    %c0_16 = arith.constant 0 : index
    %c0_17 = arith.constant 0 : index
    %22 = vector.load %arg1[%c0_15, %c2, %c0_16, %c0_17] : memref<8x4x150x25xbf16, #tpu.memory_space<vmem>>, vector<1x1x150x25xbf16>
    %23 = vector.shape_cast %22 : vector<1x1x150x25xbf16> to vector<150x25xbf16>
    %cst_18 = arith.constant dense<0.000000e+00> : vector<16x25xf32>
    %24 = tpu.matmul %0, %23, %cst_18 {dimension_numbers = #tpu.dot_dimension_numbers<[1], [0], [0], [1], [0, 0, 1, 1], [], []>} : vector<16x150xbf16>, vector<150x25xbf16>, vector<16x25xf32> -> vector<16x25xf32>
    %25 = vector.broadcast %1 : vector<16x1xf32> to vector<16x25xf32>
    %26 = arith.mulf %24, %25 : vector<16x25xf32>
    %27 = vector.broadcast %2 : vector<16x1xf32> to vector<16x25xf32>
    %28 = arith.addf %26, %27 : vector<16x25xf32>
    %cst_19 = arith.constant 0.000000e+00 : f32
    %29 = vector.broadcast %cst_19 : f32 to vector<16x25xf32>
    %30 = arith.maximumf %28, %29 : vector<16x25xf32>
    %31 = arith.maximumf %21, %30 : vector<16x25xf32>
    %c0_20 = arith.constant 0 : index
    %c3 = arith.constant 3 : index
    %c0_21 = arith.constant 0 : index
    %c0_22 = arith.constant 0 : index
    %32 = vector.load %arg1[%c0_20, %c3, %c0_21, %c0_22] : memref<8x4x150x25xbf16, #tpu.memory_space<vmem>>, vector<1x1x150x25xbf16>
    %33 = vector.shape_cast %32 : vector<1x1x150x25xbf16> to vector<150x25xbf16>
    %cst_23 = arith.constant dense<0.000000e+00> : vector<16x25xf32>
    %34 = tpu.matmul %0, %33, %cst_23 {dimension_numbers = #tpu.dot_dimension_numbers<[1], [0], [0], [1], [0, 0, 1, 1], [], []>} : vector<16x150xbf16>, vector<150x25xbf16>, vector<16x25xf32> -> vector<16x25xf32>
    %35 = vector.broadcast %1 : vector<16x1xf32> to vector<16x25xf32>
    %36 = arith.mulf %34, %35 : vector<16x25xf32>
    %37 = vector.broadcast %2 : vector<16x1xf32> to vector<16x25xf32>
    %38 = arith.addf %36, %37 : vector<16x25xf32>
    %cst_24 = arith.constant 0.000000e+00 : f32
    %39 = vector.broadcast %cst_24 : f32 to vector<16x25xf32>
    %40 = arith.maximumf %38, %39 : vector<16x25xf32>
    %41 = arith.maximumf %31, %40 : vector<16x25xf32>
    %42 = arith.truncf %41 : vector<16x25xf32> to vector<16x25xbf16>
    %c0_25 = arith.constant 0 : index
    %c0_26 = arith.constant 0 : index
    %c0_27 = arith.constant 0 : index
    %43 = vector.load %arg5[%c0_25, %c0_26, %c0_27] : memref<8x16x25xbf16, #tpu.memory_space<vmem>>, vector<1x16x25xbf16>
    %44 = vector.shape_cast %43 : vector<1x16x25xbf16> to vector<16x25xbf16>
    %45 = vector.shape_cast %42 : vector<16x25xbf16> to vector<1x16x25xbf16>
    tpu.vector_store %arg5[%c0_25, %c0_26, %c0_27], %45 {strides = array<i32>} : memref<8x16x25xbf16, #tpu.memory_space<vmem>>, vector<1x16x25xbf16>,
    %c1_28 = arith.constant 1 : index
    %c0_29 = arith.constant 0 : index
    %c0_30 = arith.constant 0 : index
    %c0_31 = arith.constant 0 : index
    %46 = vector.load %arg1[%c1_28, %c0_29, %c0_30, %c0_31] : memref<8x4x150x25xbf16, #tpu.memory_space<vmem>>, vector<1x1x150x25xbf16>
    %47 = vector.shape_cast %46 : vector<1x1x150x25xbf16> to vector<150x25xbf16>
    %cst_32 = arith.constant dense<0.000000e+00> : vector<16x25xf32>
    %48 = tpu.matmul %0, %47, %cst_32 {dimension_numbers = #tpu.dot_dimension_numbers<[1], [0], [0], [1], [0, 0, 1, 1], [], []>} : vector<16x150xbf16>, vector<150x25xbf16>, vector<16x25xf32> -> vector<16x25xf32>
    %49 = vector.broadcast %1 : vector<16x1xf32> to vector<16x25xf32>
    %50 = arith.mulf %48, %49 : vector<16x25xf32>
    %51 = vector.broadcast %2 : vector<16x1xf32> to vector<16x25xf32>
    %52 = arith.addf %50, %51 : vector<16x25xf32>
    %cst_33 = arith.constant 0.000000e+00 : f32
    %53 = vector.broadcast %cst_33 : f32 to vector<16x25xf32>
    %54 = arith.maximumf %52, %53 : vector<16x25xf32>
    %c1_34 = arith.constant 1 : index
    %c1_35 = arith.constant 1 : index
    %c0_36 = arith.constant 0 : index
    %c0_37 = arith.constant 0 : index
    %55 = vector.load %arg1[%c1_34, %c1_35, %c0_36, %c0_37] : memref<8x4x150x25xbf16, #tpu.memory_space<vmem>>, vector<1x1x150x25xbf16>
    %56 = vector.shape_cast %55 : vector<1x1x150x25xbf16> to vector<150x25xbf16>
    %cst_38 = arith.constant dense<0.000000e+00> : vector<16x25xf32>
    %57 = tpu.matmul %0, %56, %cst_38 {dimension_numbers = #tpu.dot_dimension_numbers<[1], [0], [0], [1], [0, 0, 1, 1], [], []>} : vector<16x150xbf16>, vector<150x25xbf16>, vector<16x25xf32> -> vector<16x25xf32>
    %58 = vector.broadcast %1 : vector<16x1xf32> to vector<16x25xf32>
    %59 = arith.mulf %57, %58 : vector<16x25xf32>
    %60 = vector.broadcast %2 : vector<16x1xf32> to vector<16x25xf32>
    %61 = arith.addf %59, %60 : vector<16x25xf32>
    %cst_39 = arith.constant 0.000000e+00 : f32
    %62 = vector.broadcast %cst_39 : f32 to vector<16x25xf32>
    %63 = arith.maximumf %61, %62 : vector<16x25xf32>
    %64 = arith.maximumf %54, %63 : vector<16x25xf32>
    %c1_40 = arith.constant 1 : index
    %c2_41 = arith.constant 2 : index
    %c0_42 = arith.constant 0 : index
    %c0_43 = arith.constant 0 : index
    %65 = vector.load %arg1[%c1_40, %c2_41, %c0_42, %c0_43] : memref<8x4x150x25xbf16, #tpu.memory_space<vmem>>, vector<1x1x150x25xbf16>
    %66 = vector.shape_cast %65 : vector<1x1x150x25xbf16> to vector<150x25xbf16>
    %cst_44 = arith.constant dense<0.000000e+00> : vector<16x25xf32>
    %67 = tpu.matmul %0, %66, %cst_44 {dimension_numbers = #tpu.dot_dimension_numbers<[1], [0], [0], [1], [0, 0, 1, 1], [], []>} : vector<16x150xbf16>, vector<150x25xbf16>, vector<16x25xf32> -> vector<16x25xf32>
    %68 = vector.broadcast %1 : vector<16x1xf32> to vector<16x25xf32>
    %69 = arith.mulf %67, %68 : vector<16x25xf32>
    %70 = vector.broadcast %2 : vector<16x1xf32> to vector<16x25xf32>
    %71 = arith.addf %69, %70 : vector<16x25xf32>
    %cst_45 = arith.constant 0.000000e+00 : f32
    %72 = vector.broadcast %cst_45 : f32 to vector<16x25xf32>
    %73 = arith.maximumf %71, %72 : vector<16x25xf32>
    %74 = arith.maximumf %64, %73 : vector<16x25xf32>
    %c1_46 = arith.constant 1 : index
    %c3_47 = arith.constant 3 : index
    %c0_48 = arith.constant 0 : index
    %c0_49 = arith.constant 0 : index
    %75 = vector.load %arg1[%c1_46, %c3_47, %c0_48, %c0_49] : memref<8x4x150x25xbf16, #tpu.memory_space<vmem>>, vector<1x1x150x25xbf16>
    %76 = vector.shape_cast %75 : vector<1x1x150x25xbf16> to vector<150x25xbf16>
    %cst_50 = arith.constant dense<0.000000e+00> : vector<16x25xf32>
    %77 = tpu.matmul %0, %76, %cst_50 {dimension_numbers = #tpu.dot_dimension_numbers<[1], [0], [0], [1], [0, 0, 1, 1], [], []>} : vector<16x150xbf16>, vector<150x25xbf16>, vector<16x25xf32> -> vector<16x25xf32>
    %78 = vector.broadcast %1 : vector<16x1xf32> to vector<16x25xf32>
    %79 = arith.mulf %77, %78 : vector<16x25xf32>
    %80 = vector.broadcast %2 : vector<16x1xf32> to vector<16x25xf32>
    %81 = arith.addf %79, %80 : vector<16x25xf32>
    %cst_51 = arith.constant 0.000000e+00 : f32
    %82 = vector.broadcast %cst_51 : f32 to vector<16x25xf32>
    %83 = arith.maximumf %81, %82 : vector<16x25xf32>
    %84 = arith.maximumf %74, %83 : vector<16x25xf32>
    %85 = arith.truncf %84 : vector<16x25xf32> to vector<16x25xbf16>
    %c1_52 = arith.constant 1 : index
    %c0_53 = arith.constant 0 : index
    %c0_54 = arith.constant 0 : index
    %86 = vector.load %arg5[%c1_52, %c0_53, %c0_54] : memref<8x16x25xbf16, #tpu.memory_space<vmem>>, vector<1x16x25xbf16>
    %87 = vector.shape_cast %86 : vector<1x16x25xbf16> to vector<16x25xbf16>
    %88 = vector.shape_cast %85 : vector<16x25xbf16> to vector<1x16x25xbf16>
    tpu.vector_store %arg5[%c1_52, %c0_53, %c0_54], %88 {strides = array<i32>} : memref<8x16x25xbf16, #tpu.memory_space<vmem>>, vector<1x16x25xbf16>,
    %c2_55 = arith.constant 2 : index
    %c0_56 = arith.constant 0 : index
    %c0_57 = arith.constant 0 : index
    %c0_58 = arith.constant 0 : index
    %89 = vector.load %arg1[%c2_55, %c0_56, %c0_57, %c0_58] : memref<8x4x150x25xbf16, #tpu.memory_space<vmem>>, vector<1x1x150x25xbf16>
    %90 = vector.shape_cast %89 : vector<1x1x150x25xbf16> to vector<150x25xbf16>
    %cst_59 = arith.constant dense<0.000000e+00> : vector<16x25xf32>
    %91 = tpu.matmul %0, %90, %cst_59 {dimension_numbers = #tpu.dot_dimension_numbers<[1], [0], [0], [1], [0, 0, 1, 1], [], []>} : vector<16x150xbf16>, vector<150x25xbf16>, vector<16x25xf32> -> vector<16x25xf32>
    %92 = vector.broadcast %1 : vector<16x1xf32> to vector<16x25xf32>
    %93 = arith.mulf %91, %92 : vector<16x25xf32>
    %94 = vector.broadcast %2 : vector<16x1xf32> to vector<16x25xf32>
    %95 = arith.addf %93, %94 : vector<16x25xf32>
    %cst_60 = arith.constant 0.000000e+00 : f32
    %96 = vector.broadcast %cst_60 : f32 to vector<16x25xf32>
    %97 = arith.maximumf %95, %96 : vector<16x25xf32>
    %c2_61 = arith.constant 2 : index
    %c1_62 = arith.constant 1 : index
    %c0_63 = arith.constant 0 : index
    %c0_64 = arith.constant 0 : index
    %98 = vector.load %arg1[%c2_61, %c1_62, %c0_63, %c0_64] : memref<8x4x150x25xbf16, #tpu.memory_space<vmem>>, vector<1x1x150x25xbf16>
    %99 = vector.shape_cast %98 : vector<1x1x150x25xbf16> to vector<150x25xbf16>
    %cst_65 = arith.constant dense<0.000000e+00> : vector<16x25xf32>
    %100 = tpu.matmul %0, %99, %cst_65 {dimension_numbers = #tpu.dot_dimension_numbers<[1], [0], [0], [1], [0, 0, 1, 1], [], []>} : vector<16x150xbf16>, vector<150x25xbf16>, vector<16x25xf32> -> vector<16x25xf32>
    %101 = vector.broadcast %1 : vector<16x1xf32> to vector<16x25xf32>
    %102 = arith.mulf %100, %101 : vector<16x25xf32>
    %103 = vector.broadcast %2 : vector<16x1xf32> to vector<16x25xf32>
    %104 = arith.addf %102, %103 : vector<16x25xf32>
    %cst_66 = arith.constant 0.000000e+00 : f32
    %105 = vector.broadcast %cst_66 : f32 to vector<16x25xf32>
    %106 = arith.maximumf %104, %105 : vector<16x25xf32>
    %107 = arith.maximumf %97, %106 : vector<16x25xf32>
    %c2_67 = arith.constant 2 : index
    %c2_68 = arith.constant 2 : index
    %c0_69 = arith.constant 0 : index
    %c0_70 = arith.constant 0 : index
    %108 = vector.load %arg1[%c2_67, %c2_68, %c0_69, %c0_70] : memref<8x4x150x25xbf16, #tpu.memory_space<vmem>>, vector<1x1x150x25xbf16>
    %109 = vector.shape_cast %108 : vector<1x1x150x25xbf16> to vector<150x25xbf16>
    %cst_71 = arith.constant dense<0.000000e+00> : vector<16x25xf32>
    %110 = tpu.matmul %0, %109, %cst_71 {dimension_numbers = #tpu.dot_dimension_numbers<[1], [0], [0], [1], [0, 0, 1, 1], [], []>} : vector<16x150xbf16>, vector<150x25xbf16>, vector<16x25xf32> -> vector<16x25xf32>
    %111 = vector.broadcast %1 : vector<16x1xf32> to vector<16x25xf32>
    %112 = arith.mulf %110, %111 : vector<16x25xf32>
    %113 = vector.broadcast %2 : vector<16x1xf32> to vector<16x25xf32>
    %114 = arith.addf %112, %113 : vector<16x25xf32>
    %cst_72 = arith.constant 0.000000e+00 : f32
    %115 = vector.broadcast %cst_72 : f32 to vector<16x25xf32>
    %116 = arith.maximumf %114, %115 : vector<16x25xf32>
    %117 = arith.maximumf %107, %116 : vector<16x25xf32>
    %c2_73 = arith.constant 2 : index
    %c3_74 = arith.constant 3 : index
    %c0_75 = arith.constant 0 : index
    %c0_76 = arith.constant 0 : index
    %118 = vector.load %arg1[%c2_73, %c3_74, %c0_75, %c0_76] : memref<8x4x150x25xbf16, #tpu.memory_space<vmem>>, vector<1x1x150x25xbf16>
    %119 = vector.shape_cast %118 : vector<1x1x150x25xbf16> to vector<150x25xbf16>
    %cst_77 = arith.constant dense<0.000000e+00> : vector<16x25xf32>
    %120 = tpu.matmul %0, %119, %cst_77 {dimension_numbers = #tpu.dot_dimension_numbers<[1], [0], [0], [1], [0, 0, 1, 1], [], []>} : vector<16x150xbf16>, vector<150x25xbf16>, vector<16x25xf32> -> vector<16x25xf32>
    %121 = vector.broadcast %1 : vector<16x1xf32> to vector<16x25xf32>
    %122 = arith.mulf %120, %121 : vector<16x25xf32>
    %123 = vector.broadcast %2 : vector<16x1xf32> to vector<16x25xf32>
    %124 = arith.addf %122, %123 : vector<16x25xf32>
    %cst_78 = arith.constant 0.000000e+00 : f32
    %125 = vector.broadcast %cst_78 : f32 to vector<16x25xf32>
    %126 = arith.maximumf %124, %125 : vector<16x25xf32>
    %127 = arith.maximumf %117, %126 : vector<16x25xf32>
    %128 = arith.truncf %127 : vector<16x25xf32> to vector<16x25xbf16>
    %c2_79 = arith.constant 2 : index
    %c0_80 = arith.constant 0 : index
    %c0_81 = arith.constant 0 : index
    %129 = vector.load %arg5[%c2_79, %c0_80, %c0_81] : memref<8x16x25xbf16, #tpu.memory_space<vmem>>, vector<1x16x25xbf16>
    %130 = vector.shape_cast %129 : vector<1x16x25xbf16> to vector<16x25xbf16>
    %131 = vector.shape_cast %128 : vector<16x25xbf16> to vector<1x16x25xbf16>
    tpu.vector_store %arg5[%c2_79, %c0_80, %c0_81], %131 {strides = array<i32>} : memref<8x16x25xbf16, #tpu.memory_space<vmem>>, vector<1x16x25xbf16>,
    %c3_82 = arith.constant 3 : index
    %c0_83 = arith.constant 0 : index
    %c0_84 = arith.constant 0 : index
    %c0_85 = arith.constant 0 : index
    %132 = vector.load %arg1[%c3_82, %c0_83, %c0_84, %c0_85] : memref<8x4x150x25xbf16, #tpu.memory_space<vmem>>, vector<1x1x150x25xbf16>
    %133 = vector.shape_cast %132 : vector<1x1x150x25xbf16> to vector<150x25xbf16>
    %cst_86 = arith.constant dense<0.000000e+00> : vector<16x25xf32>
    %134 = tpu.matmul %0, %133, %cst_86 {dimension_numbers = #tpu.dot_dimension_numbers<[1], [0], [0], [1], [0, 0, 1, 1], [], []>} : vector<16x150xbf16>, vector<150x25xbf16>, vector<16x25xf32> -> vector<16x25xf32>
    %135 = vector.broadcast %1 : vector<16x1xf32> to vector<16x25xf32>
    %136 = arith.mulf %134, %135 : vector<16x25xf32>
    %137 = vector.broadcast %2 : vector<16x1xf32> to vector<16x25xf32>
    %138 = arith.addf %136, %137 : vector<16x25xf32>
    %cst_87 = arith.constant 0.000000e+00 : f32
    %139 = vector.broadcast %cst_87 : f32 to vector<16x25xf32>
    %140 = arith.maximumf %138, %139 : vector<16x25xf32>
    %c3_88 = arith.constant 3 : index
    %c1_89 = arith.constant 1 : index
    %c0_90 = arith.constant 0 : index
    %c0_91 = arith.constant 0 : index
    %141 = vector.load %arg1[%c3_88, %c1_89, %c0_90, %c0_91] : memref<8x4x150x25xbf16, #tpu.memory_space<vmem>>, vector<1x1x150x25xbf16>
    %142 = vector.shape_cast %141 : vector<1x1x150x25xbf16> to vector<150x25xbf16>
    %cst_92 = arith.constant dense<0.000000e+00> : vector<16x25xf32>
    %143 = tpu.matmul %0, %142, %cst_92 {dimension_numbers = #tpu.dot_dimension_numbers<[1], [0], [0], [1], [0, 0, 1, 1], [], []>} : vector<16x150xbf16>, vector<150x25xbf16>, vector<16x25xf32> -> vector<16x25xf32>
    %144 = vector.broadcast %1 : vector<16x1xf32> to vector<16x25xf32>
    %145 = arith.mulf %143, %144 : vector<16x25xf32>
    %146 = vector.broadcast %2 : vector<16x1xf32> to vector<16x25xf32>
    %147 = arith.addf %145, %146 : vector<16x25xf32>
    %cst_93 = arith.constant 0.000000e+00 : f32
    %148 = vector.broadcast %cst_93 : f32 to vector<16x25xf32>
    %149 = arith.maximumf %147, %148 : vector<16x25xf32>
    %150 = arith.maximumf %140, %149 : vector<16x25xf32>
    %c3_94 = arith.constant 3 : index
    %c2_95 = arith.constant 2 : index
    %c0_96 = arith.constant 0 : index
    %c0_97 = arith.constant 0 : index
    %151 = vector.load %arg1[%c3_94, %c2_95, %c0_96, %c0_97] : memref<8x4x150x25xbf16, #tpu.memory_space<vmem>>, vector<1x1x150x25xbf16>
    %152 = vector.shape_cast %151 : vector<1x1x150x25xbf16> to vector<150x25xbf16>
    %cst_98 = arith.constant dense<0.000000e+00> : vector<16x25xf32>
    %153 = tpu.matmul %0, %152, %cst_98 {dimension_numbers = #tpu.dot_dimension_numbers<[1], [0], [0], [1], [0, 0, 1, 1], [], []>} : vector<16x150xbf16>, vector<150x25xbf16>, vector<16x25xf32> -> vector<16x25xf32>
    %154 = vector.broadcast %1 : vector<16x1xf32> to vector<16x25xf32>
    %155 = arith.mulf %153, %154 : vector<16x25xf32>
    %156 = vector.broadcast %2 : vector<16x1xf32> to vector<16x25xf32>
    %157 = arith.addf %155, %156 : vector<16x25xf32>
    %cst_99 = arith.constant 0.000000e+00 : f32
    %158 = vector.broadcast %cst_99 : f32 to vector<16x25xf32>
    %159 = arith.maximumf %157, %158 : vector<16x25xf32>
    %160 = arith.maximumf %150, %159 : vector<16x25xf32>
    %c3_100 = arith.constant 3 : index
    %c3_101 = arith.constant 3 : index
    %c0_102 = arith.constant 0 : index
    %c0_103 = arith.constant 0 : index
    %161 = vector.load %arg1[%c3_100, %c3_101, %c0_102, %c0_103] : memref<8x4x150x25xbf16, #tpu.memory_space<vmem>>, vector<1x1x150x25xbf16>
    %162 = vector.shape_cast %161 : vector<1x1x150x25xbf16> to vector<150x25xbf16>
    %cst_104 = arith.constant dense<0.000000e+00> : vector<16x25xf32>
    %163 = tpu.matmul %0, %162, %cst_104 {dimension_numbers = #tpu.dot_dimension_numbers<[1], [0], [0], [1], [0, 0, 1, 1], [], []>} : vector<16x150xbf16>, vector<150x25xbf16>, vector<16x25xf32> -> vector<16x25xf32>
    %164 = vector.broadcast %1 : vector<16x1xf32> to vector<16x25xf32>
    %165 = arith.mulf %163, %164 : vector<16x25xf32>
    %166 = vector.broadcast %2 : vector<16x1xf32> to vector<16x25xf32>
    %167 = arith.addf %165, %166 : vector<16x25xf32>
    %cst_105 = arith.constant 0.000000e+00 : f32
    %168 = vector.broadcast %cst_105 : f32 to vector<16x25xf32>
    %169 = arith.maximumf %167, %168 : vector<16x25xf32>
    %170 = arith.maximumf %160, %169 : vector<16x25xf32>
    %171 = arith.truncf %170 : vector<16x25xf32> to vector<16x25xbf16>
    %c3_106 = arith.constant 3 : index
    %c0_107 = arith.constant 0 : index
    %c0_108 = arith.constant 0 : index
    %172 = vector.load %arg5[%c3_106, %c0_107, %c0_108] : memref<8x16x25xbf16, #tpu.memory_space<vmem>>, vector<1x16x25xbf16>
    %173 = vector.shape_cast %172 : vector<1x16x25xbf16> to vector<16x25xbf16>
    %174 = vector.shape_cast %171 : vector<16x25xbf16> to vector<1x16x25xbf16>
    tpu.vector_store %arg5[%c3_106, %c0_107, %c0_108], %174 {strides = array<i32>} : memref<8x16x25xbf16, #tpu.memory_space<vmem>>, vector<1x16x25xbf16>,
    %c4 = arith.constant 4 : index
    %c0_109 = arith.constant 0 : index
    %c0_110 = arith.constant 0 : index
    %c0_111 = arith.constant 0 : index
    %175 = vector.load %arg1[%c4, %c0_109, %c0_110, %c0_111] : memref<8x4x150x25xbf16, #tpu.memory_space<vmem>>, vector<1x1x150x25xbf16>
    %176 = vector.shape_cast %175 : vector<1x1x150x25xbf16> to vector<150x25xbf16>
    %cst_112 = arith.constant dense<0.000000e+00> : vector<16x25xf32>
    %177 = tpu.matmul %0, %176, %cst_112 {dimension_numbers = #tpu.dot_dimension_numbers<[1], [0], [0], [1], [0, 0, 1, 1], [], []>} : vector<16x150xbf16>, vector<150x25xbf16>, vector<16x25xf32> -> vector<16x25xf32>
    %178 = vector.broadcast %1 : vector<16x1xf32> to vector<16x25xf32>
    %179 = arith.mulf %177, %178 : vector<16x25xf32>
    %180 = vector.broadcast %2 : vector<16x1xf32> to vector<16x25xf32>
    %181 = arith.addf %179, %180 : vector<16x25xf32>
    %cst_113 = arith.constant 0.000000e+00 : f32
    %182 = vector.broadcast %cst_113 : f32 to vector<16x25xf32>
    %183 = arith.maximumf %181, %182 : vector<16x25xf32>
    %c4_114 = arith.constant 4 : index
    %c1_115 = arith.constant 1 : index
    %c0_116 = arith.constant 0 : index
    %c0_117 = arith.constant 0 : index
    %184 = vector.load %arg1[%c4_114, %c1_115, %c0_116, %c0_117] : memref<8x4x150x25xbf16, #tpu.memory_space<vmem>>, vector<1x1x150x25xbf16>
    %185 = vector.shape_cast %184 : vector<1x1x150x25xbf16> to vector<150x25xbf16>
    %cst_118 = arith.constant dense<0.000000e+00> : vector<16x25xf32>
    %186 = tpu.matmul %0, %185, %cst_118 {dimension_numbers = #tpu.dot_dimension_numbers<[1], [0], [0], [1], [0, 0, 1, 1], [], []>} : vector<16x150xbf16>, vector<150x25xbf16>, vector<16x25xf32> -> vector<16x25xf32>
    %187 = vector.broadcast %1 : vector<16x1xf32> to vector<16x25xf32>
    %188 = arith.mulf %186, %187 : vector<16x25xf32>
    %189 = vector.broadcast %2 : vector<16x1xf32> to vector<16x25xf32>
    %190 = arith.addf %188, %189 : vector<16x25xf32>
    %cst_119 = arith.constant 0.000000e+00 : f32
    %191 = vector.broadcast %cst_119 : f32 to vector<16x25xf32>
    %192 = arith.maximumf %190, %191 : vector<16x25xf32>
    %193 = arith.maximumf %183, %192 : vector<16x25xf32>
    %c4_120 = arith.constant 4 : index
    %c2_121 = arith.constant 2 : index
    %c0_122 = arith.constant 0 : index
    %c0_123 = arith.constant 0 : index
    %194 = vector.load %arg1[%c4_120, %c2_121, %c0_122, %c0_123] : memref<8x4x150x25xbf16, #tpu.memory_space<vmem>>, vector<1x1x150x25xbf16>
    %195 = vector.shape_cast %194 : vector<1x1x150x25xbf16> to vector<150x25xbf16>
    %cst_124 = arith.constant dense<0.000000e+00> : vector<16x25xf32>
    %196 = tpu.matmul %0, %195, %cst_124 {dimension_numbers = #tpu.dot_dimension_numbers<[1], [0], [0], [1], [0, 0, 1, 1], [], []>} : vector<16x150xbf16>, vector<150x25xbf16>, vector<16x25xf32> -> vector<16x25xf32>
    %197 = vector.broadcast %1 : vector<16x1xf32> to vector<16x25xf32>
    %198 = arith.mulf %196, %197 : vector<16x25xf32>
    %199 = vector.broadcast %2 : vector<16x1xf32> to vector<16x25xf32>
    %200 = arith.addf %198, %199 : vector<16x25xf32>
    %cst_125 = arith.constant 0.000000e+00 : f32
    %201 = vector.broadcast %cst_125 : f32 to vector<16x25xf32>
    %202 = arith.maximumf %200, %201 : vector<16x25xf32>
    %203 = arith.maximumf %193, %202 : vector<16x25xf32>
    %c4_126 = arith.constant 4 : index
    %c3_127 = arith.constant 3 : index
    %c0_128 = arith.constant 0 : index
    %c0_129 = arith.constant 0 : index
    %204 = vector.load %arg1[%c4_126, %c3_127, %c0_128, %c0_129] : memref<8x4x150x25xbf16, #tpu.memory_space<vmem>>, vector<1x1x150x25xbf16>
    %205 = vector.shape_cast %204 : vector<1x1x150x25xbf16> to vector<150x25xbf16>
    %cst_130 = arith.constant dense<0.000000e+00> : vector<16x25xf32>
    %206 = tpu.matmul %0, %205, %cst_130 {dimension_numbers = #tpu.dot_dimension_numbers<[1], [0], [0], [1], [0, 0, 1, 1], [], []>} : vector<16x150xbf16>, vector<150x25xbf16>, vector<16x25xf32> -> vector<16x25xf32>
    %207 = vector.broadcast %1 : vector<16x1xf32> to vector<16x25xf32>
    %208 = arith.mulf %206, %207 : vector<16x25xf32>
    %209 = vector.broadcast %2 : vector<16x1xf32> to vector<16x25xf32>
    %210 = arith.addf %208, %209 : vector<16x25xf32>
    %cst_131 = arith.constant 0.000000e+00 : f32
    %211 = vector.broadcast %cst_131 : f32 to vector<16x25xf32>
    %212 = arith.maximumf %210, %211 : vector<16x25xf32>
    %213 = arith.maximumf %203, %212 : vector<16x25xf32>
    %214 = arith.truncf %213 : vector<16x25xf32> to vector<16x25xbf16>
    %c4_132 = arith.constant 4 : index
    %c0_133 = arith.constant 0 : index
    %c0_134 = arith.constant 0 : index
    %215 = vector.load %arg5[%c4_132, %c0_133, %c0_134] : memref<8x16x25xbf16, #tpu.memory_space<vmem>>, vector<1x16x25xbf16>
    %216 = vector.shape_cast %215 : vector<1x16x25xbf16> to vector<16x25xbf16>
    %217 = vector.shape_cast %214 : vector<16x25xbf16> to vector<1x16x25xbf16>
    tpu.vector_store %arg5[%c4_132, %c0_133, %c0_134], %217 {strides = array<i32>} : memref<8x16x25xbf16, #tpu.memory_space<vmem>>, vector<1x16x25xbf16>,
    %c5 = arith.constant 5 : index
    %c0_135 = arith.constant 0 : index
    %c0_136 = arith.constant 0 : index
    %c0_137 = arith.constant 0 : index
    %218 = vector.load %arg1[%c5, %c0_135, %c0_136, %c0_137] : memref<8x4x150x25xbf16, #tpu.memory_space<vmem>>, vector<1x1x150x25xbf16>
    %219 = vector.shape_cast %218 : vector<1x1x150x25xbf16> to vector<150x25xbf16>
    %cst_138 = arith.constant dense<0.000000e+00> : vector<16x25xf32>
    %220 = tpu.matmul %0, %219, %cst_138 {dimension_numbers = #tpu.dot_dimension_numbers<[1], [0], [0], [1], [0, 0, 1, 1], [], []>} : vector<16x150xbf16>, vector<150x25xbf16>, vector<16x25xf32> -> vector<16x25xf32>
    %221 = vector.broadcast %1 : vector<16x1xf32> to vector<16x25xf32>
    %222 = arith.mulf %220, %221 : vector<16x25xf32>
    %223 = vector.broadcast %2 : vector<16x1xf32> to vector<16x25xf32>
    %224 = arith.addf %222, %223 : vector<16x25xf32>
    %cst_139 = arith.constant 0.000000e+00 : f32
    %225 = vector.broadcast %cst_139 : f32 to vector<16x25xf32>
    %226 = arith.maximumf %224, %225 : vector<16x25xf32>
    %c5_140 = arith.constant 5 : index
    %c1_141 = arith.constant 1 : index
    %c0_142 = arith.constant 0 : index
    %c0_143 = arith.constant 0 : index
    %227 = vector.load %arg1[%c5_140, %c1_141, %c0_142, %c0_143] : memref<8x4x150x25xbf16, #tpu.memory_space<vmem>>, vector<1x1x150x25xbf16>
    %228 = vector.shape_cast %227 : vector<1x1x150x25xbf16> to vector<150x25xbf16>
    %cst_144 = arith.constant dense<0.000000e+00> : vector<16x25xf32>
    %229 = tpu.matmul %0, %228, %cst_144 {dimension_numbers = #tpu.dot_dimension_numbers<[1], [0], [0], [1], [0, 0, 1, 1], [], []>} : vector<16x150xbf16>, vector<150x25xbf16>, vector<16x25xf32> -> vector<16x25xf32>
    %230 = vector.broadcast %1 : vector<16x1xf32> to vector<16x25xf32>
    %231 = arith.mulf %229, %230 : vector<16x25xf32>
    %232 = vector.broadcast %2 : vector<16x1xf32> to vector<16x25xf32>
    %233 = arith.addf %231, %232 : vector<16x25xf32>
    %cst_145 = arith.constant 0.000000e+00 : f32
    %234 = vector.broadcast %cst_145 : f32 to vector<16x25xf32>
    %235 = arith.maximumf %233, %234 : vector<16x25xf32>
    %236 = arith.maximumf %226, %235 : vector<16x25xf32>
    %c5_146 = arith.constant 5 : index
    %c2_147 = arith.constant 2 : index
    %c0_148 = arith.constant 0 : index
    %c0_149 = arith.constant 0 : index
    %237 = vector.load %arg1[%c5_146, %c2_147, %c0_148, %c0_149] : memref<8x4x150x25xbf16, #tpu.memory_space<vmem>>, vector<1x1x150x25xbf16>
    %238 = vector.shape_cast %237 : vector<1x1x150x25xbf16> to vector<150x25xbf16>
    %cst_150 = arith.constant dense<0.000000e+00> : vector<16x25xf32>
    %239 = tpu.matmul %0, %238, %cst_150 {dimension_numbers = #tpu.dot_dimension_numbers<[1], [0], [0], [1], [0, 0, 1, 1], [], []>} : vector<16x150xbf16>, vector<150x25xbf16>, vector<16x25xf32> -> vector<16x25xf32>
    %240 = vector.broadcast %1 : vector<16x1xf32> to vector<16x25xf32>
    %241 = arith.mulf %239, %240 : vector<16x25xf32>
    %242 = vector.broadcast %2 : vector<16x1xf32> to vector<16x25xf32>
    %243 = arith.addf %241, %242 : vector<16x25xf32>
    %cst_151 = arith.constant 0.000000e+00 : f32
    %244 = vector.broadcast %cst_151 : f32 to vector<16x25xf32>
    %245 = arith.maximumf %243, %244 : vector<16x25xf32>
    %246 = arith.maximumf %236, %245 : vector<16x25xf32>
    %c5_152 = arith.constant 5 : index
    %c3_153 = arith.constant 3 : index
    %c0_154 = arith.constant 0 : index
    %c0_155 = arith.constant 0 : index
    %247 = vector.load %arg1[%c5_152, %c3_153, %c0_154, %c0_155] : memref<8x4x150x25xbf16, #tpu.memory_space<vmem>>, vector<1x1x150x25xbf16>
    %248 = vector.shape_cast %247 : vector<1x1x150x25xbf16> to vector<150x25xbf16>
    %cst_156 = arith.constant dense<0.000000e+00> : vector<16x25xf32>
    %249 = tpu.matmul %0, %248, %cst_156 {dimension_numbers = #tpu.dot_dimension_numbers<[1], [0], [0], [1], [0, 0, 1, 1], [], []>} : vector<16x150xbf16>, vector<150x25xbf16>, vector<16x25xf32> -> vector<16x25xf32>
    %250 = vector.broadcast %1 : vector<16x1xf32> to vector<16x25xf32>
    %251 = arith.mulf %249, %250 : vector<16x25xf32>
    %252 = vector.broadcast %2 : vector<16x1xf32> to vector<16x25xf32>
    %253 = arith.addf %251, %252 : vector<16x25xf32>
    %cst_157 = arith.constant 0.000000e+00 : f32
    %254 = vector.broadcast %cst_157 : f32 to vector<16x25xf32>
    %255 = arith.maximumf %253, %254 : vector<16x25xf32>
    %256 = arith.maximumf %246, %255 : vector<16x25xf32>
    %257 = arith.truncf %256 : vector<16x25xf32> to vector<16x25xbf16>
    %c5_158 = arith.constant 5 : index
    %c0_159 = arith.constant 0 : index
    %c0_160 = arith.constant 0 : index
    %258 = vector.load %arg5[%c5_158, %c0_159, %c0_160] : memref<8x16x25xbf16, #tpu.memory_space<vmem>>, vector<1x16x25xbf16>
    %259 = vector.shape_cast %258 : vector<1x16x25xbf16> to vector<16x25xbf16>
    %260 = vector.shape_cast %257 : vector<16x25xbf16> to vector<1x16x25xbf16>
    tpu.vector_store %arg5[%c5_158, %c0_159, %c0_160], %260 {strides = array<i32>} : memref<8x16x25xbf16, #tpu.memory_space<vmem>>, vector<1x16x25xbf16>,
    %c6 = arith.constant 6 : index
    %c0_161 = arith.constant 0 : index
    %c0_162 = arith.constant 0 : index
    %c0_163 = arith.constant 0 : index
    %261 = vector.load %arg1[%c6, %c0_161, %c0_162, %c0_163] : memref<8x4x150x25xbf16, #tpu.memory_space<vmem>>, vector<1x1x150x25xbf16>
    %262 = vector.shape_cast %261 : vector<1x1x150x25xbf16> to vector<150x25xbf16>
    %cst_164 = arith.constant dense<0.000000e+00> : vector<16x25xf32>
    %263 = tpu.matmul %0, %262, %cst_164 {dimension_numbers = #tpu.dot_dimension_numbers<[1], [0], [0], [1], [0, 0, 1, 1], [], []>} : vector<16x150xbf16>, vector<150x25xbf16>, vector<16x25xf32> -> vector<16x25xf32>
    %264 = vector.broadcast %1 : vector<16x1xf32> to vector<16x25xf32>
    %265 = arith.mulf %263, %264 : vector<16x25xf32>
    %266 = vector.broadcast %2 : vector<16x1xf32> to vector<16x25xf32>
    %267 = arith.addf %265, %266 : vector<16x25xf32>
    %cst_165 = arith.constant 0.000000e+00 : f32
    %268 = vector.broadcast %cst_165 : f32 to vector<16x25xf32>
    %269 = arith.maximumf %267, %268 : vector<16x25xf32>
    %c6_166 = arith.constant 6 : index
    %c1_167 = arith.constant 1 : index
    %c0_168 = arith.constant 0 : index
    %c0_169 = arith.constant 0 : index
    %270 = vector.load %arg1[%c6_166, %c1_167, %c0_168, %c0_169] : memref<8x4x150x25xbf16, #tpu.memory_space<vmem>>, vector<1x1x150x25xbf16>
    %271 = vector.shape_cast %270 : vector<1x1x150x25xbf16> to vector<150x25xbf16>
    %cst_170 = arith.constant dense<0.000000e+00> : vector<16x25xf32>
    %272 = tpu.matmul %0, %271, %cst_170 {dimension_numbers = #tpu.dot_dimension_numbers<[1], [0], [0], [1], [0, 0, 1, 1], [], []>} : vector<16x150xbf16>, vector<150x25xbf16>, vector<16x25xf32> -> vector<16x25xf32>
    %273 = vector.broadcast %1 : vector<16x1xf32> to vector<16x25xf32>
    %274 = arith.mulf %272, %273 : vector<16x25xf32>
    %275 = vector.broadcast %2 : vector<16x1xf32> to vector<16x25xf32>
    %276 = arith.addf %274, %275 : vector<16x25xf32>
    %cst_171 = arith.constant 0.000000e+00 : f32
    %277 = vector.broadcast %cst_171 : f32 to vector<16x25xf32>
    %278 = arith.maximumf %276, %277 : vector<16x25xf32>
    %279 = arith.maximumf %269, %278 : vector<16x25xf32>
    %c6_172 = arith.constant 6 : index
    %c2_173 = arith.constant 2 : index
    %c0_174 = arith.constant 0 : index
    %c0_175 = arith.constant 0 : index
    %280 = vector.load %arg1[%c6_172, %c2_173, %c0_174, %c0_175] : memref<8x4x150x25xbf16, #tpu.memory_space<vmem>>, vector<1x1x150x25xbf16>
    %281 = vector.shape_cast %280 : vector<1x1x150x25xbf16> to vector<150x25xbf16>
    %cst_176 = arith.constant dense<0.000000e+00> : vector<16x25xf32>
    %282 = tpu.matmul %0, %281, %cst_176 {dimension_numbers = #tpu.dot_dimension_numbers<[1], [0], [0], [1], [0, 0, 1, 1], [], []>} : vector<16x150xbf16>, vector<150x25xbf16>, vector<16x25xf32> -> vector<16x25xf32>
    %283 = vector.broadcast %1 : vector<16x1xf32> to vector<16x25xf32>
    %284 = arith.mulf %282, %283 : vector<16x25xf32>
    %285 = vector.broadcast %2 : vector<16x1xf32> to vector<16x25xf32>
    %286 = arith.addf %284, %285 : vector<16x25xf32>
    %cst_177 = arith.constant 0.000000e+00 : f32
    %287 = vector.broadcast %cst_177 : f32 to vector<16x25xf32>
    %288 = arith.maximumf %286, %287 : vector<16x25xf32>
    %289 = arith.maximumf %279, %288 : vector<16x25xf32>
    %c6_178 = arith.constant 6 : index
    %c3_179 = arith.constant 3 : index
    %c0_180 = arith.constant 0 : index
    %c0_181 = arith.constant 0 : index
    %290 = vector.load %arg1[%c6_178, %c3_179, %c0_180, %c0_181] : memref<8x4x150x25xbf16, #tpu.memory_space<vmem>>, vector<1x1x150x25xbf16>
    %291 = vector.shape_cast %290 : vector<1x1x150x25xbf16> to vector<150x25xbf16>
    %cst_182 = arith.constant dense<0.000000e+00> : vector<16x25xf32>
    %292 = tpu.matmul %0, %291, %cst_182 {dimension_numbers = #tpu.dot_dimension_numbers<[1], [0], [0], [1], [0, 0, 1, 1], [], []>} : vector<16x150xbf16>, vector<150x25xbf16>, vector<16x25xf32> -> vector<16x25xf32>
    %293 = vector.broadcast %1 : vector<16x1xf32> to vector<16x25xf32>
    %294 = arith.mulf %292, %293 : vector<16x25xf32>
    %295 = vector.broadcast %2 : vector<16x1xf32> to vector<16x25xf32>
    %296 = arith.addf %294, %295 : vector<16x25xf32>
    %cst_183 = arith.constant 0.000000e+00 : f32
    %297 = vector.broadcast %cst_183 : f32 to vector<16x25xf32>
    %298 = arith.maximumf %296, %297 : vector<16x25xf32>
    %299 = arith.maximumf %289, %298 : vector<16x25xf32>
    %300 = arith.truncf %299 : vector<16x25xf32> to vector<16x25xbf16>
    %c6_184 = arith.constant 6 : index
    %c0_185 = arith.constant 0 : index
    %c0_186 = arith.constant 0 : index
    %301 = vector.load %arg5[%c6_184, %c0_185, %c0_186] : memref<8x16x25xbf16, #tpu.memory_space<vmem>>, vector<1x16x25xbf16>
    %302 = vector.shape_cast %301 : vector<1x16x25xbf16> to vector<16x25xbf16>
    %303 = vector.shape_cast %300 : vector<16x25xbf16> to vector<1x16x25xbf16>
    tpu.vector_store %arg5[%c6_184, %c0_185, %c0_186], %303 {strides = array<i32>} : memref<8x16x25xbf16, #tpu.memory_space<vmem>>, vector<1x16x25xbf16>,
    %c7 = arith.constant 7 : index
    %c0_187 = arith.constant 0 : index
    %c0_188 = arith.constant 0 : index
    %c0_189 = arith.constant 0 : index
    %304 = vector.load %arg1[%c7, %c0_187, %c0_188, %c0_189] : memref<8x4x150x25xbf16, #tpu.memory_space<vmem>>, vector<1x1x150x25xbf16>
    %305 = vector.shape_cast %304 : vector<1x1x150x25xbf16> to vector<150x25xbf16>
    %cst_190 = arith.constant dense<0.000000e+00> : vector<16x25xf32>
    %306 = tpu.matmul %0, %305, %cst_190 {dimension_numbers = #tpu.dot_dimension_numbers<[1], [0], [0], [1], [0, 0, 1, 1], [], []>} : vector<16x150xbf16>, vector<150x25xbf16>, vector<16x25xf32> -> vector<16x25xf32>
    %307 = vector.broadcast %1 : vector<16x1xf32> to vector<16x25xf32>
    %308 = arith.mulf %306, %307 : vector<16x25xf32>
    %309 = vector.broadcast %2 : vector<16x1xf32> to vector<16x25xf32>
    %310 = arith.addf %308, %309 : vector<16x25xf32>
    %cst_191 = arith.constant 0.000000e+00 : f32
    %311 = vector.broadcast %cst_191 : f32 to vector<16x25xf32>
    %312 = arith.maximumf %310, %311 : vector<16x25xf32>
    %c7_192 = arith.constant 7 : index
    %c1_193 = arith.constant 1 : index
    %c0_194 = arith.constant 0 : index
    %c0_195 = arith.constant 0 : index
    %313 = vector.load %arg1[%c7_192, %c1_193, %c0_194, %c0_195] : memref<8x4x150x25xbf16, #tpu.memory_space<vmem>>, vector<1x1x150x25xbf16>
    %314 = vector.shape_cast %313 : vector<1x1x150x25xbf16> to vector<150x25xbf16>
    %cst_196 = arith.constant dense<0.000000e+00> : vector<16x25xf32>
    %315 = tpu.matmul %0, %314, %cst_196 {dimension_numbers = #tpu.dot_dimension_numbers<[1], [0], [0], [1], [0, 0, 1, 1], [], []>} : vector<16x150xbf16>, vector<150x25xbf16>, vector<16x25xf32> -> vector<16x25xf32>
    %316 = vector.broadcast %1 : vector<16x1xf32> to vector<16x25xf32>
    %317 = arith.mulf %315, %316 : vector<16x25xf32>
    %318 = vector.broadcast %2 : vector<16x1xf32> to vector<16x25xf32>
    %319 = arith.addf %317, %318 : vector<16x25xf32>
    %cst_197 = arith.constant 0.000000e+00 : f32
    %320 = vector.broadcast %cst_197 : f32 to vector<16x25xf32>
    %321 = arith.maximumf %319, %320 : vector<16x25xf32>
    %322 = arith.maximumf %312, %321 : vector<16x25xf32>
    %c7_198 = arith.constant 7 : index
    %c2_199 = arith.constant 2 : index
    %c0_200 = arith.constant 0 : index
    %c0_201 = arith.constant 0 : index
    %323 = vector.load %arg1[%c7_198, %c2_199, %c0_200, %c0_201] : memref<8x4x150x25xbf16, #tpu.memory_space<vmem>>, vector<1x1x150x25xbf16>
    %324 = vector.shape_cast %323 : vector<1x1x150x25xbf16> to vector<150x25xbf16>
    %cst_202 = arith.constant dense<0.000000e+00> : vector<16x25xf32>
    %325 = tpu.matmul %0, %324, %cst_202 {dimension_numbers = #tpu.dot_dimension_numbers<[1], [0], [0], [1], [0, 0, 1, 1], [], []>} : vector<16x150xbf16>, vector<150x25xbf16>, vector<16x25xf32> -> vector<16x25xf32>
    %326 = vector.broadcast %1 : vector<16x1xf32> to vector<16x25xf32>
    %327 = arith.mulf %325, %326 : vector<16x25xf32>
    %328 = vector.broadcast %2 : vector<16x1xf32> to vector<16x25xf32>
    %329 = arith.addf %327, %328 : vector<16x25xf32>
    %cst_203 = arith.constant 0.000000e+00 : f32
    %330 = vector.broadcast %cst_203 : f32 to vector<16x25xf32>
    %331 = arith.maximumf %329, %330 : vector<16x25xf32>
    %332 = arith.maximumf %322, %331 : vector<16x25xf32>
    %c7_204 = arith.constant 7 : index
    %c3_205 = arith.constant 3 : index
    %c0_206 = arith.constant 0 : index
    %c0_207 = arith.constant 0 : index
    %333 = vector.load %arg1[%c7_204, %c3_205, %c0_206, %c0_207] : memref<8x4x150x25xbf16, #tpu.memory_space<vmem>>, vector<1x1x150x25xbf16>
    %334 = vector.shape_cast %333 : vector<1x1x150x25xbf16> to vector<150x25xbf16>
    %cst_208 = arith.constant dense<0.000000e+00> : vector<16x25xf32>
    %335 = tpu.matmul %0, %334, %cst_208 {dimension_numbers = #tpu.dot_dimension_numbers<[1], [0], [0], [1], [0, 0, 1, 1], [], []>} : vector<16x150xbf16>, vector<150x25xbf16>, vector<16x25xf32> -> vector<16x25xf32>
    %336 = vector.broadcast %1 : vector<16x1xf32> to vector<16x25xf32>
    %337 = arith.mulf %335, %336 : vector<16x25xf32>
    %338 = vector.broadcast %2 : vector<16x1xf32> to vector<16x25xf32>
    %339 = arith.addf %337, %338 : vector<16x25xf32>
    %cst_209 = arith.constant 0.000000e+00 : f32
    %340 = vector.broadcast %cst_209 : f32 to vector<16x25xf32>
    %341 = arith.maximumf %339, %340 : vector<16x25xf32>
    %342 = arith.maximumf %332, %341 : vector<16x25xf32>
    %343 = arith.truncf %342 : vector<16x25xf32> to vector<16x25xbf16>
    %c7_210 = arith.constant 7 : index
    %c0_211 = arith.constant 0 : index
    %c0_212 = arith.constant 0 : index
    %344 = vector.load %arg5[%c7_210, %c0_211, %c0_212] : memref<8x16x25xbf16, #tpu.memory_space<vmem>>, vector<1x16x25xbf16>
    %345 = vector.shape_cast %344 : vector<1x16x25xbf16> to vector<16x25xbf16>
    %346 = vector.shape_cast %343 : vector<16x25xbf16> to vector<1x16x25xbf16>
    tpu.vector_store %arg5[%c7_210, %c0_211, %c0_212], %346 {strides = array<i32>} : memref<8x16x25xbf16, #tpu.memory_space<vmem>>, vector<1x16x25xbf16>,
    return
  }
  func.func @transform_0(%arg0: i32) -> (i32, i32, i32, i32) {
    %c0_i32 = arith.constant 0 : i32
    %c0_i32_0 = arith.constant 0 : i32
    %c0_i32_1 = arith.constant 0 : i32
    %c0_i32_2 = arith.constant 0 : i32
    return %arg0, %c0_i32, %c0_i32_0, %c0_i32_1 : i32, i32, i32, i32
  }
  func.func @transform_1(%arg0: i32) -> (i32, i32) {
    %c0_i32 = arith.constant 0 : i32
    %c0_i32_0 = arith.constant 0 : i32
    %c0_i32_1 = arith.constant 0 : i32
    return %c0_i32, %c0_i32_0 : i32, i32
  }
  func.func @transform_2(%arg0: i32) -> (i32, i32) {
    %c0_i32 = arith.constant 0 : i32
    %c0_i32_0 = arith.constant 0 : i32
    %c0_i32_1 = arith.constant 0 : i32
    return %c0_i32, %c0_i32_0 : i32, i32
  }
  func.func @transform_3(%arg0: i32) -> (i32, i32) {
    %c0_i32 = arith.constant 0 : i32
    %c0_i32_0 = arith.constant 0 : i32
    %c0_i32_1 = arith.constant 0 : i32
    return %c0_i32, %c0_i32_0 : i32, i32
  }
  func.func @transform_4(%arg0: i32) -> (i32, i32, i32) {
    %c0_i32 = arith.constant 0 : i32
    %c0_i32_0 = arith.constant 0 : i32
    %c0_i32_1 = arith.constant 0 : i32
    return %arg0, %c0_i32, %c0_i32_0 : i32, i32, i32
  }
}

module attributes {stable_mosaic.version = 11 : i64} {
  func.func @fc_stack_kernel(%arg0: i32, %arg1: memref<8x400xbf16, #tpu.memory_space<vmem>>, %arg2: memref<400x128xbf16, #tpu.memory_space<vmem>>, %arg3: memref<1x128xf32, #tpu.memory_space<vmem>>, %arg4: memref<1x128xf32, #tpu.memory_space<vmem>>, %arg5: memref<128x128xbf16, #tpu.memory_space<vmem>>, %arg6: memref<1x128xf32, #tpu.memory_space<vmem>>, %arg7: memref<1x128xf32, #tpu.memory_space<vmem>>, %arg8: memref<128x128xbf16, #tpu.memory_space<vmem>>, %arg9: memref<1x128xf32, #tpu.memory_space<vmem>>, %arg10: memref<8x128xf32, #tpu.memory_space<vmem>>) attributes {dimension_semantics = [#tpu.dimension_semantics<parallel>], iteration_bounds = array<i64: 1>, scalar_prefetch = 0 : i64, scratch_operands = 0 : i64, tpu.core_type = #tpu.core_type<tc>, window_params = [{transform_indices = @transform_0, window_bounds = array<i64: 8, 400>}, {pipeline_mode = #tpu.pipeline_mode<synchronous>, transform_indices = @transform_1, window_bounds = array<i64: 400, 128>}, {pipeline_mode = #tpu.pipeline_mode<synchronous>, transform_indices = @transform_2, window_bounds = array<i64: 1, 128>}, {pipeline_mode = #tpu.pipeline_mode<synchronous>, transform_indices = @transform_3, window_bounds = array<i64: 1, 128>}, {pipeline_mode = #tpu.pipeline_mode<synchronous>, transform_indices = @transform_4, window_bounds = array<i64: 128, 128>}, {pipeline_mode = #tpu.pipeline_mode<synchronous>, transform_indices = @transform_5, window_bounds = array<i64: 1, 128>}, {pipeline_mode = #tpu.pipeline_mode<synchronous>, transform_indices = @transform_6, window_bounds = array<i64: 1, 128>}, {pipeline_mode = #tpu.pipeline_mode<synchronous>, transform_indices = @transform_7, window_bounds = array<i64: 128, 128>}, {pipeline_mode = #tpu.pipeline_mode<synchronous>, transform_indices = @transform_8, window_bounds = array<i64: 1, 128>}, {transform_indices = @transform_9, window_bounds = array<i64: 8, 128>}]} {
    %c0 = arith.constant 0 : index
    %c0_0 = arith.constant 0 : index
    %0 = vector.load %arg1[%c0, %c0_0] : memref<8x400xbf16, #tpu.memory_space<vmem>>, vector<8x400xbf16>
    %c0_1 = arith.constant 0 : index
    %c0_2 = arith.constant 0 : index
    %1 = vector.load %arg2[%c0_1, %c0_2] : memref<400x128xbf16, #tpu.memory_space<vmem>>, vector<400x128xbf16>
    %cst = arith.constant dense<0.000000e+00> : vector<8x128xf32>
    %2 = tpu.matmul %0, %1, %cst {dimension_numbers = #tpu.dot_dimension_numbers<[1], [0], [0], [1], [0, 0, 1, 1], [], []>} : vector<8x400xbf16>, vector<400x128xbf16>, vector<8x128xf32> -> vector<8x128xf32>
    %c0_3 = arith.constant 0 : index
    %c0_4 = arith.constant 0 : index
    %3 = vector.load %arg3[%c0_3, %c0_4] : memref<1x128xf32, #tpu.memory_space<vmem>>, vector<1x128xf32>
    %4 = vector.broadcast %3 : vector<1x128xf32> to vector<8x128xf32>
    %5 = arith.mulf %2, %4 : vector<8x128xf32>
    %c0_5 = arith.constant 0 : index
    %c0_6 = arith.constant 0 : index
    %6 = vector.load %arg4[%c0_5, %c0_6] : memref<1x128xf32, #tpu.memory_space<vmem>>, vector<1x128xf32>
    %7 = vector.broadcast %6 : vector<1x128xf32> to vector<8x128xf32>
    %8 = arith.addf %5, %7 : vector<8x128xf32>
    %cst_7 = arith.constant 0.000000e+00 : f32
    %9 = vector.broadcast %cst_7 : f32 to vector<8x128xf32>
    %10 = arith.maximumf %8, %9 : vector<8x128xf32>
    %11 = arith.truncf %10 : vector<8x128xf32> to vector<8x128xbf16>
    %c0_8 = arith.constant 0 : index
    %c0_9 = arith.constant 0 : index
    %12 = vector.load %arg5[%c0_8, %c0_9] : memref<128x128xbf16, #tpu.memory_space<vmem>>, vector<128x128xbf16>
    %cst_10 = arith.constant dense<0.000000e+00> : vector<8x128xf32>
    %13 = tpu.matmul %11, %12, %cst_10 {dimension_numbers = #tpu.dot_dimension_numbers<[1], [0], [0], [1], [0, 0, 1, 1], [], []>} : vector<8x128xbf16>, vector<128x128xbf16>, vector<8x128xf32> -> vector<8x128xf32>
    %c0_11 = arith.constant 0 : index
    %c0_12 = arith.constant 0 : index
    %14 = vector.load %arg6[%c0_11, %c0_12] : memref<1x128xf32, #tpu.memory_space<vmem>>, vector<1x128xf32>
    %15 = vector.broadcast %14 : vector<1x128xf32> to vector<8x128xf32>
    %16 = arith.mulf %13, %15 : vector<8x128xf32>
    %c0_13 = arith.constant 0 : index
    %c0_14 = arith.constant 0 : index
    %17 = vector.load %arg7[%c0_13, %c0_14] : memref<1x128xf32, #tpu.memory_space<vmem>>, vector<1x128xf32>
    %18 = vector.broadcast %17 : vector<1x128xf32> to vector<8x128xf32>
    %19 = arith.addf %16, %18 : vector<8x128xf32>
    %cst_15 = arith.constant 0.000000e+00 : f32
    %20 = vector.broadcast %cst_15 : f32 to vector<8x128xf32>
    %21 = arith.maximumf %19, %20 : vector<8x128xf32>
    %22 = arith.truncf %21 : vector<8x128xf32> to vector<8x128xbf16>
    %c0_16 = arith.constant 0 : index
    %c0_17 = arith.constant 0 : index
    %23 = vector.load %arg8[%c0_16, %c0_17] : memref<128x128xbf16, #tpu.memory_space<vmem>>, vector<128x128xbf16>
    %cst_18 = arith.constant dense<0.000000e+00> : vector<8x128xf32>
    %24 = tpu.matmul %22, %23, %cst_18 {dimension_numbers = #tpu.dot_dimension_numbers<[1], [0], [0], [1], [0, 0, 1, 1], [], []>} : vector<8x128xbf16>, vector<128x128xbf16>, vector<8x128xf32> -> vector<8x128xf32>
    %c0_19 = arith.constant 0 : index
    %c0_20 = arith.constant 0 : index
    %25 = vector.load %arg9[%c0_19, %c0_20] : memref<1x128xf32, #tpu.memory_space<vmem>>, vector<1x128xf32>
    %26 = vector.broadcast %25 : vector<1x128xf32> to vector<8x128xf32>
    %27 = arith.addf %24, %26 : vector<8x128xf32>
    %28 = tpu.iota {dimensions = array<i32: 1>} : vector<8x128xi32>
    %c10_i32 = arith.constant 10 : i32
    %29 = vector.broadcast %c10_i32 : i32 to vector<8x128xi32>
    %30 = arith.cmpi slt, %28, %29 : vector<8x128xi32>
    %cst_21 = arith.constant -1.000000e+30 : f32
    %31 = vector.broadcast %cst_21 : f32 to vector<8x128xf32>
    %32 = arith.select %30, %27, %31 : vector<8x128xi1>, vector<8x128xf32>
    %cst_22 = arith.constant dense<0xFF800000> : vector<8xf32>
    %33 = vector.multi_reduction <maximumf>, %32, %cst_22 [1] : vector<8x128xf32> to vector<8xf32>
    %34 = vector.shape_cast %33 : vector<8xf32> to vector<8x1xf32>
    %35 = vector.broadcast %34 : vector<8x1xf32> to vector<8x128xf32>
    %36 = arith.subf %32, %35 : vector<8x128xf32>
    %37 = math.exp %36 : vector<8x128xf32>
    %cst_23 = arith.constant 0.000000e+00 : f32
    %38 = vector.broadcast %cst_23 : f32 to vector<8x128xf32>
    %39 = arith.select %30, %37, %38 : vector<8x128xi1>, vector<8x128xf32>
    %cst_24 = arith.constant dense<0.000000e+00> : vector<8xf32>
    %40 = vector.multi_reduction <add>, %39, %cst_24 [1] : vector<8x128xf32> to vector<8xf32>
    %41 = vector.shape_cast %40 : vector<8xf32> to vector<8x1xf32>
    %42 = math.log %41 : vector<8x1xf32>
    %43 = arith.addf %42, %34 : vector<8x1xf32>
    %44 = vector.broadcast %43 : vector<8x1xf32> to vector<8x128xf32>
    %45 = arith.subf %27, %44 : vector<8x128xf32>
    %c0_25 = arith.constant 0 : index
    %c0_26 = arith.constant 0 : index
    %46 = vector.load %arg10[%c0_25, %c0_26] : memref<8x128xf32, #tpu.memory_space<vmem>>, vector<8x128xf32>
    tpu.vector_store %arg10[%c0_25, %c0_26], %45 {strides = array<i32>} : memref<8x128xf32, #tpu.memory_space<vmem>>, vector<8x128xf32>,
    return
  }
  func.func @transform_0(%arg0: i32) -> (i32, i32) {
    %c0_i32 = arith.constant 0 : i32
    %c0_i32_0 = arith.constant 0 : i32
    return %arg0, %c0_i32 : i32, i32
  }
  func.func @transform_1(%arg0: i32) -> (i32, i32) {
    %c0_i32 = arith.constant 0 : i32
    %c0_i32_0 = arith.constant 0 : i32
    %c0_i32_1 = arith.constant 0 : i32
    return %c0_i32, %c0_i32_0 : i32, i32
  }
  func.func @transform_2(%arg0: i32) -> (i32, i32) {
    %c0_i32 = arith.constant 0 : i32
    %c0_i32_0 = arith.constant 0 : i32
    %c0_i32_1 = arith.constant 0 : i32
    return %c0_i32, %c0_i32_0 : i32, i32
  }
  func.func @transform_3(%arg0: i32) -> (i32, i32) {
    %c0_i32 = arith.constant 0 : i32
    %c0_i32_0 = arith.constant 0 : i32
    %c0_i32_1 = arith.constant 0 : i32
    return %c0_i32, %c0_i32_0 : i32, i32
  }
  func.func @transform_4(%arg0: i32) -> (i32, i32) {
    %c0_i32 = arith.constant 0 : i32
    %c0_i32_0 = arith.constant 0 : i32
    %c0_i32_1 = arith.constant 0 : i32
    return %c0_i32, %c0_i32_0 : i32, i32
  }
  func.func @transform_5(%arg0: i32) -> (i32, i32) {
    %c0_i32 = arith.constant 0 : i32
    %c0_i32_0 = arith.constant 0 : i32
    %c0_i32_1 = arith.constant 0 : i32
    return %c0_i32, %c0_i32_0 : i32, i32
  }
  func.func @transform_6(%arg0: i32) -> (i32, i32) {
    %c0_i32 = arith.constant 0 : i32
    %c0_i32_0 = arith.constant 0 : i32
    %c0_i32_1 = arith.constant 0 : i32
    return %c0_i32, %c0_i32_0 : i32, i32
  }
  func.func @transform_7(%arg0: i32) -> (i32, i32) {
    %c0_i32 = arith.constant 0 : i32
    %c0_i32_0 = arith.constant 0 : i32
    %c0_i32_1 = arith.constant 0 : i32
    return %c0_i32, %c0_i32_0 : i32, i32
  }
  func.func @transform_8(%arg0: i32) -> (i32, i32) {
    %c0_i32 = arith.constant 0 : i32
    %c0_i32_0 = arith.constant 0 : i32
    %c0_i32_1 = arith.constant 0 : i32
    return %c0_i32, %c0_i32_0 : i32, i32
  }
  func.func @transform_9(%arg0: i32) -> (i32, i32) {
    %c0_i32 = arith.constant 0 : i32
    %c0_i32_0 = arith.constant 0 : i32
    return %arg0, %c0_i32 : i32, i32
  }
}

</mosaic_0001>

<llo_original>
// kernel: lenet5_forward.3
$region0: #{lenet5_forward.3}
  #allocation0 [shape = 'u32[]', space=smem, size = 0x4, offset = 0x4, fixed_abs, tag = 'smem constant byte address 0x4 - core index']
  #allocation1 [shape = 'u32[144,128]{1,0:T(1,128)}', space=vmem, size = 0x12000, scoped, tag = 'internal scratch']
  %s0 = inlined_call_operand.vmem [shape: bf16[8,4,25,196], index: 0, kind: input, shape index: {}]
  %s1 = inlined_call_operand.vmem [shape: bf16[6,25], index: 1, kind: input, shape index: {}]
  %s2 = inlined_call_operand.vmem [shape: f32[6,1], index: 2, kind: input, shape index: {}]
  %s3 = inlined_call_operand.vmem [shape: f32[6,1], index: 3, kind: input, shape index: {}]
  %s4 = inlined_call_operand.vmem [shape: bf16[8,6,196], index: 4, kind: output, shape index: {}]
  %s5 = sld [smem:[#allocation0]]
  $region26: #{lenet5_forward.3} parent=0
    _
  %s7 = ssub.s32 1, %s5
  %s8 = scalar_select 0, %s7, %s5
  // Predicated region
  $region2: #{lenet5_forward.3} parent=0 // pred_check
    _
  $region3: #{lenet5_forward.3} parent=0 // pred_check_branch
    %10 = sbr.rel (0) target = $region5
  $region4: #{lenet5_forward.3} parent=0 // pred_region
    _
  $region5: #{lenet5_forward.3} parent=0 // pred_fallthru
    _
  // Predicated region
  $region6: #{lenet5_forward.3} parent=0 // pred_check
    _
  $region7: #{lenet5_forward.3} parent=0 // pred_check_branch
    %12 = sbr.rel (0) target = $region9
  $region8: #{lenet5_forward.3} parent=0 // pred_region
    _
  $region9: #{lenet5_forward.3} parent=0 // pred_fallthru
    _
  // Predicated region
  $region10: #{lenet5_forward.3} parent=0 // pred_check
    _
  $region11: #{lenet5_forward.3} parent=0 // pred_check_branch
    %14 = sbr.rel (0) target = $region13
  $region12: #{lenet5_forward.3} parent=0 // pred_region
    _
  $region13: #{lenet5_forward.3} parent=0 // pred_fallthru
    _
  // Predicated region
  $region14: #{lenet5_forward.3} parent=0 // pred_check
    _
  $region15: #{lenet5_forward.3} parent=0 // pred_check_branch
    %16 = sbr.rel (0) target = $region17
  $region16: #{lenet5_forward.3} parent=0 // pred_region
    _
  $region17: #{lenet5_forward.3} parent=0 // pred_fallthru
    _
  %v18 = vld [vmem:[%s1] sm:$0x7]
  %v19 = vld [vmem:[%s2] sm:$0x3f]
  %v20 = vld [vmem:[%s3] sm:$0x3f]
  %v21 = vld [vmem:[%s0] sm:$0xff]
  %v22 = vld [vmem:[%s0 + $0x8] sm:$0xff]
  %v23 = vld [vmem:[%s0 + $0x10] sm:$0xff]
  %v24 = vld [vmem:[%s0 + $0x18] sm:$0x11]
  %v29 = vunpack.c.l.b16 %v21
  %v30 = vunpack.c.h.b16 %v21
  %v31 = vunpack.c.l.b16 %v22
  %v32 = vunpack.c.h.b16 %v22
  %v33 = vunpack.c.l.b16 %v23
  %v34 = vunpack.c.h.b16 %v23
  %v35 = vunpack.c.l.b16 %v24
  %v36 = vunpack.c.h.b16 %v24
  %v37 = vpack.c.b16 %v31, %v29
  %v38 = vpack.c.b16 %v32, %v30
  %v39 = vpack.c.b16 %v35, %v33
  %v40 = vpack.c.b16 %v36, %v34
  %vm43 = vcmask 203776
  %v45 = vsel %vm43, %v18, 0
  %vm47 = vcmask 1043456
  %vm48 = vcmask 1044480
  %v49 = vsel %vm47, 4294967295, 65535
  %v50 = vsel %vm48, %v49, 0
  %v52 = vand.u32 %v39, %v50
  %v55 = vand.u32 %v40, %v50
  %57 = vmatprep.subr.bf16.mxu0 0
  %58 = vmatpush1.bf16.msra.mxu0 0
  %59 = vmatprep.subr.bf16.mxu0 0
  %60 = vmatpush1.bf16.msra.mxu0 0
  %61 = vmatprep.subr.bf16.mxu0 0
  %62 = vmatpush1.bf16.msra.mxu0 0
  %63 = vmatprep.subr.bf16.mxu0 0
  %64 = vmatpush1.bf16.msra.mxu0 0
  %65 = vmatprep.subr.bf16.mxu0 0
  %66 = vmatpush1.bf16.msra.mxu0 0
  %67 = vmatprep.subr.bf16.mxu0 0
  %68 = vmatpush1.bf16.msra.mxu0 0
  %69 = vmatprep.subr.bf16.mxu0 %v55
  %70 = vmatpush1.bf16.msra.mxu0 %v52
  %71 = vmatprep.subr.bf16.mxu0 %v38
  %72 = vmatpush1.bf16.msra.mxu0 %v37
  %73 = vmatprep.subr.bf16.mxu0 0
  %74 = vmatpush2.bf16.msra.mxu0 0
  %75 = vmatprep.subr.bf16.mxu0 0
  %76 = vmatpush2.bf16.msra.mxu0 0
  %77 = vmatprep.subr.bf16.mxu0 0
  %78 = vmatpush2.bf16.msra.mxu0 0
  %79 = vmatprep.subr.bf16.mxu0 0
  %80 = vmatpush2.bf16.msra.mxu0 0
  %81 = vmatprep.subr.bf16.mxu0 0
  %82 = vmatpush2.bf16.msra.mxu0 0
  %83 = vmatprep.subr.bf16.mxu0 0
  %84 = vmatpush2.bf16.msra.mxu0 0
  %85 = vmatprep.subr.bf16.mxu0 0
  %86 = vmatpush2.bf16.msra.mxu0 0
  %87 = vmatprep.subr.bf16.mxu0 0
  %88 = vmatpush2.bf16.msra.mxu0 0
  %89 = vmatprep.mubr.bf16.mxu0 0
  %90 = vmatmul.mubr.bf16.gmra.mxu0 %v45
  %v91 = vpop.f32.mrf.mxu0
  %v92 = vadd.f32 0.0, %v91
  %v93 = vpop.f32.mrf.mxu0
  %v94 = vadd.f32 0.0, %v93
  %v95 = vpop.f32.mrf.mxu0
  %v96 = vpop.f32.mrf.mxu0
  %97 = vdwg.mxu0
  %99 = vset.pattern.permute.xlu0 0
  %100 = vperm.xlu0 %99, %v19
  %v101 = vpop.permute.xlu0 %100
  %v103 = vmul.f32 %v92, %v101
  %v104 = vmul.f32 %v94, %v101
  %106 = vset.pattern.permute.xlu0 0
  %107 = vperm.xlu0 %106, %v20
  %v108 = vpop.permute.xlu0 %107
  %v110 = vadd.f32 %v103, %v108
  %v111 = vadd.f32 %v104, %v108
  %v112 = vmax.f32 %v110, 0.0
  %v113 = vmax.f32 %v111, 0.0
  %s114 = scalar_lea.vmem %s0, 32
  %v115 = vld [vmem:[%s114] sm:$0xff]
  %v116 = vld [vmem:[%s114 + $0x8] sm:$0xff]
  %v117 = vld [vmem:[%s114 + $0x10] sm:$0xff]
  %v118 = vld [vmem:[%s114 + $0x18] sm:$0x11]
  %v123 = vunpack.c.l.b16 %v115
  %v124 = vunpack.c.h.b16 %v115
  %v125 = vunpack.c.l.b16 %v116
  %v126 = vunpack.c.h.b16 %v116
  %v127 = vunpack.c.l.b16 %v117
  %v128 = vunpack.c.h.b16 %v117
  %v129 = vunpack.c.l.b16 %v118
  %v130 = vunpack.c.h.b16 %v118
  %v131 = vpack.c.b16 %v125, %v123
  %v132 = vpack.c.b16 %v126, %v124
  %v133 = vpack.c.b16 %v129, %v127
  %v134 = vpack.c.b16 %v130, %v128
  %v138 = vand.u32 %v133, %v50
  %v141 = vand.u32 %v134, %v50
  %143 = vmatprep.subr.bf16.mxu0 0
  %144 = vmatpush1.bf16.msra.mxu0 0
  %145 = vmatprep.subr.bf16.mxu0 0
  %146 = vmatpush1.bf16.msra.mxu0 0
  %147 = vmatprep.subr.bf16.mxu0 0
  %148 = vmatpush1.bf16.msra.mxu0 0
  %149 = vmatprep.subr.bf16.mxu0 0
  %150 = vmatpush1.bf16.msra.mxu0 0
  %151 = vmatprep.subr.bf16.mxu0 0
  %152 = vmatpush1.bf16.msra.mxu0 0
  %153 = vmatprep.subr.bf16.mxu0 0
  %154 = vmatpush1.bf16.msra.mxu0 0
  %155 = vmatprep.subr.bf16.mxu0 %v141
  %156 = vmatpush1.bf16.msra.mxu0 %v138
  %157 = vmatprep.subr.bf16.mxu0 %v132
  %158 = vmatpush1.bf16.msra.mxu0 %v131
  %159 = vmatprep.subr.bf16.mxu0 0
  %160 = vmatpush2.bf16.msra.mxu0 0
  %161 = vmatprep.subr.bf16.mxu0 0
  %162 = vmatpush2.bf16.msra.mxu0 0
  %163 = vmatprep.subr.bf16.mxu0 0
  %164 = vmatpush2.bf16.msra.mxu0 0
  %165 = vmatprep.subr.bf16.mxu0 0
  %166 = vmatpush2.bf16.msra.mxu0 0
  %167 = vmatprep.subr.bf16.mxu0 0
  %168 = vmatpush2.bf16.msra.mxu0 0
  %169 = vmatprep.subr.bf16.mxu0 0
  %170 = vmatpush2.bf16.msra.mxu0 0
  %171 = vmatprep.subr.bf16.mxu0 0
  %172 = vmatpush2.bf16.msra.mxu0 0
  %173 = vmatprep.subr.bf16.mxu0 0
  %174 = vmatpush2.bf16.msra.mxu0 0
  %175 = vmatprep.mubr.bf16.mxu0 0
  %176 = vmatmul.mubr.bf16.gmra.mxu0 %v45
  %v177 = vpop.f32.mrf.mxu0
  %v178 = vadd.f32 0.0, %v177
  %v179 = vpop.f32.mrf.mxu0
  %v180 = vadd.f32 0.0, %v179
  %v181 = vpop.f32.mrf.mxu0
  %v182 = vpop.f32.mrf.mxu0
  %183 = vdwg.mxu0
  %v184 = vmul.f32 %v178, %v101
  %v185 = vmul.f32 %v180, %v101
  %v186 = vadd.f32 %v184, %v108
  %v187 = vadd.f32 %v185, %v108
  %v188 = vmax.f32 %v186, 0.0
  %v189 = vmax.f32 %v187, 0.0
  %v190 = vmax.f32 %v112, %v188
  %v191 = vmax.f32 %v113, %v189
  %s192 = scalar_lea.vmem %s0, 64
  %v193 = vld [vmem:[%s192] sm:$0xff]
  %v194 = vld [vmem:[%s192 + $0x8] sm:$0xff]
  %v195 = vld [vmem:[%s192 + $0x10] sm:$0xff]
  %v196 = vld [vmem:[%s192 + $0x18] sm:$0x11]
  %v201 = vunpack.c.l.b16 %v193
  %v202 = vunpack.c.h.b16 %v193
  %v203 = vunpack.c.l.b16 %v194
  %v204 = vunpack.c.h.b16 %v194
  %v205 = vunpack.c.l.b16 %v195
  %v206 = vunpack.c.h.b16 %v195
  %v207 = vunpack.c.l.b16 %v196
  %v208 = vunpack.c.h.b16 %v196
  %v209 = vpack.c.b16 %v203, %v201
  %v210 = vpack.c.b16 %v204, %v202
  %v211 = vpack.c.b16 %v207, %v205
  %v212 = vpack.c.b16 %v208, %v206
  %v216 = vand.u32 %v211, %v50
  %v219 = vand.u32 %v212, %v50
  %221 = vmatprep.subr.bf16.mxu0 0
  %222 = vmatpush1.bf16.msra.mxu0 0
  %223 = vmatprep.subr.bf16.mxu0 0
  %224 = vmatpush1.bf16.msra.mxu0 0
  %225 = vmatprep.subr.bf16.mxu0 0
  %226 = vmatpush1.bf16.msra.mxu0 0
  %227 = vmatprep.subr.bf16.mxu0 0
  %228 = vmatpush1.bf16.msra.mxu0 0
  %229 = vmatprep.subr.bf16.mxu0 0
  %230 = vmatpush1.bf16.msra.mxu0 0
  %231 = vmatprep.subr.bf16.mxu0 0
  %232 = vmatpush1.bf16.msra.mxu0 0
  %233 = vmatprep.subr.bf16.mxu0 %v219
  %234 = vmatpush1.bf16.msra.mxu0 %v216
  %235 = vmatprep.subr.bf16.mxu0 %v210
  %236 = vmatpush1.bf16.msra.mxu0 %v209
  %237 = vmatprep.subr.bf16.mxu0 0
  %238 = vmatpush2.bf16.msra.mxu0 0
  %239 = vmatprep.subr.bf16.mxu0 0
  %240 = vmatpush2.bf16.msra.mxu0 0
  %241 = vmatprep.subr.bf16.mxu0 0
  %242 = vmatpush2.bf16.msra.mxu0 0
  %243 = vmatprep.subr.bf16.mxu0 0
  %244 = vmatpush2.bf16.msra.mxu0 0
  %245 = vmatprep.subr.bf16.mxu0 0
  %246 = vmatpush2.bf16.msra.mxu0 0
  %247 = vmatprep.subr.bf16.mxu0 0
  %248 = vmatpush2.bf16.msra.mxu0 0
  %249 = vmatprep.subr.bf16.mxu0 0
  %250 = vmatpush2.bf16.msra.mxu0 0
  %251 = vmatprep.subr.bf16.mxu0 0
  %252 = vmatpush2.bf16.msra.mxu0 0
  %253 = vmatprep.mubr.bf16.mxu0 0
  %254 = vmatmul.mubr.bf16.gmra.mxu0 %v45
  %v255 = vpop.f32.mrf.mxu0
  %v256 = vadd.f32 0.0, %v255
  %v257 = vpop.f32.mrf.mxu0
  %v258 = vadd.f32 0.0, %v257
  %v259 = vpop.f32.mrf.mxu0
  %v260 = vpop.f32.mrf.mxu0
  %261 = vdwg.mxu0
  %v262 = vmul.f32 %v256, %v101
  %v263 = vmul.f32 %v258, %v101
  %v264 = vadd.f32 %v262, %v108
  %v265 = vadd.f32 %v263, %v108
  %v266 = vmax.f32 %v264, 0.0
  %v267 = vmax.f32 %v265, 0.0
  %v268 = vmax.f32 %v190, %v266
  %v269 = vmax.f32 %v191, %v267
  %s270 = scalar_lea.vmem %s0, 96
  %v271 = vld [vmem:[%s270] sm:$0xff]
  %v272 = vld [vmem:[%s270 + $0x8] sm:$0xff]
  %v273 = vld [vmem:[%s270 + $0x10] sm:$0xff]
  %v274 = vld [vmem:[%s270 + $0x18] sm:$0x11]
  %v279 = vunpack.c.l.b16 %v271
  %v280 = vunpack.c.h.b16 %v271
  %v281 = vunpack.c.l.b16 %v272
  %v282 = vunpack.c.h.b16 %v272
  %v283 = vunpack.c.l.b16 %v273
  %v284 = vunpack.c.h.b16 %v273
  %v285 = vunpack.c.l.b16 %v274
  %v286 = vunpack.c.h.b16 %v274
  %v287 = vpack.c.b16 %v281, %v279
  %v288 = vpack.c.b16 %v282, %v280
  %v289 = vpack.c.b16 %v285, %v283
  %v290 = vpack.c.b16 %v286, %v284
  %v294 = vand.u32 %v289, %v50
  %v297 = vand.u32 %v290, %v50
  %299 = vmatprep.subr.bf16.mxu0 0
  %300 = vmatpush1.bf16.msra.mxu0 0
  %301 = vmatprep.subr.bf16.mxu0 0
  %302 = vmatpush1.bf16.msra.mxu0 0
  %303 = vmatprep.subr.bf16.mxu0 0
  %304 = vmatpush1.bf16.msra.mxu0 0
  %305 = vmatprep.subr.bf16.mxu0 0
  %306 = vmatpush1.bf16.msra.mxu0 0
  %307 = vmatprep.subr.bf16.mxu0 0
  %308 = vmatpush1.bf16.msra.mxu0 0
  %309 = vmatprep.subr.bf16.mxu0 0
  %310 = vmatpush1.bf16.msra.mxu0 0
  %311 = vmatprep.subr.bf16.mxu0 %v297
  %312 = vmatpush1.bf16.msra.mxu0 %v294
  %313 = vmatprep.subr.bf16.mxu0 %v288
  %314 = vmatpush1.bf16.msra.mxu0 %v287
  %315 = vmatprep.subr.bf16.mxu0 0
  %316 = vmatpush2.bf16.msra.mxu0 0
  %317 = vmatprep.subr.bf16.mxu0 0
  %318 = vmatpush2.bf16.msra.mxu0 0
  %319 = vmatprep.subr.bf16.mxu0 0
  %320 = vmatpush2.bf16.msra.mxu0 0
  %321 = vmatprep.subr.bf16.mxu0 0
  %322 = vmatpush2.bf16.msra.mxu0 0
  %323 = vmatprep.subr.bf16.mxu0 0
  %324 = vmatpush2.bf16.msra.mxu0 0
  %325 = vmatprep.subr.bf16.mxu0 0
  %326 = vmatpush2.bf16.msra.mxu0 0
  %327 = vmatprep.subr.bf16.mxu0 0
  %328 = vmatpush2.bf16.msra.mxu0 0
  %329 = vmatprep.subr.bf16.mxu0 0
  %330 = vmatpush2.bf16.msra.mxu0 0
  %331 = vmatprep.mubr.bf16.mxu0 0
  %332 = vmatmul.mubr.bf16.gmra.mxu0 %v45
  %v333 = vpop.f32.mrf.mxu0
  %v334 = vadd.f32 0.0, %v333
  %v335 = vpop.f32.mrf.mxu0
  %v336 = vadd.f32 0.0, %v335
  %v337 = vpop.f32.mrf.mxu0
  %v338 = vpop.f32.mrf.mxu0
  %339 = vdwg.mxu0
  %v340 = vmul.f32 %v334, %v101
  %v341 = vmul.f32 %v336, %v101
  %v342 = vadd.f32 %v340, %v108
  %v343 = vadd.f32 %v341, %v108
  %v344 = vmax.f32 %v342, 0.0
  %v345 = vmax.f32 %v343, 0.0
  %v346 = vmax.f32 %v268, %v344
  %v347 = vmax.f32 %v269, %v345
  %v348 = vpack.c.bf16 %v346, %v346
  %v349 = vpack.c.bf16 %v347, %v347
  %v352 = vunpack.c.l.b16 %v348
  %v353 = vunpack.c.l.b16 %v349
  %v354 = vpack.c.b16 %v353, %v352
  %vm356 = vcmask 1042432
  %vm357 = vcmask 555012
  %vm358 = vmor %vm357, %vm356
  %359 = vst.msk [vmem:[%s4] sm:$0x77] %vm358, %v354
  %s360 = scalar_lea.vmem %s0, 128
  %v361 = vld [vmem:[%s360] sm:$0xff]
  %v362 = vld [vmem:[%s360 + $0x8] sm:$0xff]
  %v363 = vld [vmem:[%s360 + $0x10] sm:$0xff]
  %v364 = vld [vmem:[%s360 + $0x18] sm:$0x11]
  %v369 = vunpack.c.l.b16 %v361
  %v370 = vunpack.c.h.b16 %v361
  %v371 = vunpack.c.l.b16 %v362
  %v372 = vunpack.c.h.b16 %v362
  %v373 = vunpack.c.l.b16 %v363
  %v374 = vunpack.c.h.b16 %v363
  %v375 = vunpack.c.l.b16 %v364
  %v376 = vunpack.c.h.b16 %v364
  %v377 = vpack.c.b16 %v371, %v369
  %v378 = vpack.c.b16 %v372, %v370
  %v379 = vpack.c.b16 %v375, %v373
  %v380 = vpack.c.b16 %v376, %v374
  %v384 = vand.u32 %v379, %v50
  %v387 = vand.u32 %v380, %v50
  %389 = vmatprep.subr.bf16.mxu0 0
  %390 = vmatpush1.bf16.msra.mxu0 0
  %391 = vmatprep.subr.bf16.mxu0 0
  %392 = vmatpush1.bf16.msra.mxu0 0
  %393 = vmatprep.subr.bf16.mxu0 0
  %394 = vmatpush1.bf16.msra.mxu0 0
  %395 = vmatprep.subr.bf16.mxu0 0
  %396 = vmatpush1.bf16.msra.mxu0 0
  %397 = vmatprep.subr.bf16.mxu0 0
  %398 = vmatpush1.bf16.msra.mxu0 0
  %399 = vmatprep.subr.bf16.mxu0 0
  %400 = vmatpush1.bf16.msra.mxu0 0
  %401 = vmatprep.subr.bf16.mxu0 %v387
  %402 = vmatpush1.bf16.msra.mxu0 %v384
  %403 = vmatprep.subr.bf16.mxu0 %v378
  %404 = vmatpush1.bf16.msra.mxu0 %v377
  %405 = vmatprep.subr.bf16.mxu0 0
  %406 = vmatpush2.bf16.msra.mxu0 0
  %407 = vmatprep.subr.bf16.mxu0 0
  %408 = vmatpush2.bf16.msra.mxu0 0
  %409 = vmatprep.subr.bf16.mxu0 0
  %410 = vmatpush2.bf16.msra.mxu0 0
  %411 = vmatprep.subr.bf16.mxu0 0
  %412 = vmatpush2.bf16.msra.mxu0 0
  %413 = vmatprep.subr.bf16.mxu0 0
  %414 = vmatpush2.bf16.msra.mxu0 0
  %415 = vmatprep.subr.bf16.mxu0 0
  %416 = vmatpush2.bf16.msra.mxu0 0
  %417 = vmatprep.subr.bf16.mxu0 0
  %418 = vmatpush2.bf16.msra.mxu0 0
  %419 = vmatprep.subr.bf16.mxu0 0
  %420 = vmatpush2.bf16.msra.mxu0 0
  %421 = vmatprep.mubr.bf16.mxu0 0
  %422 = vmatmul.mubr.bf16.gmra.mxu0 %v45
  %v423 = vpop.f32.mrf.mxu0
  %v424 = vadd.f32 0.0, %v423
  %v425 = vpop.f32.mrf.mxu0
  %v426 = vadd.f32 0.0, %v425
  %v427 = vpop.f32.mrf.mxu0
  %v428 = vpop.f32.mrf.mxu0
  %429 = vdwg.mxu0
  %v430 = vmul.f32 %v424, %v101
  %v431 = vmul.f32 %v426, %v101
  %v432 = vadd.f32 %v430, %v108
  %v433 = vadd.f32 %v431, %v108
  %v434 = vmax.f32 %v432, 0.0
  %v435 = vmax.f32 %v433, 0.0
  %s436 = scalar_lea.vmem %s0, 160
  %v437 = vld [vmem:[%s436] sm:$0xff]
  %v438 = vld [vmem:[%s436 + $0x8] sm:$0xff]
  %v439 = vld [vmem:[%s436 + $0x10] sm:$0xff]
  %v440 = vld [vmem:[%s436 + $0x18] sm:$0x11]
  %v445 = vunpack.c.l.b16 %v437
  %v446 = vunpack.c.h.b16 %v437
  %v447 = vunpack.c.l.b16 %v438
  %v448 = vunpack.c.h.b16 %v438
  %v449 = vunpack.c.l.b16 %v439
  %v450 = vunpack.c.h.b16 %v439
  %v451 = vunpack.c.l.b16 %v440
  %v452 = vunpack.c.h.b16 %v440
  %v453 = vpack.c.b16 %v447, %v445
  %v454 = vpack.c.b16 %v448, %v446
  %v455 = vpack.c.b16 %v451, %v449
  %v456 = vpack.c.b16 %v452, %v450
  %v460 = vand.u32 %v455, %v50
  %v463 = vand.u32 %v456, %v50
  %465 = vmatprep.subr.bf16.mxu0 0
  %466 = vmatpush1.bf16.msra.mxu0 0
  %467 = vmatprep.subr.bf16.mxu0 0
  %468 = vmatpush1.bf16.msra.mxu0 0
  %469 = vmatprep.subr.bf16.mxu0 0
  %470 = vmatpush1.bf16.msra.mxu0 0
  %471 = vmatprep.subr.bf16.mxu0 0
  %472 = vmatpush1.bf16.msra.mxu0 0
  %473 = vmatprep.subr.bf16.mxu0 0
  %474 = vmatpush1.bf16.msra.mxu0 0
  %475 = vmatprep.subr.bf16.mxu0 0
  %476 = vmatpush1.bf16.msra.mxu0 0
  %477 = vmatprep.subr.bf16.mxu0 %v463
  %478 = vmatpush1.bf16.msra.mxu0 %v460
  %479 = vmatprep.subr.bf16.mxu0 %v454
  %480 = vmatpush1.bf16.msra.mxu0 %v453
  %481 = vmatprep.subr.bf16.mxu0 0
  %482 = vmatpush2.bf16.msra.mxu0 0
  %483 = vmatprep.subr.bf16.mxu0 0
  %484 = vmatpush2.bf16.msra.mxu0 0
  %485 = vmatprep.subr.bf16.mxu0 0
  %486 = vmatpush2.bf16.msra.mxu0 0
  %487 = vmatprep.subr.bf16.mxu0 0
  %488 = vmatpush2.bf16.msra.mxu0 0
  %489 = vmatprep.subr.bf16.mxu0 0
  %490 = vmatpush2.bf16.msra.mxu0 0
  %491 = vmatprep.subr.bf16.mxu0 0
  %492 = vmatpush2.bf16.msra.mxu0 0
  %493 = vmatprep.subr.bf16.mxu0 0
  %494 = vmatpush2.bf16.msra.mxu0 0
  %495 = vmatprep.subr.bf16.mxu0 0
  %496 = vmatpush2.bf16.msra.mxu0 0
  %497 = vmatprep.mubr.bf16.mxu0 0
  %498 = vmatmul.mubr.bf16.gmra.mxu0 %v45
  %v499 = vpop.f32.mrf.mxu0
  %v500 = vadd.f32 0.0, %v499
  %v501 = vpop.f32.mrf.mxu0
  %v502 = vadd.f32 0.0, %v501
  %v503 = vpop.f32.mrf.mxu0
  %v504 = vpop.f32.mrf.mxu0
  %505 = vdwg.mxu0
  %v506 = vmul.f32 %v500, %v101
  %v507 = vmul.f32 %v502, %v101
  %v508 = vadd.f32 %v506, %v108
  %v509 = vadd.f32 %v507, %v108
  %v510 = vmax.f32 %v508, 0.0
  %v511 = vmax.f32 %v509, 0.0
  %v512 = vmax.f32 %v434, %v510
  %v513 = vmax.f32 %v435, %v511
  %s514 = scalar_lea.vmem %s0, 192
  %v515 = vld [vmem:[%s514] sm:$0xff]
  %v516 = vld [vmem:[%s514 + $0x8] sm:$0xff]
  %v517 = vld [vmem:[%s514 + $0x10] sm:$0xff]
  %v518 = vld [vmem:[%s514 + $0x18] sm:$0x11]
  %v523 = vunpack.c.l.b16 %v515
  %v524 = vunpack.c.h.b16 %v515
  %v525 = vunpack.c.l.b16 %v516
  %v526 = vunpack.c.h.b16 %v516
  %v527 = vunpack.c.l.b16 %v517
  %v528 = vunpack.c.h.b16 %v517
  %v529 = vunpack.c.l.b16 %v518
  %v530 = vunpack.c.h.b16 %v518
  %v531 = vpack.c.b16 %v525, %v523
  %v532 = vpack.c.b16 %v526, %v524
  %v533 = vpack.c.b16 %v529, %v527
  %v534 = vpack.c.b16 %v530, %v528
  %v538 = vand.u32 %v533, %v50
  %v541 = vand.u32 %v534, %v50
  %543 = vmatprep.subr.bf16.mxu0 0
  %544 = vmatpush1.bf16.msra.mxu0 0
  %545 = vmatprep.subr.bf16.mxu0 0
  %546 = vmatpush1.bf16.msra.mxu0 0
  %547 = vmatprep.subr.bf16.mxu0 0
  %548 = vmatpush1.bf16.msra.mxu0 0
  %549 = vmatprep.subr.bf16.mxu0 0
  %550 = vmatpush1.bf16.msra.mxu0 0
  %551 = vmatprep.subr.bf16.mxu0 0
  %552 = vmatpush1.bf16.msra.mxu0 0
  %553 = vmatprep.subr.bf16.mxu0 0
  %554 = vmatpush1.bf16.msra.mxu0 0
  %555 = vmatprep.subr.bf16.mxu0 %v541
  %556 = vmatpush1.bf16.msra.mxu0 %v538
  %557 = vmatprep.subr.bf16.mxu0 %v532
  %558 = vmatpush1.bf16.msra.mxu0 %v531
  %559 = vmatprep.subr.bf16.mxu0 0
  %560 = vmatpush2.bf16.msra.mxu0 0
  %561 = vmatprep.subr.bf16.mxu0 0
  %562 = vmatpush2.bf16.msra.mxu0 0
  %563 = vmatprep.subr.bf16.mxu0 0
  %564 = vmatpush2.bf16.msra.mxu0 0
  %565 = vmatprep.subr.bf16.mxu0 0
  %566 = vmatpush2.bf16.msra.mxu0 0
  %567 = vmatprep.subr.bf16.mxu0 0
  %568 = vmatpush2.bf16.msra.mxu0 0
  %569 = vmatprep.subr.bf16.mxu0 0
  %570 = vmatpush2.bf16.msra.mxu0 0
  %571 = vmatprep.subr.bf16.mxu0 0
  %572 = vmatpush2.bf16.msra.mxu0 0
  %573 = vmatprep.subr.bf16.mxu0 0
  %574 = vmatpush2.bf16.msra.mxu0 0
  %575 = vmatprep.mubr.bf16.mxu0 0
  %576 = vmatmul.mubr.bf16.gmra.mxu0 %v45
  %v577 = vpop.f32.mrf.mxu0
  %v578 = vadd.f32 0.0, %v577
  %v579 = vpop.f32.mrf.mxu0
  %v580 = vadd.f32 0.0, %v579
  %v581 = vpop.f32.mrf.mxu0
  %v582 = vpop.f32.mrf.mxu0
  %583 = vdwg.mxu0
  %v584 = vmul.f32 %v578, %v101
  %v585 = vmul.f32 %v580, %v101
  %v586 = vadd.f32 %v584, %v108
  %v587 = vadd.f32 %v585, %v108
  %v588 = vmax.f32 %v586, 0.0
  %v589 = vmax.f32 %v587, 0.0
  %v590 = vmax.f32 %v512, %v588
  %v591 = vmax.f32 %v513, %v589
  %s592 = scalar_lea.vmem %s0, 224
  %v593 = vld [vmem:[%s592] sm:$0xff]
  %v594 = vld [vmem:[%s592 + $0x8] sm:$0xff]
  %v595 = vld [vmem:[%s592 + $0x10] sm:$0xff]
  %v596 = vld [vmem:[%s592 + $0x18] sm:$0x11]
  %v601 = vunpack.c.l.b16 %v593
  %v602 = vunpack.c.h.b16 %v593
  %v603 = vunpack.c.l.b16 %v594
  %v604 = vunpack.c.h.b16 %v594
  %v605 = vunpack.c.l.b16 %v595
  %v606 = vunpack.c.h.b16 %v595
  %v607 = vunpack.c.l.b16 %v596
  %v608 = vunpack.c.h.b16 %v596
  %v609 = vpack.c.b16 %v603, %v601
  %v610 = vpack.c.b16 %v604, %v602
  %v611 = vpack.c.b16 %v607, %v605
  %v612 = vpack.c.b16 %v608, %v606
  %v616 = vand.u32 %v611, %v50
  %v619 = vand.u32 %v612, %v50
  %621 = vmatprep.subr.bf16.mxu0 0
  %622 = vmatpush1.bf16.msra.mxu0 0
  %623 = vmatprep.subr.bf16.mxu0 0
  %624 = vmatpush1.bf16.msra.mxu0 0
  %625 = vmatprep.subr.bf16.mxu0 0
  %626 = vmatpush1.bf16.msra.mxu0 0
  %627 = vmatprep.subr.bf16.mxu0 0
  %628 = vmatpush1.bf16.msra.mxu0 0
  %629 = vmatprep.subr.bf16.mxu0 0
  %630 = vmatpush1.bf16.msra.mxu0 0
  %631 = vmatprep.subr.bf16.mxu0 0
  %632 = vmatpush1.bf16.msra.mxu0 0
  %633 = vmatprep.subr.bf16.mxu0 %v619
  %634 = vmatpush1.bf16.msra.mxu0 %v616
  %635 = vmatprep.subr.bf16.mxu0 %v610
  %636 = vmatpush1.bf16.msra.mxu0 %v609
  %637 = vmatprep.subr.bf16.mxu0 0
  %638 = vmatpush2.bf16.msra.mxu0 0
  %639 = vmatprep.subr.bf16.mxu0 0
  %640 = vmatpush2.bf16.msra.mxu0 0
  %641 = vmatprep.subr.bf16.mxu0 0
  %642 = vmatpush2.bf16.msra.mxu0 0
  %643 = vmatprep.subr.bf16.mxu0 0
  %644 = vmatpush2.bf16.msra.mxu0 0
  %645 = vmatprep.subr.bf16.mxu0 0
  %646 = vmatpush2.bf16.msra.mxu0 0
  %647 = vmatprep.subr.bf16.mxu0 0
  %648 = vmatpush2.bf16.msra.mxu0 0
  %649 = vmatprep.subr.bf16.mxu0 0
  %650 = vmatpush2.bf16.msra.mxu0 0
  %651 = vmatprep.subr.bf16.mxu0 0
  %652 = vmatpush2.bf16.msra.mxu0 0
  %653 = vmatprep.mubr.bf16.mxu0 0
  %654 = vmatmul.mubr.bf16.gmra.mxu0 %v45
  %v655 = vpop.f32.mrf.mxu0
  %v656 = vadd.f32 0.0, %v655
  %v657 = vpop.f32.mrf.mxu0
  %v658 = vadd.f32 0.0, %v657
  %v659 = vpop.f32.mrf.mxu0
  %v660 = vpop.f32.mrf.mxu0
  %661 = vdwg.mxu0
  %v662 = vmul.f32 %v656, %v101
  %v663 = vmul.f32 %v658, %v101
  %v664 = vadd.f32 %v662, %v108
  %v665 = vadd.f32 %v663, %v108
  %v666 = vmax.f32 %v664, 0.0
  %v667 = vmax.f32 %v665, 0.0
  %v668 = vmax.f32 %v590, %v666
  %v669 = vmax.f32 %v591, %v667
  %v670 = vpack.c.bf16 %v668, %v668
  %v671 = vpack.c.bf16 %v669, %v669
  %v674 = vunpack.c.l.b16 %v670
  %v675 = vunpack.c.l.b16 %v671
  %v676 = vpack.c.b16 %v675, %v674
  %s678 = scalar_lea.vmem %s4, 8
  %679 = vst.msk [vmem:[%s678] sm:$0x77] %vm358, %v676
  %s680 = scalar_lea.vmem %s0, 256
  %v681 = vld [vmem:[%s680] sm:$0xff]
  %v682 = vld [vmem:[%s680 + $0x8] sm:$0xff]
  %v683 = vld [vmem:[%s680 + $0x10] sm:$0xff]
  %v684 = vld [vmem:[%s680 + $0x18] sm:$0x11]
  %v689 = vunpack.c.l.b16 %v681
  %v690 = vunpack.c.h.b16 %v681
  %v691 = vunpack.c.l.b16 %v682
  %v692 = vunpack.c.h.b16 %v682
  %v693 = vunpack.c.l.b16 %v683
  %v694 = vunpack.c.h.b16 %v683
  %v695 = vunpack.c.l.b16 %v684
  %v696 = vunpack.c.h.b16 %v684
  %v697 = vpack.c.b16 %v691, %v689
  %v698 = vpack.c.b16 %v692, %v690
  %v699 = vpack.c.b16 %v695, %v693
  %v700 = vpack.c.b16 %v696, %v694
  %v704 = vand.u32 %v699, %v50
  %v707 = vand.u32 %v700, %v50
  %709 = vmatprep.subr.bf16.mxu0 0
  %710 = vmatpush1.bf16.msra.mxu0 0
  %711 = vmatprep.subr.bf16.mxu0 0
  %712 = vmatpush1.bf16.msra.mxu0 0
  %713 = vmatprep.subr.bf16.mxu0 0
  %714 = vmatpush1.bf16.msra.mxu0 0
  %715 = vmatprep.subr.bf16.mxu0 0
  %716 = vmatpush1.bf16.msra.mxu0 0
  %717 = vmatprep.subr.bf16.mxu0 0
  %718 = vmatpush1.bf16.msra.mxu0 0
  %719 = vmatprep.subr.bf16.mxu0 0
  %720 = vmatpush1.bf16.msra.mxu0 0
  %721 = vmatprep.subr.bf16.mxu0 %v707
  %722 = vmatpush1.bf16.msra.mxu0 %v704
  %723 = vmatprep.subr.bf16.mxu0 %v698
  %724 = vmatpush1.bf16.msra.mxu0 %v697
  %725 = vmatprep.subr.bf16.mxu0 0
  %726 = vmatpush2.bf16.msra.mxu0 0
  %727 = vmatprep.subr.bf16.mxu0 0
  %728 = vmatpush2.bf16.msra.mxu0 0
  %729 = vmatprep.subr.bf16.mxu0 0
  %730 = vmatpush2.bf16.msra.mxu0 0
  %731 = vmatprep.subr.bf16.mxu0 0
  %732 = vmatpush2.bf16.msra.mxu0 0
  %733 = vmatprep.subr.bf16.mxu0 0
  %734 = vmatpush2.bf16.msra.mxu0 0
  %735 = vmatprep.subr.bf16.mxu0 0
  %736 = vmatpush2.bf16.msra.mxu0 0
  %737 = vmatprep.subr.bf16.mxu0 0
  %738 = vmatpush2.bf16.msra.mxu0 0
  %739 = vmatprep.subr.bf16.mxu0 0
  %740 = vmatpush2.bf16.msra.mxu0 0
  %741 = vmatprep.mubr.bf16.mxu0 0
  %742 = vmatmul.mubr.bf16.gmra.mxu0 %v45
  %v743 = vpop.f32.mrf.mxu0
  %v744 = vadd.f32 0.0, %v743
  %v745 = vpop.f32.mrf.mxu0
  %v746 = vadd.f32 0.0, %v745
  %v747 = vpop.f32.mrf.mxu0
  %v748 = vpop.f32.mrf.mxu0
  %749 = vdwg.mxu0
  %v750 = vmul.f32 %v744, %v101
  %v751 = vmul.f32 %v746, %v101
  %v752 = vadd.f32 %v750, %v108
  %v753 = vadd.f32 %v751, %v108
  %v754 = vmax.f32 %v752, 0.0
  %v755 = vmax.f32 %v753, 0.0
  %s756 = scalar_lea.vmem %s0, 288
  %v757 = vld [vmem:[%s756] sm:$0xff]
  %v758 = vld [vmem:[%s756 + $0x8] sm:$0xff]
  %v759 = vld [vmem:[%s756 + $0x10] sm:$0xff]
  %v760 = vld [vmem:[%s756 + $0x18] sm:$0x11]
  %v765 = vunpack.c.l.b16 %v757
  %v766 = vunpack.c.h.b16 %v757
  %v767 = vunpack.c.l.b16 %v758
  %v768 = vunpack.c.h.b16 %v758
  %v769 = vunpack.c.l.b16 %v759
  %v770 = vunpack.c.h.b16 %v759
  %v771 = vunpack.c.l.b16 %v760
  %v772 = vunpack.c.h.b16 %v760
  %v773 = vpack.c.b16 %v767, %v765
  %v774 = vpack.c.b16 %v768, %v766
  %v775 = vpack.c.b16 %v771, %v769
  %v776 = vpack.c.b16 %v772, %v770
  %v780 = vand.u32 %v775, %v50
  %v783 = vand.u32 %v776, %v50
  %785 = vmatprep.subr.bf16.mxu0 0
  %786 = vmatpush1.bf16.msra.mxu0 0
  %787 = vmatprep.subr.bf16.mxu0 0
  %788 = vmatpush1.bf16.msra.mxu0 0
  %789 = vmatprep.subr.bf16.mxu0 0
  %790 = vmatpush1.bf16.msra.mxu0 0
  %791 = vmatprep.subr.bf16.mxu0 0
  %792 = vmatpush1.bf16.msra.mxu0 0
  %793 = vmatprep.subr.bf16.mxu0 0
  %794 = vmatpush1.bf16.msra.mxu0 0
  %795 = vmatprep.subr.bf16.mxu0 0
  %796 = vmatpush1.bf16.msra.mxu0 0
  %797 = vmatprep.subr.bf16.mxu0 %v783
  %798 = vmatpush1.bf16.msra.mxu0 %v780
  %799 = vmatprep.subr.bf16.mxu0 %v774
  %800 = vmatpush1.bf16.msra.mxu0 %v773
  %801 = vmatprep.subr.bf16.mxu0 0
  %802 = vmatpush2.bf16.msra.mxu0 0
  %803 = vmatprep.subr.bf16.mxu0 0
  %804 = vmatpush2.bf16.msra.mxu0 0
  %805 = vmatprep.subr.bf16.mxu0 0
  %806 = vmatpush2.bf16.msra.mxu0 0
  %807 = vmatprep.subr.bf16.mxu0 0
  %808 = vmatpush2.bf16.msra.mxu0 0
  %809 = vmatprep.subr.bf16.mxu0 0
  %810 = vmatpush2.bf16.msra.mxu0 0
  %811 = vmatprep.subr.bf16.mxu0 0
  %812 = vmatpush2.bf16.msra.mxu0 0
  %813 = vmatprep.subr.bf16.mxu0 0
  %814 = vmatpush2.bf16.msra.mxu0 0
  %815 = vmatprep.subr.bf16.mxu0 0
  %816 = vmatpush2.bf16.msra.mxu0 0
  %817 = vmatprep.mubr.bf16.mxu0 0
  %818 = vmatmul.mubr.bf16.gmra.mxu0 %v45
  %v819 = vpop.f32.mrf.mxu0
  %v820 = vadd.f32 0.0, %v819
  %v821 = vpop.f32.mrf.mxu0
  %v822 = vadd.f32 0.0, %v821
  %v823 = vpop.f32.mrf.mxu0
  %v824 = vpop.f32.mrf.mxu0
  %825 = vdwg.mxu0
  %v826 = vmul.f32 %v820, %v101
  %v827 = vmul.f32 %v822, %v101
  %v828 = vadd.f32 %v826, %v108
  %v829 = vadd.f32 %v827, %v108
  %v830 = vmax.f32 %v828, 0.0
  %v831 = vmax.f32 %v829, 0.0
  %v832 = vmax.f32 %v754, %v830
  %v833 = vmax.f32 %v755, %v831
  %s834 = scalar_lea.vmem %s0, 320
  %v835 = vld [vmem:[%s834] sm:$0xff]
  %v836 = vld [vmem:[%s834 + $0x8] sm:$0xff]
  %v837 = vld [vmem:[%s834 + $0x10] sm:$0xff]
  %v838 = vld [vmem:[%s834 + $0x18] sm:$0x11]
  %v843 = vunpack.c.l.b16 %v835
  %v844 = vunpack.c.h.b16 %v835
  %v845 = vunpack.c.l.b16 %v836
  %v846 = vunpack.c.h.b16 %v836
  %v847 = vunpack.c.l.b16 %v837
  %v848 = vunpack.c.h.b16 %v837
  %v849 = vunpack.c.l.b16 %v838
  %v850 = vunpack.c.h.b16 %v838
  %v851 = vpack.c.b16 %v845, %v843
  %v852 = vpack.c.b16 %v846, %v844
  %v853 = vpack.c.b16 %v849, %v847
  %v854 = vpack.c.b16 %v850, %v848
  %v858 = vand.u32 %v853, %v50
  %v861 = vand.u32 %v854, %v50
  %863 = vmatprep.subr.bf16.mxu0 0
  %864 = vmatpush1.bf16.msra.mxu0 0
  %865 = vmatprep.subr.bf16.mxu0 0
  %866 = vmatpush1.bf16.msra.mxu0 0
  %867 = vmatprep.subr.bf16.mxu0 0
  %868 = vmatpush1.bf16.msra.mxu0 0
  %869 = vmatprep.subr.bf16.mxu0 0
  %870 = vmatpush1.bf16.msra.mxu0 0
  %871 = vmatprep.subr.bf16.mxu0 0
  %872 = vmatpush1.bf16.msra.mxu0 0
  %873 = vmatprep.subr.bf16.mxu0 0
  %874 = vmatpush1.bf16.msra.mxu0 0
  %875 = vmatprep.subr.bf16.mxu0 %v861
  %876 = vmatpush1.bf16.msra.mxu0 %v858
  %877 = vmatprep.subr.bf16.mxu0 %v852
  %878 = vmatpush1.bf16.msra.mxu0 %v851
  %879 = vmatprep.subr.bf16.mxu0 0
  %880 = vmatpush2.bf16.msra.mxu0 0
  %881 = vmatprep.subr.bf16.mxu0 0
  %882 = vmatpush2.bf16.msra.mxu0 0
  %883 = vmatprep.subr.bf16.mxu0 0
  %884 = vmatpush2.bf16.msra.mxu0 0
  %885 = vmatprep.subr.bf16.mxu0 0
  %886 = vmatpush2.bf16.msra.mxu0 0
  %887 = vmatprep.subr.bf16.mxu0 0
  %888 = vmatpush2.bf16.msra.mxu0 0
  %889 = vmatprep.subr.bf16.mxu0 0
  %890 = vmatpush2.bf16.msra.mxu0 0
  %891 = vmatprep.subr.bf16.mxu0 0
  %892 = vmatpush2.bf16.msra.mxu0 0
  %893 = vmatprep.subr.bf16.mxu0 0
  %894 = vmatpush2.bf16.msra.mxu0 0
  %895 = vmatprep.mubr.bf16.mxu0 0
  %896 = vmatmul.mubr.bf16.gmra.mxu0 %v45
  %v897 = vpop.f32.mrf.mxu0
  %v898 = vadd.f32 0.0, %v897
  %v899 = vpop.f32.mrf.mxu0
  %v900 = vadd.f32 0.0, %v899
  %v901 = vpop.f32.mrf.mxu0
  %v902 = vpop.f32.mrf.mxu0
  %903 = vdwg.mxu0
  %v904 = vmul.f32 %v898, %v101
  %v905 = vmul.f32 %v900, %v101
  %v906 = vadd.f32 %v904, %v108
  %v907 = vadd.f32 %v905, %v108
  %v908 = vmax.f32 %v906, 0.0
  %v909 = vmax.f32 %v907, 0.0
  %v910 = vmax.f32 %v832, %v908
  %v911 = vmax.f32 %v833, %v909
  %s912 = scalar_lea.vmem %s0, 352
  %v913 = vld [vmem:[%s912] sm:$0xff]
  %v914 = vld [vmem:[%s912 + $0x8] sm:$0xff]
  %v915 = vld [vmem:[%s912 + $0x10] sm:$0xff]
  %v916 = vld [vmem:[%s912 + $0x18] sm:$0x11]
  %v921 = vunpack.c.l.b16 %v913
  %v922 = vunpack.c.h.b16 %v913
  %v923 = vunpack.c.l.b16 %v914
  %v924 = vunpack.c.h.b16 %v914
  %v925 = vunpack.c.l.b16 %v915
  %v926 = vunpack.c.h.b16 %v915
  %v927 = vunpack.c.l.b16 %v916
  %v928 = vunpack.c.h.b16 %v916
  %v929 = vpack.c.b16 %v923, %v921
  %v930 = vpack.c.b16 %v924, %v922
  %v931 = vpack.c.b16 %v927, %v925
  %v932 = vpack.c.b16 %v928, %v926
  %v936 = vand.u32 %v931, %v50
  %v939 = vand.u32 %v932, %v50
  %941 = vmatprep.subr.bf16.mxu0 0
  %942 = vmatpush1.bf16.msra.mxu0 0
  %943 = vmatprep.subr.bf16.mxu0 0
  %944 = vmatpush1.bf16.msra.mxu0 0
  %945 = vmatprep.subr.bf16.mxu0 0
  %946 = vmatpush1.bf16.msra.mxu0 0
  %947 = vmatprep.subr.bf16.mxu0 0
  %948 = vmatpush1.bf16.msra.mxu0 0
  %949 = vmatprep.subr.bf16.mxu0 0
  %950 = vmatpush1.bf16.msra.mxu0 0
  %951 = vmatprep.subr.bf16.mxu0 0
  %952 = vmatpush1.bf16.msra.mxu0 0
  %953 = vmatprep.subr.bf16.mxu0 %v939
  %954 = vmatpush1.bf16.msra.mxu0 %v936
  %955 = vmatprep.subr.bf16.mxu0 %v930
  %956 = vmatpush1.bf16.msra.mxu0 %v929
  %957 = vmatprep.subr.bf16.mxu0 0
  %958 = vmatpush2.bf16.msra.mxu0 0
  %959 = vmatprep.subr.bf16.mxu0 0
  %960 = vmatpush2.bf16.msra.mxu0 0
  %961 = vmatprep.subr.bf16.mxu0 0
  %962 = vmatpush2.bf16.msra.mxu0 0
  %963 = vmatprep.subr.bf16.mxu0 0
  %964 = vmatpush2.bf16.msra.mxu0 0
  %965 = vmatprep.subr.bf16.mxu0 0
  %966 = vmatpush2.bf16.msra.mxu0 0
  %967 = vmatprep.subr.bf16.mxu0 0
  %968 = vmatpush2.bf16.msra.mxu0 0
  %969 = vmatprep.subr.bf16.mxu0 0
  %970 = vmatpush2.bf16.msra.mxu0 0
  %971 = vmatprep.subr.bf16.mxu0 0
  %972 = vmatpush2.bf16.msra.mxu0 0
  %973 = vmatprep.mubr.bf16.mxu0 0
  %974 = vmatmul.mubr.bf16.gmra.mxu0 %v45
  %v975 = vpop.f32.mrf.mxu0
  %v976 = vadd.f32 0.0, %v975
  %v977 = vpop.f32.mrf.mxu0
  %v978 = vadd.f32 0.0, %v977
  %v979 = vpop.f32.mrf.mxu0
  %v980 = vpop.f32.mrf.mxu0
  %981 = vdwg.mxu0
  %v982 = vmul.f32 %v976, %v101
  %v983 = vmul.f32 %v978, %v101
  %v984 = vadd.f32 %v982, %v108
  %v985 = vadd.f32 %v983, %v108
  %v986 = vmax.f32 %v984, 0.0
  %v987 = vmax.f32 %v985, 0.0
  %v988 = vmax.f32 %v910, %v986
  %v989 = vmax.f32 %v911, %v987
  %v990 = vpack.c.bf16 %v988, %v988
  %v991 = vpack.c.bf16 %v989, %v989
  %v994 = vunpack.c.l.b16 %v990
  %v995 = vunpack.c.l.b16 %v991
  %v996 = vpack.c.b16 %v995, %v994
  %s998 = scalar_lea.vmem %s4, 16
  %999 = vst.msk [vmem:[%s998] sm:$0x77] %vm358, %v996
  %s1000 = scalar_lea.vmem %s0, 384
  %v1001 = vld [vmem:[%s1000] sm:$0xff]
  %v1002 = vld [vmem:[%s1000 + $0x8] sm:$0xff]
  %v1003 = vld [vmem:[%s1000 + $0x10] sm:$0xff]
  %v1004 = vld [vmem:[%s1000 + $0x18] sm:$0x11]
  %v1009 = vunpack.c.l.b16 %v1001
  %v1010 = vunpack.c.h.b16 %v1001
  %v1011 = vunpack.c.l.b16 %v1002
  %v1012 = vunpack.c.h.b16 %v1002
  %v1013 = vunpack.c.l.b16 %v1003
  %v1014 = vunpack.c.h.b16 %v1003
  %v1015 = vunpack.c.l.b16 %v1004
  %v1016 = vunpack.c.h.b16 %v1004
  %v1017 = vpack.c.b16 %v1011, %v1009
  %v1018 = vpack.c.b16 %v1012, %v1010
  %v1019 = vpack.c.b16 %v1015, %v1013
  %v1020 = vpack.c.b16 %v1016, %v1014
  %v1024 = vand.u32 %v1019, %v50
  %v1027 = vand.u32 %v1020, %v50
  %1029 = vmatprep.subr.bf16.mxu0 0
  %1030 = vmatpush1.bf16.msra.mxu0 0
  %1031 = vmatprep.subr.bf16.mxu0 0
  %1032 = vmatpush1.bf16.msra.mxu0 0
  %1033 = vmatprep.subr.bf16.mxu0 0
  %1034 = vmatpush1.bf16.msra.mxu0 0
  %1035 = vmatprep.subr.bf16.mxu0 0
  %1036 = vmatpush1.bf16.msra.mxu0 0
  %1037 = vmatprep.subr.bf16.mxu0 0
  %1038 = vmatpush1.bf16.msra.mxu0 0
  %1039 = vmatprep.subr.bf16.mxu0 0
  %1040 = vmatpush1.bf16.msra.mxu0 0
  %1041 = vmatprep.subr.bf16.mxu0 %v1027
  %1042 = vmatpush1.bf16.msra.mxu0 %v1024
  %1043 = vmatprep.subr.bf16.mxu0 %v1018
  %1044 = vmatpush1.bf16.msra.mxu0 %v1017
  %1045 = vmatprep.subr.bf16.mxu0 0
  %1046 = vmatpush2.bf16.msra.mxu0 0
  %1047 = vmatprep.subr.bf16.mxu0 0
  %1048 = vmatpush2.bf16.msra.mxu0 0
  %1049 = vmatprep.subr.bf16.mxu0 0
  %1050 = vmatpush2.bf16.msra.mxu0 0
  %1051 = vmatprep.subr.bf16.mxu0 0
  %1052 = vmatpush2.bf16.msra.mxu0 0
  %1053 = vmatprep.subr.bf16.mxu0 0
  %1054 = vmatpush2.bf16.msra.mxu0 0
  %1055 = vmatprep.subr.bf16.mxu0 0
  %1056 = vmatpush2.bf16.msra.mxu0 0
  %1057 = vmatprep.subr.bf16.mxu0 0
  %1058 = vmatpush2.bf16.msra.mxu0 0
  %1059 = vmatprep.subr.bf16.mxu0 0
  %1060 = vmatpush2.bf16.msra.mxu0 0
  %1061 = vmatprep.mubr.bf16.mxu0 0
  %1062 = vmatmul.mubr.bf16.gmra.mxu0 %v45
  %v1063 = vpop.f32.mrf.mxu0
  %v1064 = vadd.f32 0.0, %v1063
  %v1065 = vpop.f32.mrf.mxu0
  %v1066 = vadd.f32 0.0, %v1065
  %v1067 = vpop.f32.mrf.mxu0
  %v1068 = vpop.f32.mrf.mxu0
  %1069 = vdwg.mxu0
  %v1070 = vmul.f32 %v1064, %v101
  %v1071 = vmul.f32 %v1066, %v101
  %v1072 = vadd.f32 %v1070, %v108
  %v1073 = vadd.f32 %v1071, %v108
  %v1074 = vmax.f32 %v1072, 0.0
  %v1075 = vmax.f32 %v1073, 0.0
  %s1076 = scalar_lea.vmem %s0, 416
  %v1077 = vld [vmem:[%s1076] sm:$0xff]
  %v1078 = vld [vmem:[%s1076 + $0x8] sm:$0xff]
  %v1079 = vld [vmem:[%s1076 + $0x10] sm:$0xff]
  %v1080 = vld [vmem:[%s1076 + $0x18] sm:$0x11]
  %v1085 = vunpack.c.l.b16 %v1077
  %v1086 = vunpack.c.h.b16 %v1077
  %v1087 = vunpack.c.l.b16 %v1078
  %v1088 = vunpack.c.h.b16 %v1078
  %v1089 = vunpack.c.l.b16 %v1079
  %v1090 = vunpack.c.h.b16 %v1079
  %v1091 = vunpack.c.l.b16 %v1080
  %v1092 = vunpack.c.h.b16 %v1080
  %v1093 = vpack.c.b16 %v1087, %v1085
  %v1094 = vpack.c.b16 %v1088, %v1086
  %v1095 = vpack.c.b16 %v1091, %v1089
  %v1096 = vpack.c.b16 %v1092, %v1090
  %v1100 = vand.u32 %v1095, %v50
  %v1103 = vand.u32 %v1096, %v50
  %1105 = vmatprep.subr.bf16.mxu0 0
  %1106 = vmatpush1.bf16.msra.mxu0 0
  %1107 = vmatprep.subr.bf16.mxu0 0
  %1108 = vmatpush1.bf16.msra.mxu0 0
  %1109 = vmatprep.subr.bf16.mxu0 0
  %1110 = vmatpush1.bf16.msra.mxu0 0
  %1111 = vmatprep.subr.bf16.mxu0 0
  %1112 = vmatpush1.bf16.msra.mxu0 0
  %1113 = vmatprep.subr.bf16.mxu0 0
  %1114 = vmatpush1.bf16.msra.mxu0 0
  %1115 = vmatprep.subr.bf16.mxu0 0
  %1116 = vmatpush1.bf16.msra.mxu0 0
  %1117 = vmatprep.subr.bf16.mxu0 %v1103
  %1118 = vmatpush1.bf16.msra.mxu0 %v1100
  %1119 = vmatprep.subr.bf16.mxu0 %v1094
  %1120 = vmatpush1.bf16.msra.mxu0 %v1093
  %1121 = vmatprep.subr.bf16.mxu0 0
  %1122 = vmatpush2.bf16.msra.mxu0 0
  %1123 = vmatprep.subr.bf16.mxu0 0
  %1124 = vmatpush2.bf16.msra.mxu0 0
  %1125 = vmatprep.subr.bf16.mxu0 0
  %1126 = vmatpush2.bf16.msra.mxu0 0
  %1127 = vmatprep.subr.bf16.mxu0 0
  %1128 = vmatpush2.bf16.msra.mxu0 0
  %1129 = vmatprep.subr.bf16.mxu0 0
  %1130 = vmatpush2.bf16.msra.mxu0 0
  %1131 = vmatprep.subr.bf16.mxu0 0
  %1132 = vmatpush2.bf16.msra.mxu0 0
  %1133 = vmatprep.subr.bf16.mxu0 0
  %1134 = vmatpush2.bf16.msra.mxu0 0
  %1135 = vmatprep.subr.bf16.mxu0 0
  %1136 = vmatpush2.bf16.msra.mxu0 0
  %1137 = vmatprep.mubr.bf16.mxu0 0
  %1138 = vmatmul.mubr.bf16.gmra.mxu0 %v45
  %v1139 = vpop.f32.mrf.mxu0
  %v1140 = vadd.f32 0.0, %v1139
  %v1141 = vpop.f32.mrf.mxu0
  %v1142 = vadd.f32 0.0, %v1141
  %v1143 = vpop.f32.mrf.mxu0
  %v1144 = vpop.f32.mrf.mxu0
  %1145 = vdwg.mxu0
  %v1146 = vmul.f32 %v1140, %v101
  %v1147 = vmul.f32 %v1142, %v101
  %v1148 = vadd.f32 %v1146, %v108
  %v1149 = vadd.f32 %v1147, %v108
  %v1150 = vmax.f32 %v1148, 0.0
  %v1151 = vmax.f32 %v1149, 0.0
  %v1152 = vmax.f32 %v1074, %v1150
  %v1153 = vmax.f32 %v1075, %v1151
  %s1154 = scalar_lea.vmem %s0, 448
  %v1155 = vld [vmem:[%s1154] sm:$0xff]
  %v1156 = vld [vmem:[%s1154 + $0x8] sm:$0xff]
  %v1157 = vld [vmem:[%s1154 + $0x10] sm:$0xff]
  %v1158 = vld [vmem:[%s1154 + $0x18] sm:$0x11]
  %v1163 = vunpack.c.l.b16 %v1155
  %v1164 = vunpack.c.h.b16 %v1155
  %v1165 = vunpack.c.l.b16 %v1156
  %v1166 = vunpack.c.h.b16 %v1156
  %v1167 = vunpack.c.l.b16 %v1157
  %v1168 = vunpack.c.h.b16 %v1157
  %v1169 = vunpack.c.l.b16 %v1158
  %v1170 = vunpack.c.h.b16 %v1158
  %v1171 = vpack.c.b16 %v1165, %v1163
  %v1172 = vpack.c.b16 %v1166, %v1164
  %v1173 = vpack.c.b16 %v1169, %v1167
  %v1174 = vpack.c.b16 %v1170, %v1168
  %v1178 = vand.u32 %v1173, %v50
  %v1181 = vand.u32 %v1174, %v50
  %1183 = vmatprep.subr.bf16.mxu0 0
  %1184 = vmatpush1.bf16.msra.mxu0 0
  %1185 = vmatprep.subr.bf16.mxu0 0
  %1186 = vmatpush1.bf16.msra.mxu0 0
  %1187 = vmatprep.subr.bf16.mxu0 0
  %1188 = vmatpush1.bf16.msra.mxu0 0
  %1189 = vmatprep.subr.bf16.mxu0 0
  %1190 = vmatpush1.bf16.msra.mxu0 0
  %1191 = vmatprep.subr.bf16.mxu0 0
  %1192 = vmatpush1.bf16.msra.mxu0 0
  %1193 = vmatprep.subr.bf16.mxu0 0
  %1194 = vmatpush1.bf16.msra.mxu0 0
  %1195 = vmatprep.subr.bf16.mxu0 %v1181
  %1196 = vmatpush1.bf16.msra.mxu0 %v1178
  %1197 = vmatprep.subr.bf16.mxu0 %v1172
  %1198 = vmatpush1.bf16.msra.mxu0 %v1171
  %1199 = vmatprep.subr.bf16.mxu0 0
  %1200 = vmatpush2.bf16.msra.mxu0 0
  %1201 = vmatprep.subr.bf16.mxu0 0
  %1202 = vmatpush2.bf16.msra.mxu0 0
  %1203 = vmatprep.subr.bf16.mxu0 0
  %1204 = vmatpush2.bf16.msra.mxu0 0
  %1205 = vmatprep.subr.bf16.mxu0 0
  %1206 = vmatpush2.bf16.msra.mxu0 0
  %1207 = vmatprep.subr.bf16.mxu0 0
  %1208 = vmatpush2.bf16.msra.mxu0 0
  %1209 = vmatprep.subr.bf16.mxu0 0
  %1210 = vmatpush2.bf16.msra.mxu0 0
  %1211 = vmatprep.subr.bf16.mxu0 0
  %1212 = vmatpush2.bf16.msra.mxu0 0
  %1213 = vmatprep.subr.bf16.mxu0 0
  %1214 = vmatpush2.bf16.msra.mxu0 0
  %1215 = vmatprep.mubr.bf16.mxu0 0
  %1216 = vmatmul.mubr.bf16.gmra.mxu0 %v45
  %v1217 = vpop.f32.mrf.mxu0
  %v1218 = vadd.f32 0.0, %v1217
  %v1219 = vpop.f32.mrf.mxu0
  %v1220 = vadd.f32 0.0, %v1219
  %v1221 = vpop.f32.mrf.mxu0
  %v1222 = vpop.f32.mrf.mxu0
  %1223 = vdwg.mxu0
  %v1224 = vmul.f32 %v1218, %v101
  %v1225 = vmul.f32 %v1220, %v101
  %v1226 = vadd.f32 %v1224, %v108
  %v1227 = vadd.f32 %v1225, %v108
  %v1228 = vmax.f32 %v1226, 0.0
  %v1229 = vmax.f32 %v1227, 0.0
  %v1230 = vmax.f32 %v1152, %v1228
  %v1231 = vmax.f32 %v1153, %v1229
  %s1232 = scalar_lea.vmem %s0, 480
  %v1233 = vld [vmem:[%s1232] sm:$0xff]
  %v1234 = vld [vmem:[%s1232 + $0x8] sm:$0xff]
  %v1235 = vld [vmem:[%s1232 + $0x10] sm:$0xff]
  %v1236 = vld [vmem:[%s1232 + $0x18] sm:$0x11]
  %v1241 = vunpack.c.l.b16 %v1233
  %v1242 = vunpack.c.h.b16 %v1233
  %v1243 = vunpack.c.l.b16 %v1234
  %v1244 = vunpack.c.h.b16 %v1234
  %v1245 = vunpack.c.l.b16 %v1235
  %v1246 = vunpack.c.h.b16 %v1235
  %v1247 = vunpack.c.l.b16 %v1236
  %v1248 = vunpack.c.h.b16 %v1236
  %v1249 = vpack.c.b16 %v1243, %v1241
  %v1250 = vpack.c.b16 %v1244, %v1242
  %v1251 = vpack.c.b16 %v1247, %v1245
  %v1252 = vpack.c.b16 %v1248, %v1246
  %v1256 = vand.u32 %v1251, %v50
  %v1259 = vand.u32 %v1252, %v50
  %1261 = vmatprep.subr.bf16.mxu0 0
  %1262 = vmatpush1.bf16.msra.mxu0 0
  %1263 = vmatprep.subr.bf16.mxu0 0
  %1264 = vmatpush1.bf16.msra.mxu0 0
  %1265 = vmatprep.subr.bf16.mxu0 0
  %1266 = vmatpush1.bf16.msra.mxu0 0
  %1267 = vmatprep.subr.bf16.mxu0 0
  %1268 = vmatpush1.bf16.msra.mxu0 0
  %1269 = vmatprep.subr.bf16.mxu0 0
  %1270 = vmatpush1.bf16.msra.mxu0 0
  %1271 = vmatprep.subr.bf16.mxu0 0
  %1272 = vmatpush1.bf16.msra.mxu0 0
  %1273 = vmatprep.subr.bf16.mxu0 %v1259
  %1274 = vmatpush1.bf16.msra.mxu0 %v1256
  %1275 = vmatprep.subr.bf16.mxu0 %v1250
  %1276 = vmatpush1.bf16.msra.mxu0 %v1249
  %1277 = vmatprep.subr.bf16.mxu0 0
  %1278 = vmatpush2.bf16.msra.mxu0 0
  %1279 = vmatprep.subr.bf16.mxu0 0
  %1280 = vmatpush2.bf16.msra.mxu0 0
  %1281 = vmatprep.subr.bf16.mxu0 0
  %1282 = vmatpush2.bf16.msra.mxu0 0
  %1283 = vmatprep.subr.bf16.mxu0 0
  %1284 = vmatpush2.bf16.msra.mxu0 0
  %1285 = vmatprep.subr.bf16.mxu0 0
  %1286 = vmatpush2.bf16.msra.mxu0 0
  %1287 = vmatprep.subr.bf16.mxu0 0
  %1288 = vmatpush2.bf16.msra.mxu0 0
  %1289 = vmatprep.subr.bf16.mxu0 0
  %1290 = vmatpush2.bf16.msra.mxu0 0
  %1291 = vmatprep.subr.bf16.mxu0 0
  %1292 = vmatpush2.bf16.msra.mxu0 0
  %1293 = vmatprep.mubr.bf16.mxu0 0
  %1294 = vmatmul.mubr.bf16.gmra.mxu0 %v45
  %v1295 = vpop.f32.mrf.mxu0
  %v1296 = vadd.f32 0.0, %v1295
  %v1297 = vpop.f32.mrf.mxu0
  %v1298 = vadd.f32 0.0, %v1297
  %v1299 = vpop.f32.mrf.mxu0
  %v1300 = vpop.f32.mrf.mxu0
  %1301 = vdwg.mxu0
  %v1302 = vmul.f32 %v1296, %v101
  %v1303 = vmul.f32 %v1298, %v101
  %v1304 = vadd.f32 %v1302, %v108
  %v1305 = vadd.f32 %v1303, %v108
  %v1306 = vmax.f32 %v1304, 0.0
  %v1307 = vmax.f32 %v1305, 0.0
  %v1308 = vmax.f32 %v1230, %v1306
  %v1309 = vmax.f32 %v1231, %v1307
  %v1310 = vpack.c.bf16 %v1308, %v1308
  %v1311 = vpack.c.bf16 %v1309, %v1309
  %v1314 = vunpack.c.l.b16 %v1310
  %v1315 = vunpack.c.l.b16 %v1311
  %v1316 = vpack.c.b16 %v1315, %v1314
  %s1318 = scalar_lea.vmem %s4, 24
  %1319 = vst.msk [vmem:[%s1318] sm:$0x77] %vm358, %v1316
  %s1320 = scalar_lea.vmem %s0, 512
  %v1321 = vld [vmem:[%s1320] sm:$0xff]
  %v1322 = vld [vmem:[%s1320 + $0x8] sm:$0xff]
  %v1323 = vld [vmem:[%s1320 + $0x10] sm:$0xff]
  %v1324 = vld [vmem:[%s1320 + $0x18] sm:$0x11]
  %v1329 = vunpack.c.l.b16 %v1321
  %v1330 = vunpack.c.h.b16 %v1321
  %v1331 = vunpack.c.l.b16 %v1322
  %v1332 = vunpack.c.h.b16 %v1322
  %v1333 = vunpack.c.l.b16 %v1323
  %v1334 = vunpack.c.h.b16 %v1323
  %v1335 = vunpack.c.l.b16 %v1324
  %v1336 = vunpack.c.h.b16 %v1324
  %v1337 = vpack.c.b16 %v1331, %v1329
  %v1338 = vpack.c.b16 %v1332, %v1330
  %v1339 = vpack.c.b16 %v1335, %v1333
  %v1340 = vpack.c.b16 %v1336, %v1334
  %v1344 = vand.u32 %v1339, %v50
  %v1347 = vand.u32 %v1340, %v50
  %1349 = vmatprep.subr.bf16.mxu0 0
  %1350 = vmatpush1.bf16.msra.mxu0 0
  %1351 = vmatprep.subr.bf16.mxu0 0
  %1352 = vmatpush1.bf16.msra.mxu0 0
  %1353 = vmatprep.subr.bf16.mxu0 0
  %1354 = vmatpush1.bf16.msra.mxu0 0
  %1355 = vmatprep.subr.bf16.mxu0 0
  %1356 = vmatpush1.bf16.msra.mxu0 0
  %1357 = vmatprep.subr.bf16.mxu0 0
  %1358 = vmatpush1.bf16.msra.mxu0 0
  %1359 = vmatprep.subr.bf16.mxu0 0
  %1360 = vmatpush1.bf16.msra.mxu0 0
  %1361 = vmatprep.subr.bf16.mxu0 %v1347
  %1362 = vmatpush1.bf16.msra.mxu0 %v1344
  %1363 = vmatprep.subr.bf16.mxu0 %v1338
  %1364 = vmatpush1.bf16.msra.mxu0 %v1337
  %1365 = vmatprep.subr.bf16.mxu0 0
  %1366 = vmatpush2.bf16.msra.mxu0 0
  %1367 = vmatprep.subr.bf16.mxu0 0
  %1368 = vmatpush2.bf16.msra.mxu0 0
  %1369 = vmatprep.subr.bf16.mxu0 0
  %1370 = vmatpush2.bf16.msra.mxu0 0
  %1371 = vmatprep.subr.bf16.mxu0 0
  %1372 = vmatpush2.bf16.msra.mxu0 0
  %1373 = vmatprep.subr.bf16.mxu0 0
  %1374 = vmatpush2.bf16.msra.mxu0 0
  %1375 = vmatprep.subr.bf16.mxu0 0
  %1376 = vmatpush2.bf16.msra.mxu0 0
  %1377 = vmatprep.subr.bf16.mxu0 0
  %1378 = vmatpush2.bf16.msra.mxu0 0
  %1379 = vmatprep.subr.bf16.mxu0 0
  %1380 = vmatpush2.bf16.msra.mxu0 0
  %1381 = vmatprep.mubr.bf16.mxu0 0
  %1382 = vmatmul.mubr.bf16.gmra.mxu0 %v45
  %v1383 = vpop.f32.mrf.mxu0
  %v1384 = vadd.f32 0.0, %v1383
  %v1385 = vpop.f32.mrf.mxu0
  %v1386 = vadd.f32 0.0, %v1385
  %v1387 = vpop.f32.mrf.mxu0
  %v1388 = vpop.f32.mrf.mxu0
  %1389 = vdwg.mxu0
  %v1390 = vmul.f32 %v1384, %v101
  %v1391 = vmul.f32 %v1386, %v101
  %v1392 = vadd.f32 %v1390, %v108
  %v1393 = vadd.f32 %v1391, %v108
  %v1394 = vmax.f32 %v1392, 0.0
  %v1395 = vmax.f32 %v1393, 0.0
  %s1396 = scalar_lea.vmem %s0, 544
  %v1397 = vld [vmem:[%s1396] sm:$0xff]
  %v1398 = vld [vmem:[%s1396 + $0x8] sm:$0xff]
  %v1399 = vld [vmem:[%s1396 + $0x10] sm:$0xff]
  %v1400 = vld [vmem:[%s1396 + $0x18] sm:$0x11]
  %v1405 = vunpack.c.l.b16 %v1397
  %v1406 = vunpack.c.h.b16 %v1397
  %v1407 = vunpack.c.l.b16 %v1398
  %v1408 = vunpack.c.h.b16 %v1398
  %v1409 = vunpack.c.l.b16 %v1399
  %v1410 = vunpack.c.h.b16 %v1399
  %v1411 = vunpack.c.l.b16 %v1400
  %v1412 = vunpack.c.h.b16 %v1400
  %v1413 = vpack.c.b16 %v1407, %v1405
  %v1414 = vpack.c.b16 %v1408, %v1406
  %v1415 = vpack.c.b16 %v1411, %v1409
  %v1416 = vpack.c.b16 %v1412, %v1410
  %v1420 = vand.u32 %v1415, %v50
  %v1423 = vand.u32 %v1416, %v50
  %1425 = vmatprep.subr.bf16.mxu0 0
  %1426 = vmatpush1.bf16.msra.mxu0 0
  %1427 = vmatprep.subr.bf16.mxu0 0
  %1428 = vmatpush1.bf16.msra.mxu0 0
  %1429 = vmatprep.subr.bf16.mxu0 0
  %1430 = vmatpush1.bf16.msra.mxu0 0
  %1431 = vmatprep.subr.bf16.mxu0 0
  %1432 = vmatpush1.bf16.msra.mxu0 0
  %1433 = vmatprep.subr.bf16.mxu0 0
  %1434 = vmatpush1.bf16.msra.mxu0 0
  %1435 = vmatprep.subr.bf16.mxu0 0
  %1436 = vmatpush1.bf16.msra.mxu0 0
  %1437 = vmatprep.subr.bf16.mxu0 %v1423
  %1438 = vmatpush1.bf16.msra.mxu0 %v1420
  %1439 = vmatprep.subr.bf16.mxu0 %v1414
  %1440 = vmatpush1.bf16.msra.mxu0 %v1413
  %1441 = vmatprep.subr.bf16.mxu0 0
  %1442 = vmatpush2.bf16.msra.mxu0 0
  %1443 = vmatprep.subr.bf16.mxu0 0
  %1444 = vmatpush2.bf16.msra.mxu0 0
  %1445 = vmatprep.subr.bf16.mxu0 0
  %1446 = vmatpush2.bf16.msra.mxu0 0
  %1447 = vmatprep.subr.bf16.mxu0 0
  %1448 = vmatpush2.bf16.msra.mxu0 0
  %1449 = vmatprep.subr.bf16.mxu0 0
  %1450 = vmatpush2.bf16.msra.mxu0 0
  %1451 = vmatprep.subr.bf16.mxu0 0
  %1452 = vmatpush2.bf16.msra.mxu0 0
  %1453 = vmatprep.subr.bf16.mxu0 0
  %1454 = vmatpush2.bf16.msra.mxu0 0
  %1455 = vmatprep.subr.bf16.mxu0 0
  %1456 = vmatpush2.bf16.msra.mxu0 0
  %1457 = vmatprep.mubr.bf16.mxu0 0
  %1458 = vmatmul.mubr.bf16.gmra.mxu0 %v45
  %v1459 = vpop.f32.mrf.mxu0
  %v1460 = vadd.f32 0.0, %v1459
  %v1461 = vpop.f32.mrf.mxu0
  %v1462 = vadd.f32 0.0, %v1461
  %v1463 = vpop.f32.mrf.mxu0
  %v1464 = vpop.f32.mrf.mxu0
  %1465 = vdwg.mxu0
  %v1466 = vmul.f32 %v1460, %v101
  %v1467 = vmul.f32 %v1462, %v101
  %v1468 = vadd.f32 %v1466, %v108
  %v1469 = vadd.f32 %v1467, %v108
  %v1470 = vmax.f32 %v1468, 0.0
  %v1471 = vmax.f32 %v1469, 0.0
  %v1472 = vmax.f32 %v1394, %v1470
  %v1473 = vmax.f32 %v1395, %v1471
  %s1474 = scalar_lea.vmem %s0, 576
  %v1475 = vld [vmem:[%s1474] sm:$0xff]
  %v1476 = vld [vmem:[%s1474 + $0x8] sm:$0xff]
  %v1477 = vld [vmem:[%s1474 + $0x10] sm:$0xff]
  %v1478 = vld [vmem:[%s1474 + $0x18] sm:$0x11]
  %v1483 = vunpack.c.l.b16 %v1475
  %v1484 = vunpack.c.h.b16 %v1475
  %v1485 = vunpack.c.l.b16 %v1476
  %v1486 = vunpack.c.h.b16 %v1476
  %v1487 = vunpack.c.l.b16 %v1477
  %v1488 = vunpack.c.h.b16 %v1477
  %v1489 = vunpack.c.l.b16 %v1478
  %v1490 = vunpack.c.h.b16 %v1478
  %v1491 = vpack.c.b16 %v1485, %v1483
  %v1492 = vpack.c.b16 %v1486, %v1484
  %v1493 = vpack.c.b16 %v1489, %v1487
  %v1494 = vpack.c.b16 %v1490, %v1488
  %v1498 = vand.u32 %v1493, %v50
  %v1501 = vand.u32 %v1494, %v50
  %1503 = vmatprep.subr.bf16.mxu0 0
  %1504 = vmatpush1.bf16.msra.mxu0 0
  %1505 = vmatprep.subr.bf16.mxu0 0
  %1506 = vmatpush1.bf16.msra.mxu0 0
  %1507 = vmatprep.subr.bf16.mxu0 0
  %1508 = vmatpush1.bf16.msra.mxu0 0
  %1509 = vmatprep.subr.bf16.mxu0 0
  %1510 = vmatpush1.bf16.msra.mxu0 0
  %1511 = vmatprep.subr.bf16.mxu0 0
  %1512 = vmatpush1.bf16.msra.mxu0 0
  %1513 = vmatprep.subr.bf16.mxu0 0
  %1514 = vmatpush1.bf16.msra.mxu0 0
  %1515 = vmatprep.subr.bf16.mxu0 %v1501
  %1516 = vmatpush1.bf16.msra.mxu0 %v1498
  %1517 = vmatprep.subr.bf16.mxu0 %v1492
  %1518 = vmatpush1.bf16.msra.mxu0 %v1491
  %1519 = vmatprep.subr.bf16.mxu0 0
  %1520 = vmatpush2.bf16.msra.mxu0 0
  %1521 = vmatprep.subr.bf16.mxu0 0
  %1522 = vmatpush2.bf16.msra.mxu0 0
  %1523 = vmatprep.subr.bf16.mxu0 0
  %1524 = vmatpush2.bf16.msra.mxu0 0
  %1525 = vmatprep.subr.bf16.mxu0 0
  %1526 = vmatpush2.bf16.msra.mxu0 0
  %1527 = vmatprep.subr.bf16.mxu0 0
  %1528 = vmatpush2.bf16.msra.mxu0 0
  %1529 = vmatprep.subr.bf16.mxu0 0
  %1530 = vmatpush2.bf16.msra.mxu0 0
  %1531 = vmatprep.subr.bf16.mxu0 0
  %1532 = vmatpush2.bf16.msra.mxu0 0
  %1533 = vmatprep.subr.bf16.mxu0 0
  %1534 = vmatpush2.bf16.msra.mxu0 0
  %1535 = vmatprep.mubr.bf16.mxu0 0
  %1536 = vmatmul.mubr.bf16.gmra.mxu0 %v45
  %v1537 = vpop.f32.mrf.mxu0
  %v1538 = vadd.f32 0.0, %v1537
  %v1539 = vpop.f32.mrf.mxu0
  %v1540 = vadd.f32 0.0, %v1539
  %v1541 = vpop.f32.mrf.mxu0
  %v1542 = vpop.f32.mrf.mxu0
  %1543 = vdwg.mxu0
  %v1544 = vmul.f32 %v1538, %v101
  %v1545 = vmul.f32 %v1540, %v101
  %v1546 = vadd.f32 %v1544, %v108
  %v1547 = vadd.f32 %v1545, %v108
  %v1548 = vmax.f32 %v1546, 0.0
  %v1549 = vmax.f32 %v1547, 0.0
  %v1550 = vmax.f32 %v1472, %v1548
  %v1551 = vmax.f32 %v1473, %v1549
  %s1552 = scalar_lea.vmem %s0, 608
  %v1553 = vld [vmem:[%s1552] sm:$0xff]
  %v1554 = vld [vmem:[%s1552 + $0x8] sm:$0xff]
  %v1555 = vld [vmem:[%s1552 + $0x10] sm:$0xff]
  %v1556 = vld [vmem:[%s1552 + $0x18] sm:$0x11]
  %v1561 = vunpack.c.l.b16 %v1553
  %v1562 = vunpack.c.h.b16 %v1553
  %v1563 = vunpack.c.l.b16 %v1554
  %v1564 = vunpack.c.h.b16 %v1554
  %v1565 = vunpack.c.l.b16 %v1555
  %v1566 = vunpack.c.h.b16 %v1555
  %v1567 = vunpack.c.l.b16 %v1556
  %v1568 = vunpack.c.h.b16 %v1556
  %v1569 = vpack.c.b16 %v1563, %v1561
  %v1570 = vpack.c.b16 %v1564, %v1562
  %v1571 = vpack.c.b16 %v1567, %v1565
  %v1572 = vpack.c.b16 %v1568, %v1566
  %v1576 = vand.u32 %v1571, %v50
  %v1579 = vand.u32 %v1572, %v50
  %1581 = vmatprep.subr.bf16.mxu0 0
  %1582 = vmatpush1.bf16.msra.mxu0 0
  %1583 = vmatprep.subr.bf16.mxu0 0
  %1584 = vmatpush1.bf16.msra.mxu0 0
  %1585 = vmatprep.subr.bf16.mxu0 0
  %1586 = vmatpush1.bf16.msra.mxu0 0
  %1587 = vmatprep.subr.bf16.mxu0 0
  %1588 = vmatpush1.bf16.msra.mxu0 0
  %1589 = vmatprep.subr.bf16.mxu0 0
  %1590 = vmatpush1.bf16.msra.mxu0 0
  %1591 = vmatprep.subr.bf16.mxu0 0
  %1592 = vmatpush1.bf16.msra.mxu0 0
  %1593 = vmatprep.subr.bf16.mxu0 %v1579
  %1594 = vmatpush1.bf16.msra.mxu0 %v1576
  %1595 = vmatprep.subr.bf16.mxu0 %v1570
  %1596 = vmatpush1.bf16.msra.mxu0 %v1569
  %1597 = vmatprep.subr.bf16.mxu0 0
  %1598 = vmatpush2.bf16.msra.mxu0 0
  %1599 = vmatprep.subr.bf16.mxu0 0
  %1600 = vmatpush2.bf16.msra.mxu0 0
  %1601 = vmatprep.subr.bf16.mxu0 0
  %1602 = vmatpush2.bf16.msra.mxu0 0
  %1603 = vmatprep.subr.bf16.mxu0 0
  %1604 = vmatpush2.bf16.msra.mxu0 0
  %1605 = vmatprep.subr.bf16.mxu0 0
  %1606 = vmatpush2.bf16.msra.mxu0 0
  %1607 = vmatprep.subr.bf16.mxu0 0
  %1608 = vmatpush2.bf16.msra.mxu0 0
  %1609 = vmatprep.subr.bf16.mxu0 0
  %1610 = vmatpush2.bf16.msra.mxu0 0
  %1611 = vmatprep.subr.bf16.mxu0 0
  %1612 = vmatpush2.bf16.msra.mxu0 0
  %1613 = vmatprep.mubr.bf16.mxu0 0
  %1614 = vmatmul.mubr.bf16.gmra.mxu0 %v45
  %v1615 = vpop.f32.mrf.mxu0
  %v1616 = vadd.f32 0.0, %v1615
  %v1617 = vpop.f32.mrf.mxu0
  %v1618 = vadd.f32 0.0, %v1617
  %v1619 = vpop.f32.mrf.mxu0
  %v1620 = vpop.f32.mrf.mxu0
  %1621 = vdwg.mxu0
  %v1622 = vmul.f32 %v1616, %v101
  %v1623 = vmul.f32 %v1618, %v101
  %v1624 = vadd.f32 %v1622, %v108
  %v1625 = vadd.f32 %v1623, %v108
  %v1626 = vmax.f32 %v1624, 0.0
  %v1627 = vmax.f32 %v1625, 0.0
  %v1628 = vmax.f32 %v1550, %v1626
  %v1629 = vmax.f32 %v1551, %v1627
  %v1630 = vpack.c.bf16 %v1628, %v1628
  %v1631 = vpack.c.bf16 %v1629, %v1629
  %v1634 = vunpack.c.l.b16 %v1630
  %v1635 = vunpack.c.l.b16 %v1631
  %v1636 = vpack.c.b16 %v1635, %v1634
  %s1638 = scalar_lea.vmem %s4, 32
  %1639 = vst.msk [vmem:[%s1638] sm:$0x77] %vm358, %v1636
  %s1640 = scalar_lea.vmem %s0, 640
  %v1641 = vld [vmem:[%s1640] sm:$0xff]
  %v1642 = vld [vmem:[%s1640 + $0x8] sm:$0xff]
  %v1643 = vld [vmem:[%s1640 + $0x10] sm:$0xff]
  %v1644 = vld [vmem:[%s1640 + $0x18] sm:$0x11]
  %v1649 = vunpack.c.l.b16 %v1641
  %v1650 = vunpack.c.h.b16 %v1641
  %v1651 = vunpack.c.l.b16 %v1642
  %v1652 = vunpack.c.h.b16 %v1642
  %v1653 = vunpack.c.l.b16 %v1643
  %v1654 = vunpack.c.h.b16 %v1643
  %v1655 = vunpack.c.l.b16 %v1644
  %v1656 = vunpack.c.h.b16 %v1644
  %v1657 = vpack.c.b16 %v1651, %v1649
  %v1658 = vpack.c.b16 %v1652, %v1650
  %v1659 = vpack.c.b16 %v1655, %v1653
  %v1660 = vpack.c.b16 %v1656, %v1654
  %v1664 = vand.u32 %v1659, %v50
  %v1667 = vand.u32 %v1660, %v50
  %1669 = vmatprep.subr.bf16.mxu0 0
  %1670 = vmatpush1.bf16.msra.mxu0 0
  %1671 = vmatprep.subr.bf16.mxu0 0
  %1672 = vmatpush1.bf16.msra.mxu0 0
  %1673 = vmatprep.subr.bf16.mxu0 0
  %1674 = vmatpush1.bf16.msra.mxu0 0
  %1675 = vmatprep.subr.bf16.mxu0 0
  %1676 = vmatpush1.bf16.msra.mxu0 0
  %1677 = vmatprep.subr.bf16.mxu0 0
  %1678 = vmatpush1.bf16.msra.mxu0 0
  %1679 = vmatprep.subr.bf16.mxu0 0
  %1680 = vmatpush1.bf16.msra.mxu0 0
  %1681 = vmatprep.subr.bf16.mxu0 %v1667
  %1682 = vmatpush1.bf16.msra.mxu0 %v1664
  %1683 = vmatprep.subr.bf16.mxu0 %v1658
  %1684 = vmatpush1.bf16.msra.mxu0 %v1657
  %1685 = vmatprep.subr.bf16.mxu0 0
  %1686 = vmatpush2.bf16.msra.mxu0 0
  %1687 = vmatprep.subr.bf16.mxu0 0
  %1688 = vmatpush2.bf16.msra.mxu0 0
  %1689 = vmatprep.subr.bf16.mxu0 0
  %1690 = vmatpush2.bf16.msra.mxu0 0
  %1691 = vmatprep.subr.bf16.mxu0 0
  %1692 = vmatpush2.bf16.msra.mxu0 0
  %1693 = vmatprep.subr.bf16.mxu0 0
  %1694 = vmatpush2.bf16.msra.mxu0 0
  %1695 = vmatprep.subr.bf16.mxu0 0
  %1696 = vmatpush2.bf16.msra.mxu0 0
  %1697 = vmatprep.subr.bf16.mxu0 0
  %1698 = vmatpush2.bf16.msra.mxu0 0
  %1699 = vmatprep.subr.bf16.mxu0 0
  %1700 = vmatpush2.bf16.msra.mxu0 0
  %1701 = vmatprep.mubr.bf16.mxu0 0
  %1702 = vmatmul.mubr.bf16.gmra.mxu0 %v45
  %v1703 = vpop.f32.mrf.mxu0
  %v1704 = vadd.f32 0.0, %v1703
  %v1705 = vpop.f32.mrf.mxu0
  %v1706 = vadd.f32 0.0, %v1705
  %v1707 = vpop.f32.mrf.mxu0
  %v1708 = vpop.f32.mrf.mxu0
  %1709 = vdwg.mxu0
  %v1710 = vmul.f32 %v1704, %v101
  %v1711 = vmul.f32 %v1706, %v101
  %v1712 = vadd.f32 %v1710, %v108
  %v1713 = vadd.f32 %v1711, %v108
  %v1714 = vmax.f32 %v1712, 0.0
  %v1715 = vmax.f32 %v1713, 0.0
  %s1716 = scalar_lea.vmem %s0, 672
  %v1717 = vld [vmem:[%s1716] sm:$0xff]
  %v1718 = vld [vmem:[%s1716 + $0x8] sm:$0xff]
  %v1719 = vld [vmem:[%s1716 + $0x10] sm:$0xff]
  %v1720 = vld [vmem:[%s1716 + $0x18] sm:$0x11]
  %v1725 = vunpack.c.l.b16 %v1717
  %v1726 = vunpack.c.h.b16 %v1717
  %v1727 = vunpack.c.l.b16 %v1718
  %v1728 = vunpack.c.h.b16 %v1718
  %v1729 = vunpack.c.l.b16 %v1719
  %v1730 = vunpack.c.h.b16 %v1719
  %v1731 = vunpack.c.l.b16 %v1720
  %v1732 = vunpack.c.h.b16 %v1720
  %v1733 = vpack.c.b16 %v1727, %v1725
  %v1734 = vpack.c.b16 %v1728, %v1726
  %v1735 = vpack.c.b16 %v1731, %v1729
  %v1736 = vpack.c.b16 %v1732, %v1730
  %v1740 = vand.u32 %v1735, %v50
  %v1743 = vand.u32 %v1736, %v50
  %1745 = vmatprep.subr.bf16.mxu0 0
  %1746 = vmatpush1.bf16.msra.mxu0 0
  %1747 = vmatprep.subr.bf16.mxu0 0
  %1748 = vmatpush1.bf16.msra.mxu0 0
  %1749 = vmatprep.subr.bf16.mxu0 0
  %1750 = vmatpush1.bf16.msra.mxu0 0
  %1751 = vmatprep.subr.bf16.mxu0 0
  %1752 = vmatpush1.bf16.msra.mxu0 0
  %1753 = vmatprep.subr.bf16.mxu0 0
  %1754 = vmatpush1.bf16.msra.mxu0 0
  %1755 = vmatprep.subr.bf16.mxu0 0
  %1756 = vmatpush1.bf16.msra.mxu0 0
  %1757 = vmatprep.subr.bf16.mxu0 %v1743
  %1758 = vmatpush1.bf16.msra.mxu0 %v1740
  %1759 = vmatprep.subr.bf16.mxu0 %v1734
  %1760 = vmatpush1.bf16.msra.mxu0 %v1733
  %1761 = vmatprep.subr.bf16.mxu0 0
  %1762 = vmatpush2.bf16.msra.mxu0 0
  %1763 = vmatprep.subr.bf16.mxu0 0
  %1764 = vmatpush2.bf16.msra.mxu0 0
  %1765 = vmatprep.subr.bf16.mxu0 0
  %1766 = vmatpush2.bf16.msra.mxu0 0
  %1767 = vmatprep.subr.bf16.mxu0 0
  %1768 = vmatpush2.bf16.msra.mxu0 0
  %1769 = vmatprep.subr.bf16.mxu0 0
  %1770 = vmatpush2.bf16.msra.mxu0 0
  %1771 = vmatprep.subr.bf16.mxu0 0
  %1772 = vmatpush2.bf16.msra.mxu0 0
  %1773 = vmatprep.subr.bf16.mxu0 0
  %1774 = vmatpush2.bf16.msra.mxu0 0
  %1775 = vmatprep.subr.bf16.mxu0 0
  %1776 = vmatpush2.bf16.msra.mxu0 0
  %1777 = vmatprep.mubr.bf16.mxu0 0
  %1778 = vmatmul.mubr.bf16.gmra.mxu0 %v45
  %v1779 = vpop.f32.mrf.mxu0
  %v1780 = vadd.f32 0.0, %v1779
  %v1781 = vpop.f32.mrf.mxu0
  %v1782 = vadd.f32 0.0, %v1781
  %v1783 = vpop.f32.mrf.mxu0
  %v1784 = vpop.f32.mrf.mxu0
  %1785 = vdwg.mxu0
  %v1786 = vmul.f32 %v1780, %v101
  %v1787 = vmul.f32 %v1782, %v101
  %v1788 = vadd.f32 %v1786, %v108
  %v1789 = vadd.f32 %v1787, %v108
  %v1790 = vmax.f32 %v1788, 0.0
  %v1791 = vmax.f32 %v1789, 0.0
  %v1792 = vmax.f32 %v1714, %v1790
  %v1793 = vmax.f32 %v1715, %v1791
  %s1794 = scalar_lea.vmem %s0, 704
  %v1795 = vld [vmem:[%s1794] sm:$0xff]
  %v1796 = vld [vmem:[%s1794 + $0x8] sm:$0xff]
  %v1797 = vld [vmem:[%s1794 + $0x10] sm:$0xff]
  %v1798 = vld [vmem:[%s1794 + $0x18] sm:$0x11]
  %v1803 = vunpack.c.l.b16 %v1795
  %v1804 = vunpack.c.h.b16 %v1795
  %v1805 = vunpack.c.l.b16 %v1796
  %v1806 = vunpack.c.h.b16 %v1796
  %v1807 = vunpack.c.l.b16 %v1797
  %v1808 = vunpack.c.h.b16 %v1797
  %v1809 = vunpack.c.l.b16 %v1798
  %v1810 = vunpack.c.h.b16 %v1798
  %v1811 = vpack.c.b16 %v1805, %v1803
  %v1812 = vpack.c.b16 %v1806, %v1804
  %v1813 = vpack.c.b16 %v1809, %v1807
  %v1814 = vpack.c.b16 %v1810, %v1808
  %v1818 = vand.u32 %v1813, %v50
  %v1821 = vand.u32 %v1814, %v50
  %1823 = vmatprep.subr.bf16.mxu0 0
  %1824 = vmatpush1.bf16.msra.mxu0 0
  %1825 = vmatprep.subr.bf16.mxu0 0
  %1826 = vmatpush1.bf16.msra.mxu0 0
  %1827 = vmatprep.subr.bf16.mxu0 0
  %1828 = vmatpush1.bf16.msra.mxu0 0
  %1829 = vmatprep.subr.bf16.mxu0 0
  %1830 = vmatpush1.bf16.msra.mxu0 0
  %1831 = vmatprep.subr.bf16.mxu0 0
  %1832 = vmatpush1.bf16.msra.mxu0 0
  %1833 = vmatprep.subr.bf16.mxu0 0
  %1834 = vmatpush1.bf16.msra.mxu0 0
  %1835 = vmatprep.subr.bf16.mxu0 %v1821
  %1836 = vmatpush1.bf16.msra.mxu0 %v1818
  %1837 = vmatprep.subr.bf16.mxu0 %v1812
  %1838 = vmatpush1.bf16.msra.mxu0 %v1811
  %1839 = vmatprep.subr.bf16.mxu0 0
  %1840 = vmatpush2.bf16.msra.mxu0 0
  %1841 = vmatprep.subr.bf16.mxu0 0
  %1842 = vmatpush2.bf16.msra.mxu0 0
  %1843 = vmatprep.subr.bf16.mxu0 0
  %1844 = vmatpush2.bf16.msra.mxu0 0
  %1845 = vmatprep.subr.bf16.mxu0 0
  %1846 = vmatpush2.bf16.msra.mxu0 0
  %1847 = vmatprep.subr.bf16.mxu0 0
  %1848 = vmatpush2.bf16.msra.mxu0 0
  %1849 = vmatprep.subr.bf16.mxu0 0
  %1850 = vmatpush2.bf16.msra.mxu0 0
  %1851 = vmatprep.subr.bf16.mxu0 0
  %1852 = vmatpush2.bf16.msra.mxu0 0
  %1853 = vmatprep.subr.bf16.mxu0 0
  %1854 = vmatpush2.bf16.msra.mxu0 0
  %1855 = vmatprep.mubr.bf16.mxu0 0
  %1856 = vmatmul.mubr.bf16.gmra.mxu0 %v45
  %v1857 = vpop.f32.mrf.mxu0
  %v1858 = vadd.f32 0.0, %v1857
  %v1859 = vpop.f32.mrf.mxu0
  %v1860 = vadd.f32 0.0, %v1859
  %v1861 = vpop.f32.mrf.mxu0
  %v1862 = vpop.f32.mrf.mxu0
  %1863 = vdwg.mxu0
  %v1864 = vmul.f32 %v1858, %v101
  %v1865 = vmul.f32 %v1860, %v101
  %v1866 = vadd.f32 %v1864, %v108
  %v1867 = vadd.f32 %v1865, %v108
  %v1868 = vmax.f32 %v1866, 0.0
  %v1869 = vmax.f32 %v1867, 0.0
  %v1870 = vmax.f32 %v1792, %v1868
  %v1871 = vmax.f32 %v1793, %v1869
  %s1872 = scalar_lea.vmem %s0, 736
  %v1873 = vld [vmem:[%s1872] sm:$0xff]
  %v1874 = vld [vmem:[%s1872 + $0x8] sm:$0xff]
  %v1875 = vld [vmem:[%s1872 + $0x10] sm:$0xff]
  %v1876 = vld [vmem:[%s1872 + $0x18] sm:$0x11]
  %v1881 = vunpack.c.l.b16 %v1873
  %v1882 = vunpack.c.h.b16 %v1873
  %v1883 = vunpack.c.l.b16 %v1874
  %v1884 = vunpack.c.h.b16 %v1874
  %v1885 = vunpack.c.l.b16 %v1875
  %v1886 = vunpack.c.h.b16 %v1875
  %v1887 = vunpack.c.l.b16 %v1876
  %v1888 = vunpack.c.h.b16 %v1876
  %v1889 = vpack.c.b16 %v1883, %v1881
  %v1890 = vpack.c.b16 %v1884, %v1882
  %v1891 = vpack.c.b16 %v1887, %v1885
  %v1892 = vpack.c.b16 %v1888, %v1886
  %v1896 = vand.u32 %v1891, %v50
  %v1899 = vand.u32 %v1892, %v50
  %1901 = vmatprep.subr.bf16.mxu0 0
  %1902 = vmatpush1.bf16.msra.mxu0 0
  %1903 = vmatprep.subr.bf16.mxu0 0
  %1904 = vmatpush1.bf16.msra.mxu0 0
  %1905 = vmatprep.subr.bf16.mxu0 0
  %1906 = vmatpush1.bf16.msra.mxu0 0
  %1907 = vmatprep.subr.bf16.mxu0 0
  %1908 = vmatpush1.bf16.msra.mxu0 0
  %1909 = vmatprep.subr.bf16.mxu0 0
  %1910 = vmatpush1.bf16.msra.mxu0 0
  %1911 = vmatprep.subr.bf16.mxu0 0
  %1912 = vmatpush1.bf16.msra.mxu0 0
  %1913 = vmatprep.subr.bf16.mxu0 %v1899
  %1914 = vmatpush1.bf16.msra.mxu0 %v1896
  %1915 = vmatprep.subr.bf16.mxu0 %v1890
  %1916 = vmatpush1.bf16.msra.mxu0 %v1889
  %1917 = vmatprep.subr.bf16.mxu0 0
  %1918 = vmatpush2.bf16.msra.mxu0 0
  %1919 = vmatprep.subr.bf16.mxu0 0
  %1920 = vmatpush2.bf16.msra.mxu0 0
  %1921 = vmatprep.subr.bf16.mxu0 0
  %1922 = vmatpush2.bf16.msra.mxu0 0
  %1923 = vmatprep.subr.bf16.mxu0 0
  %1924 = vmatpush2.bf16.msra.mxu0 0
  %1925 = vmatprep.subr.bf16.mxu0 0
  %1926 = vmatpush2.bf16.msra.mxu0 0
  %1927 = vmatprep.subr.bf16.mxu0 0
  %1928 = vmatpush2.bf16.msra.mxu0 0
  %1929 = vmatprep.subr.bf16.mxu0 0
  %1930 = vmatpush2.bf16.msra.mxu0 0
  %1931 = vmatprep.subr.bf16.mxu0 0
  %1932 = vmatpush2.bf16.msra.mxu0 0
  %1933 = vmatprep.mubr.bf16.mxu0 0
  %1934 = vmatmul.mubr.bf16.gmra.mxu0 %v45
  %v1935 = vpop.f32.mrf.mxu0
  %v1936 = vadd.f32 0.0, %v1935
  %v1937 = vpop.f32.mrf.mxu0
  %v1938 = vadd.f32 0.0, %v1937
  %v1939 = vpop.f32.mrf.mxu0
  %v1940 = vpop.f32.mrf.mxu0
  %1941 = vdwg.mxu0
  %v1942 = vmul.f32 %v1936, %v101
  %v1943 = vmul.f32 %v1938, %v101
  %v1944 = vadd.f32 %v1942, %v108
  %v1945 = vadd.f32 %v1943, %v108
  %v1946 = vmax.f32 %v1944, 0.0
  %v1947 = vmax.f32 %v1945, 0.0
  %v1948 = vmax.f32 %v1870, %v1946
  %v1949 = vmax.f32 %v1871, %v1947
  %v1950 = vpack.c.bf16 %v1948, %v1948
  %v1951 = vpack.c.bf16 %v1949, %v1949
  %v1954 = vunpack.c.l.b16 %v1950
  %v1955 = vunpack.c.l.b16 %v1951
  %v1956 = vpack.c.b16 %v1955, %v1954
  %s1958 = scalar_lea.vmem %s4, 40
  %1959 = vst.msk [vmem:[%s1958] sm:$0x77] %vm358, %v1956
  %s1960 = scalar_lea.vmem %s0, 768
  %v1961 = vld [vmem:[%s1960] sm:$0xff]
  %v1962 = vld [vmem:[%s1960 + $0x8] sm:$0xff]
  %v1963 = vld [vmem:[%s1960 + $0x10] sm:$0xff]
  %v1964 = vld [vmem:[%s1960 + $0x18] sm:$0x11]
  %v1969 = vunpack.c.l.b16 %v1961
  %v1970 = vunpack.c.h.b16 %v1961
  %v1971 = vunpack.c.l.b16 %v1962
  %v1972 = vunpack.c.h.b16 %v1962
  %v1973 = vunpack.c.l.b16 %v1963
  %v1974 = vunpack.c.h.b16 %v1963
  %v1975 = vunpack.c.l.b16 %v1964
  %v1976 = vunpack.c.h.b16 %v1964
  %v1977 = vpack.c.b16 %v1971, %v1969
  %v1978 = vpack.c.b16 %v1972, %v1970
  %v1979 = vpack.c.b16 %v1975, %v1973
  %v1980 = vpack.c.b16 %v1976, %v1974
  %v1984 = vand.u32 %v1979, %v50
  %v1987 = vand.u32 %v1980, %v50
  %1989 = vmatprep.subr.bf16.mxu0 0
  %1990 = vmatpush1.bf16.msra.mxu0 0
  %1991 = vmatprep.subr.bf16.mxu0 0
  %1992 = vmatpush1.bf16.msra.mxu0 0
  %1993 = vmatprep.subr.bf16.mxu0 0
  %1994 = vmatpush1.bf16.msra.mxu0 0
  %1995 = vmatprep.subr.bf16.mxu0 0
  %1996 = vmatpush1.bf16.msra.mxu0 0
  %1997 = vmatprep.subr.bf16.mxu0 0
  %1998 = vmatpush1.bf16.msra.mxu0 0
  %1999 = vmatprep.subr.bf16.mxu0 0
  %2000 = vmatpush1.bf16.msra.mxu0 0
  %2001 = vmatprep.subr.bf16.mxu0 %v1987
  %2002 = vmatpush1.bf16.msra.mxu0 %v1984
  %2003 = vmatprep.subr.bf16.mxu0 %v1978
  %2004 = vmatpush1.bf16.msra.mxu0 %v1977
  %2005 = vmatprep.subr.bf16.mxu0 0
  %2006 = vmatpush2.bf16.msra.mxu0 0
  %2007 = vmatprep.subr.bf16.mxu0 0
  %2008 = vmatpush2.bf16.msra.mxu0 0
  %2009 = vmatprep.subr.bf16.mxu0 0
  %2010 = vmatpush2.bf16.msra.mxu0 0
  %2011 = vmatprep.subr.bf16.mxu0 0
  %2012 = vmatpush2.bf16.msra.mxu0 0
  %2013 = vmatprep.subr.bf16.mxu0 0
  %2014 = vmatpush2.bf16.msra.mxu0 0
  %2015 = vmatprep.subr.bf16.mxu0 0
  %2016 = vmatpush2.bf16.msra.mxu0 0
  %2017 = vmatprep.subr.bf16.mxu0 0
  %2018 = vmatpush2.bf16.msra.mxu0 0
  %2019 = vmatprep.subr.bf16.mxu0 0
  %2020 = vmatpush2.bf16.msra.mxu0 0
  %2021 = vmatprep.mubr.bf16.mxu0 0
  %2022 = vmatmul.mubr.bf16.gmra.mxu0 %v45
  %v2023 = vpop.f32.mrf.mxu0
  %v2024 = vadd.f32 0.0, %v2023
  %v2025 = vpop.f32.mrf.mxu0
  %v2026 = vadd.f32 0.0, %v2025
  %v2027 = vpop.f32.mrf.mxu0
  %v2028 = vpop.f32.mrf.mxu0
  %2029 = vdwg.mxu0
  %v2030 = vmul.f32 %v2024, %v101
  %v2031 = vmul.f32 %v2026, %v101
  %v2032 = vadd.f32 %v2030, %v108
  %v2033 = vadd.f32 %v2031, %v108
  %v2034 = vmax.f32 %v2032, 0.0
  %v2035 = vmax.f32 %v2033, 0.0
  %s2036 = scalar_lea.vmem %s0, 800
  %v2037 = vld [vmem:[%s2036] sm:$0xff]
  %v2038 = vld [vmem:[%s2036 + $0x8] sm:$0xff]
  %v2039 = vld [vmem:[%s2036 + $0x10] sm:$0xff]
  %v2040 = vld [vmem:[%s2036 + $0x18] sm:$0x11]
  %v2045 = vunpack.c.l.b16 %v2037
  %v2046 = vunpack.c.h.b16 %v2037
  %v2047 = vunpack.c.l.b16 %v2038
  %v2048 = vunpack.c.h.b16 %v2038
  %v2049 = vunpack.c.l.b16 %v2039
  %v2050 = vunpack.c.h.b16 %v2039
  %v2051 = vunpack.c.l.b16 %v2040
  %v2052 = vunpack.c.h.b16 %v2040
  %v2053 = vpack.c.b16 %v2047, %v2045
  %v2054 = vpack.c.b16 %v2048, %v2046
  %v2055 = vpack.c.b16 %v2051, %v2049
  %v2056 = vpack.c.b16 %v2052, %v2050
  %v2060 = vand.u32 %v2055, %v50
  %v2063 = vand.u32 %v2056, %v50
  %2065 = vmatprep.subr.bf16.mxu0 0
  %2066 = vmatpush1.bf16.msra.mxu0 0
  %2067 = vmatprep.subr.bf16.mxu0 0
  %2068 = vmatpush1.bf16.msra.mxu0 0
  %2069 = vmatprep.subr.bf16.mxu0 0
  %2070 = vmatpush1.bf16.msra.mxu0 0
  %2071 = vmatprep.subr.bf16.mxu0 0
  %2072 = vmatpush1.bf16.msra.mxu0 0
  %2073 = vmatprep.subr.bf16.mxu0 0
  %2074 = vmatpush1.bf16.msra.mxu0 0
  %2075 = vmatprep.subr.bf16.mxu0 0
  %2076 = vmatpush1.bf16.msra.mxu0 0
  %2077 = vmatprep.subr.bf16.mxu0 %v2063
  %2078 = vmatpush1.bf16.msra.mxu0 %v2060
  %2079 = vmatprep.subr.bf16.mxu0 %v2054
  %2080 = vmatpush1.bf16.msra.mxu0 %v2053
  %2081 = vmatprep.subr.bf16.mxu0 0
  %2082 = vmatpush2.bf16.msra.mxu0 0
  %2083 = vmatprep.subr.bf16.mxu0 0
  %2084 = vmatpush2.bf16.msra.mxu0 0
  %2085 = vmatprep.subr.bf16.mxu0 0
  %2086 = vmatpush2.bf16.msra.mxu0 0
  %2087 = vmatprep.subr.bf16.mxu0 0
  %2088 = vmatpush2.bf16.msra.mxu0 0
  %2089 = vmatprep.subr.bf16.mxu0 0
  %2090 = vmatpush2.bf16.msra.mxu0 0
  %2091 = vmatprep.subr.bf16.mxu0 0
  %2092 = vmatpush2.bf16.msra.mxu0 0
  %2093 = vmatprep.subr.bf16.mxu0 0
  %2094 = vmatpush2.bf16.msra.mxu0 0
  %2095 = vmatprep.subr.bf16.mxu0 0
  %2096 = vmatpush2.bf16.msra.mxu0 0
  %2097 = vmatprep.mubr.bf16.mxu0 0
  %2098 = vmatmul.mubr.bf16.gmra.mxu0 %v45
  %v2099 = vpop.f32.mrf.mxu0
  %v2100 = vadd.f32 0.0, %v2099
  %v2101 = vpop.f32.mrf.mxu0
  %v2102 = vadd.f32 0.0, %v2101
  %v2103 = vpop.f32.mrf.mxu0
  %v2104 = vpop.f32.mrf.mxu0
  %2105 = vdwg.mxu0
  %v2106 = vmul.f32 %v2100, %v101
  %v2107 = vmul.f32 %v2102, %v101
  %v2108 = vadd.f32 %v2106, %v108
  %v2109 = vadd.f32 %v2107, %v108
  %v2110 = vmax.f32 %v2108, 0.0
  %v2111 = vmax.f32 %v2109, 0.0
  %v2112 = vmax.f32 %v2034, %v2110
  %v2113 = vmax.f32 %v2035, %v2111
  %s2114 = scalar_lea.vmem %s0, 832
  %v2115 = vld [vmem:[%s2114] sm:$0xff]
  %v2116 = vld [vmem:[%s2114 + $0x8] sm:$0xff]
  %v2117 = vld [vmem:[%s2114 + $0x10] sm:$0xff]
  %v2118 = vld [vmem:[%s2114 + $0x18] sm:$0x11]
  %v2123 = vunpack.c.l.b16 %v2115
  %v2124 = vunpack.c.h.b16 %v2115
  %v2125 = vunpack.c.l.b16 %v2116
  %v2126 = vunpack.c.h.b16 %v2116
  %v2127 = vunpack.c.l.b16 %v2117
  %v2128 = vunpack.c.h.b16 %v2117
  %v2129 = vunpack.c.l.b16 %v2118
  %v2130 = vunpack.c.h.b16 %v2118
  %v2131 = vpack.c.b16 %v2125, %v2123
  %v2132 = vpack.c.b16 %v2126, %v2124
  %v2133 = vpack.c.b16 %v2129, %v2127
  %v2134 = vpack.c.b16 %v2130, %v2128
  %v2138 = vand.u32 %v2133, %v50
  %v2141 = vand.u32 %v2134, %v50
  %2143 = vmatprep.subr.bf16.mxu0 0
  %2144 = vmatpush1.bf16.msra.mxu0 0
  %2145 = vmatprep.subr.bf16.mxu0 0
  %2146 = vmatpush1.bf16.msra.mxu0 0
  %2147 = vmatprep.subr.bf16.mxu0 0
  %2148 = vmatpush1.bf16.msra.mxu0 0
  %2149 = vmatprep.subr.bf16.mxu0 0
  %2150 = vmatpush1.bf16.msra.mxu0 0
  %2151 = vmatprep.subr.bf16.mxu0 0
  %2152 = vmatpush1.bf16.msra.mxu0 0
  %2153 = vmatprep.subr.bf16.mxu0 0
  %2154 = vmatpush1.bf16.msra.mxu0 0
  %2155 = vmatprep.subr.bf16.mxu0 %v2141
  %2156 = vmatpush1.bf16.msra.mxu0 %v2138
  %2157 = vmatprep.subr.bf16.mxu0 %v2132
  %2158 = vmatpush1.bf16.msra.mxu0 %v2131
  %2159 = vmatprep.subr.bf16.mxu0 0
  %2160 = vmatpush2.bf16.msra.mxu0 0
  %2161 = vmatprep.subr.bf16.mxu0 0
  %2162 = vmatpush2.bf16.msra.mxu0 0
  %2163 = vmatprep.subr.bf16.mxu0 0
  %2164 = vmatpush2.bf16.msra.mxu0 0
  %2165 = vmatprep.subr.bf16.mxu0 0
  %2166 = vmatpush2.bf16.msra.mxu0 0
  %2167 = vmatprep.subr.bf16.mxu0 0
  %2168 = vmatpush2.bf16.msra.mxu0 0
  %2169 = vmatprep.subr.bf16.mxu0 0
  %2170 = vmatpush2.bf16.msra.mxu0 0
  %2171 = vmatprep.subr.bf16.mxu0 0
  %2172 = vmatpush2.bf16.msra.mxu0 0
  %2173 = vmatprep.subr.bf16.mxu0 0
  %2174 = vmatpush2.bf16.msra.mxu0 0
  %2175 = vmatprep.mubr.bf16.mxu0 0
  %2176 = vmatmul.mubr.bf16.gmra.mxu0 %v45
  %v2177 = vpop.f32.mrf.mxu0
  %v2178 = vadd.f32 0.0, %v2177
  %v2179 = vpop.f32.mrf.mxu0
  %v2180 = vadd.f32 0.0, %v2179
  %v2181 = vpop.f32.mrf.mxu0
  %v2182 = vpop.f32.mrf.mxu0
  %2183 = vdwg.mxu0
  %v2184 = vmul.f32 %v2178, %v101
  %v2185 = vmul.f32 %v2180, %v101
  %v2186 = vadd.f32 %v2184, %v108
  %v2187 = vadd.f32 %v2185, %v108
  %v2188 = vmax.f32 %v2186, 0.0
  %v2189 = vmax.f32 %v2187, 0.0
  %v2190 = vmax.f32 %v2112, %v2188
  %v2191 = vmax.f32 %v2113, %v2189
  %s2192 = scalar_lea.vmem %s0, 864
  %v2193 = vld [vmem:[%s2192] sm:$0xff]
  %v2194 = vld [vmem:[%s2192 + $0x8] sm:$0xff]
  %v2195 = vld [vmem:[%s2192 + $0x10] sm:$0xff]
  %v2196 = vld [vmem:[%s2192 + $0x18] sm:$0x11]
  %v2201 = vunpack.c.l.b16 %v2193
  %v2202 = vunpack.c.h.b16 %v2193
  %v2203 = vunpack.c.l.b16 %v2194
  %v2204 = vunpack.c.h.b16 %v2194
  %v2205 = vunpack.c.l.b16 %v2195
  %v2206 = vunpack.c.h.b16 %v2195
  %v2207 = vunpack.c.l.b16 %v2196
  %v2208 = vunpack.c.h.b16 %v2196
  %v2209 = vpack.c.b16 %v2203, %v2201
  %v2210 = vpack.c.b16 %v2204, %v2202
  %v2211 = vpack.c.b16 %v2207, %v2205
  %v2212 = vpack.c.b16 %v2208, %v2206
  %v2216 = vand.u32 %v2211, %v50
  %v2219 = vand.u32 %v2212, %v50
  %2221 = vmatprep.subr.bf16.mxu0 0
  %2222 = vmatpush1.bf16.msra.mxu0 0
  %2223 = vmatprep.subr.bf16.mxu0 0
  %2224 = vmatpush1.bf16.msra.mxu0 0
  %2225 = vmatprep.subr.bf16.mxu0 0
  %2226 = vmatpush1.bf16.msra.mxu0 0
  %2227 = vmatprep.subr.bf16.mxu0 0
  %2228 = vmatpush1.bf16.msra.mxu0 0
  %2229 = vmatprep.subr.bf16.mxu0 0
  %2230 = vmatpush1.bf16.msra.mxu0 0
  %2231 = vmatprep.subr.bf16.mxu0 0
  %2232 = vmatpush1.bf16.msra.mxu0 0
  %2233 = vmatprep.subr.bf16.mxu0 %v2219
  %2234 = vmatpush1.bf16.msra.mxu0 %v2216
  %2235 = vmatprep.subr.bf16.mxu0 %v2210
  %2236 = vmatpush1.bf16.msra.mxu0 %v2209
  %2237 = vmatprep.subr.bf16.mxu0 0
  %2238 = vmatpush2.bf16.msra.mxu0 0
  %2239 = vmatprep.subr.bf16.mxu0 0
  %2240 = vmatpush2.bf16.msra.mxu0 0
  %2241 = vmatprep.subr.bf16.mxu0 0
  %2242 = vmatpush2.bf16.msra.mxu0 0
  %2243 = vmatprep.subr.bf16.mxu0 0
  %2244 = vmatpush2.bf16.msra.mxu0 0
  %2245 = vmatprep.subr.bf16.mxu0 0
  %2246 = vmatpush2.bf16.msra.mxu0 0
  %2247 = vmatprep.subr.bf16.mxu0 0
  %2248 = vmatpush2.bf16.msra.mxu0 0
  %2249 = vmatprep.subr.bf16.mxu0 0
  %2250 = vmatpush2.bf16.msra.mxu0 0
  %2251 = vmatprep.subr.bf16.mxu0 0
  %2252 = vmatpush2.bf16.msra.mxu0 0
  %2253 = vmatprep.mubr.bf16.mxu0 0
  %2254 = vmatmul.mubr.bf16.gmra.mxu0 %v45
  %v2255 = vpop.f32.mrf.mxu0
  %v2256 = vadd.f32 0.0, %v2255
  %v2257 = vpop.f32.mrf.mxu0
  %v2258 = vadd.f32 0.0, %v2257
  %v2259 = vpop.f32.mrf.mxu0
  %v2260 = vpop.f32.mrf.mxu0
  %2261 = vdwg.mxu0
  %v2262 = vmul.f32 %v2256, %v101
  %v2263 = vmul.f32 %v2258, %v101
  %v2264 = vadd.f32 %v2262, %v108
  %v2265 = vadd.f32 %v2263, %v108
  %v2266 = vmax.f32 %v2264, 0.0
  %v2267 = vmax.f32 %v2265, 0.0
  %v2268 = vmax.f32 %v2190, %v2266
  %v2269 = vmax.f32 %v2191, %v2267
  %v2270 = vpack.c.bf16 %v2268, %v2268
  %v2271 = vpack.c.bf16 %v2269, %v2269
  %v2274 = vunpack.c.l.b16 %v2270
  %v2275 = vunpack.c.l.b16 %v2271
  %v2276 = vpack.c.b16 %v2275, %v2274
  %s2278 = scalar_lea.vmem %s4, 48
  %2279 = vst.msk [vmem:[%s2278] sm:$0x77] %vm358, %v2276
  %s2280 = scalar_lea.vmem %s0, 896
  %v2281 = vld [vmem:[%s2280] sm:$0xff]
  %v2282 = vld [vmem:[%s2280 + $0x8] sm:$0xff]
  %v2283 = vld [vmem:[%s2280 + $0x10] sm:$0xff]
  %v2284 = vld [vmem:[%s2280 + $0x18] sm:$0x11]
  %v2289 = vunpack.c.l.b16 %v2281
  %v2290 = vunpack.c.h.b16 %v2281
  %v2291 = vunpack.c.l.b16 %v2282
  %v2292 = vunpack.c.h.b16 %v2282
  %v2293 = vunpack.c.l.b16 %v2283
  %v2294 = vunpack.c.h.b16 %v2283
  %v2295 = vunpack.c.l.b16 %v2284
  %v2296 = vunpack.c.h.b16 %v2284
  %v2297 = vpack.c.b16 %v2291, %v2289
  %v2298 = vpack.c.b16 %v2292, %v2290
  %v2299 = vpack.c.b16 %v2295, %v2293
  %v2300 = vpack.c.b16 %v2296, %v2294
  %v2304 = vand.u32 %v2299, %v50
  %v2307 = vand.u32 %v2300, %v50
  %2309 = vmatprep.subr.bf16.mxu0 0
  %2310 = vmatpush1.bf16.msra.mxu0 0
  %2311 = vmatprep.subr.bf16.mxu0 0
  %2312 = vmatpush1.bf16.msra.mxu0 0
  %2313 = vmatprep.subr.bf16.mxu0 0
  %2314 = vmatpush1.bf16.msra.mxu0 0
  %2315 = vmatprep.subr.bf16.mxu0 0
  %2316 = vmatpush1.bf16.msra.mxu0 0
  %2317 = vmatprep.subr.bf16.mxu0 0
  %2318 = vmatpush1.bf16.msra.mxu0 0
  %2319 = vmatprep.subr.bf16.mxu0 0
  %2320 = vmatpush1.bf16.msra.mxu0 0
  %2321 = vmatprep.subr.bf16.mxu0 %v2307
  %2322 = vmatpush1.bf16.msra.mxu0 %v2304
  %2323 = vmatprep.subr.bf16.mxu0 %v2298
  %2324 = vmatpush1.bf16.msra.mxu0 %v2297
  %2325 = vmatprep.subr.bf16.mxu0 0
  %2326 = vmatpush2.bf16.msra.mxu0 0
  %2327 = vmatprep.subr.bf16.mxu0 0
  %2328 = vmatpush2.bf16.msra.mxu0 0
  %2329 = vmatprep.subr.bf16.mxu0 0
  %2330 = vmatpush2.bf16.msra.mxu0 0
  %2331 = vmatprep.subr.bf16.mxu0 0
  %2332 = vmatpush2.bf16.msra.mxu0 0
  %2333 = vmatprep.subr.bf16.mxu0 0
  %2334 = vmatpush2.bf16.msra.mxu0 0
  %2335 = vmatprep.subr.bf16.mxu0 0
  %2336 = vmatpush2.bf16.msra.mxu0 0
  %2337 = vmatprep.subr.bf16.mxu0 0
  %2338 = vmatpush2.bf16.msra.mxu0 0
  %2339 = vmatprep.subr.bf16.mxu0 0
  %2340 = vmatpush2.bf16.msra.mxu0 0
  %2341 = vmatprep.mubr.bf16.mxu0 0
  %2342 = vmatmul.mubr.bf16.gmra.mxu0 %v45
  %v2343 = vpop.f32.mrf.mxu0
  %v2344 = vadd.f32 0.0, %v2343
  %v2345 = vpop.f32.mrf.mxu0
  %v2346 = vadd.f32 0.0, %v2345
  %v2347 = vpop.f32.mrf.mxu0
  %v2348 = vpop.f32.mrf.mxu0
  %2349 = vdwg.mxu0
  %v2350 = vmul.f32 %v2344, %v101
  %v2351 = vmul.f32 %v2346, %v101
  %v2352 = vadd.f32 %v2350, %v108
  %v2353 = vadd.f32 %v2351, %v108
  %v2354 = vmax.f32 %v2352, 0.0
  %v2355 = vmax.f32 %v2353, 0.0
  %s2356 = scalar_lea.vmem %s0, 928
  %v2357 = vld [vmem:[%s2356] sm:$0xff]
  %v2358 = vld [vmem:[%s2356 + $0x8] sm:$0xff]
  %v2359 = vld [vmem:[%s2356 + $0x10] sm:$0xff]
  %v2360 = vld [vmem:[%s2356 + $0x18] sm:$0x11]
  %v2365 = vunpack.c.l.b16 %v2357
  %v2366 = vunpack.c.h.b16 %v2357
  %v2367 = vunpack.c.l.b16 %v2358
  %v2368 = vunpack.c.h.b16 %v2358
  %v2369 = vunpack.c.l.b16 %v2359
  %v2370 = vunpack.c.h.b16 %v2359
  %v2371 = vunpack.c.l.b16 %v2360
  %v2372 = vunpack.c.h.b16 %v2360
  %v2373 = vpack.c.b16 %v2367, %v2365
  %v2374 = vpack.c.b16 %v2368, %v2366
  %v2375 = vpack.c.b16 %v2371, %v2369
  %v2376 = vpack.c.b16 %v2372, %v2370
  %v2380 = vand.u32 %v2375, %v50
  %v2383 = vand.u32 %v2376, %v50
  %2385 = vmatprep.subr.bf16.mxu0 0
  %2386 = vmatpush1.bf16.msra.mxu0 0
  %2387 = vmatprep.subr.bf16.mxu0 0
  %2388 = vmatpush1.bf16.msra.mxu0 0
  %2389 = vmatprep.subr.bf16.mxu0 0
  %2390 = vmatpush1.bf16.msra.mxu0 0
  %2391 = vmatprep.subr.bf16.mxu0 0
  %2392 = vmatpush1.bf16.msra.mxu0 0
  %2393 = vmatprep.subr.bf16.mxu0 0
  %2394 = vmatpush1.bf16.msra.mxu0 0
  %2395 = vmatprep.subr.bf16.mxu0 0
  %2396 = vmatpush1.bf16.msra.mxu0 0
  %2397 = vmatprep.subr.bf16.mxu0 %v2383
  %2398 = vmatpush1.bf16.msra.mxu0 %v2380
  %2399 = vmatprep.subr.bf16.mxu0 %v2374
  %2400 = vmatpush1.bf16.msra.mxu0 %v2373
  %2401 = vmatprep.subr.bf16.mxu0 0
  %2402 = vmatpush2.bf16.msra.mxu0 0
  %2403 = vmatprep.subr.bf16.mxu0 0
  %2404 = vmatpush2.bf16.msra.mxu0 0
  %2405 = vmatprep.subr.bf16.mxu0 0
  %2406 = vmatpush2.bf16.msra.mxu0 0
  %2407 = vmatprep.subr.bf16.mxu0 0
  %2408 = vmatpush2.bf16.msra.mxu0 0
  %2409 = vmatprep.subr.bf16.mxu0 0
  %2410 = vmatpush2.bf16.msra.mxu0 0
  %2411 = vmatprep.subr.bf16.mxu0 0
  %2412 = vmatpush2.bf16.msra.mxu0 0
  %2413 = vmatprep.subr.bf16.mxu0 0
  %2414 = vmatpush2.bf16.msra.mxu0 0
  %2415 = vmatprep.subr.bf16.mxu0 0
  %2416 = vmatpush2.bf16.msra.mxu0 0
  %2417 = vmatprep.mubr.bf16.mxu0 0
  %2418 = vmatmul.mubr.bf16.gmra.mxu0 %v45
  %v2419 = vpop.f32.mrf.mxu0
  %v2420 = vadd.f32 0.0, %v2419
  %v2421 = vpop.f32.mrf.mxu0
  %v2422 = vadd.f32 0.0, %v2421
  %v2423 = vpop.f32.mrf.mxu0
  %v2424 = vpop.f32.mrf.mxu0
  %2425 = vdwg.mxu0
  %v2426 = vmul.f32 %v2420, %v101
  %v2427 = vmul.f32 %v2422, %v101
  %v2428 = vadd.f32 %v2426, %v108
  %v2429 = vadd.f32 %v2427, %v108
  %v2430 = vmax.f32 %v2428, 0.0
  %v2431 = vmax.f32 %v2429, 0.0
  %v2432 = vmax.f32 %v2354, %v2430
  %v2433 = vmax.f32 %v2355, %v2431
  %s2434 = scalar_lea.vmem %s0, 960
  %v2435 = vld [vmem:[%s2434] sm:$0xff]
  %v2436 = vld [vmem:[%s2434 + $0x8] sm:$0xff]
  %v2437 = vld [vmem:[%s2434 + $0x10] sm:$0xff]
  %v2438 = vld [vmem:[%s2434 + $0x18] sm:$0x11]
  %v2443 = vunpack.c.l.b16 %v2435
  %v2444 = vunpack.c.h.b16 %v2435
  %v2445 = vunpack.c.l.b16 %v2436
  %v2446 = vunpack.c.h.b16 %v2436
  %v2447 = vunpack.c.l.b16 %v2437
  %v2448 = vunpack.c.h.b16 %v2437
  %v2449 = vunpack.c.l.b16 %v2438
  %v2450 = vunpack.c.h.b16 %v2438
  %v2451 = vpack.c.b16 %v2445, %v2443
  %v2452 = vpack.c.b16 %v2446, %v2444
  %v2453 = vpack.c.b16 %v2449, %v2447
  %v2454 = vpack.c.b16 %v2450, %v2448
  %v2458 = vand.u32 %v2453, %v50
  %v2461 = vand.u32 %v2454, %v50
  %2463 = vmatprep.subr.bf16.mxu0 0
  %2464 = vmatpush1.bf16.msra.mxu0 0
  %2465 = vmatprep.subr.bf16.mxu0 0
  %2466 = vmatpush1.bf16.msra.mxu0 0
  %2467 = vmatprep.subr.bf16.mxu0 0
  %2468 = vmatpush1.bf16.msra.mxu0 0
  %2469 = vmatprep.subr.bf16.mxu0 0
  %2470 = vmatpush1.bf16.msra.mxu0 0
  %2471 = vmatprep.subr.bf16.mxu0 0
  %2472 = vmatpush1.bf16.msra.mxu0 0
  %2473 = vmatprep.subr.bf16.mxu0 0
  %2474 = vmatpush1.bf16.msra.mxu0 0
  %2475 = vmatprep.subr.bf16.mxu0 %v2461
  %2476 = vmatpush1.bf16.msra.mxu0 %v2458
  %2477 = vmatprep.subr.bf16.mxu0 %v2452
  %2478 = vmatpush1.bf16.msra.mxu0 %v2451
  %2479 = vmatprep.subr.bf16.mxu0 0
  %2480 = vmatpush2.bf16.msra.mxu0 0
  %2481 = vmatprep.subr.bf16.mxu0 0
  %2482 = vmatpush2.bf16.msra.mxu0 0
  %2483 = vmatprep.subr.bf16.mxu0 0
  %2484 = vmatpush2.bf16.msra.mxu0 0
  %2485 = vmatprep.subr.bf16.mxu0 0
  %2486 = vmatpush2.bf16.msra.mxu0 0
  %2487 = vmatprep.subr.bf16.mxu0 0
  %2488 = vmatpush2.bf16.msra.mxu0 0
  %2489 = vmatprep.subr.bf16.mxu0 0
  %2490 = vmatpush2.bf16.msra.mxu0 0
  %2491 = vmatprep.subr.bf16.mxu0 0
  %2492 = vmatpush2.bf16.msra.mxu0 0
  %2493 = vmatprep.subr.bf16.mxu0 0
  %2494 = vmatpush2.bf16.msra.mxu0 0
  %2495 = vmatprep.mubr.bf16.mxu0 0
  %2496 = vmatmul.mubr.bf16.gmra.mxu0 %v45
  %v2497 = vpop.f32.mrf.mxu0
  %v2498 = vadd.f32 0.0, %v2497
  %v2499 = vpop.f32.mrf.mxu0
  %v2500 = vadd.f32 0.0, %v2499
  %v2501 = vpop.f32.mrf.mxu0
  %v2502 = vpop.f32.mrf.mxu0
  %2503 = vdwg.mxu0
  %v2504 = vmul.f32 %v2498, %v101
  %v2505 = vmul.f32 %v2500, %v101
  %v2506 = vadd.f32 %v2504, %v108
  %v2507 = vadd.f32 %v2505, %v108
  %v2508 = vmax.f32 %v2506, 0.0
  %v2509 = vmax.f32 %v2507, 0.0
  %v2510 = vmax.f32 %v2432, %v2508
  %v2511 = vmax.f32 %v2433, %v2509
  %s2512 = scalar_lea.vmem %s0, 992
  %v2513 = vld [vmem:[%s2512] sm:$0xff]
  %v2514 = vld [vmem:[%s2512 + $0x8] sm:$0xff]
  %v2515 = vld [vmem:[%s2512 + $0x10] sm:$0xff]
  %v2516 = vld [vmem:[%s2512 + $0x18] sm:$0x11]
  %v2521 = vunpack.c.l.b16 %v2513
  %v2522 = vunpack.c.h.b16 %v2513
  %v2523 = vunpack.c.l.b16 %v2514
  %v2524 = vunpack.c.h.b16 %v2514
  %v2525 = vunpack.c.l.b16 %v2515
  %v2526 = vunpack.c.h.b16 %v2515
  %v2527 = vunpack.c.l.b16 %v2516
  %v2528 = vunpack.c.h.b16 %v2516
  %v2529 = vpack.c.b16 %v2523, %v2521
  %v2530 = vpack.c.b16 %v2524, %v2522
  %v2531 = vpack.c.b16 %v2527, %v2525
  %v2532 = vpack.c.b16 %v2528, %v2526
  %v2536 = vand.u32 %v2531, %v50
  %v2539 = vand.u32 %v2532, %v50
  %2541 = vmatprep.subr.bf16.mxu0 0
  %2542 = vmatpush1.bf16.msra.mxu0 0
  %2543 = vmatprep.subr.bf16.mxu0 0
  %2544 = vmatpush1.bf16.msra.mxu0 0
  %2545 = vmatprep.subr.bf16.mxu0 0
  %2546 = vmatpush1.bf16.msra.mxu0 0
  %2547 = vmatprep.subr.bf16.mxu0 0
  %2548 = vmatpush1.bf16.msra.mxu0 0
  %2549 = vmatprep.subr.bf16.mxu0 0
  %2550 = vmatpush1.bf16.msra.mxu0 0
  %2551 = vmatprep.subr.bf16.mxu0 0
  %2552 = vmatpush1.bf16.msra.mxu0 0
  %2553 = vmatprep.subr.bf16.mxu0 %v2539
  %2554 = vmatpush1.bf16.msra.mxu0 %v2536
  %2555 = vmatprep.subr.bf16.mxu0 %v2530
  %2556 = vmatpush1.bf16.msra.mxu0 %v2529
  %2557 = vmatprep.subr.bf16.mxu0 0
  %2558 = vmatpush2.bf16.msra.mxu0 0
  %2559 = vmatprep.subr.bf16.mxu0 0
  %2560 = vmatpush2.bf16.msra.mxu0 0
  %2561 = vmatprep.subr.bf16.mxu0 0
  %2562 = vmatpush2.bf16.msra.mxu0 0
  %2563 = vmatprep.subr.bf16.mxu0 0
  %2564 = vmatpush2.bf16.msra.mxu0 0
  %2565 = vmatprep.subr.bf16.mxu0 0
  %2566 = vmatpush2.bf16.msra.mxu0 0
  %2567 = vmatprep.subr.bf16.mxu0 0
  %2568 = vmatpush2.bf16.msra.mxu0 0
  %2569 = vmatprep.subr.bf16.mxu0 0
  %2570 = vmatpush2.bf16.msra.mxu0 0
  %2571 = vmatprep.subr.bf16.mxu0 0
  %2572 = vmatpush2.bf16.msra.mxu0 0
  %2573 = vmatprep.mubr.bf16.mxu0 0
  %2574 = vmatmul.mubr.bf16.gmra.mxu0 %v45
  %v2575 = vpop.f32.mrf.mxu0
  %v2576 = vadd.f32 0.0, %v2575
  %v2577 = vpop.f32.mrf.mxu0
  %v2578 = vadd.f32 0.0, %v2577
  %v2579 = vpop.f32.mrf.mxu0
  %v2580 = vpop.f32.mrf.mxu0
  %2581 = vdwg.mxu0
  %v2582 = vmul.f32 %v2576, %v101
  %v2583 = vmul.f32 %v2578, %v101
  %v2584 = vadd.f32 %v2582, %v108
  %v2585 = vadd.f32 %v2583, %v108
  %v2586 = vmax.f32 %v2584, 0.0
  %v2587 = vmax.f32 %v2585, 0.0
  %v2588 = vmax.f32 %v2510, %v2586
  %v2589 = vmax.f32 %v2511, %v2587
  %v2590 = vpack.c.bf16 %v2588, %v2588
  %v2591 = vpack.c.bf16 %v2589, %v2589
  %v2594 = vunpack.c.l.b16 %v2590
  %v2595 = vunpack.c.l.b16 %v2591
  %v2596 = vpack.c.b16 %v2595, %v2594
  %s2598 = scalar_lea.vmem %s4, 56
  %2599 = vst.msk [vmem:[%s2598] sm:$0x77] %vm358, %v2596
  // Predicated region
  $region18: #{lenet5_forward.3} parent=0 // pred_check
    _
  $region19: #{lenet5_forward.3} parent=0 // pred_check_branch
    %2601 = sbr.rel (0) target = $region21
  $region20: #{lenet5_forward.3} parent=0 // pred_region
    _
  $region21: #{lenet5_forward.3} parent=0 // pred_fallthru
    _
  // Predicated region
  $region22: #{lenet5_forward.3} parent=0 // pred_check
    _
  $region23: #{lenet5_forward.3} parent=0 // pred_check_branch
    %2603 = sbr.rel (0) target = $region25
  $region24: #{lenet5_forward.3} parent=0 // pred_region
    _
  $region25: #{lenet5_forward.3} parent=0 // pred_fallthru
    _

// kernel: lenet5_forward.4
$region0: #{lenet5_forward.4}
  #allocation0 [shape = 'u32[]', space=smem, size = 0x4, offset = 0x4, fixed_abs, tag = 'smem constant byte address 0x4 - core index']
  #allocation1 [shape = 'u32[144,128]{1,0:T(1,128)}', space=vmem, size = 0x12000, scoped, tag = 'internal scratch']
  %s0 = inlined_call_operand.vmem [shape: bf16[8,4,150,25], index: 0, kind: input, shape index: {}]
  %s1 = inlined_call_operand.vmem [shape: bf16[16,150], index: 1, kind: input, shape index: {}]
  %s2 = inlined_call_operand.vmem [shape: f32[16,1], index: 2, kind: input, shape index: {}]
  %s3 = inlined_call_operand.vmem [shape: f32[16,1], index: 3, kind: input, shape index: {}]
  %s4 = inlined_call_operand.vmem [shape: bf16[8,16,25], index: 4, kind: output, shape index: {}]
  %s5 = sld [smem:[#allocation0]]
  $region26: #{lenet5_forward.4} parent=0
    _
  %s7 = ssub.s32 1, %s5
  %s8 = scalar_select 0, %s7, %s5
  // Predicated region
  $region2: #{lenet5_forward.4} parent=0 // pred_check
    _
  $region3: #{lenet5_forward.4} parent=0 // pred_check_branch
    %10 = sbr.rel (0) target = $region5
  $region4: #{lenet5_forward.4} parent=0 // pred_region
    _
  $region5: #{lenet5_forward.4} parent=0 // pred_fallthru
    _
  // Predicated region
  $region6: #{lenet5_forward.4} parent=0 // pred_check
    _
  $region7: #{lenet5_forward.4} parent=0 // pred_check_branch
    %12 = sbr.rel (0) target = $region9
  $region8: #{lenet5_forward.4} parent=0 // pred_region
    _
  $region9: #{lenet5_forward.4} parent=0 // pred_fallthru
    _
  // Predicated region
  $region10: #{lenet5_forward.4} parent=0 // pred_check
    _
  $region11: #{lenet5_forward.4} parent=0 // pred_check_branch
    %14 = sbr.rel (0) target = $region13
  $region12: #{lenet5_forward.4} parent=0 // pred_region
    _
  $region13: #{lenet5_forward.4} parent=0 // pred_fallthru
    _
  // Predicated region
  $region14: #{lenet5_forward.4} parent=0 // pred_check
    _
  $region15: #{lenet5_forward.4} parent=0 // pred_check_branch
    %16 = sbr.rel (0) target = $region17
  $region16: #{lenet5_forward.4} parent=0 // pred_region
    _
  $region17: #{lenet5_forward.4} parent=0 // pred_fallthru
    _
  %v18 = vld [vmem:[%s1] sm:$0xff]
  %v19 = vld [vmem:[%s1 + $0x8] sm:$0xff]
  %v20 = vld [vmem:[%s2] sm:$0xff]
  %v21 = vld [vmem:[%s2 + $0x8] sm:$0xff]
  %v22 = vld [vmem:[%s3] sm:$0xff]
  %v23 = vld [vmem:[%s3 + $0x8] sm:$0xff]
  %v24 = vld [vmem:[%s0] sm:$0xf]
  %v25 = vld [vmem:[%s0 + $0x4] sm:$0xf]
  %v26 = vld [vmem:[%s0 + $0x8] sm:$0xf]
  %v27 = vld [vmem:[%s0 + $0xc] sm:$0xf]
  %v28 = vld [vmem:[%s0 + $0x10] sm:$0xf]
  %v29 = vld [vmem:[%s0 + $0x14] sm:$0xf]
  %v30 = vld [vmem:[%s0 + $0x18] sm:$0xf]
  %v31 = vld [vmem:[%s0 + $0x1c] sm:$0xf]
  %v32 = vld [vmem:[%s0 + $0x20] sm:$0xf]
  %v33 = vld [vmem:[%s0 + $0x24] sm:$0xf]
  %v34 = vld [vmem:[%s0 + $0x28] sm:$0xf]
  %v35 = vld [vmem:[%s0 + $0x2c] sm:$0xf]
  %v36 = vld [vmem:[%s0 + $0x30] sm:$0xf]
  %v37 = vld [vmem:[%s0 + $0x34] sm:$0xf]
  %v38 = vld [vmem:[%s0 + $0x38] sm:$0xf]
  %v39 = vld [vmem:[%s0 + $0x3c] sm:$0xf]
  %v40 = vld [vmem:[%s0 + $0x40] sm:$0xf]
  %v41 = vld [vmem:[%s0 + $0x44] sm:$0xf]
  %v42 = vld [vmem:[%s0 + $0x48] sm:$0x7]
  %v45 = vunpack.c.l.b16 %v18
  %v46 = vunpack.c.h.b16 %v18
  %v47 = vunpack.c.l.b16 %v19
  %v48 = vunpack.c.h.b16 %v19
  %v49 = vpack.c.b16 %v47, %v45
  %v50 = vpack.c.b16 %v48, %v46
  %v71 = vunpack.c.l.b16 %v24
  %v72 = vunpack.c.l.b16 %v25
  %v73 = vunpack.c.l.b16 %v26
  %v74 = vunpack.c.l.b16 %v27
  %v75 = vunpack.c.l.b16 %v28
  %v76 = vunpack.c.l.b16 %v29
  %v77 = vunpack.c.l.b16 %v30
  %v78 = vunpack.c.l.b16 %v31
  %v79 = vunpack.c.l.b16 %v32
  %v80 = vunpack.c.l.b16 %v33
  %v81 = vunpack.c.l.b16 %v34
  %v82 = vunpack.c.l.b16 %v35
  %v83 = vunpack.c.l.b16 %v36
  %v84 = vunpack.c.l.b16 %v37
  %v85 = vunpack.c.l.b16 %v38
  %v86 = vunpack.c.l.b16 %v39
  %v87 = vunpack.c.l.b16 %v40
  %v88 = vunpack.c.l.b16 %v41
  %v89 = vunpack.c.l.b16 %v42
  %v90 = vpack.c.b16 %v72, %v71
  %v91 = vpack.c.b16 %v74, %v73
  %v92 = vpack.c.b16 %v76, %v75
  %v93 = vpack.c.b16 %v78, %v77
  %v94 = vpack.c.b16 %v80, %v79
  %v95 = vpack.c.b16 %v82, %v81
  %v96 = vpack.c.b16 %v84, %v83
  %v97 = vpack.c.b16 %v86, %v85
  %v98 = vpack.c.b16 %v88, %v87
  %v99 = vpack.c.b16 %v89, %v89
  %vm109 = vcmask 179200
  %v111 = vsel %vm109, %v50, 0
  %vm113 = vcmask 1042432
  %v115 = vsel %vm113, %v99, 0
  %117 = vmatprep.subr.bf16.mxu0 0
  %118 = vmatpush1.bf16.msra.mxu0 %v97
  %119 = vmatprep.subr.bf16.mxu0 0
  %120 = vmatpush1.bf16.msra.mxu0 %v96
  %121 = vmatprep.subr.bf16.mxu0 0
  %122 = vmatpush1.bf16.msra.mxu0 %v95
  %123 = vmatprep.subr.bf16.mxu0 0
  %124 = vmatpush1.bf16.msra.mxu0 %v94
  %125 = vmatprep.subr.bf16.mxu0 0
  %126 = vmatpush1.bf16.msra.mxu0 %v93
  %127 = vmatprep.subr.bf16.mxu0 0
  %128 = vmatpush1.bf16.msra.mxu0 %v92
  %129 = vmatprep.subr.bf16.mxu0 0
  %130 = vmatpush1.bf16.msra.mxu0 %v91
  %131 = vmatprep.subr.bf16.mxu0 0
  %132 = vmatpush1.bf16.msra.mxu0 %v90
  %133 = vmatprep.subr.bf16.mxu0 0
  %134 = vmatpush2.bf16.msra.mxu0 0
  %135 = vmatprep.subr.bf16.mxu0 0
  %136 = vmatpush2.bf16.msra.mxu0 0
  %137 = vmatprep.subr.bf16.mxu0 0
  %138 = vmatpush2.bf16.msra.mxu0 0
  %139 = vmatprep.subr.bf16.mxu0 0
  %140 = vmatpush2.bf16.msra.mxu0 0
  %141 = vmatprep.subr.bf16.mxu0 0
  %142 = vmatpush2.bf16.msra.mxu0 0
  %143 = vmatprep.subr.bf16.mxu0 0
  %144 = vmatpush2.bf16.msra.mxu0 0
  %145 = vmatprep.subr.bf16.mxu0 0
  %146 = vmatpush2.bf16.msra.mxu0 %v115
  %147 = vmatprep.subr.bf16.mxu0 0
  %148 = vmatpush2.bf16.msra.mxu0 %v98
  %149 = vmatprep.mubr.bf16.mxu0 %v111
  %150 = vmatmul.mubr.bf16.gmra.mxu0 %v49
  %v151 = vpop.f32.mrf.mxu0
  %v152 = vadd.f32 0.0, %v151
  %v153 = vpop.f32.mrf.mxu0
  %v154 = vpop.f32.mrf.mxu0
  %v155 = vadd.f32 0.0, %v154
  %v156 = vpop.f32.mrf.mxu0
  %157 = vdwg.mxu0
  %159 = vset.pattern.permute.xlu0 0
  %160 = vperm.xlu0 %159, %v20
  %v161 = vpop.permute.xlu0 %160
  %164 = vset.pattern.permute.xlu0 0
  %165 = vperm.xlu0 %164, %v21
  %v166 = vpop.permute.xlu0 %165
  %v168 = vmul.f32 %v152, %v161
  %v169 = vmul.f32 %v155, %v166
  %171 = vset.pattern.permute.xlu0 0
  %172 = vperm.xlu0 %171, %v22
  %v173 = vpop.permute.xlu0 %172
  %176 = vset.pattern.permute.xlu0 0
  %177 = vperm.xlu0 %176, %v23
  %v178 = vpop.permute.xlu0 %177
  %v180 = vadd.f32 %v168, %v173
  %v181 = vadd.f32 %v169, %v178
  %v182 = vmax.f32 %v180, 0.0
  %v183 = vmax.f32 %v181, 0.0
  %s184 = scalar_lea.vmem %s0, 76
  %v185 = vld [vmem:[%s184] sm:$0xf]
  %v186 = vld [vmem:[%s184 + $0x4] sm:$0xf]
  %v187 = vld [vmem:[%s184 + $0x8] sm:$0xf]
  %v188 = vld [vmem:[%s184 + $0xc] sm:$0xf]
  %v189 = vld [vmem:[%s184 + $0x10] sm:$0xf]
  %v190 = vld [vmem:[%s184 + $0x14] sm:$0xf]
  %v191 = vld [vmem:[%s184 + $0x18] sm:$0xf]
  %v192 = vld [vmem:[%s184 + $0x1c] sm:$0xf]
  %v193 = vld [vmem:[%s184 + $0x20] sm:$0xf]
  %v194 = vld [vmem:[%s184 + $0x24] sm:$0xf]
  %v195 = vld [vmem:[%s184 + $0x28] sm:$0xf]
  %v196 = vld [vmem:[%s184 + $0x2c] sm:$0xf]
  %v197 = vld [vmem:[%s184 + $0x30] sm:$0xf]
  %v198 = vld [vmem:[%s184 + $0x34] sm:$0xf]
  %v199 = vld [vmem:[%s184 + $0x38] sm:$0xf]
  %v200 = vld [vmem:[%s184 + $0x3c] sm:$0xf]
  %v201 = vld [vmem:[%s184 + $0x40] sm:$0xf]
  %v202 = vld [vmem:[%s184 + $0x44] sm:$0xf]
  %v203 = vld [vmem:[%s184 + $0x48] sm:$0x7]
  %v223 = vunpack.c.l.b16 %v185
  %v224 = vunpack.c.l.b16 %v186
  %v225 = vunpack.c.l.b16 %v187
  %v226 = vunpack.c.l.b16 %v188
  %v227 = vunpack.c.l.b16 %v189
  %v228 = vunpack.c.l.b16 %v190
  %v229 = vunpack.c.l.b16 %v191
  %v230 = vunpack.c.l.b16 %v192
  %v231 = vunpack.c.l.b16 %v193
  %v232 = vunpack.c.l.b16 %v194
  %v233 = vunpack.c.l.b16 %v195
  %v234 = vunpack.c.l.b16 %v196
  %v235 = vunpack.c.l.b16 %v197
  %v236 = vunpack.c.l.b16 %v198
  %v237 = vunpack.c.l.b16 %v199
  %v238 = vunpack.c.l.b16 %v200
  %v239 = vunpack.c.l.b16 %v201
  %v240 = vunpack.c.l.b16 %v202
  %v241 = vunpack.c.l.b16 %v203
  %v242 = vpack.c.b16 %v224, %v223
  %v243 = vpack.c.b16 %v226, %v225
  %v244 = vpack.c.b16 %v228, %v227
  %v245 = vpack.c.b16 %v230, %v229
  %v246 = vpack.c.b16 %v232, %v231
  %v247 = vpack.c.b16 %v234, %v233
  %v248 = vpack.c.b16 %v236, %v235
  %v249 = vpack.c.b16 %v238, %v237
  %v250 = vpack.c.b16 %v240, %v239
  %v251 = vpack.c.b16 %v241, %v241
  %v262 = vsel %vm113, %v251, 0
  %264 = vmatprep.subr.bf16.mxu0 0
  %265 = vmatpush1.bf16.msra.mxu0 %v249
  %266 = vmatprep.subr.bf16.mxu0 0
  %267 = vmatpush1.bf16.msra.mxu0 %v248
  %268 = vmatprep.subr.bf16.mxu0 0
  %269 = vmatpush1.bf16.msra.mxu0 %v247
  %270 = vmatprep.subr.bf16.mxu0 0
  %271 = vmatpush1.bf16.msra.mxu0 %v246
  %272 = vmatprep.subr.bf16.mxu0 0
  %273 = vmatpush1.bf16.msra.mxu0 %v245
  %274 = vmatprep.subr.bf16.mxu0 0
  %275 = vmatpush1.bf16.msra.mxu0 %v244
  %276 = vmatprep.subr.bf16.mxu0 0
  %277 = vmatpush1.bf16.msra.mxu0 %v243
  %278 = vmatprep.subr.bf16.mxu0 0
  %279 = vmatpush1.bf16.msra.mxu0 %v242
  %280 = vmatprep.subr.bf16.mxu0 0
  %281 = vmatpush2.bf16.msra.mxu0 0
  %282 = vmatprep.subr.bf16.mxu0 0
  %283 = vmatpush2.bf16.msra.mxu0 0
  %284 = vmatprep.subr.bf16.mxu0 0
  %285 = vmatpush2.bf16.msra.mxu0 0
  %286 = vmatprep.subr.bf16.mxu0 0
  %287 = vmatpush2.bf16.msra.mxu0 0
  %288 = vmatprep.subr.bf16.mxu0 0
  %289 = vmatpush2.bf16.msra.mxu0 0
  %290 = vmatprep.subr.bf16.mxu0 0
  %291 = vmatpush2.bf16.msra.mxu0 0
  %292 = vmatprep.subr.bf16.mxu0 0
  %293 = vmatpush2.bf16.msra.mxu0 %v262
  %294 = vmatprep.subr.bf16.mxu0 0
  %295 = vmatpush2.bf16.msra.mxu0 %v250
  %296 = vmatprep.mubr.bf16.mxu0 %v111
  %297 = vmatmul.mubr.bf16.gmra.mxu0 %v49
  %v298 = vpop.f32.mrf.mxu0
  %v299 = vadd.f32 0.0, %v298
  %v300 = vpop.f32.mrf.mxu0
  %v301 = vpop.f32.mrf.mxu0
  %v302 = vadd.f32 0.0, %v301
  %v303 = vpop.f32.mrf.mxu0
  %304 = vdwg.mxu0
  %v305 = vmul.f32 %v299, %v161
  %v306 = vmul.f32 %v302, %v166
  %v307 = vadd.f32 %v305, %v173
  %v308 = vadd.f32 %v306, %v178
  %v309 = vmax.f32 %v307, 0.0
  %v310 = vmax.f32 %v308, 0.0
  %v311 = vmax.f32 %v182, %v309
  %v312 = vmax.f32 %v183, %v310
  %s313 = scalar_lea.vmem %s0, 152
  %v314 = vld [vmem:[%s313] sm:$0xf]
  %v315 = vld [vmem:[%s313 + $0x4] sm:$0xf]
  %v316 = vld [vmem:[%s313 + $0x8] sm:$0xf]
  %v317 = vld [vmem:[%s313 + $0xc] sm:$0xf]
  %v318 = vld [vmem:[%s313 + $0x10] sm:$0xf]
  %v319 = vld [vmem:[%s313 + $0x14] sm:$0xf]
  %v320 = vld [vmem:[%s313 + $0x18] sm:$0xf]
  %v321 = vld [vmem:[%s313 + $0x1c] sm:$0xf]
  %v322 = vld [vmem:[%s313 + $0x20] sm:$0xf]
  %v323 = vld [vmem:[%s313 + $0x24] sm:$0xf]
  %v324 = vld [vmem:[%s313 + $0x28] sm:$0xf]
  %v325 = vld [vmem:[%s313 + $0x2c] sm:$0xf]
  %v326 = vld [vmem:[%s313 + $0x30] sm:$0xf]
  %v327 = vld [vmem:[%s313 + $0x34] sm:$0xf]
  %v328 = vld [vmem:[%s313 + $0x38] sm:$0xf]
  %v329 = vld [vmem:[%s313 + $0x3c] sm:$0xf]
  %v330 = vld [vmem:[%s313 + $0x40] sm:$0xf]
  %v331 = vld [vmem:[%s313 + $0x44] sm:$0xf]
  %v332 = vld [vmem:[%s313 + $0x48] sm:$0x7]
  %v352 = vunpack.c.l.b16 %v314
  %v353 = vunpack.c.l.b16 %v315
  %v354 = vunpack.c.l.b16 %v316
  %v355 = vunpack.c.l.b16 %v317
  %v356 = vunpack.c.l.b16 %v318
  %v357 = vunpack.c.l.b16 %v319
  %v358 = vunpack.c.l.b16 %v320
  %v359 = vunpack.c.l.b16 %v321
  %v360 = vunpack.c.l.b16 %v322
  %v361 = vunpack.c.l.b16 %v323
  %v362 = vunpack.c.l.b16 %v324
  %v363 = vunpack.c.l.b16 %v325
  %v364 = vunpack.c.l.b16 %v326
  %v365 = vunpack.c.l.b16 %v327
  %v366 = vunpack.c.l.b16 %v328
  %v367 = vunpack.c.l.b16 %v329
  %v368 = vunpack.c.l.b16 %v330
  %v369 = vunpack.c.l.b16 %v331
  %v370 = vunpack.c.l.b16 %v332
  %v371 = vpack.c.b16 %v353, %v352
  %v372 = vpack.c.b16 %v355, %v354
  %v373 = vpack.c.b16 %v357, %v356
  %v374 = vpack.c.b16 %v359, %v358
  %v375 = vpack.c.b16 %v361, %v360
  %v376 = vpack.c.b16 %v363, %v362
  %v377 = vpack.c.b16 %v365, %v364
  %v378 = vpack.c.b16 %v367, %v366
  %v379 = vpack.c.b16 %v369, %v368
  %v380 = vpack.c.b16 %v370, %v370
  %v391 = vsel %vm113, %v380, 0
  %393 = vmatprep.subr.bf16.mxu0 0
  %394 = vmatpush1.bf16.msra.mxu0 %v378
  %395 = vmatprep.subr.bf16.mxu0 0
  %396 = vmatpush1.bf16.msra.mxu0 %v377
  %397 = vmatprep.subr.bf16.mxu0 0
  %398 = vmatpush1.bf16.msra.mxu0 %v376
  %399 = vmatprep.subr.bf16.mxu0 0
  %400 = vmatpush1.bf16.msra.mxu0 %v375
  %401 = vmatprep.subr.bf16.mxu0 0
  %402 = vmatpush1.bf16.msra.mxu0 %v374
  %403 = vmatprep.subr.bf16.mxu0 0
  %404 = vmatpush1.bf16.msra.mxu0 %v373
  %405 = vmatprep.subr.bf16.mxu0 0
  %406 = vmatpush1.bf16.msra.mxu0 %v372
  %407 = vmatprep.subr.bf16.mxu0 0
  %408 = vmatpush1.bf16.msra.mxu0 %v371
  %409 = vmatprep.subr.bf16.mxu0 0
  %410 = vmatpush2.bf16.msra.mxu0 0
  %411 = vmatprep.subr.bf16.mxu0 0
  %412 = vmatpush2.bf16.msra.mxu0 0
  %413 = vmatprep.subr.bf16.mxu0 0
  %414 = vmatpush2.bf16.msra.mxu0 0
  %415 = vmatprep.subr.bf16.mxu0 0
  %416 = vmatpush2.bf16.msra.mxu0 0
  %417 = vmatprep.subr.bf16.mxu0 0
  %418 = vmatpush2.bf16.msra.mxu0 0
  %419 = vmatprep.subr.bf16.mxu0 0
  %420 = vmatpush2.bf16.msra.mxu0 0
  %421 = vmatprep.subr.bf16.mxu0 0
  %422 = vmatpush2.bf16.msra.mxu0 %v391
  %423 = vmatprep.subr.bf16.mxu0 0
  %424 = vmatpush2.bf16.msra.mxu0 %v379
  %425 = vmatprep.mubr.bf16.mxu0 %v111
  %426 = vmatmul.mubr.bf16.gmra.mxu0 %v49
  %v427 = vpop.f32.mrf.mxu0
  %v428 = vadd.f32 0.0, %v427
  %v429 = vpop.f32.mrf.mxu0
  %v430 = vpop.f32.mrf.mxu0
  %v431 = vadd.f32 0.0, %v430
  %v432 = vpop.f32.mrf.mxu0
  %433 = vdwg.mxu0
  %v434 = vmul.f32 %v428, %v161
  %v435 = vmul.f32 %v431, %v166
  %v436 = vadd.f32 %v434, %v173
  %v437 = vadd.f32 %v435, %v178
  %v438 = vmax.f32 %v436, 0.0
  %v439 = vmax.f32 %v437, 0.0
  %v440 = vmax.f32 %v311, %v438
  %v441 = vmax.f32 %v312, %v439
  %s442 = scalar_lea.vmem %s0, 228
  %v443 = vld [vmem:[%s442] sm:$0xf]
  %v444 = vld [vmem:[%s442 + $0x4] sm:$0xf]
  %v445 = vld [vmem:[%s442 + $0x8] sm:$0xf]
  %v446 = vld [vmem:[%s442 + $0xc] sm:$0xf]
  %v447 = vld [vmem:[%s442 + $0x10] sm:$0xf]
  %v448 = vld [vmem:[%s442 + $0x14] sm:$0xf]
  %v449 = vld [vmem:[%s442 + $0x18] sm:$0xf]
  %v450 = vld [vmem:[%s442 + $0x1c] sm:$0xf]
  %v451 = vld [vmem:[%s442 + $0x20] sm:$0xf]
  %v452 = vld [vmem:[%s442 + $0x24] sm:$0xf]
  %v453 = vld [vmem:[%s442 + $0x28] sm:$0xf]
  %v454 = vld [vmem:[%s442 + $0x2c] sm:$0xf]
  %v455 = vld [vmem:[%s442 + $0x30] sm:$0xf]
  %v456 = vld [vmem:[%s442 + $0x34] sm:$0xf]
  %v457 = vld [vmem:[%s442 + $0x38] sm:$0xf]
  %v458 = vld [vmem:[%s442 + $0x3c] sm:$0xf]
  %v459 = vld [vmem:[%s442 + $0x40] sm:$0xf]
  %v460 = vld [vmem:[%s442 + $0x44] sm:$0xf]
  %v461 = vld [vmem:[%s442 + $0x48] sm:$0x7]
  %v481 = vunpack.c.l.b16 %v443
  %v482 = vunpack.c.l.b16 %v444
  %v483 = vunpack.c.l.b16 %v445
  %v484 = vunpack.c.l.b16 %v446
  %v485 = vunpack.c.l.b16 %v447
  %v486 = vunpack.c.l.b16 %v448
  %v487 = vunpack.c.l.b16 %v449
  %v488 = vunpack.c.l.b16 %v450
  %v489 = vunpack.c.l.b16 %v451
  %v490 = vunpack.c.l.b16 %v452
  %v491 = vunpack.c.l.b16 %v453
  %v492 = vunpack.c.l.b16 %v454
  %v493 = vunpack.c.l.b16 %v455
  %v494 = vunpack.c.l.b16 %v456
  %v495 = vunpack.c.l.b16 %v457
  %v496 = vunpack.c.l.b16 %v458
  %v497 = vunpack.c.l.b16 %v459
  %v498 = vunpack.c.l.b16 %v460
  %v499 = vunpack.c.l.b16 %v461
  %v500 = vpack.c.b16 %v482, %v481
  %v501 = vpack.c.b16 %v484, %v483
  %v502 = vpack.c.b16 %v486, %v485
  %v503 = vpack.c.b16 %v488, %v487
  %v504 = vpack.c.b16 %v490, %v489
  %v505 = vpack.c.b16 %v492, %v491
  %v506 = vpack.c.b16 %v494, %v493
  %v507 = vpack.c.b16 %v496, %v495
  %v508 = vpack.c.b16 %v498, %v497
  %v509 = vpack.c.b16 %v499, %v499
  %v520 = vsel %vm113, %v509, 0
  %522 = vmatprep.subr.bf16.mxu0 0
  %523 = vmatpush1.bf16.msra.mxu0 %v507
  %524 = vmatprep.subr.bf16.mxu0 0
  %525 = vmatpush1.bf16.msra.mxu0 %v506
  %526 = vmatprep.subr.bf16.mxu0 0
  %527 = vmatpush1.bf16.msra.mxu0 %v505
  %528 = vmatprep.subr.bf16.mxu0 0
  %529 = vmatpush1.bf16.msra.mxu0 %v504
  %530 = vmatprep.subr.bf16.mxu0 0
  %531 = vmatpush1.bf16.msra.mxu0 %v503
  %532 = vmatprep.subr.bf16.mxu0 0
  %533 = vmatpush1.bf16.msra.mxu0 %v502
  %534 = vmatprep.subr.bf16.mxu0 0
  %535 = vmatpush1.bf16.msra.mxu0 %v501
  %536 = vmatprep.subr.bf16.mxu0 0
  %537 = vmatpush1.bf16.msra.mxu0 %v500
  %538 = vmatprep.subr.bf16.mxu0 0
  %539 = vmatpush2.bf16.msra.mxu0 0
  %540 = vmatprep.subr.bf16.mxu0 0
  %541 = vmatpush2.bf16.msra.mxu0 0
  %542 = vmatprep.subr.bf16.mxu0 0
  %543 = vmatpush2.bf16.msra.mxu0 0
  %544 = vmatprep.subr.bf16.mxu0 0
  %545 = vmatpush2.bf16.msra.mxu0 0
  %546 = vmatprep.subr.bf16.mxu0 0
  %547 = vmatpush2.bf16.msra.mxu0 0
  %548 = vmatprep.subr.bf16.mxu0 0
  %549 = vmatpush2.bf16.msra.mxu0 0
  %550 = vmatprep.subr.bf16.mxu0 0
  %551 = vmatpush2.bf16.msra.mxu0 %v520
  %552 = vmatprep.subr.bf16.mxu0 0
  %553 = vmatpush2.bf16.msra.mxu0 %v508
  %554 = vmatprep.mubr.bf16.mxu0 %v111
  %555 = vmatmul.mubr.bf16.gmra.mxu0 %v49
  %v556 = vpop.f32.mrf.mxu0
  %v557 = vadd.f32 0.0, %v556
  %v558 = vpop.f32.mrf.mxu0
  %v559 = vpop.f32.mrf.mxu0
  %v560 = vadd.f32 0.0, %v559
  %v561 = vpop.f32.mrf.mxu0
  %562 = vdwg.mxu0
  %v563 = vmul.f32 %v557, %v161
  %v564 = vmul.f32 %v560, %v166
  %v565 = vadd.f32 %v563, %v173
  %v566 = vadd.f32 %v564, %v178
  %v567 = vmax.f32 %v565, 0.0
  %v568 = vmax.f32 %v566, 0.0
  %v569 = vmax.f32 %v440, %v567
  %v570 = vmax.f32 %v441, %v568
  %v571 = vpack.c.bf16 %v570, %v569
  %v573 = vunpack.c.l.b16 %v571
  %v574 = vunpack.c.h.b16 %v571
  %v575 = vpack.c.b16 %v573, %v573
  %v576 = vpack.c.b16 %v574, %v574
  %vm579 = vcmask 199680
  %580 = vst.msk [vmem:[%s4] sm:$0xf] %vm579, %v575
  %581 = vst.msk [vmem:[%s4 + $0x4] sm:$0xf] %vm579, %v576
  %s582 = scalar_lea.vmem %s0, 304
  %v583 = vld [vmem:[%s582] sm:$0xf]
  %v584 = vld [vmem:[%s582 + $0x4] sm:$0xf]
  %v585 = vld [vmem:[%s582 + $0x8] sm:$0xf]
  %v586 = vld [vmem:[%s582 + $0xc] sm:$0xf]
  %v587 = vld [vmem:[%s582 + $0x10] sm:$0xf]
  %v588 = vld [vmem:[%s582 + $0x14] sm:$0xf]
  %v589 = vld [vmem:[%s582 + $0x18] sm:$0xf]
  %v590 = vld [vmem:[%s582 + $0x1c] sm:$0xf]
  %v591 = vld [vmem:[%s582 + $0x20] sm:$0xf]
  %v592 = vld [vmem:[%s582 + $0x24] sm:$0xf]
  %v593 = vld [vmem:[%s582 + $0x28] sm:$0xf]
  %v594 = vld [vmem:[%s582 + $0x2c] sm:$0xf]
  %v595 = vld [vmem:[%s582 + $0x30] sm:$0xf]
  %v596 = vld [vmem:[%s582 + $0x34] sm:$0xf]
  %v597 = vld [vmem:[%s582 + $0x38] sm:$0xf]
  %v598 = vld [vmem:[%s582 + $0x3c] sm:$0xf]
  %v599 = vld [vmem:[%s582 + $0x40] sm:$0xf]
  %v600 = vld [vmem:[%s582 + $0x44] sm:$0xf]
  %v601 = vld [vmem:[%s582 + $0x48] sm:$0x7]
  %v621 = vunpack.c.l.b16 %v583
  %v622 = vunpack.c.l.b16 %v584
  %v623 = vunpack.c.l.b16 %v585
  %v624 = vunpack.c.l.b16 %v586
  %v625 = vunpack.c.l.b16 %v587
  %v626 = vunpack.c.l.b16 %v588
  %v627 = vunpack.c.l.b16 %v589
  %v628 = vunpack.c.l.b16 %v590
  %v629 = vunpack.c.l.b16 %v591
  %v630 = vunpack.c.l.b16 %v592
  %v631 = vunpack.c.l.b16 %v593
  %v632 = vunpack.c.l.b16 %v594
  %v633 = vunpack.c.l.b16 %v595
  %v634 = vunpack.c.l.b16 %v596
  %v635 = vunpack.c.l.b16 %v597
  %v636 = vunpack.c.l.b16 %v598
  %v637 = vunpack.c.l.b16 %v599
  %v638 = vunpack.c.l.b16 %v600
  %v639 = vunpack.c.l.b16 %v601
  %v640 = vpack.c.b16 %v622, %v621
  %v641 = vpack.c.b16 %v624, %v623
  %v642 = vpack.c.b16 %v626, %v625
  %v643 = vpack.c.b16 %v628, %v627
  %v644 = vpack.c.b16 %v630, %v629
  %v645 = vpack.c.b16 %v632, %v631
  %v646 = vpack.c.b16 %v634, %v633
  %v647 = vpack.c.b16 %v636, %v635
  %v648 = vpack.c.b16 %v638, %v637
  %v649 = vpack.c.b16 %v639, %v639
  %v660 = vsel %vm113, %v649, 0
  %662 = vmatprep.subr.bf16.mxu0 0
  %663 = vmatpush1.bf16.msra.mxu0 %v647
  %664 = vmatprep.subr.bf16.mxu0 0
  %665 = vmatpush1.bf16.msra.mxu0 %v646
  %666 = vmatprep.subr.bf16.mxu0 0
  %667 = vmatpush1.bf16.msra.mxu0 %v645
  %668 = vmatprep.subr.bf16.mxu0 0
  %669 = vmatpush1.bf16.msra.mxu0 %v644
  %670 = vmatprep.subr.bf16.mxu0 0
  %671 = vmatpush1.bf16.msra.mxu0 %v643
  %672 = vmatprep.subr.bf16.mxu0 0
  %673 = vmatpush1.bf16.msra.mxu0 %v642
  %674 = vmatprep.subr.bf16.mxu0 0
  %675 = vmatpush1.bf16.msra.mxu0 %v641
  %676 = vmatprep.subr.bf16.mxu0 0
  %677 = vmatpush1.bf16.msra.mxu0 %v640
  %678 = vmatprep.subr.bf16.mxu0 0
  %679 = vmatpush2.bf16.msra.mxu0 0
  %680 = vmatprep.subr.bf16.mxu0 0
  %681 = vmatpush2.bf16.msra.mxu0 0
  %682 = vmatprep.subr.bf16.mxu0 0
  %683 = vmatpush2.bf16.msra.mxu0 0
  %684 = vmatprep.subr.bf16.mxu0 0
  %685 = vmatpush2.bf16.msra.mxu0 0
  %686 = vmatprep.subr.bf16.mxu0 0
  %687 = vmatpush2.bf16.msra.mxu0 0
  %688 = vmatprep.subr.bf16.mxu0 0
  %689 = vmatpush2.bf16.msra.mxu0 0
  %690 = vmatprep.subr.bf16.mxu0 0
  %691 = vmatpush2.bf16.msra.mxu0 %v660
  %692 = vmatprep.subr.bf16.mxu0 0
  %693 = vmatpush2.bf16.msra.mxu0 %v648
  %694 = vmatprep.mubr.bf16.mxu0 %v111
  %695 = vmatmul.mubr.bf16.gmra.mxu0 %v49
  %v696 = vpop.f32.mrf.mxu0
  %v697 = vadd.f32 0.0, %v696
  %v698 = vpop.f32.mrf.mxu0
  %v699 = vpop.f32.mrf.mxu0
  %v700 = vadd.f32 0.0, %v699
  %v701 = vpop.f32.mrf.mxu0
  %702 = vdwg.mxu0
  %v703 = vmul.f32 %v697, %v161
  %v704 = vmul.f32 %v700, %v166
  %v705 = vadd.f32 %v703, %v173
  %v706 = vadd.f32 %v704, %v178
  %v707 = vmax.f32 %v705, 0.0
  %v708 = vmax.f32 %v706, 0.0
  %s709 = scalar_lea.vmem %s0, 380
  %v710 = vld [vmem:[%s709] sm:$0xf]
  %v711 = vld [vmem:[%s709 + $0x4] sm:$0xf]
  %v712 = vld [vmem:[%s709 + $0x8] sm:$0xf]
  %v713 = vld [vmem:[%s709 + $0xc] sm:$0xf]
  %v714 = vld [vmem:[%s709 + $0x10] sm:$0xf]
  %v715 = vld [vmem:[%s709 + $0x14] sm:$0xf]
  %v716 = vld [vmem:[%s709 + $0x18] sm:$0xf]
  %v717 = vld [vmem:[%s709 + $0x1c] sm:$0xf]
  %v718 = vld [vmem:[%s709 + $0x20] sm:$0xf]
  %v719 = vld [vmem:[%s709 + $0x24] sm:$0xf]
  %v720 = vld [vmem:[%s709 + $0x28] sm:$0xf]
  %v721 = vld [vmem:[%s709 + $0x2c] sm:$0xf]
  %v722 = vld [vmem:[%s709 + $0x30] sm:$0xf]
  %v723 = vld [vmem:[%s709 + $0x34] sm:$0xf]
  %v724 = vld [vmem:[%s709 + $0x38] sm:$0xf]
  %v725 = vld [vmem:[%s709 + $0x3c] sm:$0xf]
  %v726 = vld [vmem:[%s709 + $0x40] sm:$0xf]
  %v727 = vld [vmem:[%s709 + $0x44] sm:$0xf]
  %v728 = vld [vmem:[%s709 + $0x48] sm:$0x7]
  %v748 = vunpack.c.l.b16 %v710
  %v749 = vunpack.c.l.b16 %v711
  %v750 = vunpack.c.l.b16 %v712
  %v751 = vunpack.c.l.b16 %v713
  %v752 = vunpack.c.l.b16 %v714
  %v753 = vunpack.c.l.b16 %v715
  %v754 = vunpack.c.l.b16 %v716
  %v755 = vunpack.c.l.b16 %v717
  %v756 = vunpack.c.l.b16 %v718
  %v757 = vunpack.c.l.b16 %v719
  %v758 = vunpack.c.l.b16 %v720
  %v759 = vunpack.c.l.b16 %v721
  %v760 = vunpack.c.l.b16 %v722
  %v761 = vunpack.c.l.b16 %v723
  %v762 = vunpack.c.l.b16 %v724
  %v763 = vunpack.c.l.b16 %v725
  %v764 = vunpack.c.l.b16 %v726
  %v765 = vunpack.c.l.b16 %v727
  %v766 = vunpack.c.l.b16 %v728
  %v767 = vpack.c.b16 %v749, %v748
  %v768 = vpack.c.b16 %v751, %v750
  %v769 = vpack.c.b16 %v753, %v752
  %v770 = vpack.c.b16 %v755, %v754
  %v771 = vpack.c.b16 %v757, %v756
  %v772 = vpack.c.b16 %v759, %v758
  %v773 = vpack.c.b16 %v761, %v760
  %v774 = vpack.c.b16 %v763, %v762
  %v775 = vpack.c.b16 %v765, %v764
  %v776 = vpack.c.b16 %v766, %v766
  %v787 = vsel %vm113, %v776, 0
  %789 = vmatprep.subr.bf16.mxu0 0
  %790 = vmatpush1.bf16.msra.mxu0 %v774
  %791 = vmatprep.subr.bf16.mxu0 0
  %792 = vmatpush1.bf16.msra.mxu0 %v773
  %793 = vmatprep.subr.bf16.mxu0 0
  %794 = vmatpush1.bf16.msra.mxu0 %v772
  %795 = vmatprep.subr.bf16.mxu0 0
  %796 = vmatpush1.bf16.msra.mxu0 %v771
  %797 = vmatprep.subr.bf16.mxu0 0
  %798 = vmatpush1.bf16.msra.mxu0 %v770
  %799 = vmatprep.subr.bf16.mxu0 0
  %800 = vmatpush1.bf16.msra.mxu0 %v769
  %801 = vmatprep.subr.bf16.mxu0 0
  %802 = vmatpush1.bf16.msra.mxu0 %v768
  %803 = vmatprep.subr.bf16.mxu0 0
  %804 = vmatpush1.bf16.msra.mxu0 %v767
  %805 = vmatprep.subr.bf16.mxu0 0
  %806 = vmatpush2.bf16.msra.mxu0 0
  %807 = vmatprep.subr.bf16.mxu0 0
  %808 = vmatpush2.bf16.msra.mxu0 0
  %809 = vmatprep.subr.bf16.mxu0 0
  %810 = vmatpush2.bf16.msra.mxu0 0
  %811 = vmatprep.subr.bf16.mxu0 0
  %812 = vmatpush2.bf16.msra.mxu0 0
  %813 = vmatprep.subr.bf16.mxu0 0
  %814 = vmatpush2.bf16.msra.mxu0 0
  %815 = vmatprep.subr.bf16.mxu0 0
  %816 = vmatpush2.bf16.msra.mxu0 0
  %817 = vmatprep.subr.bf16.mxu0 0
  %818 = vmatpush2.bf16.msra.mxu0 %v787
  %819 = vmatprep.subr.bf16.mxu0 0
  %820 = vmatpush2.bf16.msra.mxu0 %v775
  %821 = vmatprep.mubr.bf16.mxu0 %v111
  %822 = vmatmul.mubr.bf16.gmra.mxu0 %v49
  %v823 = vpop.f32.mrf.mxu0
  %v824 = vadd.f32 0.0, %v823
  %v825 = vpop.f32.mrf.mxu0
  %v826 = vpop.f32.mrf.mxu0
  %v827 = vadd.f32 0.0, %v826
  %v828 = vpop.f32.mrf.mxu0
  %829 = vdwg.mxu0
  %v830 = vmul.f32 %v824, %v161
  %v831 = vmul.f32 %v827, %v166
  %v832 = vadd.f32 %v830, %v173
  %v833 = vadd.f32 %v831, %v178
  %v834 = vmax.f32 %v832, 0.0
  %v835 = vmax.f32 %v833, 0.0
  %v836 = vmax.f32 %v707, %v834
  %v837 = vmax.f32 %v708, %v835
  %s838 = scalar_lea.vmem %s0, 456
  %v839 = vld [vmem:[%s838] sm:$0xf]
  %v840 = vld [vmem:[%s838 + $0x4] sm:$0xf]
  %v841 = vld [vmem:[%s838 + $0x8] sm:$0xf]
  %v842 = vld [vmem:[%s838 + $0xc] sm:$0xf]
  %v843 = vld [vmem:[%s838 + $0x10] sm:$0xf]
  %v844 = vld [vmem:[%s838 + $0x14] sm:$0xf]
  %v845 = vld [vmem:[%s838 + $0x18] sm:$0xf]
  %v846 = vld [vmem:[%s838 + $0x1c] sm:$0xf]
  %v847 = vld [vmem:[%s838 + $0x20] sm:$0xf]
  %v848 = vld [vmem:[%s838 + $0x24] sm:$0xf]
  %v849 = vld [vmem:[%s838 + $0x28] sm:$0xf]
  %v850 = vld [vmem:[%s838 + $0x2c] sm:$0xf]
  %v851 = vld [vmem:[%s838 + $0x30] sm:$0xf]
  %v852 = vld [vmem:[%s838 + $0x34] sm:$0xf]
  %v853 = vld [vmem:[%s838 + $0x38] sm:$0xf]
  %v854 = vld [vmem:[%s838 + $0x3c] sm:$0xf]
  %v855 = vld [vmem:[%s838 + $0x40] sm:$0xf]
  %v856 = vld [vmem:[%s838 + $0x44] sm:$0xf]
  %v857 = vld [vmem:[%s838 + $0x48] sm:$0x7]
  %v877 = vunpack.c.l.b16 %v839
  %v878 = vunpack.c.l.b16 %v840
  %v879 = vunpack.c.l.b16 %v841
  %v880 = vunpack.c.l.b16 %v842
  %v881 = vunpack.c.l.b16 %v843
  %v882 = vunpack.c.l.b16 %v844
  %v883 = vunpack.c.l.b16 %v845
  %v884 = vunpack.c.l.b16 %v846
  %v885 = vunpack.c.l.b16 %v847
  %v886 = vunpack.c.l.b16 %v848
  %v887 = vunpack.c.l.b16 %v849
  %v888 = vunpack.c.l.b16 %v850
  %v889 = vunpack.c.l.b16 %v851
  %v890 = vunpack.c.l.b16 %v852
  %v891 = vunpack.c.l.b16 %v853
  %v892 = vunpack.c.l.b16 %v854
  %v893 = vunpack.c.l.b16 %v855
  %v894 = vunpack.c.l.b16 %v856
  %v895 = vunpack.c.l.b16 %v857
  %v896 = vpack.c.b16 %v878, %v877
  %v897 = vpack.c.b16 %v880, %v879
  %v898 = vpack.c.b16 %v882, %v881
  %v899 = vpack.c.b16 %v884, %v883
  %v900 = vpack.c.b16 %v886, %v885
  %v901 = vpack.c.b16 %v888, %v887
  %v902 = vpack.c.b16 %v890, %v889
  %v903 = vpack.c.b16 %v892, %v891
  %v904 = vpack.c.b16 %v894, %v893
  %v905 = vpack.c.b16 %v895, %v895
  %v916 = vsel %vm113, %v905, 0
  %918 = vmatprep.subr.bf16.mxu0 0
  %919 = vmatpush1.bf16.msra.mxu0 %v903
  %920 = vmatprep.subr.bf16.mxu0 0
  %921 = vmatpush1.bf16.msra.mxu0 %v902
  %922 = vmatprep.subr.bf16.mxu0 0
  %923 = vmatpush1.bf16.msra.mxu0 %v901
  %924 = vmatprep.subr.bf16.mxu0 0
  %925 = vmatpush1.bf16.msra.mxu0 %v900
  %926 = vmatprep.subr.bf16.mxu0 0
  %927 = vmatpush1.bf16.msra.mxu0 %v899
  %928 = vmatprep.subr.bf16.mxu0 0
  %929 = vmatpush1.bf16.msra.mxu0 %v898
  %930 = vmatprep.subr.bf16.mxu0 0
  %931 = vmatpush1.bf16.msra.mxu0 %v897
  %932 = vmatprep.subr.bf16.mxu0 0
  %933 = vmatpush1.bf16.msra.mxu0 %v896
  %934 = vmatprep.subr.bf16.mxu0 0
  %935 = vmatpush2.bf16.msra.mxu0 0
  %936 = vmatprep.subr.bf16.mxu0 0
  %937 = vmatpush2.bf16.msra.mxu0 0
  %938 = vmatprep.subr.bf16.mxu0 0
  %939 = vmatpush2.bf16.msra.mxu0 0
  %940 = vmatprep.subr.bf16.mxu0 0
  %941 = vmatpush2.bf16.msra.mxu0 0
  %942 = vmatprep.subr.bf16.mxu0 0
  %943 = vmatpush2.bf16.msra.mxu0 0
  %944 = vmatprep.subr.bf16.mxu0 0
  %945 = vmatpush2.bf16.msra.mxu0 0
  %946 = vmatprep.subr.bf16.mxu0 0
  %947 = vmatpush2.bf16.msra.mxu0 %v916
  %948 = vmatprep.subr.bf16.mxu0 0
  %949 = vmatpush2.bf16.msra.mxu0 %v904
  %950 = vmatprep.mubr.bf16.mxu0 %v111
  %951 = vmatmul.mubr.bf16.gmra.mxu0 %v49
  %v952 = vpop.f32.mrf.mxu0
  %v953 = vadd.f32 0.0, %v952
  %v954 = vpop.f32.mrf.mxu0
  %v955 = vpop.f32.mrf.mxu0
  %v956 = vadd.f32 0.0, %v955
  %v957 = vpop.f32.mrf.mxu0
  %958 = vdwg.mxu0
  %v959 = vmul.f32 %v953, %v161
  %v960 = vmul.f32 %v956, %v166
  %v961 = vadd.f32 %v959, %v173
  %v962 = vadd.f32 %v960, %v178
  %v963 = vmax.f32 %v961, 0.0
  %v964 = vmax.f32 %v962, 0.0
  %v965 = vmax.f32 %v836, %v963
  %v966 = vmax.f32 %v837, %v964
  %s967 = scalar_lea.vmem %s0, 532
  %v968 = vld [vmem:[%s967] sm:$0xf]
  %v969 = vld [vmem:[%s967 + $0x4] sm:$0xf]
  %v970 = vld [vmem:[%s967 + $0x8] sm:$0xf]
  %v971 = vld [vmem:[%s967 + $0xc] sm:$0xf]
  %v972 = vld [vmem:[%s967 + $0x10] sm:$0xf]
  %v973 = vld [vmem:[%s967 + $0x14] sm:$0xf]
  %v974 = vld [vmem:[%s967 + $0x18] sm:$0xf]
  %v975 = vld [vmem:[%s967 + $0x1c] sm:$0xf]
  %v976 = vld [vmem:[%s967 + $0x20] sm:$0xf]
  %v977 = vld [vmem:[%s967 + $0x24] sm:$0xf]
  %v978 = vld [vmem:[%s967 + $0x28] sm:$0xf]
  %v979 = vld [vmem:[%s967 + $0x2c] sm:$0xf]
  %v980 = vld [vmem:[%s967 + $0x30] sm:$0xf]
  %v981 = vld [vmem:[%s967 + $0x34] sm:$0xf]
  %v982 = vld [vmem:[%s967 + $0x38] sm:$0xf]
  %v983 = vld [vmem:[%s967 + $0x3c] sm:$0xf]
  %v984 = vld [vmem:[%s967 + $0x40] sm:$0xf]
  %v985 = vld [vmem:[%s967 + $0x44] sm:$0xf]
  %v986 = vld [vmem:[%s967 + $0x48] sm:$0x7]
  %v1006 = vunpack.c.l.b16 %v968
  %v1007 = vunpack.c.l.b16 %v969
  %v1008 = vunpack.c.l.b16 %v970
  %v1009 = vunpack.c.l.b16 %v971
  %v1010 = vunpack.c.l.b16 %v972
  %v1011 = vunpack.c.l.b16 %v973
  %v1012 = vunpack.c.l.b16 %v974
  %v1013 = vunpack.c.l.b16 %v975
  %v1014 = vunpack.c.l.b16 %v976
  %v1015 = vunpack.c.l.b16 %v977
  %v1016 = vunpack.c.l.b16 %v978
  %v1017 = vunpack.c.l.b16 %v979
  %v1018 = vunpack.c.l.b16 %v980
  %v1019 = vunpack.c.l.b16 %v981
  %v1020 = vunpack.c.l.b16 %v982
  %v1021 = vunpack.c.l.b16 %v983
  %v1022 = vunpack.c.l.b16 %v984
  %v1023 = vunpack.c.l.b16 %v985
  %v1024 = vunpack.c.l.b16 %v986
  %v1025 = vpack.c.b16 %v1007, %v1006
  %v1026 = vpack.c.b16 %v1009, %v1008
  %v1027 = vpack.c.b16 %v1011, %v1010
  %v1028 = vpack.c.b16 %v1013, %v1012
  %v1029 = vpack.c.b16 %v1015, %v1014
  %v1030 = vpack.c.b16 %v1017, %v1016
  %v1031 = vpack.c.b16 %v1019, %v1018
  %v1032 = vpack.c.b16 %v1021, %v1020
  %v1033 = vpack.c.b16 %v1023, %v1022
  %v1034 = vpack.c.b16 %v1024, %v1024
  %v1045 = vsel %vm113, %v1034, 0
  %1047 = vmatprep.subr.bf16.mxu0 0
  %1048 = vmatpush1.bf16.msra.mxu0 %v1032
  %1049 = vmatprep.subr.bf16.mxu0 0
  %1050 = vmatpush1.bf16.msra.mxu0 %v1031
  %1051 = vmatprep.subr.bf16.mxu0 0
  %1052 = vmatpush1.bf16.msra.mxu0 %v1030
  %1053 = vmatprep.subr.bf16.mxu0 0
  %1054 = vmatpush1.bf16.msra.mxu0 %v1029
  %1055 = vmatprep.subr.bf16.mxu0 0
  %1056 = vmatpush1.bf16.msra.mxu0 %v1028
  %1057 = vmatprep.subr.bf16.mxu0 0
  %1058 = vmatpush1.bf16.msra.mxu0 %v1027
  %1059 = vmatprep.subr.bf16.mxu0 0
  %1060 = vmatpush1.bf16.msra.mxu0 %v1026
  %1061 = vmatprep.subr.bf16.mxu0 0
  %1062 = vmatpush1.bf16.msra.mxu0 %v1025
  %1063 = vmatprep.subr.bf16.mxu0 0
  %1064 = vmatpush2.bf16.msra.mxu0 0
  %1065 = vmatprep.subr.bf16.mxu0 0
  %1066 = vmatpush2.bf16.msra.mxu0 0
  %1067 = vmatprep.subr.bf16.mxu0 0
  %1068 = vmatpush2.bf16.msra.mxu0 0
  %1069 = vmatprep.subr.bf16.mxu0 0
  %1070 = vmatpush2.bf16.msra.mxu0 0
  %1071 = vmatprep.subr.bf16.mxu0 0
  %1072 = vmatpush2.bf16.msra.mxu0 0
  %1073 = vmatprep.subr.bf16.mxu0 0
  %1074 = vmatpush2.bf16.msra.mxu0 0
  %1075 = vmatprep.subr.bf16.mxu0 0
  %1076 = vmatpush2.bf16.msra.mxu0 %v1045
  %1077 = vmatprep.subr.bf16.mxu0 0
  %1078 = vmatpush2.bf16.msra.mxu0 %v1033
  %1079 = vmatprep.mubr.bf16.mxu0 %v111
  %1080 = vmatmul.mubr.bf16.gmra.mxu0 %v49
  %v1081 = vpop.f32.mrf.mxu0
  %v1082 = vadd.f32 0.0, %v1081
  %v1083 = vpop.f32.mrf.mxu0
  %v1084 = vpop.f32.mrf.mxu0
  %v1085 = vadd.f32 0.0, %v1084
  %v1086 = vpop.f32.mrf.mxu0
  %1087 = vdwg.mxu0
  %v1088 = vmul.f32 %v1082, %v161
  %v1089 = vmul.f32 %v1085, %v166
  %v1090 = vadd.f32 %v1088, %v173
  %v1091 = vadd.f32 %v1089, %v178
  %v1092 = vmax.f32 %v1090, 0.0
  %v1093 = vmax.f32 %v1091, 0.0
  %v1094 = vmax.f32 %v965, %v1092
  %v1095 = vmax.f32 %v966, %v1093
  %v1096 = vpack.c.bf16 %v1095, %v1094
  %v1098 = vunpack.c.l.b16 %v1096
  %v1099 = vunpack.c.h.b16 %v1096
  %v1100 = vpack.c.b16 %v1098, %v1098
  %v1101 = vpack.c.b16 %v1099, %v1099
  %s1104 = scalar_lea.vmem %s4, 8
  %1105 = vst.msk [vmem:[%s1104] sm:$0xf] %vm579, %v1100
  %1106 = vst.msk [vmem:[%s1104 + $0x4] sm:$0xf] %vm579, %v1101
  %s1107 = scalar_lea.vmem %s0, 608
  %v1108 = vld [vmem:[%s1107] sm:$0xf]
  %v1109 = vld [vmem:[%s1107 + $0x4] sm:$0xf]
  %v1110 = vld [vmem:[%s1107 + $0x8] sm:$0xf]
  %v1111 = vld [vmem:[%s1107 + $0xc] sm:$0xf]
  %v1112 = vld [vmem:[%s1107 + $0x10] sm:$0xf]
  %v1113 = vld [vmem:[%s1107 + $0x14] sm:$0xf]
  %v1114 = vld [vmem:[%s1107 + $0x18] sm:$0xf]
  %v1115 = vld [vmem:[%s1107 + $0x1c] sm:$0xf]
  %v1116 = vld [vmem:[%s1107 + $0x20] sm:$0xf]
  %v1117 = vld [vmem:[%s1107 + $0x24] sm:$0xf]
  %v1118 = vld [vmem:[%s1107 + $0x28] sm:$0xf]
  %v1119 = vld [vmem:[%s1107 + $0x2c] sm:$0xf]
  %v1120 = vld [vmem:[%s1107 + $0x30] sm:$0xf]
  %v1121 = vld [vmem:[%s1107 + $0x34] sm:$0xf]
  %v1122 = vld [vmem:[%s1107 + $0x38] sm:$0xf]
  %v1123 = vld [vmem:[%s1107 + $0x3c] sm:$0xf]
  %v1124 = vld [vmem:[%s1107 + $0x40] sm:$0xf]
  %v1125 = vld [vmem:[%s1107 + $0x44] sm:$0xf]
  %v1126 = vld [vmem:[%s1107 + $0x48] sm:$0x7]
  %v1146 = vunpack.c.l.b16 %v1108
  %v1147 = vunpack.c.l.b16 %v1109
  %v1148 = vunpack.c.l.b16 %v1110
  %v1149 = vunpack.c.l.b16 %v1111
  %v1150 = vunpack.c.l.b16 %v1112
  %v1151 = vunpack.c.l.b16 %v1113
  %v1152 = vunpack.c.l.b16 %v1114
  %v1153 = vunpack.c.l.b16 %v1115
  %v1154 = vunpack.c.l.b16 %v1116
  %v1155 = vunpack.c.l.b16 %v1117
  %v1156 = vunpack.c.l.b16 %v1118
  %v1157 = vunpack.c.l.b16 %v1119
  %v1158 = vunpack.c.l.b16 %v1120
  %v1159 = vunpack.c.l.b16 %v1121
  %v1160 = vunpack.c.l.b16 %v1122
  %v1161 = vunpack.c.l.b16 %v1123
  %v1162 = vunpack.c.l.b16 %v1124
  %v1163 = vunpack.c.l.b16 %v1125
  %v1164 = vunpack.c.l.b16 %v1126
  %v1165 = vpack.c.b16 %v1147, %v1146
  %v1166 = vpack.c.b16 %v1149, %v1148
  %v1167 = vpack.c.b16 %v1151, %v1150
  %v1168 = vpack.c.b16 %v1153, %v1152
  %v1169 = vpack.c.b16 %v1155, %v1154
  %v1170 = vpack.c.b16 %v1157, %v1156
  %v1171 = vpack.c.b16 %v1159, %v1158
  %v1172 = vpack.c.b16 %v1161, %v1160
  %v1173 = vpack.c.b16 %v1163, %v1162
  %v1174 = vpack.c.b16 %v1164, %v1164
  %v1185 = vsel %vm113, %v1174, 0
  %1187 = vmatprep.subr.bf16.mxu0 0
  %1188 = vmatpush1.bf16.msra.mxu0 %v1172
  %1189 = vmatprep.subr.bf16.mxu0 0
  %1190 = vmatpush1.bf16.msra.mxu0 %v1171
  %1191 = vmatprep.subr.bf16.mxu0 0
  %1192 = vmatpush1.bf16.msra.mxu0 %v1170
  %1193 = vmatprep.subr.bf16.mxu0 0
  %1194 = vmatpush1.bf16.msra.mxu0 %v1169
  %1195 = vmatprep.subr.bf16.mxu0 0
  %1196 = vmatpush1.bf16.msra.mxu0 %v1168
  %1197 = vmatprep.subr.bf16.mxu0 0
  %1198 = vmatpush1.bf16.msra.mxu0 %v1167
  %1199 = vmatprep.subr.bf16.mxu0 0
  %1200 = vmatpush1.bf16.msra.mxu0 %v1166
  %1201 = vmatprep.subr.bf16.mxu0 0
  %1202 = vmatpush1.bf16.msra.mxu0 %v1165
  %1203 = vmatprep.subr.bf16.mxu0 0
  %1204 = vmatpush2.bf16.msra.mxu0 0
  %1205 = vmatprep.subr.bf16.mxu0 0
  %1206 = vmatpush2.bf16.msra.mxu0 0
  %1207 = vmatprep.subr.bf16.mxu0 0
  %1208 = vmatpush2.bf16.msra.mxu0 0
  %1209 = vmatprep.subr.bf16.mxu0 0
  %1210 = vmatpush2.bf16.msra.mxu0 0
  %1211 = vmatprep.subr.bf16.mxu0 0
  %1212 = vmatpush2.bf16.msra.mxu0 0
  %1213 = vmatprep.subr.bf16.mxu0 0
  %1214 = vmatpush2.bf16.msra.mxu0 0
  %1215 = vmatprep.subr.bf16.mxu0 0
  %1216 = vmatpush2.bf16.msra.mxu0 %v1185
  %1217 = vmatprep.subr.bf16.mxu0 0
  %1218 = vmatpush2.bf16.msra.mxu0 %v1173
  %1219 = vmatprep.mubr.bf16.mxu0 %v111
  %1220 = vmatmul.mubr.bf16.gmra.mxu0 %v49
  %v1221 = vpop.f32.mrf.mxu0
  %v1222 = vadd.f32 0.0, %v1221
  %v1223 = vpop.f32.mrf.mxu0
  %v1224 = vpop.f32.mrf.mxu0
  %v1225 = vadd.f32 0.0, %v1224
  %v1226 = vpop.f32.mrf.mxu0
  %1227 = vdwg.mxu0
  %v1228 = vmul.f32 %v1222, %v161
  %v1229 = vmul.f32 %v1225, %v166
  %v1230 = vadd.f32 %v1228, %v173
  %v1231 = vadd.f32 %v1229, %v178
  %v1232 = vmax.f32 %v1230, 0.0
  %v1233 = vmax.f32 %v1231, 0.0
  %s1234 = scalar_lea.vmem %s0, 684
  %v1235 = vld [vmem:[%s1234] sm:$0xf]
  %v1236 = vld [vmem:[%s1234 + $0x4] sm:$0xf]
  %v1237 = vld [vmem:[%s1234 + $0x8] sm:$0xf]
  %v1238 = vld [vmem:[%s1234 + $0xc] sm:$0xf]
  %v1239 = vld [vmem:[%s1234 + $0x10] sm:$0xf]
  %v1240 = vld [vmem:[%s1234 + $0x14] sm:$0xf]
  %v1241 = vld [vmem:[%s1234 + $0x18] sm:$0xf]
  %v1242 = vld [vmem:[%s1234 + $0x1c] sm:$0xf]
  %v1243 = vld [vmem:[%s1234 + $0x20] sm:$0xf]
  %v1244 = vld [vmem:[%s1234 + $0x24] sm:$0xf]
  %v1245 = vld [vmem:[%s1234 + $0x28] sm:$0xf]
  %v1246 = vld [vmem:[%s1234 + $0x2c] sm:$0xf]
  %v1247 = vld [vmem:[%s1234 + $0x30] sm:$0xf]
  %v1248 = vld [vmem:[%s1234 + $0x34] sm:$0xf]
  %v1249 = vld [vmem:[%s1234 + $0x38] sm:$0xf]
  %v1250 = vld [vmem:[%s1234 + $0x3c] sm:$0xf]
  %v1251 = vld [vmem:[%s1234 + $0x40] sm:$0xf]
  %v1252 = vld [vmem:[%s1234 + $0x44] sm:$0xf]
  %v1253 = vld [vmem:[%s1234 + $0x48] sm:$0x7]
  %v1273 = vunpack.c.l.b16 %v1235
  %v1274 = vunpack.c.l.b16 %v1236
  %v1275 = vunpack.c.l.b16 %v1237
  %v1276 = vunpack.c.l.b16 %v1238
  %v1277 = vunpack.c.l.b16 %v1239
  %v1278 = vunpack.c.l.b16 %v1240
  %v1279 = vunpack.c.l.b16 %v1241
  %v1280 = vunpack.c.l.b16 %v1242
  %v1281 = vunpack.c.l.b16 %v1243
  %v1282 = vunpack.c.l.b16 %v1244
  %v1283 = vunpack.c.l.b16 %v1245
  %v1284 = vunpack.c.l.b16 %v1246
  %v1285 = vunpack.c.l.b16 %v1247
  %v1286 = vunpack.c.l.b16 %v1248
  %v1287 = vunpack.c.l.b16 %v1249
  %v1288 = vunpack.c.l.b16 %v1250
  %v1289 = vunpack.c.l.b16 %v1251
  %v1290 = vunpack.c.l.b16 %v1252
  %v1291 = vunpack.c.l.b16 %v1253
  %v1292 = vpack.c.b16 %v1274, %v1273
  %v1293 = vpack.c.b16 %v1276, %v1275
  %v1294 = vpack.c.b16 %v1278, %v1277
  %v1295 = vpack.c.b16 %v1280, %v1279
  %v1296 = vpack.c.b16 %v1282, %v1281
  %v1297 = vpack.c.b16 %v1284, %v1283
  %v1298 = vpack.c.b16 %v1286, %v1285
  %v1299 = vpack.c.b16 %v1288, %v1287
  %v1300 = vpack.c.b16 %v1290, %v1289
  %v1301 = vpack.c.b16 %v1291, %v1291
  %v1312 = vsel %vm113, %v1301, 0
  %1314 = vmatprep.subr.bf16.mxu0 0
  %1315 = vmatpush1.bf16.msra.mxu0 %v1299
  %1316 = vmatprep.subr.bf16.mxu0 0
  %1317 = vmatpush1.bf16.msra.mxu0 %v1298
  %1318 = vmatprep.subr.bf16.mxu0 0
  %1319 = vmatpush1.bf16.msra.mxu0 %v1297
  %1320 = vmatprep.subr.bf16.mxu0 0
  %1321 = vmatpush1.bf16.msra.mxu0 %v1296
  %1322 = vmatprep.subr.bf16.mxu0 0
  %1323 = vmatpush1.bf16.msra.mxu0 %v1295
  %1324 = vmatprep.subr.bf16.mxu0 0
  %1325 = vmatpush1.bf16.msra.mxu0 %v1294
  %1326 = vmatprep.subr.bf16.mxu0 0
  %1327 = vmatpush1.bf16.msra.mxu0 %v1293
  %1328 = vmatprep.subr.bf16.mxu0 0
  %1329 = vmatpush1.bf16.msra.mxu0 %v1292
  %1330 = vmatprep.subr.bf16.mxu0 0
  %1331 = vmatpush2.bf16.msra.mxu0 0
  %1332 = vmatprep.subr.bf16.mxu0 0
  %1333 = vmatpush2.bf16.msra.mxu0 0
  %1334 = vmatprep.subr.bf16.mxu0 0
  %1335 = vmatpush2.bf16.msra.mxu0 0
  %1336 = vmatprep.subr.bf16.mxu0 0
  %1337 = vmatpush2.bf16.msra.mxu0 0
  %1338 = vmatprep.subr.bf16.mxu0 0
  %1339 = vmatpush2.bf16.msra.mxu0 0
  %1340 = vmatprep.subr.bf16.mxu0 0
  %1341 = vmatpush2.bf16.msra.mxu0 0
  %1342 = vmatprep.subr.bf16.mxu0 0
  %1343 = vmatpush2.bf16.msra.mxu0 %v1312
  %1344 = vmatprep.subr.bf16.mxu0 0
  %1345 = vmatpush2.bf16.msra.mxu0 %v1300
  %1346 = vmatprep.mubr.bf16.mxu0 %v111
  %1347 = vmatmul.mubr.bf16.gmra.mxu0 %v49
  %v1348 = vpop.f32.mrf.mxu0
  %v1349 = vadd.f32 0.0, %v1348
  %v1350 = vpop.f32.mrf.mxu0
  %v1351 = vpop.f32.mrf.mxu0
  %v1352 = vadd.f32 0.0, %v1351
  %v1353 = vpop.f32.mrf.mxu0
  %1354 = vdwg.mxu0
  %v1355 = vmul.f32 %v1349, %v161
  %v1356 = vmul.f32 %v1352, %v166
  %v1357 = vadd.f32 %v1355, %v173
  %v1358 = vadd.f32 %v1356, %v178
  %v1359 = vmax.f32 %v1357, 0.0
  %v1360 = vmax.f32 %v1358, 0.0
  %v1361 = vmax.f32 %v1232, %v1359
  %v1362 = vmax.f32 %v1233, %v1360
  %s1363 = scalar_lea.vmem %s0, 760
  %v1364 = vld [vmem:[%s1363] sm:$0xf]
  %v1365 = vld [vmem:[%s1363 + $0x4] sm:$0xf]
  %v1366 = vld [vmem:[%s1363 + $0x8] sm:$0xf]
  %v1367 = vld [vmem:[%s1363 + $0xc] sm:$0xf]
  %v1368 = vld [vmem:[%s1363 + $0x10] sm:$0xf]
  %v1369 = vld [vmem:[%s1363 + $0x14] sm:$0xf]
  %v1370 = vld [vmem:[%s1363 + $0x18] sm:$0xf]
  %v1371 = vld [vmem:[%s1363 + $0x1c] sm:$0xf]
  %v1372 = vld [vmem:[%s1363 + $0x20] sm:$0xf]
  %v1373 = vld [vmem:[%s1363 + $0x24] sm:$0xf]
  %v1374 = vld [vmem:[%s1363 + $0x28] sm:$0xf]
  %v1375 = vld [vmem:[%s1363 + $0x2c] sm:$0xf]
  %v1376 = vld [vmem:[%s1363 + $0x30] sm:$0xf]
  %v1377 = vld [vmem:[%s1363 + $0x34] sm:$0xf]
  %v1378 = vld [vmem:[%s1363 + $0x38] sm:$0xf]
  %v1379 = vld [vmem:[%s1363 + $0x3c] sm:$0xf]
  %v1380 = vld [vmem:[%s1363 + $0x40] sm:$0xf]
  %v1381 = vld [vmem:[%s1363 + $0x44] sm:$0xf]
  %v1382 = vld [vmem:[%s1363 + $0x48] sm:$0x7]
  %v1402 = vunpack.c.l.b16 %v1364
  %v1403 = vunpack.c.l.b16 %v1365
  %v1404 = vunpack.c.l.b16 %v1366
  %v1405 = vunpack.c.l.b16 %v1367
  %v1406 = vunpack.c.l.b16 %v1368
  %v1407 = vunpack.c.l.b16 %v1369
  %v1408 = vunpack.c.l.b16 %v1370
  %v1409 = vunpack.c.l.b16 %v1371
  %v1410 = vunpack.c.l.b16 %v1372
  %v1411 = vunpack.c.l.b16 %v1373
  %v1412 = vunpack.c.l.b16 %v1374
  %v1413 = vunpack.c.l.b16 %v1375
  %v1414 = vunpack.c.l.b16 %v1376
  %v1415 = vunpack.c.l.b16 %v1377
  %v1416 = vunpack.c.l.b16 %v1378
  %v1417 = vunpack.c.l.b16 %v1379
  %v1418 = vunpack.c.l.b16 %v1380
  %v1419 = vunpack.c.l.b16 %v1381
  %v1420 = vunpack.c.l.b16 %v1382
  %v1421 = vpack.c.b16 %v1403, %v1402
  %v1422 = vpack.c.b16 %v1405, %v1404
  %v1423 = vpack.c.b16 %v1407, %v1406
  %v1424 = vpack.c.b16 %v1409, %v1408
  %v1425 = vpack.c.b16 %v1411, %v1410
  %v1426 = vpack.c.b16 %v1413, %v1412
  %v1427 = vpack.c.b16 %v1415, %v1414
  %v1428 = vpack.c.b16 %v1417, %v1416
  %v1429 = vpack.c.b16 %v1419, %v1418
  %v1430 = vpack.c.b16 %v1420, %v1420
  %v1441 = vsel %vm113, %v1430, 0
  %1443 = vmatprep.subr.bf16.mxu0 0
  %1444 = vmatpush1.bf16.msra.mxu0 %v1428
  %1445 = vmatprep.subr.bf16.mxu0 0
  %1446 = vmatpush1.bf16.msra.mxu0 %v1427
  %1447 = vmatprep.subr.bf16.mxu0 0
  %1448 = vmatpush1.bf16.msra.mxu0 %v1426
  %1449 = vmatprep.subr.bf16.mxu0 0
  %1450 = vmatpush1.bf16.msra.mxu0 %v1425
  %1451 = vmatprep.subr.bf16.mxu0 0
  %1452 = vmatpush1.bf16.msra.mxu0 %v1424
  %1453 = vmatprep.subr.bf16.mxu0 0
  %1454 = vmatpush1.bf16.msra.mxu0 %v1423
  %1455 = vmatprep.subr.bf16.mxu0 0
  %1456 = vmatpush1.bf16.msra.mxu0 %v1422
  %1457 = vmatprep.subr.bf16.mxu0 0
  %1458 = vmatpush1.bf16.msra.mxu0 %v1421
  %1459 = vmatprep.subr.bf16.mxu0 0
  %1460 = vmatpush2.bf16.msra.mxu0 0
  %1461 = vmatprep.subr.bf16.mxu0 0
  %1462 = vmatpush2.bf16.msra.mxu0 0
  %1463 = vmatprep.subr.bf16.mxu0 0
  %1464 = vmatpush2.bf16.msra.mxu0 0
  %1465 = vmatprep.subr.bf16.mxu0 0
  %1466 = vmatpush2.bf16.msra.mxu0 0
  %1467 = vmatprep.subr.bf16.mxu0 0
  %1468 = vmatpush2.bf16.msra.mxu0 0
  %1469 = vmatprep.subr.bf16.mxu0 0
  %1470 = vmatpush2.bf16.msra.mxu0 0
  %1471 = vmatprep.subr.bf16.mxu0 0
  %1472 = vmatpush2.bf16.msra.mxu0 %v1441
  %1473 = vmatprep.subr.bf16.mxu0 0
  %1474 = vmatpush2.bf16.msra.mxu0 %v1429
  %1475 = vmatprep.mubr.bf16.mxu0 %v111
  %1476 = vmatmul.mubr.bf16.gmra.mxu0 %v49
  %v1477 = vpop.f32.mrf.mxu0
  %v1478 = vadd.f32 0.0, %v1477
  %v1479 = vpop.f32.mrf.mxu0
  %v1480 = vpop.f32.mrf.mxu0
  %v1481 = vadd.f32 0.0, %v1480
  %v1482 = vpop.f32.mrf.mxu0
  %1483 = vdwg.mxu0
  %v1484 = vmul.f32 %v1478, %v161
  %v1485 = vmul.f32 %v1481, %v166
  %v1486 = vadd.f32 %v1484, %v173
  %v1487 = vadd.f32 %v1485, %v178
  %v1488 = vmax.f32 %v1486, 0.0
  %v1489 = vmax.f32 %v1487, 0.0
  %v1490 = vmax.f32 %v1361, %v1488
  %v1491 = vmax.f32 %v1362, %v1489
  %s1492 = scalar_lea.vmem %s0, 836
  %v1493 = vld [vmem:[%s1492] sm:$0xf]
  %v1494 = vld [vmem:[%s1492 + $0x4] sm:$0xf]
  %v1495 = vld [vmem:[%s1492 + $0x8] sm:$0xf]
  %v1496 = vld [vmem:[%s1492 + $0xc] sm:$0xf]
  %v1497 = vld [vmem:[%s1492 + $0x10] sm:$0xf]
  %v1498 = vld [vmem:[%s1492 + $0x14] sm:$0xf]
  %v1499 = vld [vmem:[%s1492 + $0x18] sm:$0xf]
  %v1500 = vld [vmem:[%s1492 + $0x1c] sm:$0xf]
  %v1501 = vld [vmem:[%s1492 + $0x20] sm:$0xf]
  %v1502 = vld [vmem:[%s1492 + $0x24] sm:$0xf]
  %v1503 = vld [vmem:[%s1492 + $0x28] sm:$0xf]
  %v1504 = vld [vmem:[%s1492 + $0x2c] sm:$0xf]
  %v1505 = vld [vmem:[%s1492 + $0x30] sm:$0xf]
  %v1506 = vld [vmem:[%s1492 + $0x34] sm:$0xf]
  %v1507 = vld [vmem:[%s1492 + $0x38] sm:$0xf]
  %v1508 = vld [vmem:[%s1492 + $0x3c] sm:$0xf]
  %v1509 = vld [vmem:[%s1492 + $0x40] sm:$0xf]
  %v1510 = vld [vmem:[%s1492 + $0x44] sm:$0xf]
  %v1511 = vld [vmem:[%s1492 + $0x48] sm:$0x7]
  %v1531 = vunpack.c.l.b16 %v1493
  %v1532 = vunpack.c.l.b16 %v1494
  %v1533 = vunpack.c.l.b16 %v1495
  %v1534 = vunpack.c.l.b16 %v1496
  %v1535 = vunpack.c.l.b16 %v1497
  %v1536 = vunpack.c.l.b16 %v1498
  %v1537 = vunpack.c.l.b16 %v1499
  %v1538 = vunpack.c.l.b16 %v1500
  %v1539 = vunpack.c.l.b16 %v1501
  %v1540 = vunpack.c.l.b16 %v1502
  %v1541 = vunpack.c.l.b16 %v1503
  %v1542 = vunpack.c.l.b16 %v1504
  %v1543 = vunpack.c.l.b16 %v1505
  %v1544 = vunpack.c.l.b16 %v1506
  %v1545 = vunpack.c.l.b16 %v1507
  %v1546 = vunpack.c.l.b16 %v1508
  %v1547 = vunpack.c.l.b16 %v1509
  %v1548 = vunpack.c.l.b16 %v1510
  %v1549 = vunpack.c.l.b16 %v1511
  %v1550 = vpack.c.b16 %v1532, %v1531
  %v1551 = vpack.c.b16 %v1534, %v1533
  %v1552 = vpack.c.b16 %v1536, %v1535
  %v1553 = vpack.c.b16 %v1538, %v1537
  %v1554 = vpack.c.b16 %v1540, %v1539
  %v1555 = vpack.c.b16 %v1542, %v1541
  %v1556 = vpack.c.b16 %v1544, %v1543
  %v1557 = vpack.c.b16 %v1546, %v1545
  %v1558 = vpack.c.b16 %v1548, %v1547
  %v1559 = vpack.c.b16 %v1549, %v1549
  %v1570 = vsel %vm113, %v1559, 0
  %1572 = vmatprep.subr.bf16.mxu0 0
  %1573 = vmatpush1.bf16.msra.mxu0 %v1557
  %1574 = vmatprep.subr.bf16.mxu0 0
  %1575 = vmatpush1.bf16.msra.mxu0 %v1556
  %1576 = vmatprep.subr.bf16.mxu0 0
  %1577 = vmatpush1.bf16.msra.mxu0 %v1555
  %1578 = vmatprep.subr.bf16.mxu0 0
  %1579 = vmatpush1.bf16.msra.mxu0 %v1554
  %1580 = vmatprep.subr.bf16.mxu0 0
  %1581 = vmatpush1.bf16.msra.mxu0 %v1553
  %1582 = vmatprep.subr.bf16.mxu0 0
  %1583 = vmatpush1.bf16.msra.mxu0 %v1552
  %1584 = vmatprep.subr.bf16.mxu0 0
  %1585 = vmatpush1.bf16.msra.mxu0 %v1551
  %1586 = vmatprep.subr.bf16.mxu0 0
  %1587 = vmatpush1.bf16.msra.mxu0 %v1550
  %1588 = vmatprep.subr.bf16.mxu0 0
  %1589 = vmatpush2.bf16.msra.mxu0 0
  %1590 = vmatprep.subr.bf16.mxu0 0
  %1591 = vmatpush2.bf16.msra.mxu0 0
  %1592 = vmatprep.subr.bf16.mxu0 0
  %1593 = vmatpush2.bf16.msra.mxu0 0
  %1594 = vmatprep.subr.bf16.mxu0 0
  %1595 = vmatpush2.bf16.msra.mxu0 0
  %1596 = vmatprep.subr.bf16.mxu0 0
  %1597 = vmatpush2.bf16.msra.mxu0 0
  %1598 = vmatprep.subr.bf16.mxu0 0
  %1599 = vmatpush2.bf16.msra.mxu0 0
  %1600 = vmatprep.subr.bf16.mxu0 0
  %1601 = vmatpush2.bf16.msra.mxu0 %v1570
  %1602 = vmatprep.subr.bf16.mxu0 0
  %1603 = vmatpush2.bf16.msra.mxu0 %v1558
  %1604 = vmatprep.mubr.bf16.mxu0 %v111
  %1605 = vmatmul.mubr.bf16.gmra.mxu0 %v49
  %v1606 = vpop.f32.mrf.mxu0
  %v1607 = vadd.f32 0.0, %v1606
  %v1608 = vpop.f32.mrf.mxu0
  %v1609 = vpop.f32.mrf.mxu0
  %v1610 = vadd.f32 0.0, %v1609
  %v1611 = vpop.f32.mrf.mxu0
  %1612 = vdwg.mxu0
  %v1613 = vmul.f32 %v1607, %v161
  %v1614 = vmul.f32 %v1610, %v166
  %v1615 = vadd.f32 %v1613, %v173
  %v1616 = vadd.f32 %v1614, %v178
  %v1617 = vmax.f32 %v1615, 0.0
  %v1618 = vmax.f32 %v1616, 0.0
  %v1619 = vmax.f32 %v1490, %v1617
  %v1620 = vmax.f32 %v1491, %v1618
  %v1621 = vpack.c.bf16 %v1620, %v1619
  %v1623 = vunpack.c.l.b16 %v1621
  %v1624 = vunpack.c.h.b16 %v1621
  %v1625 = vpack.c.b16 %v1623, %v1623
  %v1626 = vpack.c.b16 %v1624, %v1624
  %s1629 = scalar_lea.vmem %s4, 16
  %1630 = vst.msk [vmem:[%s1629] sm:$0xf] %vm579, %v1625
  %1631 = vst.msk [vmem:[%s1629 + $0x4] sm:$0xf] %vm579, %v1626
  %s1632 = scalar_lea.vmem %s0, 912
  %v1633 = vld [vmem:[%s1632] sm:$0xf]
  %v1634 = vld [vmem:[%s1632 + $0x4] sm:$0xf]
  %v1635 = vld [vmem:[%s1632 + $0x8] sm:$0xf]
  %v1636 = vld [vmem:[%s1632 + $0xc] sm:$0xf]
  %v1637 = vld [vmem:[%s1632 + $0x10] sm:$0xf]
  %v1638 = vld [vmem:[%s1632 + $0x14] sm:$0xf]
  %v1639 = vld [vmem:[%s1632 + $0x18] sm:$0xf]
  %v1640 = vld [vmem:[%s1632 + $0x1c] sm:$0xf]
  %v1641 = vld [vmem:[%s1632 + $0x20] sm:$0xf]
  %v1642 = vld [vmem:[%s1632 + $0x24] sm:$0xf]
  %v1643 = vld [vmem:[%s1632 + $0x28] sm:$0xf]
  %v1644 = vld [vmem:[%s1632 + $0x2c] sm:$0xf]
  %v1645 = vld [vmem:[%s1632 + $0x30] sm:$0xf]
  %v1646 = vld [vmem:[%s1632 + $0x34] sm:$0xf]
  %v1647 = vld [vmem:[%s1632 + $0x38] sm:$0xf]
  %v1648 = vld [vmem:[%s1632 + $0x3c] sm:$0xf]
  %v1649 = vld [vmem:[%s1632 + $0x40] sm:$0xf]
  %v1650 = vld [vmem:[%s1632 + $0x44] sm:$0xf]
  %v1651 = vld [vmem:[%s1632 + $0x48] sm:$0x7]
  %v1671 = vunpack.c.l.b16 %v1633
  %v1672 = vunpack.c.l.b16 %v1634
  %v1673 = vunpack.c.l.b16 %v1635
  %v1674 = vunpack.c.l.b16 %v1636
  %v1675 = vunpack.c.l.b16 %v1637
  %v1676 = vunpack.c.l.b16 %v1638
  %v1677 = vunpack.c.l.b16 %v1639
  %v1678 = vunpack.c.l.b16 %v1640
  %v1679 = vunpack.c.l.b16 %v1641
  %v1680 = vunpack.c.l.b16 %v1642
  %v1681 = vunpack.c.l.b16 %v1643
  %v1682 = vunpack.c.l.b16 %v1644
  %v1683 = vunpack.c.l.b16 %v1645
  %v1684 = vunpack.c.l.b16 %v1646
  %v1685 = vunpack.c.l.b16 %v1647
  %v1686 = vunpack.c.l.b16 %v1648
  %v1687 = vunpack.c.l.b16 %v1649
  %v1688 = vunpack.c.l.b16 %v1650
  %v1689 = vunpack.c.l.b16 %v1651
  %v1690 = vpack.c.b16 %v1672, %v1671
  %v1691 = vpack.c.b16 %v1674, %v1673
  %v1692 = vpack.c.b16 %v1676, %v1675
  %v1693 = vpack.c.b16 %v1678, %v1677
  %v1694 = vpack.c.b16 %v1680, %v1679
  %v1695 = vpack.c.b16 %v1682, %v1681
  %v1696 = vpack.c.b16 %v1684, %v1683
  %v1697 = vpack.c.b16 %v1686, %v1685
  %v1698 = vpack.c.b16 %v1688, %v1687
  %v1699 = vpack.c.b16 %v1689, %v1689
  %v1710 = vsel %vm113, %v1699, 0
  %1712 = vmatprep.subr.bf16.mxu0 0
  %1713 = vmatpush1.bf16.msra.mxu0 %v1697
  %1714 = vmatprep.subr.bf16.mxu0 0
  %1715 = vmatpush1.bf16.msra.mxu0 %v1696
  %1716 = vmatprep.subr.bf16.mxu0 0
  %1717 = vmatpush1.bf16.msra.mxu0 %v1695
  %1718 = vmatprep.subr.bf16.mxu0 0
  %1719 = vmatpush1.bf16.msra.mxu0 %v1694
  %1720 = vmatprep.subr.bf16.mxu0 0
  %1721 = vmatpush1.bf16.msra.mxu0 %v1693
  %1722 = vmatprep.subr.bf16.mxu0 0
  %1723 = vmatpush1.bf16.msra.mxu0 %v1692
  %1724 = vmatprep.subr.bf16.mxu0 0
  %1725 = vmatpush1.bf16.msra.mxu0 %v1691
  %1726 = vmatprep.subr.bf16.mxu0 0
  %1727 = vmatpush1.bf16.msra.mxu0 %v1690
  %1728 = vmatprep.subr.bf16.mxu0 0
  %1729 = vmatpush2.bf16.msra.mxu0 0
  %1730 = vmatprep.subr.bf16.mxu0 0
  %1731 = vmatpush2.bf16.msra.mxu0 0
  %1732 = vmatprep.subr.bf16.mxu0 0
  %1733 = vmatpush2.bf16.msra.mxu0 0
  %1734 = vmatprep.subr.bf16.mxu0 0
  %1735 = vmatpush2.bf16.msra.mxu0 0
  %1736 = vmatprep.subr.bf16.mxu0 0
  %1737 = vmatpush2.bf16.msra.mxu0 0
  %1738 = vmatprep.subr.bf16.mxu0 0
  %1739 = vmatpush2.bf16.msra.mxu0 0
  %1740 = vmatprep.subr.bf16.mxu0 0
  %1741 = vmatpush2.bf16.msra.mxu0 %v1710
  %1742 = vmatprep.subr.bf16.mxu0 0
  %1743 = vmatpush2.bf16.msra.mxu0 %v1698
  %1744 = vmatprep.mubr.bf16.mxu0 %v111
  %1745 = vmatmul.mubr.bf16.gmra.mxu0 %v49
  %v1746 = vpop.f32.mrf.mxu0
  %v1747 = vadd.f32 0.0, %v1746
  %v1748 = vpop.f32.mrf.mxu0
  %v1749 = vpop.f32.mrf.mxu0
  %v1750 = vadd.f32 0.0, %v1749
  %v1751 = vpop.f32.mrf.mxu0
  %1752 = vdwg.mxu0
  %v1753 = vmul.f32 %v1747, %v161
  %v1754 = vmul.f32 %v1750, %v166
  %v1755 = vadd.f32 %v1753, %v173
  %v1756 = vadd.f32 %v1754, %v178
  %v1757 = vmax.f32 %v1755, 0.0
  %v1758 = vmax.f32 %v1756, 0.0
  %s1759 = scalar_lea.vmem %s0, 988
  %v1760 = vld [vmem:[%s1759] sm:$0xf]
  %v1761 = vld [vmem:[%s1759 + $0x4] sm:$0xf]
  %v1762 = vld [vmem:[%s1759 + $0x8] sm:$0xf]
  %v1763 = vld [vmem:[%s1759 + $0xc] sm:$0xf]
  %v1764 = vld [vmem:[%s1759 + $0x10] sm:$0xf]
  %v1765 = vld [vmem:[%s1759 + $0x14] sm:$0xf]
  %v1766 = vld [vmem:[%s1759 + $0x18] sm:$0xf]
  %v1767 = vld [vmem:[%s1759 + $0x1c] sm:$0xf]
  %v1768 = vld [vmem:[%s1759 + $0x20] sm:$0xf]
  %v1769 = vld [vmem:[%s1759 + $0x24] sm:$0xf]
  %v1770 = vld [vmem:[%s1759 + $0x28] sm:$0xf]
  %v1771 = vld [vmem:[%s1759 + $0x2c] sm:$0xf]
  %v1772 = vld [vmem:[%s1759 + $0x30] sm:$0xf]
  %v1773 = vld [vmem:[%s1759 + $0x34] sm:$0xf]
  %v1774 = vld [vmem:[%s1759 + $0x38] sm:$0xf]
  %v1775 = vld [vmem:[%s1759 + $0x3c] sm:$0xf]
  %v1776 = vld [vmem:[%s1759 + $0x40] sm:$0xf]
  %v1777 = vld [vmem:[%s1759 + $0x44] sm:$0xf]
  %v1778 = vld [vmem:[%s1759 + $0x48] sm:$0x7]
  %v1798 = vunpack.c.l.b16 %v1760
  %v1799 = vunpack.c.l.b16 %v1761
  %v1800 = vunpack.c.l.b16 %v1762
  %v1801 = vunpack.c.l.b16 %v1763
  %v1802 = vunpack.c.l.b16 %v1764
  %v1803 = vunpack.c.l.b16 %v1765
  %v1804 = vunpack.c.l.b16 %v1766
  %v1805 = vunpack.c.l.b16 %v1767
  %v1806 = vunpack.c.l.b16 %v1768
  %v1807 = vunpack.c.l.b16 %v1769
  %v1808 = vunpack.c.l.b16 %v1770
  %v1809 = vunpack.c.l.b16 %v1771
  %v1810 = vunpack.c.l.b16 %v1772
  %v1811 = vunpack.c.l.b16 %v1773
  %v1812 = vunpack.c.l.b16 %v1774
  %v1813 = vunpack.c.l.b16 %v1775
  %v1814 = vunpack.c.l.b16 %v1776
  %v1815 = vunpack.c.l.b16 %v1777
  %v1816 = vunpack.c.l.b16 %v1778
  %v1817 = vpack.c.b16 %v1799, %v1798
  %v1818 = vpack.c.b16 %v1801, %v1800
  %v1819 = vpack.c.b16 %v1803, %v1802
  %v1820 = vpack.c.b16 %v1805, %v1804
  %v1821 = vpack.c.b16 %v1807, %v1806
  %v1822 = vpack.c.b16 %v1809, %v1808
  %v1823 = vpack.c.b16 %v1811, %v1810
  %v1824 = vpack.c.b16 %v1813, %v1812
  %v1825 = vpack.c.b16 %v1815, %v1814
  %v1826 = vpack.c.b16 %v1816, %v1816
  %v1837 = vsel %vm113, %v1826, 0
  %1839 = vmatprep.subr.bf16.mxu0 0
  %1840 = vmatpush1.bf16.msra.mxu0 %v1824
  %1841 = vmatprep.subr.bf16.mxu0 0
  %1842 = vmatpush1.bf16.msra.mxu0 %v1823
  %1843 = vmatprep.subr.bf16.mxu0 0
  %1844 = vmatpush1.bf16.msra.mxu0 %v1822
  %1845 = vmatprep.subr.bf16.mxu0 0
  %1846 = vmatpush1.bf16.msra.mxu0 %v1821
  %1847 = vmatprep.subr.bf16.mxu0 0
  %1848 = vmatpush1.bf16.msra.mxu0 %v1820
  %1849 = vmatprep.subr.bf16.mxu0 0
  %1850 = vmatpush1.bf16.msra.mxu0 %v1819
  %1851 = vmatprep.subr.bf16.mxu0 0
  %1852 = vmatpush1.bf16.msra.mxu0 %v1818
  %1853 = vmatprep.subr.bf16.mxu0 0
  %1854 = vmatpush1.bf16.msra.mxu0 %v1817
  %1855 = vmatprep.subr.bf16.mxu0 0
  %1856 = vmatpush2.bf16.msra.mxu0 0
  %1857 = vmatprep.subr.bf16.mxu0 0
  %1858 = vmatpush2.bf16.msra.mxu0 0
  %1859 = vmatprep.subr.bf16.mxu0 0
  %1860 = vmatpush2.bf16.msra.mxu0 0
  %1861 = vmatprep.subr.bf16.mxu0 0
  %1862 = vmatpush2.bf16.msra.mxu0 0
  %1863 = vmatprep.subr.bf16.mxu0 0
  %1864 = vmatpush2.bf16.msra.mxu0 0
  %1865 = vmatprep.subr.bf16.mxu0 0
  %1866 = vmatpush2.bf16.msra.mxu0 0
  %1867 = vmatprep.subr.bf16.mxu0 0
  %1868 = vmatpush2.bf16.msra.mxu0 %v1837
  %1869 = vmatprep.subr.bf16.mxu0 0
  %1870 = vmatpush2.bf16.msra.mxu0 %v1825
  %1871 = vmatprep.mubr.bf16.mxu0 %v111
  %1872 = vmatmul.mubr.bf16.gmra.mxu0 %v49
  %v1873 = vpop.f32.mrf.mxu0
  %v1874 = vadd.f32 0.0, %v1873
  %v1875 = vpop.f32.mrf.mxu0
  %v1876 = vpop.f32.mrf.mxu0
  %v1877 = vadd.f32 0.0, %v1876
  %v1878 = vpop.f32.mrf.mxu0
  %1879 = vdwg.mxu0
  %v1880 = vmul.f32 %v1874, %v161
  %v1881 = vmul.f32 %v1877, %v166
  %v1882 = vadd.f32 %v1880, %v173
  %v1883 = vadd.f32 %v1881, %v178
  %v1884 = vmax.f32 %v1882, 0.0
  %v1885 = vmax.f32 %v1883, 0.0
  %v1886 = vmax.f32 %v1757, %v1884
  %v1887 = vmax.f32 %v1758, %v1885
  %s1888 = scalar_lea.vmem %s0, 1064
  %v1889 = vld [vmem:[%s1888] sm:$0xf]
  %v1890 = vld [vmem:[%s1888 + $0x4] sm:$0xf]
  %v1891 = vld [vmem:[%s1888 + $0x8] sm:$0xf]
  %v1892 = vld [vmem:[%s1888 + $0xc] sm:$0xf]
  %v1893 = vld [vmem:[%s1888 + $0x10] sm:$0xf]
  %v1894 = vld [vmem:[%s1888 + $0x14] sm:$0xf]
  %v1895 = vld [vmem:[%s1888 + $0x18] sm:$0xf]
  %v1896 = vld [vmem:[%s1888 + $0x1c] sm:$0xf]
  %v1897 = vld [vmem:[%s1888 + $0x20] sm:$0xf]
  %v1898 = vld [vmem:[%s1888 + $0x24] sm:$0xf]
  %v1899 = vld [vmem:[%s1888 + $0x28] sm:$0xf]
  %v1900 = vld [vmem:[%s1888 + $0x2c] sm:$0xf]
  %v1901 = vld [vmem:[%s1888 + $0x30] sm:$0xf]
  %v1902 = vld [vmem:[%s1888 + $0x34] sm:$0xf]
  %v1903 = vld [vmem:[%s1888 + $0x38] sm:$0xf]
  %v1904 = vld [vmem:[%s1888 + $0x3c] sm:$0xf]
  %v1905 = vld [vmem:[%s1888 + $0x40] sm:$0xf]
  %v1906 = vld [vmem:[%s1888 + $0x44] sm:$0xf]
  %v1907 = vld [vmem:[%s1888 + $0x48] sm:$0x7]
  %v1927 = vunpack.c.l.b16 %v1889
  %v1928 = vunpack.c.l.b16 %v1890
  %v1929 = vunpack.c.l.b16 %v1891
  %v1930 = vunpack.c.l.b16 %v1892
  %v1931 = vunpack.c.l.b16 %v1893
  %v1932 = vunpack.c.l.b16 %v1894
  %v1933 = vunpack.c.l.b16 %v1895
  %v1934 = vunpack.c.l.b16 %v1896
  %v1935 = vunpack.c.l.b16 %v1897
  %v1936 = vunpack.c.l.b16 %v1898
  %v1937 = vunpack.c.l.b16 %v1899
  %v1938 = vunpack.c.l.b16 %v1900
  %v1939 = vunpack.c.l.b16 %v1901
  %v1940 = vunpack.c.l.b16 %v1902
  %v1941 = vunpack.c.l.b16 %v1903
  %v1942 = vunpack.c.l.b16 %v1904
  %v1943 = vunpack.c.l.b16 %v1905
  %v1944 = vunpack.c.l.b16 %v1906
  %v1945 = vunpack.c.l.b16 %v1907
  %v1946 = vpack.c.b16 %v1928, %v1927
  %v1947 = vpack.c.b16 %v1930, %v1929
  %v1948 = vpack.c.b16 %v1932, %v1931
  %v1949 = vpack.c.b16 %v1934, %v1933
  %v1950 = vpack.c.b16 %v1936, %v1935
  %v1951 = vpack.c.b16 %v1938, %v1937
  %v1952 = vpack.c.b16 %v1940, %v1939
  %v1953 = vpack.c.b16 %v1942, %v1941
  %v1954 = vpack.c.b16 %v1944, %v1943
  %v1955 = vpack.c.b16 %v1945, %v1945
  %v1966 = vsel %vm113, %v1955, 0
  %1968 = vmatprep.subr.bf16.mxu0 0
  %1969 = vmatpush1.bf16.msra.mxu0 %v1953
  %1970 = vmatprep.subr.bf16.mxu0 0
  %1971 = vmatpush1.bf16.msra.mxu0 %v1952
  %1972 = vmatprep.subr.bf16.mxu0 0
  %1973 = vmatpush1.bf16.msra.mxu0 %v1951
  %1974 = vmatprep.subr.bf16.mxu0 0
  %1975 = vmatpush1.bf16.msra.mxu0 %v1950
  %1976 = vmatprep.subr.bf16.mxu0 0
  %1977 = vmatpush1.bf16.msra.mxu0 %v1949
  %1978 = vmatprep.subr.bf16.mxu0 0
  %1979 = vmatpush1.bf16.msra.mxu0 %v1948
  %1980 = vmatprep.subr.bf16.mxu0 0
  %1981 = vmatpush1.bf16.msra.mxu0 %v1947
  %1982 = vmatprep.subr.bf16.mxu0 0
  %1983 = vmatpush1.bf16.msra.mxu0 %v1946
  %1984 = vmatprep.subr.bf16.mxu0 0
  %1985 = vmatpush2.bf16.msra.mxu0 0
  %1986 = vmatprep.subr.bf16.mxu0 0
  %1987 = vmatpush2.bf16.msra.mxu0 0
  %1988 = vmatprep.subr.bf16.mxu0 0
  %1989 = vmatpush2.bf16.msra.mxu0 0
  %1990 = vmatprep.subr.bf16.mxu0 0
  %1991 = vmatpush2.bf16.msra.mxu0 0
  %1992 = vmatprep.subr.bf16.mxu0 0
  %1993 = vmatpush2.bf16.msra.mxu0 0
  %1994 = vmatprep.subr.bf16.mxu0 0
  %1995 = vmatpush2.bf16.msra.mxu0 0
  %1996 = vmatprep.subr.bf16.mxu0 0
  %1997 = vmatpush2.bf16.msra.mxu0 %v1966
  %1998 = vmatprep.subr.bf16.mxu0 0
  %1999 = vmatpush2.bf16.msra.mxu0 %v1954
  %2000 = vmatprep.mubr.bf16.mxu0 %v111
  %2001 = vmatmul.mubr.bf16.gmra.mxu0 %v49
  %v2002 = vpop.f32.mrf.mxu0
  %v2003 = vadd.f32 0.0, %v2002
  %v2004 = vpop.f32.mrf.mxu0
  %v2005 = vpop.f32.mrf.mxu0
  %v2006 = vadd.f32 0.0, %v2005
  %v2007 = vpop.f32.mrf.mxu0
  %2008 = vdwg.mxu0
  %v2009 = vmul.f32 %v2003, %v161
  %v2010 = vmul.f32 %v2006, %v166
  %v2011 = vadd.f32 %v2009, %v173
  %v2012 = vadd.f32 %v2010, %v178
  %v2013 = vmax.f32 %v2011, 0.0
  %v2014 = vmax.f32 %v2012, 0.0
  %v2015 = vmax.f32 %v1886, %v2013
  %v2016 = vmax.f32 %v1887, %v2014
  %s2017 = scalar_lea.vmem %s0, 1140
  %v2018 = vld [vmem:[%s2017] sm:$0xf]
  %v2019 = vld [vmem:[%s2017 + $0x4] sm:$0xf]
  %v2020 = vld [vmem:[%s2017 + $0x8] sm:$0xf]
  %v2021 = vld [vmem:[%s2017 + $0xc] sm:$0xf]
  %v2022 = vld [vmem:[%s2017 + $0x10] sm:$0xf]
  %v2023 = vld [vmem:[%s2017 + $0x14] sm:$0xf]
  %v2024 = vld [vmem:[%s2017 + $0x18] sm:$0xf]
  %v2025 = vld [vmem:[%s2017 + $0x1c] sm:$0xf]
  %v2026 = vld [vmem:[%s2017 + $0x20] sm:$0xf]
  %v2027 = vld [vmem:[%s2017 + $0x24] sm:$0xf]
  %v2028 = vld [vmem:[%s2017 + $0x28] sm:$0xf]
  %v2029 = vld [vmem:[%s2017 + $0x2c] sm:$0xf]
  %v2030 = vld [vmem:[%s2017 + $0x30] sm:$0xf]
  %v2031 = vld [vmem:[%s2017 + $0x34] sm:$0xf]
  %v2032 = vld [vmem:[%s2017 + $0x38] sm:$0xf]
  %v2033 = vld [vmem:[%s2017 + $0x3c] sm:$0xf]
  %v2034 = vld [vmem:[%s2017 + $0x40] sm:$0xf]
  %v2035 = vld [vmem:[%s2017 + $0x44] sm:$0xf]
  %v2036 = vld [vmem:[%s2017 + $0x48] sm:$0x7]
  %v2056 = vunpack.c.l.b16 %v2018
  %v2057 = vunpack.c.l.b16 %v2019
  %v2058 = vunpack.c.l.b16 %v2020
  %v2059 = vunpack.c.l.b16 %v2021
  %v2060 = vunpack.c.l.b16 %v2022
  %v2061 = vunpack.c.l.b16 %v2023
  %v2062 = vunpack.c.l.b16 %v2024
  %v2063 = vunpack.c.l.b16 %v2025
  %v2064 = vunpack.c.l.b16 %v2026
  %v2065 = vunpack.c.l.b16 %v2027
  %v2066 = vunpack.c.l.b16 %v2028
  %v2067 = vunpack.c.l.b16 %v2029
  %v2068 = vunpack.c.l.b16 %v2030
  %v2069 = vunpack.c.l.b16 %v2031
  %v2070 = vunpack.c.l.b16 %v2032
  %v2071 = vunpack.c.l.b16 %v2033
  %v2072 = vunpack.c.l.b16 %v2034
  %v2073 = vunpack.c.l.b16 %v2035
  %v2074 = vunpack.c.l.b16 %v2036
  %v2075 = vpack.c.b16 %v2057, %v2056
  %v2076 = vpack.c.b16 %v2059, %v2058
  %v2077 = vpack.c.b16 %v2061, %v2060
  %v2078 = vpack.c.b16 %v2063, %v2062
  %v2079 = vpack.c.b16 %v2065, %v2064
  %v2080 = vpack.c.b16 %v2067, %v2066
  %v2081 = vpack.c.b16 %v2069, %v2068
  %v2082 = vpack.c.b16 %v2071, %v2070
  %v2083 = vpack.c.b16 %v2073, %v2072
  %v2084 = vpack.c.b16 %v2074, %v2074
  %v2095 = vsel %vm113, %v2084, 0
  %2097 = vmatprep.subr.bf16.mxu0 0
  %2098 = vmatpush1.bf16.msra.mxu0 %v2082
  %2099 = vmatprep.subr.bf16.mxu0 0
  %2100 = vmatpush1.bf16.msra.mxu0 %v2081
  %2101 = vmatprep.subr.bf16.mxu0 0
  %2102 = vmatpush1.bf16.msra.mxu0 %v2080
  %2103 = vmatprep.subr.bf16.mxu0 0
  %2104 = vmatpush1.bf16.msra.mxu0 %v2079
  %2105 = vmatprep.subr.bf16.mxu0 0
  %2106 = vmatpush1.bf16.msra.mxu0 %v2078
  %2107 = vmatprep.subr.bf16.mxu0 0
  %2108 = vmatpush1.bf16.msra.mxu0 %v2077
  %2109 = vmatprep.subr.bf16.mxu0 0
  %2110 = vmatpush1.bf16.msra.mxu0 %v2076
  %2111 = vmatprep.subr.bf16.mxu0 0
  %2112 = vmatpush1.bf16.msra.mxu0 %v2075
  %2113 = vmatprep.subr.bf16.mxu0 0
  %2114 = vmatpush2.bf16.msra.mxu0 0
  %2115 = vmatprep.subr.bf16.mxu0 0
  %2116 = vmatpush2.bf16.msra.mxu0 0
  %2117 = vmatprep.subr.bf16.mxu0 0
  %2118 = vmatpush2.bf16.msra.mxu0 0
  %2119 = vmatprep.subr.bf16.mxu0 0
  %2120 = vmatpush2.bf16.msra.mxu0 0
  %2121 = vmatprep.subr.bf16.mxu0 0
  %2122 = vmatpush2.bf16.msra.mxu0 0
  %2123 = vmatprep.subr.bf16.mxu0 0
  %2124 = vmatpush2.bf16.msra.mxu0 0
  %2125 = vmatprep.subr.bf16.mxu0 0
  %2126 = vmatpush2.bf16.msra.mxu0 %v2095
  %2127 = vmatprep.subr.bf16.mxu0 0
  %2128 = vmatpush2.bf16.msra.mxu0 %v2083
  %2129 = vmatprep.mubr.bf16.mxu0 %v111
  %2130 = vmatmul.mubr.bf16.gmra.mxu0 %v49
  %v2131 = vpop.f32.mrf.mxu0
  %v2132 = vadd.f32 0.0, %v2131
  %v2133 = vpop.f32.mrf.mxu0
  %v2134 = vpop.f32.mrf.mxu0
  %v2135 = vadd.f32 0.0, %v2134
  %v2136 = vpop.f32.mrf.mxu0
  %2137 = vdwg.mxu0
  %v2138 = vmul.f32 %v2132, %v161
  %v2139 = vmul.f32 %v2135, %v166
  %v2140 = vadd.f32 %v2138, %v173
  %v2141 = vadd.f32 %v2139, %v178
  %v2142 = vmax.f32 %v2140, 0.0
  %v2143 = vmax.f32 %v2141, 0.0
  %v2144 = vmax.f32 %v2015, %v2142
  %v2145 = vmax.f32 %v2016, %v2143
  %v2146 = vpack.c.bf16 %v2145, %v2144
  %v2148 = vunpack.c.l.b16 %v2146
  %v2149 = vunpack.c.h.b16 %v2146
  %v2150 = vpack.c.b16 %v2148, %v2148
  %v2151 = vpack.c.b16 %v2149, %v2149
  %s2154 = scalar_lea.vmem %s4, 24
  %2155 = vst.msk [vmem:[%s2154] sm:$0xf] %vm579, %v2150
  %2156 = vst.msk [vmem:[%s2154 + $0x4] sm:$0xf] %vm579, %v2151
  %s2157 = scalar_lea.vmem %s0, 1216
  %v2158 = vld [vmem:[%s2157] sm:$0xf]
  %v2159 = vld [vmem:[%s2157 + $0x4] sm:$0xf]
  %v2160 = vld [vmem:[%s2157 + $0x8] sm:$0xf]
  %v2161 = vld [vmem:[%s2157 + $0xc] sm:$0xf]
  %v2162 = vld [vmem:[%s2157 + $0x10] sm:$0xf]
  %v2163 = vld [vmem:[%s2157 + $0x14] sm:$0xf]
  %v2164 = vld [vmem:[%s2157 + $0x18] sm:$0xf]
  %v2165 = vld [vmem:[%s2157 + $0x1c] sm:$0xf]
  %v2166 = vld [vmem:[%s2157 + $0x20] sm:$0xf]
  %v2167 = vld [vmem:[%s2157 + $0x24] sm:$0xf]
  %v2168 = vld [vmem:[%s2157 + $0x28] sm:$0xf]
  %v2169 = vld [vmem:[%s2157 + $0x2c] sm:$0xf]
  %v2170 = vld [vmem:[%s2157 + $0x30] sm:$0xf]
  %v2171 = vld [vmem:[%s2157 + $0x34] sm:$0xf]
  %v2172 = vld [vmem:[%s2157 + $0x38] sm:$0xf]
  %v2173 = vld [vmem:[%s2157 + $0x3c] sm:$0xf]
  %v2174 = vld [vmem:[%s2157 + $0x40] sm:$0xf]
  %v2175 = vld [vmem:[%s2157 + $0x44] sm:$0xf]
  %v2176 = vld [vmem:[%s2157 + $0x48] sm:$0x7]
  %v2196 = vunpack.c.l.b16 %v2158
  %v2197 = vunpack.c.l.b16 %v2159
  %v2198 = vunpack.c.l.b16 %v2160
  %v2199 = vunpack.c.l.b16 %v2161
  %v2200 = vunpack.c.l.b16 %v2162
  %v2201 = vunpack.c.l.b16 %v2163
  %v2202 = vunpack.c.l.b16 %v2164
  %v2203 = vunpack.c.l.b16 %v2165
  %v2204 = vunpack.c.l.b16 %v2166
  %v2205 = vunpack.c.l.b16 %v2167
  %v2206 = vunpack.c.l.b16 %v2168
  %v2207 = vunpack.c.l.b16 %v2169
  %v2208 = vunpack.c.l.b16 %v2170
  %v2209 = vunpack.c.l.b16 %v2171
  %v2210 = vunpack.c.l.b16 %v2172
  %v2211 = vunpack.c.l.b16 %v2173
  %v2212 = vunpack.c.l.b16 %v2174
  %v2213 = vunpack.c.l.b16 %v2175
  %v2214 = vunpack.c.l.b16 %v2176
  %v2215 = vpack.c.b16 %v2197, %v2196
  %v2216 = vpack.c.b16 %v2199, %v2198
  %v2217 = vpack.c.b16 %v2201, %v2200
  %v2218 = vpack.c.b16 %v2203, %v2202
  %v2219 = vpack.c.b16 %v2205, %v2204
  %v2220 = vpack.c.b16 %v2207, %v2206
  %v2221 = vpack.c.b16 %v2209, %v2208
  %v2222 = vpack.c.b16 %v2211, %v2210
  %v2223 = vpack.c.b16 %v2213, %v2212
  %v2224 = vpack.c.b16 %v2214, %v2214
  %v2235 = vsel %vm113, %v2224, 0
  %2237 = vmatprep.subr.bf16.mxu0 0
  %2238 = vmatpush1.bf16.msra.mxu0 %v2222
  %2239 = vmatprep.subr.bf16.mxu0 0
  %2240 = vmatpush1.bf16.msra.mxu0 %v2221
  %2241 = vmatprep.subr.bf16.mxu0 0
  %2242 = vmatpush1.bf16.msra.mxu0 %v2220
  %2243 = vmatprep.subr.bf16.mxu0 0
  %2244 = vmatpush1.bf16.msra.mxu0 %v2219
  %2245 = vmatprep.subr.bf16.mxu0 0
  %2246 = vmatpush1.bf16.msra.mxu0 %v2218
  %2247 = vmatprep.subr.bf16.mxu0 0
  %2248 = vmatpush1.bf16.msra.mxu0 %v2217
  %2249 = vmatprep.subr.bf16.mxu0 0
  %2250 = vmatpush1.bf16.msra.mxu0 %v2216
  %2251 = vmatprep.subr.bf16.mxu0 0
  %2252 = vmatpush1.bf16.msra.mxu0 %v2215
  %2253 = vmatprep.subr.bf16.mxu0 0
  %2254 = vmatpush2.bf16.msra.mxu0 0
  %2255 = vmatprep.subr.bf16.mxu0 0
  %2256 = vmatpush2.bf16.msra.mxu0 0
  %2257 = vmatprep.subr.bf16.mxu0 0
  %2258 = vmatpush2.bf16.msra.mxu0 0
  %2259 = vmatprep.subr.bf16.mxu0 0
  %2260 = vmatpush2.bf16.msra.mxu0 0
  %2261 = vmatprep.subr.bf16.mxu0 0
  %2262 = vmatpush2.bf16.msra.mxu0 0
  %2263 = vmatprep.subr.bf16.mxu0 0
  %2264 = vmatpush2.bf16.msra.mxu0 0
  %2265 = vmatprep.subr.bf16.mxu0 0
  %2266 = vmatpush2.bf16.msra.mxu0 %v2235
  %2267 = vmatprep.subr.bf16.mxu0 0
  %2268 = vmatpush2.bf16.msra.mxu0 %v2223
  %2269 = vmatprep.mubr.bf16.mxu0 %v111
  %2270 = vmatmul.mubr.bf16.gmra.mxu0 %v49
  %v2271 = vpop.f32.mrf.mxu0
  %v2272 = vadd.f32 0.0, %v2271
  %v2273 = vpop.f32.mrf.mxu0
  %v2274 = vpop.f32.mrf.mxu0
  %v2275 = vadd.f32 0.0, %v2274
  %v2276 = vpop.f32.mrf.mxu0
  %2277 = vdwg.mxu0
  %v2278 = vmul.f32 %v2272, %v161
  %v2279 = vmul.f32 %v2275, %v166
  %v2280 = vadd.f32 %v2278, %v173
  %v2281 = vadd.f32 %v2279, %v178
  %v2282 = vmax.f32 %v2280, 0.0
  %v2283 = vmax.f32 %v2281, 0.0
  %s2284 = scalar_lea.vmem %s0, 1292
  %v2285 = vld [vmem:[%s2284] sm:$0xf]
  %v2286 = vld [vmem:[%s2284 + $0x4] sm:$0xf]
  %v2287 = vld [vmem:[%s2284 + $0x8] sm:$0xf]
  %v2288 = vld [vmem:[%s2284 + $0xc] sm:$0xf]
  %v2289 = vld [vmem:[%s2284 + $0x10] sm:$0xf]
  %v2290 = vld [vmem:[%s2284 + $0x14] sm:$0xf]
  %v2291 = vld [vmem:[%s2284 + $0x18] sm:$0xf]
  %v2292 = vld [vmem:[%s2284 + $0x1c] sm:$0xf]
  %v2293 = vld [vmem:[%s2284 + $0x20] sm:$0xf]
  %v2294 = vld [vmem:[%s2284 + $0x24] sm:$0xf]
  %v2295 = vld [vmem:[%s2284 + $0x28] sm:$0xf]
  %v2296 = vld [vmem:[%s2284 + $0x2c] sm:$0xf]
  %v2297 = vld [vmem:[%s2284 + $0x30] sm:$0xf]
  %v2298 = vld [vmem:[%s2284 + $0x34] sm:$0xf]
  %v2299 = vld [vmem:[%s2284 + $0x38] sm:$0xf]
  %v2300 = vld [vmem:[%s2284 + $0x3c] sm:$0xf]
  %v2301 = vld [vmem:[%s2284 + $0x40] sm:$0xf]
  %v2302 = vld [vmem:[%s2284 + $0x44] sm:$0xf]
  %v2303 = vld [vmem:[%s2284 + $0x48] sm:$0x7]
  %v2323 = vunpack.c.l.b16 %v2285
  %v2324 = vunpack.c.l.b16 %v2286
  %v2325 = vunpack.c.l.b16 %v2287
  %v2326 = vunpack.c.l.b16 %v2288
  %v2327 = vunpack.c.l.b16 %v2289
  %v2328 = vunpack.c.l.b16 %v2290
  %v2329 = vunpack.c.l.b16 %v2291
  %v2330 = vunpack.c.l.b16 %v2292
  %v2331 = vunpack.c.l.b16 %v2293
  %v2332 = vunpack.c.l.b16 %v2294
  %v2333 = vunpack.c.l.b16 %v2295
  %v2334 = vunpack.c.l.b16 %v2296
  %v2335 = vunpack.c.l.b16 %v2297
  %v2336 = vunpack.c.l.b16 %v2298
  %v2337 = vunpack.c.l.b16 %v2299
  %v2338 = vunpack.c.l.b16 %v2300
  %v2339 = vunpack.c.l.b16 %v2301
  %v2340 = vunpack.c.l.b16 %v2302
  %v2341 = vunpack.c.l.b16 %v2303
  %v2342 = vpack.c.b16 %v2324, %v2323
  %v2343 = vpack.c.b16 %v2326, %v2325
  %v2344 = vpack.c.b16 %v2328, %v2327
  %v2345 = vpack.c.b16 %v2330, %v2329
  %v2346 = vpack.c.b16 %v2332, %v2331
  %v2347 = vpack.c.b16 %v2334, %v2333
  %v2348 = vpack.c.b16 %v2336, %v2335
  %v2349 = vpack.c.b16 %v2338, %v2337
  %v2350 = vpack.c.b16 %v2340, %v2339
  %v2351 = vpack.c.b16 %v2341, %v2341
  %v2362 = vsel %vm113, %v2351, 0
  %2364 = vmatprep.subr.bf16.mxu0 0
  %2365 = vmatpush1.bf16.msra.mxu0 %v2349
  %2366 = vmatprep.subr.bf16.mxu0 0
  %2367 = vmatpush1.bf16.msra.mxu0 %v2348
  %2368 = vmatprep.subr.bf16.mxu0 0
  %2369 = vmatpush1.bf16.msra.mxu0 %v2347
  %2370 = vmatprep.subr.bf16.mxu0 0
  %2371 = vmatpush1.bf16.msra.mxu0 %v2346
  %2372 = vmatprep.subr.bf16.mxu0 0
  %2373 = vmatpush1.bf16.msra.mxu0 %v2345
  %2374 = vmatprep.subr.bf16.mxu0 0
  %2375 = vmatpush1.bf16.msra.mxu0 %v2344
  %2376 = vmatprep.subr.bf16.mxu0 0
  %2377 = vmatpush1.bf16.msra.mxu0 %v2343
  %2378 = vmatprep.subr.bf16.mxu0 0
  %2379 = vmatpush1.bf16.msra.mxu0 %v2342
  %2380 = vmatprep.subr.bf16.mxu0 0
  %2381 = vmatpush2.bf16.msra.mxu0 0
  %2382 = vmatprep.subr.bf16.mxu0 0
  %2383 = vmatpush2.bf16.msra.mxu0 0
  %2384 = vmatprep.subr.bf16.mxu0 0
  %2385 = vmatpush2.bf16.msra.mxu0 0
  %2386 = vmatprep.subr.bf16.mxu0 0
  %2387 = vmatpush2.bf16.msra.mxu0 0
  %2388 = vmatprep.subr.bf16.mxu0 0
  %2389 = vmatpush2.bf16.msra.mxu0 0
  %2390 = vmatprep.subr.bf16.mxu0 0
  %2391 = vmatpush2.bf16.msra.mxu0 0
  %2392 = vmatprep.subr.bf16.mxu0 0
  %2393 = vmatpush2.bf16.msra.mxu0 %v2362
  %2394 = vmatprep.subr.bf16.mxu0 0
  %2395 = vmatpush2.bf16.msra.mxu0 %v2350
  %2396 = vmatprep.mubr.bf16.mxu0 %v111
  %2397 = vmatmul.mubr.bf16.gmra.mxu0 %v49
  %v2398 = vpop.f32.mrf.mxu0
  %v2399 = vadd.f32 0.0, %v2398
  %v2400 = vpop.f32.mrf.mxu0
  %v2401 = vpop.f32.mrf.mxu0
  %v2402 = vadd.f32 0.0, %v2401
  %v2403 = vpop.f32.mrf.mxu0
  %2404 = vdwg.mxu0
  %v2405 = vmul.f32 %v2399, %v161
  %v2406 = vmul.f32 %v2402, %v166
  %v2407 = vadd.f32 %v2405, %v173
  %v2408 = vadd.f32 %v2406, %v178
  %v2409 = vmax.f32 %v2407, 0.0
  %v2410 = vmax.f32 %v2408, 0.0
  %v2411 = vmax.f32 %v2282, %v2409
  %v2412 = vmax.f32 %v2283, %v2410
  %s2413 = scalar_lea.vmem %s0, 1368
  %v2414 = vld [vmem:[%s2413] sm:$0xf]
  %v2415 = vld [vmem:[%s2413 + $0x4] sm:$0xf]
  %v2416 = vld [vmem:[%s2413 + $0x8] sm:$0xf]
  %v2417 = vld [vmem:[%s2413 + $0xc] sm:$0xf]
  %v2418 = vld [vmem:[%s2413 + $0x10] sm:$0xf]
  %v2419 = vld [vmem:[%s2413 + $0x14] sm:$0xf]
  %v2420 = vld [vmem:[%s2413 + $0x18] sm:$0xf]
  %v2421 = vld [vmem:[%s2413 + $0x1c] sm:$0xf]
  %v2422 = vld [vmem:[%s2413 + $0x20] sm:$0xf]
  %v2423 = vld [vmem:[%s2413 + $0x24] sm:$0xf]
  %v2424 = vld [vmem:[%s2413 + $0x28] sm:$0xf]
  %v2425 = vld [vmem:[%s2413 + $0x2c] sm:$0xf]
  %v2426 = vld [vmem:[%s2413 + $0x30] sm:$0xf]
  %v2427 = vld [vmem:[%s2413 + $0x34] sm:$0xf]
  %v2428 = vld [vmem:[%s2413 + $0x38] sm:$0xf]
  %v2429 = vld [vmem:[%s2413 + $0x3c] sm:$0xf]
  %v2430 = vld [vmem:[%s2413 + $0x40] sm:$0xf]
  %v2431 = vld [vmem:[%s2413 + $0x44] sm:$0xf]
  %v2432 = vld [vmem:[%s2413 + $0x48] sm:$0x7]
  %v2452 = vunpack.c.l.b16 %v2414
  %v2453 = vunpack.c.l.b16 %v2415
  %v2454 = vunpack.c.l.b16 %v2416
  %v2455 = vunpack.c.l.b16 %v2417
  %v2456 = vunpack.c.l.b16 %v2418
  %v2457 = vunpack.c.l.b16 %v2419
  %v2458 = vunpack.c.l.b16 %v2420
  %v2459 = vunpack.c.l.b16 %v2421
  %v2460 = vunpack.c.l.b16 %v2422
  %v2461 = vunpack.c.l.b16 %v2423
  %v2462 = vunpack.c.l.b16 %v2424
  %v2463 = vunpack.c.l.b16 %v2425
  %v2464 = vunpack.c.l.b16 %v2426
  %v2465 = vunpack.c.l.b16 %v2427
  %v2466 = vunpack.c.l.b16 %v2428
  %v2467 = vunpack.c.l.b16 %v2429
  %v2468 = vunpack.c.l.b16 %v2430
  %v2469 = vunpack.c.l.b16 %v2431
  %v2470 = vunpack.c.l.b16 %v2432
  %v2471 = vpack.c.b16 %v2453, %v2452
  %v2472 = vpack.c.b16 %v2455, %v2454
  %v2473 = vpack.c.b16 %v2457, %v2456
  %v2474 = vpack.c.b16 %v2459, %v2458
  %v2475 = vpack.c.b16 %v2461, %v2460
  %v2476 = vpack.c.b16 %v2463, %v2462
  %v2477 = vpack.c.b16 %v2465, %v2464
  %v2478 = vpack.c.b16 %v2467, %v2466
  %v2479 = vpack.c.b16 %v2469, %v2468
  %v2480 = vpack.c.b16 %v2470, %v2470
  %v2491 = vsel %vm113, %v2480, 0
  %2493 = vmatprep.subr.bf16.mxu0 0
  %2494 = vmatpush1.bf16.msra.mxu0 %v2478
  %2495 = vmatprep.subr.bf16.mxu0 0
  %2496 = vmatpush1.bf16.msra.mxu0 %v2477
  %2497 = vmatprep.subr.bf16.mxu0 0
  %2498 = vmatpush1.bf16.msra.mxu0 %v2476
  %2499 = vmatprep.subr.bf16.mxu0 0
  %2500 = vmatpush1.bf16.msra.mxu0 %v2475
  %2501 = vmatprep.subr.bf16.mxu0 0
  %2502 = vmatpush1.bf16.msra.mxu0 %v2474
  %2503 = vmatprep.subr.bf16.mxu0 0
  %2504 = vmatpush1.bf16.msra.mxu0 %v2473
  %2505 = vmatprep.subr.bf16.mxu0 0
  %2506 = vmatpush1.bf16.msra.mxu0 %v2472
  %2507 = vmatprep.subr.bf16.mxu0 0
  %2508 = vmatpush1.bf16.msra.mxu0 %v2471
  %2509 = vmatprep.subr.bf16.mxu0 0
  %2510 = vmatpush2.bf16.msra.mxu0 0
  %2511 = vmatprep.subr.bf16.mxu0 0
  %2512 = vmatpush2.bf16.msra.mxu0 0
  %2513 = vmatprep.subr.bf16.mxu0 0
  %2514 = vmatpush2.bf16.msra.mxu0 0
  %2515 = vmatprep.subr.bf16.mxu0 0
  %2516 = vmatpush2.bf16.msra.mxu0 0
  %2517 = vmatprep.subr.bf16.mxu0 0
  %2518 = vmatpush2.bf16.msra.mxu0 0
  %2519 = vmatprep.subr.bf16.mxu0 0
  %2520 = vmatpush2.bf16.msra.mxu0 0
  %2521 = vmatprep.subr.bf16.mxu0 0
  %2522 = vmatpush2.bf16.msra.mxu0 %v2491
  %2523 = vmatprep.subr.bf16.mxu0 0
  %2524 = vmatpush2.bf16.msra.mxu0 %v2479
  %2525 = vmatprep.mubr.bf16.mxu0 %v111
  %2526 = vmatmul.mubr.bf16.gmra.mxu0 %v49
  %v2527 = vpop.f32.mrf.mxu0
  %v2528 = vadd.f32 0.0, %v2527
  %v2529 = vpop.f32.mrf.mxu0
  %v2530 = vpop.f32.mrf.mxu0
  %v2531 = vadd.f32 0.0, %v2530
  %v2532 = vpop.f32.mrf.mxu0
  %2533 = vdwg.mxu0
  %v2534 = vmul.f32 %v2528, %v161
  %v2535 = vmul.f32 %v2531, %v166
  %v2536 = vadd.f32 %v2534, %v173
  %v2537 = vadd.f32 %v2535, %v178
  %v2538 = vmax.f32 %v2536, 0.0
  %v2539 = vmax.f32 %v2537, 0.0
  %v2540 = vmax.f32 %v2411, %v2538
  %v2541 = vmax.f32 %v2412, %v2539
  %s2542 = scalar_lea.vmem %s0, 1444
  %v2543 = vld [vmem:[%s2542] sm:$0xf]
  %v2544 = vld [vmem:[%s2542 + $0x4] sm:$0xf]
  %v2545 = vld [vmem:[%s2542 + $0x8] sm:$0xf]
  %v2546 = vld [vmem:[%s2542 + $0xc] sm:$0xf]
  %v2547 = vld [vmem:[%s2542 + $0x10] sm:$0xf]
  %v2548 = vld [vmem:[%s2542 + $0x14] sm:$0xf]
  %v2549 = vld [vmem:[%s2542 + $0x18] sm:$0xf]
  %v2550 = vld [vmem:[%s2542 + $0x1c] sm:$0xf]
  %v2551 = vld [vmem:[%s2542 + $0x20] sm:$0xf]
  %v2552 = vld [vmem:[%s2542 + $0x24] sm:$0xf]
  %v2553 = vld [vmem:[%s2542 + $0x28] sm:$0xf]
  %v2554 = vld [vmem:[%s2542 + $0x2c] sm:$0xf]
  %v2555 = vld [vmem:[%s2542 + $0x30] sm:$0xf]
  %v2556 = vld [vmem:[%s2542 + $0x34] sm:$0xf]
  %v2557 = vld [vmem:[%s2542 + $0x38] sm:$0xf]
  %v2558 = vld [vmem:[%s2542 + $0x3c] sm:$0xf]
  %v2559 = vld [vmem:[%s2542 + $0x40] sm:$0xf]
  %v2560 = vld [vmem:[%s2542 + $0x44] sm:$0xf]
  %v2561 = vld [vmem:[%s2542 + $0x48] sm:$0x7]
  %v2581 = vunpack.c.l.b16 %v2543
  %v2582 = vunpack.c.l.b16 %v2544
  %v2583 = vunpack.c.l.b16 %v2545
  %v2584 = vunpack.c.l.b16 %v2546
  %v2585 = vunpack.c.l.b16 %v2547
  %v2586 = vunpack.c.l.b16 %v2548
  %v2587 = vunpack.c.l.b16 %v2549
  %v2588 = vunpack.c.l.b16 %v2550
  %v2589 = vunpack.c.l.b16 %v2551
  %v2590 = vunpack.c.l.b16 %v2552
  %v2591 = vunpack.c.l.b16 %v2553
  %v2592 = vunpack.c.l.b16 %v2554
  %v2593 = vunpack.c.l.b16 %v2555
  %v2594 = vunpack.c.l.b16 %v2556
  %v2595 = vunpack.c.l.b16 %v2557
  %v2596 = vunpack.c.l.b16 %v2558
  %v2597 = vunpack.c.l.b16 %v2559
  %v2598 = vunpack.c.l.b16 %v2560
  %v2599 = vunpack.c.l.b16 %v2561
  %v2600 = vpack.c.b16 %v2582, %v2581
  %v2601 = vpack.c.b16 %v2584, %v2583
  %v2602 = vpack.c.b16 %v2586, %v2585
  %v2603 = vpack.c.b16 %v2588, %v2587
  %v2604 = vpack.c.b16 %v2590, %v2589
  %v2605 = vpack.c.b16 %v2592, %v2591
  %v2606 = vpack.c.b16 %v2594, %v2593
  %v2607 = vpack.c.b16 %v2596, %v2595
  %v2608 = vpack.c.b16 %v2598, %v2597
  %v2609 = vpack.c.b16 %v2599, %v2599
  %v2620 = vsel %vm113, %v2609, 0
  %2622 = vmatprep.subr.bf16.mxu0 0
  %2623 = vmatpush1.bf16.msra.mxu0 %v2607
  %2624 = vmatprep.subr.bf16.mxu0 0
  %2625 = vmatpush1.bf16.msra.mxu0 %v2606
  %2626 = vmatprep.subr.bf16.mxu0 0
  %2627 = vmatpush1.bf16.msra.mxu0 %v2605
  %2628 = vmatprep.subr.bf16.mxu0 0
  %2629 = vmatpush1.bf16.msra.mxu0 %v2604
  %2630 = vmatprep.subr.bf16.mxu0 0
  %2631 = vmatpush1.bf16.msra.mxu0 %v2603
  %2632 = vmatprep.subr.bf16.mxu0 0
  %2633 = vmatpush1.bf16.msra.mxu0 %v2602
  %2634 = vmatprep.subr.bf16.mxu0 0
  %2635 = vmatpush1.bf16.msra.mxu0 %v2601
  %2636 = vmatprep.subr.bf16.mxu0 0
  %2637 = vmatpush1.bf16.msra.mxu0 %v2600
  %2638 = vmatprep.subr.bf16.mxu0 0
  %2639 = vmatpush2.bf16.msra.mxu0 0
  %2640 = vmatprep.subr.bf16.mxu0 0
  %2641 = vmatpush2.bf16.msra.mxu0 0
  %2642 = vmatprep.subr.bf16.mxu0 0
  %2643 = vmatpush2.bf16.msra.mxu0 0
  %2644 = vmatprep.subr.bf16.mxu0 0
  %2645 = vmatpush2.bf16.msra.mxu0 0
  %2646 = vmatprep.subr.bf16.mxu0 0
  %2647 = vmatpush2.bf16.msra.mxu0 0
  %2648 = vmatprep.subr.bf16.mxu0 0
  %2649 = vmatpush2.bf16.msra.mxu0 0
  %2650 = vmatprep.subr.bf16.mxu0 0
  %2651 = vmatpush2.bf16.msra.mxu0 %v2620
  %2652 = vmatprep.subr.bf16.mxu0 0
  %2653 = vmatpush2.bf16.msra.mxu0 %v2608
  %2654 = vmatprep.mubr.bf16.mxu0 %v111
  %2655 = vmatmul.mubr.bf16.gmra.mxu0 %v49
  %v2656 = vpop.f32.mrf.mxu0
  %v2657 = vadd.f32 0.0, %v2656
  %v2658 = vpop.f32.mrf.mxu0
  %v2659 = vpop.f32.mrf.mxu0
  %v2660 = vadd.f32 0.0, %v2659
  %v2661 = vpop.f32.mrf.mxu0
  %2662 = vdwg.mxu0
  %v2663 = vmul.f32 %v2657, %v161
  %v2664 = vmul.f32 %v2660, %v166
  %v2665 = vadd.f32 %v2663, %v173
  %v2666 = vadd.f32 %v2664, %v178
  %v2667 = vmax.f32 %v2665, 0.0
  %v2668 = vmax.f32 %v2666, 0.0
  %v2669 = vmax.f32 %v2540, %v2667
  %v2670 = vmax.f32 %v2541, %v2668
  %v2671 = vpack.c.bf16 %v2670, %v2669
  %v2673 = vunpack.c.l.b16 %v2671
  %v2674 = vunpack.c.h.b16 %v2671
  %v2675 = vpack.c.b16 %v2673, %v2673
  %v2676 = vpack.c.b16 %v2674, %v2674
  %s2679 = scalar_lea.vmem %s4, 32
  %2680 = vst.msk [vmem:[%s2679] sm:$0xf] %vm579, %v2675
  %2681 = vst.msk [vmem:[%s2679 + $0x4] sm:$0xf] %vm579, %v2676
  %s2682 = scalar_lea.vmem %s0, 1520
  %v2683 = vld [vmem:[%s2682] sm:$0xf]
  %v2684 = vld [vmem:[%s2682 + $0x4] sm:$0xf]
  %v2685 = vld [vmem:[%s2682 + $0x8] sm:$0xf]
  %v2686 = vld [vmem:[%s2682 + $0xc] sm:$0xf]
  %v2687 = vld [vmem:[%s2682 + $0x10] sm:$0xf]
  %v2688 = vld [vmem:[%s2682 + $0x14] sm:$0xf]
  %v2689 = vld [vmem:[%s2682 + $0x18] sm:$0xf]
  %v2690 = vld [vmem:[%s2682 + $0x1c] sm:$0xf]
  %v2691 = vld [vmem:[%s2682 + $0x20] sm:$0xf]
  %v2692 = vld [vmem:[%s2682 + $0x24] sm:$0xf]
  %v2693 = vld [vmem:[%s2682 + $0x28] sm:$0xf]
  %v2694 = vld [vmem:[%s2682 + $0x2c] sm:$0xf]
  %v2695 = vld [vmem:[%s2682 + $0x30] sm:$0xf]
  %v2696 = vld [vmem:[%s2682 + $0x34] sm:$0xf]
  %v2697 = vld [vmem:[%s2682 + $0x38] sm:$0xf]
  %v2698 = vld [vmem:[%s2682 + $0x3c] sm:$0xf]
  %v2699 = vld [vmem:[%s2682 + $0x40] sm:$0xf]
  %v2700 = vld [vmem:[%s2682 + $0x44] sm:$0xf]
  %v2701 = vld [vmem:[%s2682 + $0x48] sm:$0x7]
  %v2721 = vunpack.c.l.b16 %v2683
  %v2722 = vunpack.c.l.b16 %v2684
  %v2723 = vunpack.c.l.b16 %v2685
  %v2724 = vunpack.c.l.b16 %v2686
  %v2725 = vunpack.c.l.b16 %v2687
  %v2726 = vunpack.c.l.b16 %v2688
  %v2727 = vunpack.c.l.b16 %v2689
  %v2728 = vunpack.c.l.b16 %v2690
  %v2729 = vunpack.c.l.b16 %v2691
  %v2730 = vunpack.c.l.b16 %v2692
  %v2731 = vunpack.c.l.b16 %v2693
  %v2732 = vunpack.c.l.b16 %v2694
  %v2733 = vunpack.c.l.b16 %v2695
  %v2734 = vunpack.c.l.b16 %v2696
  %v2735 = vunpack.c.l.b16 %v2697
  %v2736 = vunpack.c.l.b16 %v2698
  %v2737 = vunpack.c.l.b16 %v2699
  %v2738 = vunpack.c.l.b16 %v2700
  %v2739 = vunpack.c.l.b16 %v2701
  %v2740 = vpack.c.b16 %v2722, %v2721
  %v2741 = vpack.c.b16 %v2724, %v2723
  %v2742 = vpack.c.b16 %v2726, %v2725
  %v2743 = vpack.c.b16 %v2728, %v2727
  %v2744 = vpack.c.b16 %v2730, %v2729
  %v2745 = vpack.c.b16 %v2732, %v2731
  %v2746 = vpack.c.b16 %v2734, %v2733
  %v2747 = vpack.c.b16 %v2736, %v2735
  %v2748 = vpack.c.b16 %v2738, %v2737
  %v2749 = vpack.c.b16 %v2739, %v2739
  %v2760 = vsel %vm113, %v2749, 0
  %2762 = vmatprep.subr.bf16.mxu0 0
  %2763 = vmatpush1.bf16.msra.mxu0 %v2747
  %2764 = vmatprep.subr.bf16.mxu0 0
  %2765 = vmatpush1.bf16.msra.mxu0 %v2746
  %2766 = vmatprep.subr.bf16.mxu0 0
  %2767 = vmatpush1.bf16.msra.mxu0 %v2745
  %2768 = vmatprep.subr.bf16.mxu0 0
  %2769 = vmatpush1.bf16.msra.mxu0 %v2744
  %2770 = vmatprep.subr.bf16.mxu0 0
  %2771 = vmatpush1.bf16.msra.mxu0 %v2743
  %2772 = vmatprep.subr.bf16.mxu0 0
  %2773 = vmatpush1.bf16.msra.mxu0 %v2742
  %2774 = vmatprep.subr.bf16.mxu0 0
  %2775 = vmatpush1.bf16.msra.mxu0 %v2741
  %2776 = vmatprep.subr.bf16.mxu0 0
  %2777 = vmatpush1.bf16.msra.mxu0 %v2740
  %2778 = vmatprep.subr.bf16.mxu0 0
  %2779 = vmatpush2.bf16.msra.mxu0 0
  %2780 = vmatprep.subr.bf16.mxu0 0
  %2781 = vmatpush2.bf16.msra.mxu0 0
  %2782 = vmatprep.subr.bf16.mxu0 0
  %2783 = vmatpush2.bf16.msra.mxu0 0
  %2784 = vmatprep.subr.bf16.mxu0 0
  %2785 = vmatpush2.bf16.msra.mxu0 0
  %2786 = vmatprep.subr.bf16.mxu0 0
  %2787 = vmatpush2.bf16.msra.mxu0 0
  %2788 = vmatprep.subr.bf16.mxu0 0
  %2789 = vmatpush2.bf16.msra.mxu0 0
  %2790 = vmatprep.subr.bf16.mxu0 0
  %2791 = vmatpush2.bf16.msra.mxu0 %v2760
  %2792 = vmatprep.subr.bf16.mxu0 0
  %2793 = vmatpush2.bf16.msra.mxu0 %v2748
  %2794 = vmatprep.mubr.bf16.mxu0 %v111
  %2795 = vmatmul.mubr.bf16.gmra.mxu0 %v49
  %v2796 = vpop.f32.mrf.mxu0
  %v2797 = vadd.f32 0.0, %v2796
  %v2798 = vpop.f32.mrf.mxu0
  %v2799 = vpop.f32.mrf.mxu0
  %v2800 = vadd.f32 0.0, %v2799
  %v2801 = vpop.f32.mrf.mxu0
  %2802 = vdwg.mxu0
  %v2803 = vmul.f32 %v2797, %v161
  %v2804 = vmul.f32 %v2800, %v166
  %v2805 = vadd.f32 %v2803, %v173
  %v2806 = vadd.f32 %v2804, %v178
  %v2807 = vmax.f32 %v2805, 0.0
  %v2808 = vmax.f32 %v2806, 0.0
  %s2809 = scalar_lea.vmem %s0, 1596
  %v2810 = vld [vmem:[%s2809] sm:$0xf]
  %v2811 = vld [vmem:[%s2809 + $0x4] sm:$0xf]
  %v2812 = vld [vmem:[%s2809 + $0x8] sm:$0xf]
  %v2813 = vld [vmem:[%s2809 + $0xc] sm:$0xf]
  %v2814 = vld [vmem:[%s2809 + $0x10] sm:$0xf]
  %v2815 = vld [vmem:[%s2809 + $0x14] sm:$0xf]
  %v2816 = vld [vmem:[%s2809 + $0x18] sm:$0xf]
  %v2817 = vld [vmem:[%s2809 + $0x1c] sm:$0xf]
  %v2818 = vld [vmem:[%s2809 + $0x20] sm:$0xf]
  %v2819 = vld [vmem:[%s2809 + $0x24] sm:$0xf]
  %v2820 = vld [vmem:[%s2809 + $0x28] sm:$0xf]
  %v2821 = vld [vmem:[%s2809 + $0x2c] sm:$0xf]
  %v2822 = vld [vmem:[%s2809 + $0x30] sm:$0xf]
  %v2823 = vld [vmem:[%s2809 + $0x34] sm:$0xf]
  %v2824 = vld [vmem:[%s2809 + $0x38] sm:$0xf]
  %v2825 = vld [vmem:[%s2809 + $0x3c] sm:$0xf]
  %v2826 = vld [vmem:[%s2809 + $0x40] sm:$0xf]
  %v2827 = vld [vmem:[%s2809 + $0x44] sm:$0xf]
  %v2828 = vld [vmem:[%s2809 + $0x48] sm:$0x7]
  %v2848 = vunpack.c.l.b16 %v2810
  %v2849 = vunpack.c.l.b16 %v2811
  %v2850 = vunpack.c.l.b16 %v2812
  %v2851 = vunpack.c.l.b16 %v2813
  %v2852 = vunpack.c.l.b16 %v2814
  %v2853 = vunpack.c.l.b16 %v2815
  %v2854 = vunpack.c.l.b16 %v2816
  %v2855 = vunpack.c.l.b16 %v2817
  %v2856 = vunpack.c.l.b16 %v2818
  %v2857 = vunpack.c.l.b16 %v2819
  %v2858 = vunpack.c.l.b16 %v2820
  %v2859 = vunpack.c.l.b16 %v2821
  %v2860 = vunpack.c.l.b16 %v2822
  %v2861 = vunpack.c.l.b16 %v2823
  %v2862 = vunpack.c.l.b16 %v2824
  %v2863 = vunpack.c.l.b16 %v2825
  %v2864 = vunpack.c.l.b16 %v2826
  %v2865 = vunpack.c.l.b16 %v2827
  %v2866 = vunpack.c.l.b16 %v2828
  %v2867 = vpack.c.b16 %v2849, %v2848
  %v2868 = vpack.c.b16 %v2851, %v2850
  %v2869 = vpack.c.b16 %v2853, %v2852
  %v2870 = vpack.c.b16 %v2855, %v2854
  %v2871 = vpack.c.b16 %v2857, %v2856
  %v2872 = vpack.c.b16 %v2859, %v2858
  %v2873 = vpack.c.b16 %v2861, %v2860
  %v2874 = vpack.c.b16 %v2863, %v2862
  %v2875 = vpack.c.b16 %v2865, %v2864
  %v2876 = vpack.c.b16 %v2866, %v2866
  %v2887 = vsel %vm113, %v2876, 0
  %2889 = vmatprep.subr.bf16.mxu0 0
  %2890 = vmatpush1.bf16.msra.mxu0 %v2874
  %2891 = vmatprep.subr.bf16.mxu0 0
  %2892 = vmatpush1.bf16.msra.mxu0 %v2873
  %2893 = vmatprep.subr.bf16.mxu0 0
  %2894 = vmatpush1.bf16.msra.mxu0 %v2872
  %2895 = vmatprep.subr.bf16.mxu0 0
  %2896 = vmatpush1.bf16.msra.mxu0 %v2871
  %2897 = vmatprep.subr.bf16.mxu0 0
  %2898 = vmatpush1.bf16.msra.mxu0 %v2870
  %2899 = vmatprep.subr.bf16.mxu0 0
  %2900 = vmatpush1.bf16.msra.mxu0 %v2869
  %2901 = vmatprep.subr.bf16.mxu0 0
  %2902 = vmatpush1.bf16.msra.mxu0 %v2868
  %2903 = vmatprep.subr.bf16.mxu0 0
  %2904 = vmatpush1.bf16.msra.mxu0 %v2867
  %2905 = vmatprep.subr.bf16.mxu0 0
  %2906 = vmatpush2.bf16.msra.mxu0 0
  %2907 = vmatprep.subr.bf16.mxu0 0
  %2908 = vmatpush2.bf16.msra.mxu0 0
  %2909 = vmatprep.subr.bf16.mxu0 0
  %2910 = vmatpush2.bf16.msra.mxu0 0
  %2911 = vmatprep.subr.bf16.mxu0 0
  %2912 = vmatpush2.bf16.msra.mxu0 0
  %2913 = vmatprep.subr.bf16.mxu0 0
  %2914 = vmatpush2.bf16.msra.mxu0 0
  %2915 = vmatprep.subr.bf16.mxu0 0
  %2916 = vmatpush2.bf16.msra.mxu0 0
  %2917 = vmatprep.subr.bf16.mxu0 0
  %2918 = vmatpush2.bf16.msra.mxu0 %v2887
  %2919 = vmatprep.subr.bf16.mxu0 0
  %2920 = vmatpush2.bf16.msra.mxu0 %v2875
  %2921 = vmatprep.mubr.bf16.mxu0 %v111
  %2922 = vmatmul.mubr.bf16.gmra.mxu0 %v49
  %v2923 = vpop.f32.mrf.mxu0
  %v2924 = vadd.f32 0.0, %v2923
  %v2925 = vpop.f32.mrf.mxu0
  %v2926 = vpop.f32.mrf.mxu0
  %v2927 = vadd.f32 0.0, %v2926
  %v2928 = vpop.f32.mrf.mxu0
  %2929 = vdwg.mxu0
  %v2930 = vmul.f32 %v2924, %v161
  %v2931 = vmul.f32 %v2927, %v166
  %v2932 = vadd.f32 %v2930, %v173
  %v2933 = vadd.f32 %v2931, %v178
  %v2934 = vmax.f32 %v2932, 0.0
  %v2935 = vmax.f32 %v2933, 0.0
  %v2936 = vmax.f32 %v2807, %v2934
  %v2937 = vmax.f32 %v2808, %v2935
  %s2938 = scalar_lea.vmem %s0, 1672
  %v2939 = vld [vmem:[%s2938] sm:$0xf]
  %v2940 = vld [vmem:[%s2938 + $0x4] sm:$0xf]
  %v2941 = vld [vmem:[%s2938 + $0x8] sm:$0xf]
  %v2942 = vld [vmem:[%s2938 + $0xc] sm:$0xf]
  %v2943 = vld [vmem:[%s2938 + $0x10] sm:$0xf]
  %v2944 = vld [vmem:[%s2938 + $0x14] sm:$0xf]
  %v2945 = vld [vmem:[%s2938 + $0x18] sm:$0xf]
  %v2946 = vld [vmem:[%s2938 + $0x1c] sm:$0xf]
  %v2947 = vld [vmem:[%s2938 + $0x20] sm:$0xf]
  %v2948 = vld [vmem:[%s2938 + $0x24] sm:$0xf]
  %v2949 = vld [vmem:[%s2938 + $0x28] sm:$0xf]
  %v2950 = vld [vmem:[%s2938 + $0x2c] sm:$0xf]
  %v2951 = vld [vmem:[%s2938 + $0x30] sm:$0xf]
  %v2952 = vld [vmem:[%s2938 + $0x34] sm:$0xf]
  %v2953 = vld [vmem:[%s2938 + $0x38] sm:$0xf]
  %v2954 = vld [vmem:[%s2938 + $0x3c] sm:$0xf]
  %v2955 = vld [vmem:[%s2938 + $0x40] sm:$0xf]
  %v2956 = vld [vmem:[%s2938 + $0x44] sm:$0xf]
  %v2957 = vld [vmem:[%s2938 + $0x48] sm:$0x7]
  %v2977 = vunpack.c.l.b16 %v2939
  %v2978 = vunpack.c.l.b16 %v2940
  %v2979 = vunpack.c.l.b16 %v2941
  %v2980 = vunpack.c.l.b16 %v2942
  %v2981 = vunpack.c.l.b16 %v2943
  %v2982 = vunpack.c.l.b16 %v2944
  %v2983 = vunpack.c.l.b16 %v2945
  %v2984 = vunpack.c.l.b16 %v2946
  %v2985 = vunpack.c.l.b16 %v2947
  %v2986 = vunpack.c.l.b16 %v2948
  %v2987 = vunpack.c.l.b16 %v2949
  %v2988 = vunpack.c.l.b16 %v2950
  %v2989 = vunpack.c.l.b16 %v2951
  %v2990 = vunpack.c.l.b16 %v2952
  %v2991 = vunpack.c.l.b16 %v2953
  %v2992 = vunpack.c.l.b16 %v2954
  %v2993 = vunpack.c.l.b16 %v2955
  %v2994 = vunpack.c.l.b16 %v2956
  %v2995 = vunpack.c.l.b16 %v2957
  %v2996 = vpack.c.b16 %v2978, %v2977
  %v2997 = vpack.c.b16 %v2980, %v2979
  %v2998 = vpack.c.b16 %v2982, %v2981
  %v2999 = vpack.c.b16 %v2984, %v2983
  %v3000 = vpack.c.b16 %v2986, %v2985
  %v3001 = vpack.c.b16 %v2988, %v2987
  %v3002 = vpack.c.b16 %v2990, %v2989
  %v3003 = vpack.c.b16 %v2992, %v2991
  %v3004 = vpack.c.b16 %v2994, %v2993
  %v3005 = vpack.c.b16 %v2995, %v2995
  %v3016 = vsel %vm113, %v3005, 0
  %3018 = vmatprep.subr.bf16.mxu0 0
  %3019 = vmatpush1.bf16.msra.mxu0 %v3003
  %3020 = vmatprep.subr.bf16.mxu0 0
  %3021 = vmatpush1.bf16.msra.mxu0 %v3002
  %3022 = vmatprep.subr.bf16.mxu0 0
  %3023 = vmatpush1.bf16.msra.mxu0 %v3001
  %3024 = vmatprep.subr.bf16.mxu0 0
  %3025 = vmatpush1.bf16.msra.mxu0 %v3000
  %3026 = vmatprep.subr.bf16.mxu0 0
  %3027 = vmatpush1.bf16.msra.mxu0 %v2999
  %3028 = vmatprep.subr.bf16.mxu0 0
  %3029 = vmatpush1.bf16.msra.mxu0 %v2998
  %3030 = vmatprep.subr.bf16.mxu0 0
  %3031 = vmatpush1.bf16.msra.mxu0 %v2997
  %3032 = vmatprep.subr.bf16.mxu0 0
  %3033 = vmatpush1.bf16.msra.mxu0 %v2996
  %3034 = vmatprep.subr.bf16.mxu0 0
  %3035 = vmatpush2.bf16.msra.mxu0 0
  %3036 = vmatprep.subr.bf16.mxu0 0
  %3037 = vmatpush2.bf16.msra.mxu0 0
  %3038 = vmatprep.subr.bf16.mxu0 0
  %3039 = vmatpush2.bf16.msra.mxu0 0
  %3040 = vmatprep.subr.bf16.mxu0 0
  %3041 = vmatpush2.bf16.msra.mxu0 0
  %3042 = vmatprep.subr.bf16.mxu0 0
  %3043 = vmatpush2.bf16.msra.mxu0 0
  %3044 = vmatprep.subr.bf16.mxu0 0
  %3045 = vmatpush2.bf16.msra.mxu0 0
  %3046 = vmatprep.subr.bf16.mxu0 0
  %3047 = vmatpush2.bf16.msra.mxu0 %v3016
  %3048 = vmatprep.subr.bf16.mxu0 0
  %3049 = vmatpush2.bf16.msra.mxu0 %v3004
  %3050 = vmatprep.mubr.bf16.mxu0 %v111
  %3051 = vmatmul.mubr.bf16.gmra.mxu0 %v49
  %v3052 = vpop.f32.mrf.mxu0
  %v3053 = vadd.f32 0.0, %v3052
  %v3054 = vpop.f32.mrf.mxu0
  %v3055 = vpop.f32.mrf.mxu0
  %v3056 = vadd.f32 0.0, %v3055
  %v3057 = vpop.f32.mrf.mxu0
  %3058 = vdwg.mxu0
  %v3059 = vmul.f32 %v3053, %v161
  %v3060 = vmul.f32 %v3056, %v166
  %v3061 = vadd.f32 %v3059, %v173
  %v3062 = vadd.f32 %v3060, %v178
  %v3063 = vmax.f32 %v3061, 0.0
  %v3064 = vmax.f32 %v3062, 0.0
  %v3065 = vmax.f32 %v2936, %v3063
  %v3066 = vmax.f32 %v2937, %v3064
  %s3067 = scalar_lea.vmem %s0, 1748
  %v3068 = vld [vmem:[%s3067] sm:$0xf]
  %v3069 = vld [vmem:[%s3067 + $0x4] sm:$0xf]
  %v3070 = vld [vmem:[%s3067 + $0x8] sm:$0xf]
  %v3071 = vld [vmem:[%s3067 + $0xc] sm:$0xf]
  %v3072 = vld [vmem:[%s3067 + $0x10] sm:$0xf]
  %v3073 = vld [vmem:[%s3067 + $0x14] sm:$0xf]
  %v3074 = vld [vmem:[%s3067 + $0x18] sm:$0xf]
  %v3075 = vld [vmem:[%s3067 + $0x1c] sm:$0xf]
  %v3076 = vld [vmem:[%s3067 + $0x20] sm:$0xf]
  %v3077 = vld [vmem:[%s3067 + $0x24] sm:$0xf]
  %v3078 = vld [vmem:[%s3067 + $0x28] sm:$0xf]
  %v3079 = vld [vmem:[%s3067 + $0x2c] sm:$0xf]
  %v3080 = vld [vmem:[%s3067 + $0x30] sm:$0xf]
  %v3081 = vld [vmem:[%s3067 + $0x34] sm:$0xf]
  %v3082 = vld [vmem:[%s3067 + $0x38] sm:$0xf]
  %v3083 = vld [vmem:[%s3067 + $0x3c] sm:$0xf]
  %v3084 = vld [vmem:[%s3067 + $0x40] sm:$0xf]
  %v3085 = vld [vmem:[%s3067 + $0x44] sm:$0xf]
  %v3086 = vld [vmem:[%s3067 + $0x48] sm:$0x7]
  %v3106 = vunpack.c.l.b16 %v3068
  %v3107 = vunpack.c.l.b16 %v3069
  %v3108 = vunpack.c.l.b16 %v3070
  %v3109 = vunpack.c.l.b16 %v3071
  %v3110 = vunpack.c.l.b16 %v3072
  %v3111 = vunpack.c.l.b16 %v3073
  %v3112 = vunpack.c.l.b16 %v3074
  %v3113 = vunpack.c.l.b16 %v3075
  %v3114 = vunpack.c.l.b16 %v3076
  %v3115 = vunpack.c.l.b16 %v3077
  %v3116 = vunpack.c.l.b16 %v3078
  %v3117 = vunpack.c.l.b16 %v3079
  %v3118 = vunpack.c.l.b16 %v3080
  %v3119 = vunpack.c.l.b16 %v3081
  %v3120 = vunpack.c.l.b16 %v3082
  %v3121 = vunpack.c.l.b16 %v3083
  %v3122 = vunpack.c.l.b16 %v3084
  %v3123 = vunpack.c.l.b16 %v3085
  %v3124 = vunpack.c.l.b16 %v3086
  %v3125 = vpack.c.b16 %v3107, %v3106
  %v3126 = vpack.c.b16 %v3109, %v3108
  %v3127 = vpack.c.b16 %v3111, %v3110
  %v3128 = vpack.c.b16 %v3113, %v3112
  %v3129 = vpack.c.b16 %v3115, %v3114
  %v3130 = vpack.c.b16 %v3117, %v3116
  %v3131 = vpack.c.b16 %v3119, %v3118
  %v3132 = vpack.c.b16 %v3121, %v3120
  %v3133 = vpack.c.b16 %v3123, %v3122
  %v3134 = vpack.c.b16 %v3124, %v3124
  %v3145 = vsel %vm113, %v3134, 0
  %3147 = vmatprep.subr.bf16.mxu0 0
  %3148 = vmatpush1.bf16.msra.mxu0 %v3132
  %3149 = vmatprep.subr.bf16.mxu0 0
  %3150 = vmatpush1.bf16.msra.mxu0 %v3131
  %3151 = vmatprep.subr.bf16.mxu0 0
  %3152 = vmatpush1.bf16.msra.mxu0 %v3130
  %3153 = vmatprep.subr.bf16.mxu0 0
  %3154 = vmatpush1.bf16.msra.mxu0 %v3129
  %3155 = vmatprep.subr.bf16.mxu0 0
  %3156 = vmatpush1.bf16.msra.mxu0 %v3128
  %3157 = vmatprep.subr.bf16.mxu0 0
  %3158 = vmatpush1.bf16.msra.mxu0 %v3127
  %3159 = vmatprep.subr.bf16.mxu0 0
  %3160 = vmatpush1.bf16.msra.mxu0 %v3126
  %3161 = vmatprep.subr.bf16.mxu0 0
  %3162 = vmatpush1.bf16.msra.mxu0 %v3125
  %3163 = vmatprep.subr.bf16.mxu0 0
  %3164 = vmatpush2.bf16.msra.mxu0 0
  %3165 = vmatprep.subr.bf16.mxu0 0
  %3166 = vmatpush2.bf16.msra.mxu0 0
  %3167 = vmatprep.subr.bf16.mxu0 0
  %3168 = vmatpush2.bf16.msra.mxu0 0
  %3169 = vmatprep.subr.bf16.mxu0 0
  %3170 = vmatpush2.bf16.msra.mxu0 0
  %3171 = vmatprep.subr.bf16.mxu0 0
  %3172 = vmatpush2.bf16.msra.mxu0 0
  %3173 = vmatprep.subr.bf16.mxu0 0
  %3174 = vmatpush2.bf16.msra.mxu0 0
  %3175 = vmatprep.subr.bf16.mxu0 0
  %3176 = vmatpush2.bf16.msra.mxu0 %v3145
  %3177 = vmatprep.subr.bf16.mxu0 0
  %3178 = vmatpush2.bf16.msra.mxu0 %v3133
  %3179 = vmatprep.mubr.bf16.mxu0 %v111
  %3180 = vmatmul.mubr.bf16.gmra.mxu0 %v49
  %v3181 = vpop.f32.mrf.mxu0
  %v3182 = vadd.f32 0.0, %v3181
  %v3183 = vpop.f32.mrf.mxu0
  %v3184 = vpop.f32.mrf.mxu0
  %v3185 = vadd.f32 0.0, %v3184
  %v3186 = vpop.f32.mrf.mxu0
  %3187 = vdwg.mxu0
  %v3188 = vmul.f32 %v3182, %v161
  %v3189 = vmul.f32 %v3185, %v166
  %v3190 = vadd.f32 %v3188, %v173
  %v3191 = vadd.f32 %v3189, %v178
  %v3192 = vmax.f32 %v3190, 0.0
  %v3193 = vmax.f32 %v3191, 0.0
  %v3194 = vmax.f32 %v3065, %v3192
  %v3195 = vmax.f32 %v3066, %v3193
  %v3196 = vpack.c.bf16 %v3195, %v3194
  %v3198 = vunpack.c.l.b16 %v3196
  %v3199 = vunpack.c.h.b16 %v3196
  %v3200 = vpack.c.b16 %v3198, %v3198
  %v3201 = vpack.c.b16 %v3199, %v3199
  %s3204 = scalar_lea.vmem %s4, 40
  %3205 = vst.msk [vmem:[%s3204] sm:$0xf] %vm579, %v3200
  %3206 = vst.msk [vmem:[%s3204 + $0x4] sm:$0xf] %vm579, %v3201
  %s3207 = scalar_lea.vmem %s0, 1824
  %v3208 = vld [vmem:[%s3207] sm:$0xf]
  %v3209 = vld [vmem:[%s3207 + $0x4] sm:$0xf]
  %v3210 = vld [vmem:[%s3207 + $0x8] sm:$0xf]
  %v3211 = vld [vmem:[%s3207 + $0xc] sm:$0xf]
  %v3212 = vld [vmem:[%s3207 + $0x10] sm:$0xf]
  %v3213 = vld [vmem:[%s3207 + $0x14] sm:$0xf]
  %v3214 = vld [vmem:[%s3207 + $0x18] sm:$0xf]
  %v3215 = vld [vmem:[%s3207 + $0x1c] sm:$0xf]
  %v3216 = vld [vmem:[%s3207 + $0x20] sm:$0xf]
  %v3217 = vld [vmem:[%s3207 + $0x24] sm:$0xf]
  %v3218 = vld [vmem:[%s3207 + $0x28] sm:$0xf]
  %v3219 = vld [vmem:[%s3207 + $0x2c] sm:$0xf]
  %v3220 = vld [vmem:[%s3207 + $0x30] sm:$0xf]
  %v3221 = vld [vmem:[%s3207 + $0x34] sm:$0xf]
  %v3222 = vld [vmem:[%s3207 + $0x38] sm:$0xf]
  %v3223 = vld [vmem:[%s3207 + $0x3c] sm:$0xf]
  %v3224 = vld [vmem:[%s3207 + $0x40] sm:$0xf]
  %v3225 = vld [vmem:[%s3207 + $0x44] sm:$0xf]
  %v3226 = vld [vmem:[%s3207 + $0x48] sm:$0x7]
  %v3246 = vunpack.c.l.b16 %v3208
  %v3247 = vunpack.c.l.b16 %v3209
  %v3248 = vunpack.c.l.b16 %v3210
  %v3249 = vunpack.c.l.b16 %v3211
  %v3250 = vunpack.c.l.b16 %v3212
  %v3251 = vunpack.c.l.b16 %v3213
  %v3252 = vunpack.c.l.b16 %v3214
  %v3253 = vunpack.c.l.b16 %v3215
  %v3254 = vunpack.c.l.b16 %v3216
  %v3255 = vunpack.c.l.b16 %v3217
  %v3256 = vunpack.c.l.b16 %v3218
  %v3257 = vunpack.c.l.b16 %v3219
  %v3258 = vunpack.c.l.b16 %v3220
  %v3259 = vunpack.c.l.b16 %v3221
  %v3260 = vunpack.c.l.b16 %v3222
  %v3261 = vunpack.c.l.b16 %v3223
  %v3262 = vunpack.c.l.b16 %v3224
  %v3263 = vunpack.c.l.b16 %v3225
  %v3264 = vunpack.c.l.b16 %v3226
  %v3265 = vpack.c.b16 %v3247, %v3246
  %v3266 = vpack.c.b16 %v3249, %v3248
  %v3267 = vpack.c.b16 %v3251, %v3250
  %v3268 = vpack.c.b16 %v3253, %v3252
  %v3269 = vpack.c.b16 %v3255, %v3254
  %v3270 = vpack.c.b16 %v3257, %v3256
  %v3271 = vpack.c.b16 %v3259, %v3258
  %v3272 = vpack.c.b16 %v3261, %v3260
  %v3273 = vpack.c.b16 %v3263, %v3262
  %v3274 = vpack.c.b16 %v3264, %v3264
  %v3285 = vsel %vm113, %v3274, 0
  %3287 = vmatprep.subr.bf16.mxu0 0
  %3288 = vmatpush1.bf16.msra.mxu0 %v3272
  %3289 = vmatprep.subr.bf16.mxu0 0
  %3290 = vmatpush1.bf16.msra.mxu0 %v3271
  %3291 = vmatprep.subr.bf16.mxu0 0
  %3292 = vmatpush1.bf16.msra.mxu0 %v3270
  %3293 = vmatprep.subr.bf16.mxu0 0
  %3294 = vmatpush1.bf16.msra.mxu0 %v3269
  %3295 = vmatprep.subr.bf16.mxu0 0
  %3296 = vmatpush1.bf16.msra.mxu0 %v3268
  %3297 = vmatprep.subr.bf16.mxu0 0
  %3298 = vmatpush1.bf16.msra.mxu0 %v3267
  %3299 = vmatprep.subr.bf16.mxu0 0
  %3300 = vmatpush1.bf16.msra.mxu0 %v3266
  %3301 = vmatprep.subr.bf16.mxu0 0
  %3302 = vmatpush1.bf16.msra.mxu0 %v3265
  %3303 = vmatprep.subr.bf16.mxu0 0
  %3304 = vmatpush2.bf16.msra.mxu0 0
  %3305 = vmatprep.subr.bf16.mxu0 0
  %3306 = vmatpush2.bf16.msra.mxu0 0
  %3307 = vmatprep.subr.bf16.mxu0 0
  %3308 = vmatpush2.bf16.msra.mxu0 0
  %3309 = vmatprep.subr.bf16.mxu0 0
  %3310 = vmatpush2.bf16.msra.mxu0 0
  %3311 = vmatprep.subr.bf16.mxu0 0
  %3312 = vmatpush2.bf16.msra.mxu0 0
  %3313 = vmatprep.subr.bf16.mxu0 0
  %3314 = vmatpush2.bf16.msra.mxu0 0
  %3315 = vmatprep.subr.bf16.mxu0 0
  %3316 = vmatpush2.bf16.msra.mxu0 %v3285
  %3317 = vmatprep.subr.bf16.mxu0 0
  %3318 = vmatpush2.bf16.msra.mxu0 %v3273
  %3319 = vmatprep.mubr.bf16.mxu0 %v111
  %3320 = vmatmul.mubr.bf16.gmra.mxu0 %v49
  %v3321 = vpop.f32.mrf.mxu0
  %v3322 = vadd.f32 0.0, %v3321
  %v3323 = vpop.f32.mrf.mxu0
  %v3324 = vpop.f32.mrf.mxu0
  %v3325 = vadd.f32 0.0, %v3324
  %v3326 = vpop.f32.mrf.mxu0
  %3327 = vdwg.mxu0
  %v3328 = vmul.f32 %v3322, %v161
  %v3329 = vmul.f32 %v3325, %v166
  %v3330 = vadd.f32 %v3328, %v173
  %v3331 = vadd.f32 %v3329, %v178
  %v3332 = vmax.f32 %v3330, 0.0
  %v3333 = vmax.f32 %v3331, 0.0
  %s3334 = scalar_lea.vmem %s0, 1900
  %v3335 = vld [vmem:[%s3334] sm:$0xf]
  %v3336 = vld [vmem:[%s3334 + $0x4] sm:$0xf]
  %v3337 = vld [vmem:[%s3334 + $0x8] sm:$0xf]
  %v3338 = vld [vmem:[%s3334 + $0xc] sm:$0xf]
  %v3339 = vld [vmem:[%s3334 + $0x10] sm:$0xf]
  %v3340 = vld [vmem:[%s3334 + $0x14] sm:$0xf]
  %v3341 = vld [vmem:[%s3334 + $0x18] sm:$0xf]
  %v3342 = vld [vmem:[%s3334 + $0x1c] sm:$0xf]
  %v3343 = vld [vmem:[%s3334 + $0x20] sm:$0xf]
  %v3344 = vld [vmem:[%s3334 + $0x24] sm:$0xf]
  %v3345 = vld [vmem:[%s3334 + $0x28] sm:$0xf]
  %v3346 = vld [vmem:[%s3334 + $0x2c] sm:$0xf]
  %v3347 = vld [vmem:[%s3334 + $0x30] sm:$0xf]
  %v3348 = vld [vmem:[%s3334 + $0x34] sm:$0xf]
  %v3349 = vld [vmem:[%s3334 + $0x38] sm:$0xf]
  %v3350 = vld [vmem:[%s3334 + $0x3c] sm:$0xf]
  %v3351 = vld [vmem:[%s3334 + $0x40] sm:$0xf]
  %v3352 = vld [vmem:[%s3334 + $0x44] sm:$0xf]
  %v3353 = vld [vmem:[%s3334 + $0x48] sm:$0x7]
  %v3373 = vunpack.c.l.b16 %v3335
  %v3374 = vunpack.c.l.b16 %v3336
  %v3375 = vunpack.c.l.b16 %v3337
  %v3376 = vunpack.c.l.b16 %v3338
  %v3377 = vunpack.c.l.b16 %v3339
  %v3378 = vunpack.c.l.b16 %v3340
  %v3379 = vunpack.c.l.b16 %v3341
  %v3380 = vunpack.c.l.b16 %v3342
  %v3381 = vunpack.c.l.b16 %v3343
  %v3382 = vunpack.c.l.b16 %v3344
  %v3383 = vunpack.c.l.b16 %v3345
  %v3384 = vunpack.c.l.b16 %v3346
  %v3385 = vunpack.c.l.b16 %v3347
  %v3386 = vunpack.c.l.b16 %v3348
  %v3387 = vunpack.c.l.b16 %v3349
  %v3388 = vunpack.c.l.b16 %v3350
  %v3389 = vunpack.c.l.b16 %v3351
  %v3390 = vunpack.c.l.b16 %v3352
  %v3391 = vunpack.c.l.b16 %v3353
  %v3392 = vpack.c.b16 %v3374, %v3373
  %v3393 = vpack.c.b16 %v3376, %v3375
  %v3394 = vpack.c.b16 %v3378, %v3377
  %v3395 = vpack.c.b16 %v3380, %v3379
  %v3396 = vpack.c.b16 %v3382, %v3381
  %v3397 = vpack.c.b16 %v3384, %v3383
  %v3398 = vpack.c.b16 %v3386, %v3385
  %v3399 = vpack.c.b16 %v3388, %v3387
  %v3400 = vpack.c.b16 %v3390, %v3389
  %v3401 = vpack.c.b16 %v3391, %v3391
  %v3412 = vsel %vm113, %v3401, 0
  %3414 = vmatprep.subr.bf16.mxu0 0
  %3415 = vmatpush1.bf16.msra.mxu0 %v3399
  %3416 = vmatprep.subr.bf16.mxu0 0
  %3417 = vmatpush1.bf16.msra.mxu0 %v3398
  %3418 = vmatprep.subr.bf16.mxu0 0
  %3419 = vmatpush1.bf16.msra.mxu0 %v3397
  %3420 = vmatprep.subr.bf16.mxu0 0
  %3421 = vmatpush1.bf16.msra.mxu0 %v3396
  %3422 = vmatprep.subr.bf16.mxu0 0
  %3423 = vmatpush1.bf16.msra.mxu0 %v3395
  %3424 = vmatprep.subr.bf16.mxu0 0
  %3425 = vmatpush1.bf16.msra.mxu0 %v3394
  %3426 = vmatprep.subr.bf16.mxu0 0
  %3427 = vmatpush1.bf16.msra.mxu0 %v3393
  %3428 = vmatprep.subr.bf16.mxu0 0
  %3429 = vmatpush1.bf16.msra.mxu0 %v3392
  %3430 = vmatprep.subr.bf16.mxu0 0
  %3431 = vmatpush2.bf16.msra.mxu0 0
  %3432 = vmatprep.subr.bf16.mxu0 0
  %3433 = vmatpush2.bf16.msra.mxu0 0
  %3434 = vmatprep.subr.bf16.mxu0 0
  %3435 = vmatpush2.bf16.msra.mxu0 0
  %3436 = vmatprep.subr.bf16.mxu0 0
  %3437 = vmatpush2.bf16.msra.mxu0 0
  %3438 = vmatprep.subr.bf16.mxu0 0
  %3439 = vmatpush2.bf16.msra.mxu0 0
  %3440 = vmatprep.subr.bf16.mxu0 0
  %3441 = vmatpush2.bf16.msra.mxu0 0
  %3442 = vmatprep.subr.bf16.mxu0 0
  %3443 = vmatpush2.bf16.msra.mxu0 %v3412
  %3444 = vmatprep.subr.bf16.mxu0 0
  %3445 = vmatpush2.bf16.msra.mxu0 %v3400
  %3446 = vmatprep.mubr.bf16.mxu0 %v111
  %3447 = vmatmul.mubr.bf16.gmra.mxu0 %v49
  %v3448 = vpop.f32.mrf.mxu0
  %v3449 = vadd.f32 0.0, %v3448
  %v3450 = vpop.f32.mrf.mxu0
  %v3451 = vpop.f32.mrf.mxu0
  %v3452 = vadd.f32 0.0, %v3451
  %v3453 = vpop.f32.mrf.mxu0
  %3454 = vdwg.mxu0
  %v3455 = vmul.f32 %v3449, %v161
  %v3456 = vmul.f32 %v3452, %v166
  %v3457 = vadd.f32 %v3455, %v173
  %v3458 = vadd.f32 %v3456, %v178
  %v3459 = vmax.f32 %v3457, 0.0
  %v3460 = vmax.f32 %v3458, 0.0
  %v3461 = vmax.f32 %v3332, %v3459
  %v3462 = vmax.f32 %v3333, %v3460
  %s3463 = scalar_lea.vmem %s0, 1976
  %v3464 = vld [vmem:[%s3463] sm:$0xf]
  %v3465 = vld [vmem:[%s3463 + $0x4] sm:$0xf]
  %v3466 = vld [vmem:[%s3463 + $0x8] sm:$0xf]
  %v3467 = vld [vmem:[%s3463 + $0xc] sm:$0xf]
  %v3468 = vld [vmem:[%s3463 + $0x10] sm:$0xf]
  %v3469 = vld [vmem:[%s3463 + $0x14] sm:$0xf]
  %v3470 = vld [vmem:[%s3463 + $0x18] sm:$0xf]
  %v3471 = vld [vmem:[%s3463 + $0x1c] sm:$0xf]
  %v3472 = vld [vmem:[%s3463 + $0x20] sm:$0xf]
  %v3473 = vld [vmem:[%s3463 + $0x24] sm:$0xf]
  %v3474 = vld [vmem:[%s3463 + $0x28] sm:$0xf]
  %v3475 = vld [vmem:[%s3463 + $0x2c] sm:$0xf]
  %v3476 = vld [vmem:[%s3463 + $0x30] sm:$0xf]
  %v3477 = vld [vmem:[%s3463 + $0x34] sm:$0xf]
  %v3478 = vld [vmem:[%s3463 + $0x38] sm:$0xf]
  %v3479 = vld [vmem:[%s3463 + $0x3c] sm:$0xf]
  %v3480 = vld [vmem:[%s3463 + $0x40] sm:$0xf]
  %v3481 = vld [vmem:[%s3463 + $0x44] sm:$0xf]
  %v3482 = vld [vmem:[%s3463 + $0x48] sm:$0x7]
  %v3502 = vunpack.c.l.b16 %v3464
  %v3503 = vunpack.c.l.b16 %v3465
  %v3504 = vunpack.c.l.b16 %v3466
  %v3505 = vunpack.c.l.b16 %v3467
  %v3506 = vunpack.c.l.b16 %v3468
  %v3507 = vunpack.c.l.b16 %v3469
  %v3508 = vunpack.c.l.b16 %v3470
  %v3509 = vunpack.c.l.b16 %v3471
  %v3510 = vunpack.c.l.b16 %v3472
  %v3511 = vunpack.c.l.b16 %v3473
  %v3512 = vunpack.c.l.b16 %v3474
  %v3513 = vunpack.c.l.b16 %v3475
  %v3514 = vunpack.c.l.b16 %v3476
  %v3515 = vunpack.c.l.b16 %v3477
  %v3516 = vunpack.c.l.b16 %v3478
  %v3517 = vunpack.c.l.b16 %v3479
  %v3518 = vunpack.c.l.b16 %v3480
  %v3519 = vunpack.c.l.b16 %v3481
  %v3520 = vunpack.c.l.b16 %v3482
  %v3521 = vpack.c.b16 %v3503, %v3502
  %v3522 = vpack.c.b16 %v3505, %v3504
  %v3523 = vpack.c.b16 %v3507, %v3506
  %v3524 = vpack.c.b16 %v3509, %v3508
  %v3525 = vpack.c.b16 %v3511, %v3510
  %v3526 = vpack.c.b16 %v3513, %v3512
  %v3527 = vpack.c.b16 %v3515, %v3514
  %v3528 = vpack.c.b16 %v3517, %v3516
  %v3529 = vpack.c.b16 %v3519, %v3518
  %v3530 = vpack.c.b16 %v3520, %v3520
  %v3541 = vsel %vm113, %v3530, 0
  %3543 = vmatprep.subr.bf16.mxu0 0
  %3544 = vmatpush1.bf16.msra.mxu0 %v3528
  %3545 = vmatprep.subr.bf16.mxu0 0
  %3546 = vmatpush1.bf16.msra.mxu0 %v3527
  %3547 = vmatprep.subr.bf16.mxu0 0
  %3548 = vmatpush1.bf16.msra.mxu0 %v3526
  %3549 = vmatprep.subr.bf16.mxu0 0
  %3550 = vmatpush1.bf16.msra.mxu0 %v3525
  %3551 = vmatprep.subr.bf16.mxu0 0
  %3552 = vmatpush1.bf16.msra.mxu0 %v3524
  %3553 = vmatprep.subr.bf16.mxu0 0
  %3554 = vmatpush1.bf16.msra.mxu0 %v3523
  %3555 = vmatprep.subr.bf16.mxu0 0
  %3556 = vmatpush1.bf16.msra.mxu0 %v3522
  %3557 = vmatprep.subr.bf16.mxu0 0
  %3558 = vmatpush1.bf16.msra.mxu0 %v3521
  %3559 = vmatprep.subr.bf16.mxu0 0
  %3560 = vmatpush2.bf16.msra.mxu0 0
  %3561 = vmatprep.subr.bf16.mxu0 0
  %3562 = vmatpush2.bf16.msra.mxu0 0
  %3563 = vmatprep.subr.bf16.mxu0 0
  %3564 = vmatpush2.bf16.msra.mxu0 0
  %3565 = vmatprep.subr.bf16.mxu0 0
  %3566 = vmatpush2.bf16.msra.mxu0 0
  %3567 = vmatprep.subr.bf16.mxu0 0
  %3568 = vmatpush2.bf16.msra.mxu0 0
  %3569 = vmatprep.subr.bf16.mxu0 0
  %3570 = vmatpush2.bf16.msra.mxu0 0
  %3571 = vmatprep.subr.bf16.mxu0 0
  %3572 = vmatpush2.bf16.msra.mxu0 %v3541
  %3573 = vmatprep.subr.bf16.mxu0 0
  %3574 = vmatpush2.bf16.msra.mxu0 %v3529
  %3575 = vmatprep.mubr.bf16.mxu0 %v111
  %3576 = vmatmul.mubr.bf16.gmra.mxu0 %v49
  %v3577 = vpop.f32.mrf.mxu0
  %v3578 = vadd.f32 0.0, %v3577
  %v3579 = vpop.f32.mrf.mxu0
  %v3580 = vpop.f32.mrf.mxu0
  %v3581 = vadd.f32 0.0, %v3580
  %v3582 = vpop.f32.mrf.mxu0
  %3583 = vdwg.mxu0
  %v3584 = vmul.f32 %v3578, %v161
  %v3585 = vmul.f32 %v3581, %v166
  %v3586 = vadd.f32 %v3584, %v173
  %v3587 = vadd.f32 %v3585, %v178
  %v3588 = vmax.f32 %v3586, 0.0
  %v3589 = vmax.f32 %v3587, 0.0
  %v3590 = vmax.f32 %v3461, %v3588
  %v3591 = vmax.f32 %v3462, %v3589
  %s3592 = scalar_lea.vmem %s0, 2052
  %v3593 = vld [vmem:[%s3592] sm:$0xf]
  %v3594 = vld [vmem:[%s3592 + $0x4] sm:$0xf]
  %v3595 = vld [vmem:[%s3592 + $0x8] sm:$0xf]
  %v3596 = vld [vmem:[%s3592 + $0xc] sm:$0xf]
  %v3597 = vld [vmem:[%s3592 + $0x10] sm:$0xf]
  %v3598 = vld [vmem:[%s3592 + $0x14] sm:$0xf]
  %v3599 = vld [vmem:[%s3592 + $0x18] sm:$0xf]
  %v3600 = vld [vmem:[%s3592 + $0x1c] sm:$0xf]
  %v3601 = vld [vmem:[%s3592 + $0x20] sm:$0xf]
  %v3602 = vld [vmem:[%s3592 + $0x24] sm:$0xf]
  %v3603 = vld [vmem:[%s3592 + $0x28] sm:$0xf]
  %v3604 = vld [vmem:[%s3592 + $0x2c] sm:$0xf]
  %v3605 = vld [vmem:[%s3592 + $0x30] sm:$0xf]
  %v3606 = vld [vmem:[%s3592 + $0x34] sm:$0xf]
  %v3607 = vld [vmem:[%s3592 + $0x38] sm:$0xf]
  %v3608 = vld [vmem:[%s3592 + $0x3c] sm:$0xf]
  %v3609 = vld [vmem:[%s3592 + $0x40] sm:$0xf]
  %v3610 = vld [vmem:[%s3592 + $0x44] sm:$0xf]
  %v3611 = vld [vmem:[%s3592 + $0x48] sm:$0x7]
  %v3631 = vunpack.c.l.b16 %v3593
  %v3632 = vunpack.c.l.b16 %v3594
  %v3633 = vunpack.c.l.b16 %v3595
  %v3634 = vunpack.c.l.b16 %v3596
  %v3635 = vunpack.c.l.b16 %v3597
  %v3636 = vunpack.c.l.b16 %v3598
  %v3637 = vunpack.c.l.b16 %v3599
  %v3638 = vunpack.c.l.b16 %v3600
  %v3639 = vunpack.c.l.b16 %v3601
  %v3640 = vunpack.c.l.b16 %v3602
  %v3641 = vunpack.c.l.b16 %v3603
  %v3642 = vunpack.c.l.b16 %v3604
  %v3643 = vunpack.c.l.b16 %v3605
  %v3644 = vunpack.c.l.b16 %v3606
  %v3645 = vunpack.c.l.b16 %v3607
  %v3646 = vunpack.c.l.b16 %v3608
  %v3647 = vunpack.c.l.b16 %v3609
  %v3648 = vunpack.c.l.b16 %v3610
  %v3649 = vunpack.c.l.b16 %v3611
  %v3650 = vpack.c.b16 %v3632, %v3631
  %v3651 = vpack.c.b16 %v3634, %v3633
  %v3652 = vpack.c.b16 %v3636, %v3635
  %v3653 = vpack.c.b16 %v3638, %v3637
  %v3654 = vpack.c.b16 %v3640, %v3639
  %v3655 = vpack.c.b16 %v3642, %v3641
  %v3656 = vpack.c.b16 %v3644, %v3643
  %v3657 = vpack.c.b16 %v3646, %v3645
  %v3658 = vpack.c.b16 %v3648, %v3647
  %v3659 = vpack.c.b16 %v3649, %v3649
  %v3670 = vsel %vm113, %v3659, 0
  %3672 = vmatprep.subr.bf16.mxu0 0
  %3673 = vmatpush1.bf16.msra.mxu0 %v3657
  %3674 = vmatprep.subr.bf16.mxu0 0
  %3675 = vmatpush1.bf16.msra.mxu0 %v3656
  %3676 = vmatprep.subr.bf16.mxu0 0
  %3677 = vmatpush1.bf16.msra.mxu0 %v3655
  %3678 = vmatprep.subr.bf16.mxu0 0
  %3679 = vmatpush1.bf16.msra.mxu0 %v3654
  %3680 = vmatprep.subr.bf16.mxu0 0
  %3681 = vmatpush1.bf16.msra.mxu0 %v3653
  %3682 = vmatprep.subr.bf16.mxu0 0
  %3683 = vmatpush1.bf16.msra.mxu0 %v3652
  %3684 = vmatprep.subr.bf16.mxu0 0
  %3685 = vmatpush1.bf16.msra.mxu0 %v3651
  %3686 = vmatprep.subr.bf16.mxu0 0
  %3687 = vmatpush1.bf16.msra.mxu0 %v3650
  %3688 = vmatprep.subr.bf16.mxu0 0
  %3689 = vmatpush2.bf16.msra.mxu0 0
  %3690 = vmatprep.subr.bf16.mxu0 0
  %3691 = vmatpush2.bf16.msra.mxu0 0
  %3692 = vmatprep.subr.bf16.mxu0 0
  %3693 = vmatpush2.bf16.msra.mxu0 0
  %3694 = vmatprep.subr.bf16.mxu0 0
  %3695 = vmatpush2.bf16.msra.mxu0 0
  %3696 = vmatprep.subr.bf16.mxu0 0
  %3697 = vmatpush2.bf16.msra.mxu0 0
  %3698 = vmatprep.subr.bf16.mxu0 0
  %3699 = vmatpush2.bf16.msra.mxu0 0
  %3700 = vmatprep.subr.bf16.mxu0 0
  %3701 = vmatpush2.bf16.msra.mxu0 %v3670
  %3702 = vmatprep.subr.bf16.mxu0 0
  %3703 = vmatpush2.bf16.msra.mxu0 %v3658
  %3704 = vmatprep.mubr.bf16.mxu0 %v111
  %3705 = vmatmul.mubr.bf16.gmra.mxu0 %v49
  %v3706 = vpop.f32.mrf.mxu0
  %v3707 = vadd.f32 0.0, %v3706
  %v3708 = vpop.f32.mrf.mxu0
  %v3709 = vpop.f32.mrf.mxu0
  %v3710 = vadd.f32 0.0, %v3709
  %v3711 = vpop.f32.mrf.mxu0
  %3712 = vdwg.mxu0
  %v3713 = vmul.f32 %v3707, %v161
  %v3714 = vmul.f32 %v3710, %v166
  %v3715 = vadd.f32 %v3713, %v173
  %v3716 = vadd.f32 %v3714, %v178
  %v3717 = vmax.f32 %v3715, 0.0
  %v3718 = vmax.f32 %v3716, 0.0
  %v3719 = vmax.f32 %v3590, %v3717
  %v3720 = vmax.f32 %v3591, %v3718
  %v3721 = vpack.c.bf16 %v3720, %v3719
  %v3723 = vunpack.c.l.b16 %v3721
  %v3724 = vunpack.c.h.b16 %v3721
  %v3725 = vpack.c.b16 %v3723, %v3723
  %v3726 = vpack.c.b16 %v3724, %v3724
  %s3729 = scalar_lea.vmem %s4, 48
  %3730 = vst.msk [vmem:[%s3729] sm:$0xf] %vm579, %v3725
  %3731 = vst.msk [vmem:[%s3729 + $0x4] sm:$0xf] %vm579, %v3726
  %s3732 = scalar_lea.vmem %s0, 2128
  %v3733 = vld [vmem:[%s3732] sm:$0xf]
  %v3734 = vld [vmem:[%s3732 + $0x4] sm:$0xf]
  %v3735 = vld [vmem:[%s3732 + $0x8] sm:$0xf]
  %v3736 = vld [vmem:[%s3732 + $0xc] sm:$0xf]
  %v3737 = vld [vmem:[%s3732 + $0x10] sm:$0xf]
  %v3738 = vld [vmem:[%s3732 + $0x14] sm:$0xf]
  %v3739 = vld [vmem:[%s3732 + $0x18] sm:$0xf]
  %v3740 = vld [vmem:[%s3732 + $0x1c] sm:$0xf]
  %v3741 = vld [vmem:[%s3732 + $0x20] sm:$0xf]
  %v3742 = vld [vmem:[%s3732 + $0x24] sm:$0xf]
  %v3743 = vld [vmem:[%s3732 + $0x28] sm:$0xf]
  %v3744 = vld [vmem:[%s3732 + $0x2c] sm:$0xf]
  %v3745 = vld [vmem:[%s3732 + $0x30] sm:$0xf]
  %v3746 = vld [vmem:[%s3732 + $0x34] sm:$0xf]
  %v3747 = vld [vmem:[%s3732 + $0x38] sm:$0xf]
  %v3748 = vld [vmem:[%s3732 + $0x3c] sm:$0xf]
  %v3749 = vld [vmem:[%s3732 + $0x40] sm:$0xf]
  %v3750 = vld [vmem:[%s3732 + $0x44] sm:$0xf]
  %v3751 = vld [vmem:[%s3732 + $0x48] sm:$0x7]
  %v3771 = vunpack.c.l.b16 %v3733
  %v3772 = vunpack.c.l.b16 %v3734
  %v3773 = vunpack.c.l.b16 %v3735
  %v3774 = vunpack.c.l.b16 %v3736
  %v3775 = vunpack.c.l.b16 %v3737
  %v3776 = vunpack.c.l.b16 %v3738
  %v3777 = vunpack.c.l.b16 %v3739
  %v3778 = vunpack.c.l.b16 %v3740
  %v3779 = vunpack.c.l.b16 %v3741
  %v3780 = vunpack.c.l.b16 %v3742
  %v3781 = vunpack.c.l.b16 %v3743
  %v3782 = vunpack.c.l.b16 %v3744
  %v3783 = vunpack.c.l.b16 %v3745
  %v3784 = vunpack.c.l.b16 %v3746
  %v3785 = vunpack.c.l.b16 %v3747
  %v3786 = vunpack.c.l.b16 %v3748
  %v3787 = vunpack.c.l.b16 %v3749
  %v3788 = vunpack.c.l.b16 %v3750
  %v3789 = vunpack.c.l.b16 %v3751
  %v3790 = vpack.c.b16 %v3772, %v3771
  %v3791 = vpack.c.b16 %v3774, %v3773
  %v3792 = vpack.c.b16 %v3776, %v3775
  %v3793 = vpack.c.b16 %v3778, %v3777
  %v3794 = vpack.c.b16 %v3780, %v3779
  %v3795 = vpack.c.b16 %v3782, %v3781
  %v3796 = vpack.c.b16 %v3784, %v3783
  %v3797 = vpack.c.b16 %v3786, %v3785
  %v3798 = vpack.c.b16 %v3788, %v3787
  %v3799 = vpack.c.b16 %v3789, %v3789
  %v3810 = vsel %vm113, %v3799, 0
  %3812 = vmatprep.subr.bf16.mxu0 0
  %3813 = vmatpush1.bf16.msra.mxu0 %v3797
  %3814 = vmatprep.subr.bf16.mxu0 0
  %3815 = vmatpush1.bf16.msra.mxu0 %v3796
  %3816 = vmatprep.subr.bf16.mxu0 0
  %3817 = vmatpush1.bf16.msra.mxu0 %v3795
  %3818 = vmatprep.subr.bf16.mxu0 0
  %3819 = vmatpush1.bf16.msra.mxu0 %v3794
  %3820 = vmatprep.subr.bf16.mxu0 0
  %3821 = vmatpush1.bf16.msra.mxu0 %v3793
  %3822 = vmatprep.subr.bf16.mxu0 0
  %3823 = vmatpush1.bf16.msra.mxu0 %v3792
  %3824 = vmatprep.subr.bf16.mxu0 0
  %3825 = vmatpush1.bf16.msra.mxu0 %v3791
  %3826 = vmatprep.subr.bf16.mxu0 0
  %3827 = vmatpush1.bf16.msra.mxu0 %v3790
  %3828 = vmatprep.subr.bf16.mxu0 0
  %3829 = vmatpush2.bf16.msra.mxu0 0
  %3830 = vmatprep.subr.bf16.mxu0 0
  %3831 = vmatpush2.bf16.msra.mxu0 0
  %3832 = vmatprep.subr.bf16.mxu0 0
  %3833 = vmatpush2.bf16.msra.mxu0 0
  %3834 = vmatprep.subr.bf16.mxu0 0
  %3835 = vmatpush2.bf16.msra.mxu0 0
  %3836 = vmatprep.subr.bf16.mxu0 0
  %3837 = vmatpush2.bf16.msra.mxu0 0
  %3838 = vmatprep.subr.bf16.mxu0 0
  %3839 = vmatpush2.bf16.msra.mxu0 0
  %3840 = vmatprep.subr.bf16.mxu0 0
  %3841 = vmatpush2.bf16.msra.mxu0 %v3810
  %3842 = vmatprep.subr.bf16.mxu0 0
  %3843 = vmatpush2.bf16.msra.mxu0 %v3798
  %3844 = vmatprep.mubr.bf16.mxu0 %v111
  %3845 = vmatmul.mubr.bf16.gmra.mxu0 %v49
  %v3846 = vpop.f32.mrf.mxu0
  %v3847 = vadd.f32 0.0, %v3846
  %v3848 = vpop.f32.mrf.mxu0
  %v3849 = vpop.f32.mrf.mxu0
  %v3850 = vadd.f32 0.0, %v3849
  %v3851 = vpop.f32.mrf.mxu0
  %3852 = vdwg.mxu0
  %v3853 = vmul.f32 %v3847, %v161
  %v3854 = vmul.f32 %v3850, %v166
  %v3855 = vadd.f32 %v3853, %v173
  %v3856 = vadd.f32 %v3854, %v178
  %v3857 = vmax.f32 %v3855, 0.0
  %v3858 = vmax.f32 %v3856, 0.0
  %s3859 = scalar_lea.vmem %s0, 2204
  %v3860 = vld [vmem:[%s3859] sm:$0xf]
  %v3861 = vld [vmem:[%s3859 + $0x4] sm:$0xf]
  %v3862 = vld [vmem:[%s3859 + $0x8] sm:$0xf]
  %v3863 = vld [vmem:[%s3859 + $0xc] sm:$0xf]
  %v3864 = vld [vmem:[%s3859 + $0x10] sm:$0xf]
  %v3865 = vld [vmem:[%s3859 + $0x14] sm:$0xf]
  %v3866 = vld [vmem:[%s3859 + $0x18] sm:$0xf]
  %v3867 = vld [vmem:[%s3859 + $0x1c] sm:$0xf]
  %v3868 = vld [vmem:[%s3859 + $0x20] sm:$0xf]
  %v3869 = vld [vmem:[%s3859 + $0x24] sm:$0xf]
  %v3870 = vld [vmem:[%s3859 + $0x28] sm:$0xf]
  %v3871 = vld [vmem:[%s3859 + $0x2c] sm:$0xf]
  %v3872 = vld [vmem:[%s3859 + $0x30] sm:$0xf]
  %v3873 = vld [vmem:[%s3859 + $0x34] sm:$0xf]
  %v3874 = vld [vmem:[%s3859 + $0x38] sm:$0xf]
  %v3875 = vld [vmem:[%s3859 + $0x3c] sm:$0xf]
  %v3876 = vld [vmem:[%s3859 + $0x40] sm:$0xf]
  %v3877 = vld [vmem:[%s3859 + $0x44] sm:$0xf]
  %v3878 = vld [vmem:[%s3859 + $0x48] sm:$0x7]
  %v3898 = vunpack.c.l.b16 %v3860
  %v3899 = vunpack.c.l.b16 %v3861
  %v3900 = vunpack.c.l.b16 %v3862
  %v3901 = vunpack.c.l.b16 %v3863
  %v3902 = vunpack.c.l.b16 %v3864
  %v3903 = vunpack.c.l.b16 %v3865
  %v3904 = vunpack.c.l.b16 %v3866
  %v3905 = vunpack.c.l.b16 %v3867
  %v3906 = vunpack.c.l.b16 %v3868
  %v3907 = vunpack.c.l.b16 %v3869
  %v3908 = vunpack.c.l.b16 %v3870
  %v3909 = vunpack.c.l.b16 %v3871
  %v3910 = vunpack.c.l.b16 %v3872
  %v3911 = vunpack.c.l.b16 %v3873
  %v3912 = vunpack.c.l.b16 %v3874
  %v3913 = vunpack.c.l.b16 %v3875
  %v3914 = vunpack.c.l.b16 %v3876
  %v3915 = vunpack.c.l.b16 %v3877
  %v3916 = vunpack.c.l.b16 %v3878
  %v3917 = vpack.c.b16 %v3899, %v3898
  %v3918 = vpack.c.b16 %v3901, %v3900
  %v3919 = vpack.c.b16 %v3903, %v3902
  %v3920 = vpack.c.b16 %v3905, %v3904
  %v3921 = vpack.c.b16 %v3907, %v3906
  %v3922 = vpack.c.b16 %v3909, %v3908
  %v3923 = vpack.c.b16 %v3911, %v3910
  %v3924 = vpack.c.b16 %v3913, %v3912
  %v3925 = vpack.c.b16 %v3915, %v3914
  %v3926 = vpack.c.b16 %v3916, %v3916
  %v3937 = vsel %vm113, %v3926, 0
  %3939 = vmatprep.subr.bf16.mxu0 0
  %3940 = vmatpush1.bf16.msra.mxu0 %v3924
  %3941 = vmatprep.subr.bf16.mxu0 0
  %3942 = vmatpush1.bf16.msra.mxu0 %v3923
  %3943 = vmatprep.subr.bf16.mxu0 0
  %3944 = vmatpush1.bf16.msra.mxu0 %v3922
  %3945 = vmatprep.subr.bf16.mxu0 0
  %3946 = vmatpush1.bf16.msra.mxu0 %v3921
  %3947 = vmatprep.subr.bf16.mxu0 0
  %3948 = vmatpush1.bf16.msra.mxu0 %v3920
  %3949 = vmatprep.subr.bf16.mxu0 0
  %3950 = vmatpush1.bf16.msra.mxu0 %v3919
  %3951 = vmatprep.subr.bf16.mxu0 0
  %3952 = vmatpush1.bf16.msra.mxu0 %v3918
  %3953 = vmatprep.subr.bf16.mxu0 0
  %3954 = vmatpush1.bf16.msra.mxu0 %v3917
  %3955 = vmatprep.subr.bf16.mxu0 0
  %3956 = vmatpush2.bf16.msra.mxu0 0
  %3957 = vmatprep.subr.bf16.mxu0 0
  %3958 = vmatpush2.bf16.msra.mxu0 0
  %3959 = vmatprep.subr.bf16.mxu0 0
  %3960 = vmatpush2.bf16.msra.mxu0 0
  %3961 = vmatprep.subr.bf16.mxu0 0
  %3962 = vmatpush2.bf16.msra.mxu0 0
  %3963 = vmatprep.subr.bf16.mxu0 0
  %3964 = vmatpush2.bf16.msra.mxu0 0
  %3965 = vmatprep.subr.bf16.mxu0 0
  %3966 = vmatpush2.bf16.msra.mxu0 0
  %3967 = vmatprep.subr.bf16.mxu0 0
  %3968 = vmatpush2.bf16.msra.mxu0 %v3937
  %3969 = vmatprep.subr.bf16.mxu0 0
  %3970 = vmatpush2.bf16.msra.mxu0 %v3925
  %3971 = vmatprep.mubr.bf16.mxu0 %v111
  %3972 = vmatmul.mubr.bf16.gmra.mxu0 %v49
  %v3973 = vpop.f32.mrf.mxu0
  %v3974 = vadd.f32 0.0, %v3973
  %v3975 = vpop.f32.mrf.mxu0
  %v3976 = vpop.f32.mrf.mxu0
  %v3977 = vadd.f32 0.0, %v3976
  %v3978 = vpop.f32.mrf.mxu0
  %3979 = vdwg.mxu0
  %v3980 = vmul.f32 %v3974, %v161
  %v3981 = vmul.f32 %v3977, %v166
  %v3982 = vadd.f32 %v3980, %v173
  %v3983 = vadd.f32 %v3981, %v178
  %v3984 = vmax.f32 %v3982, 0.0
  %v3985 = vmax.f32 %v3983, 0.0
  %v3986 = vmax.f32 %v3857, %v3984
  %v3987 = vmax.f32 %v3858, %v3985
  %s3988 = scalar_lea.vmem %s0, 2280
  %v3989 = vld [vmem:[%s3988] sm:$0xf]
  %v3990 = vld [vmem:[%s3988 + $0x4] sm:$0xf]
  %v3991 = vld [vmem:[%s3988 + $0x8] sm:$0xf]
  %v3992 = vld [vmem:[%s3988 + $0xc] sm:$0xf]
  %v3993 = vld [vmem:[%s3988 + $0x10] sm:$0xf]
  %v3994 = vld [vmem:[%s3988 + $0x14] sm:$0xf]
  %v3995 = vld [vmem:[%s3988 + $0x18] sm:$0xf]
  %v3996 = vld [vmem:[%s3988 + $0x1c] sm:$0xf]
  %v3997 = vld [vmem:[%s3988 + $0x20] sm:$0xf]
  %v3998 = vld [vmem:[%s3988 + $0x24] sm:$0xf]
  %v3999 = vld [vmem:[%s3988 + $0x28] sm:$0xf]
  %v4000 = vld [vmem:[%s3988 + $0x2c] sm:$0xf]
  %v4001 = vld [vmem:[%s3988 + $0x30] sm:$0xf]
  %v4002 = vld [vmem:[%s3988 + $0x34] sm:$0xf]
  %v4003 = vld [vmem:[%s3988 + $0x38] sm:$0xf]
  %v4004 = vld [vmem:[%s3988 + $0x3c] sm:$0xf]
  %v4005 = vld [vmem:[%s3988 + $0x40] sm:$0xf]
  %v4006 = vld [vmem:[%s3988 + $0x44] sm:$0xf]
  %v4007 = vld [vmem:[%s3988 + $0x48] sm:$0x7]
  %v4027 = vunpack.c.l.b16 %v3989
  %v4028 = vunpack.c.l.b16 %v3990
  %v4029 = vunpack.c.l.b16 %v3991
  %v4030 = vunpack.c.l.b16 %v3992
  %v4031 = vunpack.c.l.b16 %v3993
  %v4032 = vunpack.c.l.b16 %v3994
  %v4033 = vunpack.c.l.b16 %v3995
  %v4034 = vunpack.c.l.b16 %v3996
  %v4035 = vunpack.c.l.b16 %v3997
  %v4036 = vunpack.c.l.b16 %v3998
  %v4037 = vunpack.c.l.b16 %v3999
  %v4038 = vunpack.c.l.b16 %v4000
  %v4039 = vunpack.c.l.b16 %v4001
  %v4040 = vunpack.c.l.b16 %v4002
  %v4041 = vunpack.c.l.b16 %v4003
  %v4042 = vunpack.c.l.b16 %v4004
  %v4043 = vunpack.c.l.b16 %v4005
  %v4044 = vunpack.c.l.b16 %v4006
  %v4045 = vunpack.c.l.b16 %v4007
  %v4046 = vpack.c.b16 %v4028, %v4027
  %v4047 = vpack.c.b16 %v4030, %v4029
  %v4048 = vpack.c.b16 %v4032, %v4031
  %v4049 = vpack.c.b16 %v4034, %v4033
  %v4050 = vpack.c.b16 %v4036, %v4035
  %v4051 = vpack.c.b16 %v4038, %v4037
  %v4052 = vpack.c.b16 %v4040, %v4039
  %v4053 = vpack.c.b16 %v4042, %v4041
  %v4054 = vpack.c.b16 %v4044, %v4043
  %v4055 = vpack.c.b16 %v4045, %v4045
  %v4066 = vsel %vm113, %v4055, 0
  %4068 = vmatprep.subr.bf16.mxu0 0
  %4069 = vmatpush1.bf16.msra.mxu0 %v4053
  %4070 = vmatprep.subr.bf16.mxu0 0
  %4071 = vmatpush1.bf16.msra.mxu0 %v4052
  %4072 = vmatprep.subr.bf16.mxu0 0
  %4073 = vmatpush1.bf16.msra.mxu0 %v4051
  %4074 = vmatprep.subr.bf16.mxu0 0
  %4075 = vmatpush1.bf16.msra.mxu0 %v4050
  %4076 = vmatprep.subr.bf16.mxu0 0
  %4077 = vmatpush1.bf16.msra.mxu0 %v4049
  %4078 = vmatprep.subr.bf16.mxu0 0
  %4079 = vmatpush1.bf16.msra.mxu0 %v4048
  %4080 = vmatprep.subr.bf16.mxu0 0
  %4081 = vmatpush1.bf16.msra.mxu0 %v4047
  %4082 = vmatprep.subr.bf16.mxu0 0
  %4083 = vmatpush1.bf16.msra.mxu0 %v4046
  %4084 = vmatprep.subr.bf16.mxu0 0
  %4085 = vmatpush2.bf16.msra.mxu0 0
  %4086 = vmatprep.subr.bf16.mxu0 0
  %4087 = vmatpush2.bf16.msra.mxu0 0
  %4088 = vmatprep.subr.bf16.mxu0 0
  %4089 = vmatpush2.bf16.msra.mxu0 0
  %4090 = vmatprep.subr.bf16.mxu0 0
  %4091 = vmatpush2.bf16.msra.mxu0 0
  %4092 = vmatprep.subr.bf16.mxu0 0
  %4093 = vmatpush2.bf16.msra.mxu0 0
  %4094 = vmatprep.subr.bf16.mxu0 0
  %4095 = vmatpush2.bf16.msra.mxu0 0
  %4096 = vmatprep.subr.bf16.mxu0 0
  %4097 = vmatpush2.bf16.msra.mxu0 %v4066
  %4098 = vmatprep.subr.bf16.mxu0 0
  %4099 = vmatpush2.bf16.msra.mxu0 %v4054
  %4100 = vmatprep.mubr.bf16.mxu0 %v111
  %4101 = vmatmul.mubr.bf16.gmra.mxu0 %v49
  %v4102 = vpop.f32.mrf.mxu0
  %v4103 = vadd.f32 0.0, %v4102
  %v4104 = vpop.f32.mrf.mxu0
  %v4105 = vpop.f32.mrf.mxu0
  %v4106 = vadd.f32 0.0, %v4105
  %v4107 = vpop.f32.mrf.mxu0
  %4108 = vdwg.mxu0
  %v4109 = vmul.f32 %v4103, %v161
  %v4110 = vmul.f32 %v4106, %v166
  %v4111 = vadd.f32 %v4109, %v173
  %v4112 = vadd.f32 %v4110, %v178
  %v4113 = vmax.f32 %v4111, 0.0
  %v4114 = vmax.f32 %v4112, 0.0
  %v4115 = vmax.f32 %v3986, %v4113
  %v4116 = vmax.f32 %v3987, %v4114
  %s4117 = scalar_lea.vmem %s0, 2356
  %v4118 = vld [vmem:[%s4117] sm:$0xf]
  %v4119 = vld [vmem:[%s4117 + $0x4] sm:$0xf]
  %v4120 = vld [vmem:[%s4117 + $0x8] sm:$0xf]
  %v4121 = vld [vmem:[%s4117 + $0xc] sm:$0xf]
  %v4122 = vld [vmem:[%s4117 + $0x10] sm:$0xf]
  %v4123 = vld [vmem:[%s4117 + $0x14] sm:$0xf]
  %v4124 = vld [vmem:[%s4117 + $0x18] sm:$0xf]
  %v4125 = vld [vmem:[%s4117 + $0x1c] sm:$0xf]
  %v4126 = vld [vmem:[%s4117 + $0x20] sm:$0xf]
  %v4127 = vld [vmem:[%s4117 + $0x24] sm:$0xf]
  %v4128 = vld [vmem:[%s4117 + $0x28] sm:$0xf]
  %v4129 = vld [vmem:[%s4117 + $0x2c] sm:$0xf]
  %v4130 = vld [vmem:[%s4117 + $0x30] sm:$0xf]
  %v4131 = vld [vmem:[%s4117 + $0x34] sm:$0xf]
  %v4132 = vld [vmem:[%s4117 + $0x38] sm:$0xf]
  %v4133 = vld [vmem:[%s4117 + $0x3c] sm:$0xf]
  %v4134 = vld [vmem:[%s4117 + $0x40] sm:$0xf]
  %v4135 = vld [vmem:[%s4117 + $0x44] sm:$0xf]
  %v4136 = vld [vmem:[%s4117 + $0x48] sm:$0x7]
  %v4156 = vunpack.c.l.b16 %v4118
  %v4157 = vunpack.c.l.b16 %v4119
  %v4158 = vunpack.c.l.b16 %v4120
  %v4159 = vunpack.c.l.b16 %v4121
  %v4160 = vunpack.c.l.b16 %v4122
  %v4161 = vunpack.c.l.b16 %v4123
  %v4162 = vunpack.c.l.b16 %v4124
  %v4163 = vunpack.c.l.b16 %v4125
  %v4164 = vunpack.c.l.b16 %v4126
  %v4165 = vunpack.c.l.b16 %v4127
  %v4166 = vunpack.c.l.b16 %v4128
  %v4167 = vunpack.c.l.b16 %v4129
  %v4168 = vunpack.c.l.b16 %v4130
  %v4169 = vunpack.c.l.b16 %v4131
  %v4170 = vunpack.c.l.b16 %v4132
  %v4171 = vunpack.c.l.b16 %v4133
  %v4172 = vunpack.c.l.b16 %v4134
  %v4173 = vunpack.c.l.b16 %v4135
  %v4174 = vunpack.c.l.b16 %v4136
  %v4175 = vpack.c.b16 %v4157, %v4156
  %v4176 = vpack.c.b16 %v4159, %v4158
  %v4177 = vpack.c.b16 %v4161, %v4160
  %v4178 = vpack.c.b16 %v4163, %v4162
  %v4179 = vpack.c.b16 %v4165, %v4164
  %v4180 = vpack.c.b16 %v4167, %v4166
  %v4181 = vpack.c.b16 %v4169, %v4168
  %v4182 = vpack.c.b16 %v4171, %v4170
  %v4183 = vpack.c.b16 %v4173, %v4172
  %v4184 = vpack.c.b16 %v4174, %v4174
  %v4195 = vsel %vm113, %v4184, 0
  %4197 = vmatprep.subr.bf16.mxu0 0
  %4198 = vmatpush1.bf16.msra.mxu0 %v4182
  %4199 = vmatprep.subr.bf16.mxu0 0
  %4200 = vmatpush1.bf16.msra.mxu0 %v4181
  %4201 = vmatprep.subr.bf16.mxu0 0
  %4202 = vmatpush1.bf16.msra.mxu0 %v4180
  %4203 = vmatprep.subr.bf16.mxu0 0
  %4204 = vmatpush1.bf16.msra.mxu0 %v4179
  %4205 = vmatprep.subr.bf16.mxu0 0
  %4206 = vmatpush1.bf16.msra.mxu0 %v4178
  %4207 = vmatprep.subr.bf16.mxu0 0
  %4208 = vmatpush1.bf16.msra.mxu0 %v4177
  %4209 = vmatprep.subr.bf16.mxu0 0
  %4210 = vmatpush1.bf16.msra.mxu0 %v4176
  %4211 = vmatprep.subr.bf16.mxu0 0
  %4212 = vmatpush1.bf16.msra.mxu0 %v4175
  %4213 = vmatprep.subr.bf16.mxu0 0
  %4214 = vmatpush2.bf16.msra.mxu0 0
  %4215 = vmatprep.subr.bf16.mxu0 0
  %4216 = vmatpush2.bf16.msra.mxu0 0
  %4217 = vmatprep.subr.bf16.mxu0 0
  %4218 = vmatpush2.bf16.msra.mxu0 0
  %4219 = vmatprep.subr.bf16.mxu0 0
  %4220 = vmatpush2.bf16.msra.mxu0 0
  %4221 = vmatprep.subr.bf16.mxu0 0
  %4222 = vmatpush2.bf16.msra.mxu0 0
  %4223 = vmatprep.subr.bf16.mxu0 0
  %4224 = vmatpush2.bf16.msra.mxu0 0
  %4225 = vmatprep.subr.bf16.mxu0 0
  %4226 = vmatpush2.bf16.msra.mxu0 %v4195
  %4227 = vmatprep.subr.bf16.mxu0 0
  %4228 = vmatpush2.bf16.msra.mxu0 %v4183
  %4229 = vmatprep.mubr.bf16.mxu0 %v111
  %4230 = vmatmul.mubr.bf16.gmra.mxu0 %v49
  %v4231 = vpop.f32.mrf.mxu0
  %v4232 = vadd.f32 0.0, %v4231
  %v4233 = vpop.f32.mrf.mxu0
  %v4234 = vpop.f32.mrf.mxu0
  %v4235 = vadd.f32 0.0, %v4234
  %v4236 = vpop.f32.mrf.mxu0
  %4237 = vdwg.mxu0
  %v4238 = vmul.f32 %v4232, %v161
  %v4239 = vmul.f32 %v4235, %v166
  %v4240 = vadd.f32 %v4238, %v173
  %v4241 = vadd.f32 %v4239, %v178
  %v4242 = vmax.f32 %v4240, 0.0
  %v4243 = vmax.f32 %v4241, 0.0
  %v4244 = vmax.f32 %v4115, %v4242
  %v4245 = vmax.f32 %v4116, %v4243
  %v4246 = vpack.c.bf16 %v4245, %v4244
  %v4248 = vunpack.c.l.b16 %v4246
  %v4249 = vunpack.c.h.b16 %v4246
  %v4250 = vpack.c.b16 %v4248, %v4248
  %v4251 = vpack.c.b16 %v4249, %v4249
  %s4254 = scalar_lea.vmem %s4, 56
  %4255 = vst.msk [vmem:[%s4254] sm:$0xf] %vm579, %v4250
  %4256 = vst.msk [vmem:[%s4254 + $0x4] sm:$0xf] %vm579, %v4251
  // Predicated region
  $region18: #{lenet5_forward.4} parent=0 // pred_check
    _
  $region19: #{lenet5_forward.4} parent=0 // pred_check_branch
    %4258 = sbr.rel (0) target = $region21
  $region20: #{lenet5_forward.4} parent=0 // pred_region
    _
  $region21: #{lenet5_forward.4} parent=0 // pred_fallthru
    _
  // Predicated region
  $region22: #{lenet5_forward.4} parent=0 // pred_check
    _
  $region23: #{lenet5_forward.4} parent=0 // pred_check_branch
    %4260 = sbr.rel (0) target = $region25
  $region24: #{lenet5_forward.4} parent=0 // pred_region
    _
  $region25: #{lenet5_forward.4} parent=0 // pred_fallthru
    _

// kernel: lenet5_forward.5
$region0: #{lenet5_forward.5}
  #allocation0 [shape = 'u32[]', space=smem, size = 0x4, offset = 0x4, fixed_abs, tag = 'smem constant byte address 0x4 - core index']
  #allocation1 [shape = 'u32[144,128]{1,0:T(1,128)}', space=vmem, size = 0x12000, scoped, tag = 'internal scratch']
  %s0 = inlined_call_operand.vmem [shape: bf16[8,400], index: 0, kind: input, shape index: {}]
  %s1 = inlined_call_operand.vmem [shape: bf16[400,128], index: 1, kind: input, shape index: {}]
  %s2 = inlined_call_operand.vmem [shape: f32[1,128], index: 2, kind: input, shape index: {}]
  %s3 = inlined_call_operand.vmem [shape: f32[1,128], index: 3, kind: input, shape index: {}]
  %s4 = inlined_call_operand.vmem [shape: bf16[128,128], index: 4, kind: input, shape index: {}]
  %s5 = inlined_call_operand.vmem [shape: f32[1,128], index: 5, kind: input, shape index: {}]
  %s6 = inlined_call_operand.vmem [shape: f32[1,128], index: 6, kind: input, shape index: {}]
  %s7 = inlined_call_operand.vmem [shape: bf16[128,128], index: 7, kind: input, shape index: {}]
  %s8 = inlined_call_operand.vmem [shape: f32[1,128], index: 8, kind: input, shape index: {}]
  %s9 = inlined_call_operand.vmem [shape: f32[8,128], index: 9, kind: output, shape index: {}]
  %s10 = sld [smem:[#allocation0]]
  $region46: #{lenet5_forward.5} parent=0
    _
  %s12 = ssub.s32 1, %s10
  %s13 = scalar_select 0, %s12, %s10
  // Predicated region
  $region2: #{lenet5_forward.5} parent=0 // pred_check
    _
  $region3: #{lenet5_forward.5} parent=0 // pred_check_branch
    %15 = sbr.rel (0) target = $region5
  $region4: #{lenet5_forward.5} parent=0 // pred_region
    _
  $region5: #{lenet5_forward.5} parent=0 // pred_fallthru
    _
  // Predicated region
  $region6: #{lenet5_forward.5} parent=0 // pred_check
    _
  $region7: #{lenet5_forward.5} parent=0 // pred_check_branch
    %17 = sbr.rel (0) target = $region9
  $region8: #{lenet5_forward.5} parent=0 // pred_region
    _
  $region9: #{lenet5_forward.5} parent=0 // pred_fallthru
    _
  // Predicated region
  $region10: #{lenet5_forward.5} parent=0 // pred_check
    _
  $region11: #{lenet5_forward.5} parent=0 // pred_check_branch
    %19 = sbr.rel (0) target = $region13
  $region12: #{lenet5_forward.5} parent=0 // pred_region
    _
  $region13: #{lenet5_forward.5} parent=0 // pred_fallthru
    _
  // Predicated region
  $region14: #{lenet5_forward.5} parent=0 // pred_check
    _
  $region15: #{lenet5_forward.5} parent=0 // pred_check_branch
    %21 = sbr.rel (0) target = $region17
  $region16: #{lenet5_forward.5} parent=0 // pred_region
    _
  $region17: #{lenet5_forward.5} parent=0 // pred_fallthru
    _
  // Predicated region
  $region18: #{lenet5_forward.5} parent=0 // pred_check
    _
  $region19: #{lenet5_forward.5} parent=0 // pred_check_branch
    %23 = sbr.rel (0) target = $region21
  $region20: #{lenet5_forward.5} parent=0 // pred_region
    _
  $region21: #{lenet5_forward.5} parent=0 // pred_fallthru
    _
  // Predicated region
  $region22: #{lenet5_forward.5} parent=0 // pred_check
    _
  $region23: #{lenet5_forward.5} parent=0 // pred_check_branch
    %25 = sbr.rel (0) target = $region25
  $region24: #{lenet5_forward.5} parent=0 // pred_region
    _
  $region25: #{lenet5_forward.5} parent=0 // pred_fallthru
    _
  // Predicated region
  $region26: #{lenet5_forward.5} parent=0 // pred_check
    _
  $region27: #{lenet5_forward.5} parent=0 // pred_check_branch
    %27 = sbr.rel (0) target = $region29
  $region28: #{lenet5_forward.5} parent=0 // pred_region
    _
  $region29: #{lenet5_forward.5} parent=0 // pred_fallthru
    _
  // Predicated region
  $region30: #{lenet5_forward.5} parent=0 // pred_check
    _
  $region31: #{lenet5_forward.5} parent=0 // pred_check_branch
    %29 = sbr.rel (0) target = $region33
  $region32: #{lenet5_forward.5} parent=0 // pred_region
    _
  $region33: #{lenet5_forward.5} parent=0 // pred_fallthru
    _
  // Predicated region
  $region34: #{lenet5_forward.5} parent=0 // pred_check
    _
  $region35: #{lenet5_forward.5} parent=0 // pred_check_branch
    %31 = sbr.rel (0) target = $region37
  $region36: #{lenet5_forward.5} parent=0 // pred_region
    _
  $region37: #{lenet5_forward.5} parent=0 // pred_fallthru
    _
  %v33 = vld [vmem:[%s0] sm:$0xff]
  %v34 = vld [vmem:[%s0 + $0x8] sm:$0xff]
  %v35 = vld [vmem:[%s1] sm:$0xf]
  %v36 = vld [vmem:[%s1 + $0x4] sm:$0xf]
  %v37 = vld [vmem:[%s1 + $0x8] sm:$0xf]
  %v38 = vld [vmem:[%s1 + $0xc] sm:$0xf]
  %v39 = vld [vmem:[%s1 + $0x10] sm:$0xf]
  %v40 = vld [vmem:[%s1 + $0x14] sm:$0xf]
  %v41 = vld [vmem:[%s1 + $0x18] sm:$0xf]
  %v42 = vld [vmem:[%s1 + $0x1c] sm:$0xf]
  %v43 = vld [vmem:[%s1 + $0x20] sm:$0xf]
  %v44 = vld [vmem:[%s1 + $0x24] sm:$0xf]
  %v45 = vld [vmem:[%s1 + $0x28] sm:$0xf]
  %v46 = vld [vmem:[%s1 + $0x2c] sm:$0xf]
  %v47 = vld [vmem:[%s1 + $0x30] sm:$0xf]
  %v48 = vld [vmem:[%s1 + $0x34] sm:$0xf]
  %v49 = vld [vmem:[%s1 + $0x38] sm:$0xf]
  %v50 = vld [vmem:[%s1 + $0x3c] sm:$0xf]
  %v51 = vld [vmem:[%s1 + $0x40] sm:$0xf]
  %v52 = vld [vmem:[%s1 + $0x44] sm:$0xf]
  %v53 = vld [vmem:[%s1 + $0x48] sm:$0xf]
  %v54 = vld [vmem:[%s1 + $0x4c] sm:$0xf]
  %v55 = vld [vmem:[%s1 + $0x50] sm:$0xf]
  %v56 = vld [vmem:[%s1 + $0x54] sm:$0xf]
  %v57 = vld [vmem:[%s1 + $0x58] sm:$0xf]
  %v58 = vld [vmem:[%s1 + $0x5c] sm:$0xf]
  %v59 = vld [vmem:[%s1 + $0x60] sm:$0xf]
  %v60 = vld [vmem:[%s1 + $0x64] sm:$0xf]
  %v61 = vld [vmem:[%s1 + $0x68] sm:$0xf]
  %v62 = vld [vmem:[%s1 + $0x6c] sm:$0xf]
  %v63 = vld [vmem:[%s1 + $0x70] sm:$0xf]
  %v64 = vld [vmem:[%s1 + $0x74] sm:$0xf]
  %v65 = vld [vmem:[%s1 + $0x78] sm:$0xf]
  %v66 = vld [vmem:[%s1 + $0x7c] sm:$0xf]
  %v67 = vld [vmem:[%s1 + $0x80] sm:$0xf]
  %v68 = vld [vmem:[%s1 + $0x84] sm:$0xf]
  %v69 = vld [vmem:[%s1 + $0x88] sm:$0xf]
  %v70 = vld [vmem:[%s1 + $0x8c] sm:$0xf]
  %v71 = vld [vmem:[%s1 + $0x90] sm:$0xf]
  %v72 = vld [vmem:[%s1 + $0x94] sm:$0xf]
  %v73 = vld [vmem:[%s1 + $0x98] sm:$0xf]
  %v74 = vld [vmem:[%s1 + $0x9c] sm:$0xf]
  %v75 = vld [vmem:[%s1 + $0xa0] sm:$0xf]
  %v76 = vld [vmem:[%s1 + $0xa4] sm:$0xf]
  %v77 = vld [vmem:[%s1 + $0xa8] sm:$0xf]
  %v78 = vld [vmem:[%s1 + $0xac] sm:$0xf]
  %v79 = vld [vmem:[%s1 + $0xb0] sm:$0xf]
  %v80 = vld [vmem:[%s1 + $0xb4] sm:$0xf]
  %v81 = vld [vmem:[%s1 + $0xb8] sm:$0xf]
  %v82 = vld [vmem:[%s1 + $0xbc] sm:$0xf]
  %v83 = vld [vmem:[%s1 + $0xc0] sm:$0xf]
  %v84 = vld [vmem:[%s1 + $0xc4] sm:$0xf]
  %v87 = vunpack.c.l.b16 %v33
  %v88 = vunpack.c.h.b16 %v33
  %v89 = vunpack.c.l.b16 %v34
  %v90 = vunpack.c.h.b16 %v34
  %v91 = vpack.c.b16 %v87, %v87
  %v92 = vpack.c.b16 %v88, %v88
  %v93 = vpack.c.b16 %v89, %v89
  %v94 = vpack.c.b16 %v90, %v90
  %v148 = vunpack.c.l.b16 %v35
  %v149 = vunpack.c.l.b16 %v36
  %v150 = vunpack.c.l.b16 %v37
  %v151 = vunpack.c.l.b16 %v38
  %v152 = vunpack.c.l.b16 %v39
  %v153 = vunpack.c.l.b16 %v40
  %v154 = vunpack.c.l.b16 %v41
  %v155 = vunpack.c.l.b16 %v42
  %v156 = vunpack.c.l.b16 %v43
  %v157 = vunpack.c.l.b16 %v44
  %v158 = vunpack.c.l.b16 %v45
  %v159 = vunpack.c.l.b16 %v46
  %v160 = vunpack.c.l.b16 %v47
  %v161 = vunpack.c.l.b16 %v48
  %v162 = vunpack.c.l.b16 %v49
  %v163 = vunpack.c.l.b16 %v50
  %v164 = vunpack.c.l.b16 %v51
  %v165 = vunpack.c.l.b16 %v52
  %v166 = vunpack.c.l.b16 %v53
  %v167 = vunpack.c.l.b16 %v54
  %v168 = vunpack.c.l.b16 %v55
  %v169 = vunpack.c.l.b16 %v56
  %v170 = vunpack.c.l.b16 %v57
  %v171 = vunpack.c.l.b16 %v58
  %v172 = vunpack.c.l.b16 %v59
  %v173 = vunpack.c.l.b16 %v60
  %v174 = vunpack.c.l.b16 %v61
  %v175 = vunpack.c.l.b16 %v62
  %v176 = vunpack.c.l.b16 %v63
  %v177 = vunpack.c.l.b16 %v64
  %v178 = vunpack.c.l.b16 %v65
  %v179 = vunpack.c.l.b16 %v66
  %v180 = vunpack.c.l.b16 %v67
  %v181 = vunpack.c.l.b16 %v68
  %v182 = vunpack.c.l.b16 %v69
  %v183 = vunpack.c.l.b16 %v70
  %v184 = vunpack.c.l.b16 %v71
  %v185 = vunpack.c.l.b16 %v72
  %v186 = vunpack.c.l.b16 %v73
  %v187 = vunpack.c.l.b16 %v74
  %v188 = vunpack.c.l.b16 %v75
  %v189 = vunpack.c.l.b16 %v76
  %v190 = vunpack.c.l.b16 %v77
  %v191 = vunpack.c.l.b16 %v78
  %v192 = vunpack.c.l.b16 %v79
  %v193 = vunpack.c.l.b16 %v80
  %v194 = vunpack.c.l.b16 %v81
  %v195 = vunpack.c.l.b16 %v82
  %v196 = vunpack.c.l.b16 %v83
  %v197 = vunpack.c.l.b16 %v84
  %v198 = vpack.c.b16 %v149, %v148
  %v199 = vpack.c.b16 %v151, %v150
  %v200 = vpack.c.b16 %v153, %v152
  %v201 = vpack.c.b16 %v155, %v154
  %v202 = vpack.c.b16 %v157, %v156
  %v203 = vpack.c.b16 %v159, %v158
  %v204 = vpack.c.b16 %v161, %v160
  %v205 = vpack.c.b16 %v163, %v162
  %v206 = vpack.c.b16 %v165, %v164
  %v207 = vpack.c.b16 %v167, %v166
  %v208 = vpack.c.b16 %v169, %v168
  %v209 = vpack.c.b16 %v171, %v170
  %v210 = vpack.c.b16 %v173, %v172
  %v211 = vpack.c.b16 %v175, %v174
  %v212 = vpack.c.b16 %v177, %v176
  %v213 = vpack.c.b16 %v179, %v178
  %v214 = vpack.c.b16 %v181, %v180
  %v215 = vpack.c.b16 %v183, %v182
  %v216 = vpack.c.b16 %v185, %v184
  %v217 = vpack.c.b16 %v187, %v186
  %v218 = vpack.c.b16 %v189, %v188
  %v219 = vpack.c.b16 %v191, %v190
  %v220 = vpack.c.b16 %v193, %v192
  %v221 = vpack.c.b16 %v195, %v194
  %v222 = vpack.c.b16 %v197, %v196
  %vm248 = vcmask 130048
  %v250 = vsel %vm248, %v94, 0
  %252 = vmatprep.subr.bf16.mxu0 0
  %253 = vmatpush1.bf16.msra.mxu0 %v205
  %254 = vmatprep.subr.bf16.mxu0 0
  %255 = vmatpush1.bf16.msra.mxu0 %v204
  %256 = vmatprep.subr.bf16.mxu0 0
  %257 = vmatpush1.bf16.msra.mxu0 %v203
  %258 = vmatprep.subr.bf16.mxu0 0
  %259 = vmatpush1.bf16.msra.mxu0 %v202
  %260 = vmatprep.subr.bf16.mxu0 0
  %261 = vmatpush1.bf16.msra.mxu0 %v201
  %262 = vmatprep.subr.bf16.mxu0 0
  %263 = vmatpush1.bf16.msra.mxu0 %v200
  %264 = vmatprep.subr.bf16.mxu0 0
  %265 = vmatpush1.bf16.msra.mxu0 %v199
  %266 = vmatprep.subr.bf16.mxu0 0
  %267 = vmatpush1.bf16.msra.mxu0 %v198
  %268 = vmatprep.subr.bf16.mxu0 0
  %269 = vmatpush2.bf16.msra.mxu0 %v213
  %270 = vmatprep.subr.bf16.mxu0 0
  %271 = vmatpush2.bf16.msra.mxu0 %v212
  %272 = vmatprep.subr.bf16.mxu0 0
  %273 = vmatpush2.bf16.msra.mxu0 %v211
  %274 = vmatprep.subr.bf16.mxu0 0
  %275 = vmatpush2.bf16.msra.mxu0 %v210
  %276 = vmatprep.subr.bf16.mxu0 0
  %277 = vmatpush2.bf16.msra.mxu0 %v209
  %278 = vmatprep.subr.bf16.mxu0 0
  %279 = vmatpush2.bf16.msra.mxu0 %v208
  %280 = vmatprep.subr.bf16.mxu0 0
  %281 = vmatpush2.bf16.msra.mxu0 %v207
  %282 = vmatprep.subr.bf16.mxu0 0
  %283 = vmatpush2.bf16.msra.mxu0 %v206
  %284 = vmatprep.mubr.bf16.mxu0 %v92
  %285 = vmatmul.mubr.bf16.gmra.mxu0 %v91
  %v286 = vpop.f32.mrf.mxu0
  %v287 = vadd.f32 0.0, %v286
  %v288 = vpop.f32.mrf.mxu0
  %v289 = vpop.f32.mrf.mxu0
  %v290 = vpop.f32.mrf.mxu0
  %291 = vdwg.mxu0
  %292 = vmatprep.subr.bf16.mxu0 0
  %293 = vmatpush1.bf16.msra.mxu0 %v221
  %294 = vmatprep.subr.bf16.mxu0 0
  %295 = vmatpush1.bf16.msra.mxu0 %v220
  %296 = vmatprep.subr.bf16.mxu0 0
  %297 = vmatpush1.bf16.msra.mxu0 %v219
  %298 = vmatprep.subr.bf16.mxu0 0
  %299 = vmatpush1.bf16.msra.mxu0 %v218
  %300 = vmatprep.subr.bf16.mxu0 0
  %301 = vmatpush1.bf16.msra.mxu0 %v217
  %302 = vmatprep.subr.bf16.mxu0 0
  %303 = vmatpush1.bf16.msra.mxu0 %v216
  %304 = vmatprep.subr.bf16.mxu0 0
  %305 = vmatpush1.bf16.msra.mxu0 %v215
  %306 = vmatprep.subr.bf16.mxu0 0
  %307 = vmatpush1.bf16.msra.mxu0 %v214
  %308 = vmatprep.subr.bf16.mxu0 0
  %309 = vmatpush2.bf16.msra.mxu0 0
  %310 = vmatprep.subr.bf16.mxu0 0
  %311 = vmatpush2.bf16.msra.mxu0 0
  %312 = vmatprep.subr.bf16.mxu0 0
  %313 = vmatpush2.bf16.msra.mxu0 0
  %314 = vmatprep.subr.bf16.mxu0 0
  %315 = vmatpush2.bf16.msra.mxu0 0
  %316 = vmatprep.subr.bf16.mxu0 0
  %317 = vmatpush2.bf16.msra.mxu0 0
  %318 = vmatprep.subr.bf16.mxu0 0
  %319 = vmatpush2.bf16.msra.mxu0 0
  %320 = vmatprep.subr.bf16.mxu0 0
  %321 = vmatpush2.bf16.msra.mxu0 0
  %322 = vmatprep.subr.bf16.mxu0 0
  %323 = vmatpush2.bf16.msra.mxu0 %v222
  %324 = vmatprep.mubr.bf16.mxu0 %v250
  %325 = vmatmul.mubr.bf16.gmra.mxu0 %v93
  %v326 = vpop.f32.mrf.mxu0
  %v327 = vadd.f32 %v287, %v326
  %v328 = vpop.f32.mrf.mxu0
  %v329 = vpop.f32.mrf.mxu0
  %v330 = vpop.f32.mrf.mxu0
  %331 = vdwg.mxu0
  %v332 = vld [vmem:[%s2] sm:$0x1]
  %v334 = vlaneseq
  %v335 = vshrl.u32 %v334, 7
  %v336 = vsub.s32 0, %v335
  %v337 = vrot.slane %v332, %v336
  %v339 = vmul.f32 %v327, %v337
  %v340 = vld [vmem:[%s3] sm:$0x1]
  %v342 = vlaneseq
  %v343 = vshrl.u32 %v342, 7
  %v344 = vsub.s32 0, %v343
  %v345 = vrot.slane %v340, %v344
  %v347 = vadd.f32 %v339, %v345
  %v348 = vmax.f32 %v347, 0.0
  %v349 = vpack.c.bf16 %v348, %v348
  %v350 = vld [vmem:[%s4] sm:$0xf]
  %v351 = vld [vmem:[%s4 + $0x4] sm:$0xf]
  %v352 = vld [vmem:[%s4 + $0x8] sm:$0xf]
  %v353 = vld [vmem:[%s4 + $0xc] sm:$0xf]
  %v354 = vld [vmem:[%s4 + $0x10] sm:$0xf]
  %v355 = vld [vmem:[%s4 + $0x14] sm:$0xf]
  %v356 = vld [vmem:[%s4 + $0x18] sm:$0xf]
  %v357 = vld [vmem:[%s4 + $0x1c] sm:$0xf]
  %v358 = vld [vmem:[%s4 + $0x20] sm:$0xf]
  %v359 = vld [vmem:[%s4 + $0x24] sm:$0xf]
  %v360 = vld [vmem:[%s4 + $0x28] sm:$0xf]
  %v361 = vld [vmem:[%s4 + $0x2c] sm:$0xf]
  %v362 = vld [vmem:[%s4 + $0x30] sm:$0xf]
  %v363 = vld [vmem:[%s4 + $0x34] sm:$0xf]
  %v364 = vld [vmem:[%s4 + $0x38] sm:$0xf]
  %v365 = vld [vmem:[%s4 + $0x3c] sm:$0xf]
  %v382 = vunpack.c.l.b16 %v350
  %v383 = vunpack.c.l.b16 %v351
  %v384 = vunpack.c.l.b16 %v352
  %v385 = vunpack.c.l.b16 %v353
  %v386 = vunpack.c.l.b16 %v354
  %v387 = vunpack.c.l.b16 %v355
  %v388 = vunpack.c.l.b16 %v356
  %v389 = vunpack.c.l.b16 %v357
  %v390 = vunpack.c.l.b16 %v358
  %v391 = vunpack.c.l.b16 %v359
  %v392 = vunpack.c.l.b16 %v360
  %v393 = vunpack.c.l.b16 %v361
  %v394 = vunpack.c.l.b16 %v362
  %v395 = vunpack.c.l.b16 %v363
  %v396 = vunpack.c.l.b16 %v364
  %v397 = vunpack.c.l.b16 %v365
  %v398 = vpack.c.b16 %v383, %v382
  %v399 = vpack.c.b16 %v385, %v384
  %v400 = vpack.c.b16 %v387, %v386
  %v401 = vpack.c.b16 %v389, %v388
  %v402 = vpack.c.b16 %v391, %v390
  %v403 = vpack.c.b16 %v393, %v392
  %v404 = vpack.c.b16 %v395, %v394
  %v405 = vpack.c.b16 %v397, %v396
  %414 = vmatprep.subr.bf16.mxu0 0
  %415 = vmatpush1.bf16.msra.mxu0 %v405
  %416 = vmatprep.subr.bf16.mxu0 0
  %417 = vmatpush1.bf16.msra.mxu0 %v404
  %418 = vmatprep.subr.bf16.mxu0 0
  %419 = vmatpush1.bf16.msra.mxu0 %v403
  %420 = vmatprep.subr.bf16.mxu0 0
  %421 = vmatpush1.bf16.msra.mxu0 %v402
  %422 = vmatprep.subr.bf16.mxu0 0
  %423 = vmatpush1.bf16.msra.mxu0 %v401
  %424 = vmatprep.subr.bf16.mxu0 0
  %425 = vmatpush1.bf16.msra.mxu0 %v400
  %426 = vmatprep.subr.bf16.mxu0 0
  %427 = vmatpush1.bf16.msra.mxu0 %v399
  %428 = vmatprep.subr.bf16.mxu0 0
  %429 = vmatpush1.bf16.msra.mxu0 %v398
  %430 = vmatprep.subr.bf16.mxu0 0
  %431 = vmatpush2.bf16.msra.mxu0 0
  %432 = vmatprep.subr.bf16.mxu0 0
  %433 = vmatpush2.bf16.msra.mxu0 0
  %434 = vmatprep.subr.bf16.mxu0 0
  %435 = vmatpush2.bf16.msra.mxu0 0
  %436 = vmatprep.subr.bf16.mxu0 0
  %437 = vmatpush2.bf16.msra.mxu0 0
  %438 = vmatprep.subr.bf16.mxu0 0
  %439 = vmatpush2.bf16.msra.mxu0 0
  %440 = vmatprep.subr.bf16.mxu0 0
  %441 = vmatpush2.bf16.msra.mxu0 0
  %442 = vmatprep.subr.bf16.mxu0 0
  %443 = vmatpush2.bf16.msra.mxu0 0
  %444 = vmatprep.subr.bf16.mxu0 0
  %445 = vmatpush2.bf16.msra.mxu0 0
  %446 = vmatprep.mubr.bf16.mxu0 0
  %447 = vmatmul.mubr.bf16.gmra.mxu0 %v349
  %v448 = vpop.f32.mrf.mxu0
  %v449 = vadd.f32 0.0, %v448
  %v450 = vpop.f32.mrf.mxu0
  %v451 = vpop.f32.mrf.mxu0
  %v452 = vpop.f32.mrf.mxu0
  %453 = vdwg.mxu0
  %v454 = vld [vmem:[%s5] sm:$0x1]
  %v456 = vlaneseq
  %v457 = vshrl.u32 %v456, 7
  %v458 = vsub.s32 0, %v457
  %v459 = vrot.slane %v454, %v458
  %v461 = vmul.f32 %v449, %v459
  %v462 = vld [vmem:[%s6] sm:$0x1]
  %v464 = vlaneseq
  %v465 = vshrl.u32 %v464, 7
  %v466 = vsub.s32 0, %v465
  %v467 = vrot.slane %v462, %v466
  %v469 = vadd.f32 %v461, %v467
  %v470 = vmax.f32 %v469, 0.0
  %v471 = vpack.c.bf16 %v470, %v470
  %v472 = vld [vmem:[%s7] sm:$0xf]
  %v473 = vld [vmem:[%s7 + $0x4] sm:$0xf]
  %v474 = vld [vmem:[%s7 + $0x8] sm:$0xf]
  %v475 = vld [vmem:[%s7 + $0xc] sm:$0xf]
  %v476 = vld [vmem:[%s7 + $0x10] sm:$0xf]
  %v477 = vld [vmem:[%s7 + $0x14] sm:$0xf]
  %v478 = vld [vmem:[%s7 + $0x18] sm:$0xf]
  %v479 = vld [vmem:[%s7 + $0x1c] sm:$0xf]
  %v480 = vld [vmem:[%s7 + $0x20] sm:$0xf]
  %v481 = vld [vmem:[%s7 + $0x24] sm:$0xf]
  %v482 = vld [vmem:[%s7 + $0x28] sm:$0xf]
  %v483 = vld [vmem:[%s7 + $0x2c] sm:$0xf]
  %v484 = vld [vmem:[%s7 + $0x30] sm:$0xf]
  %v485 = vld [vmem:[%s7 + $0x34] sm:$0xf]
  %v486 = vld [vmem:[%s7 + $0x38] sm:$0xf]
  %v487 = vld [vmem:[%s7 + $0x3c] sm:$0xf]
  %v488 = vld [vmem:[%s8] sm:$0x1]
  %v490 = vlaneseq
  %v491 = vshrl.u32 %v490, 7
  %v492 = vsub.s32 0, %v491
  %v493 = vrot.slane %v488, %v492
  %v511 = vunpack.c.l.b16 %v472
  %v512 = vunpack.c.l.b16 %v473
  %v513 = vunpack.c.l.b16 %v474
  %v514 = vunpack.c.l.b16 %v475
  %v515 = vunpack.c.l.b16 %v476
  %v516 = vunpack.c.l.b16 %v477
  %v517 = vunpack.c.l.b16 %v478
  %v518 = vunpack.c.l.b16 %v479
  %v519 = vunpack.c.l.b16 %v480
  %v520 = vunpack.c.l.b16 %v481
  %v521 = vunpack.c.l.b16 %v482
  %v522 = vunpack.c.l.b16 %v483
  %v523 = vunpack.c.l.b16 %v484
  %v524 = vunpack.c.l.b16 %v485
  %v525 = vunpack.c.l.b16 %v486
  %v526 = vunpack.c.l.b16 %v487
  %v527 = vpack.c.b16 %v512, %v511
  %v528 = vpack.c.b16 %v514, %v513
  %v529 = vpack.c.b16 %v516, %v515
  %v530 = vpack.c.b16 %v518, %v517
  %v531 = vpack.c.b16 %v520, %v519
  %v532 = vpack.c.b16 %v522, %v521
  %v533 = vpack.c.b16 %v524, %v523
  %v534 = vpack.c.b16 %v526, %v525
  %543 = vmatprep.subr.bf16.mxu0 0
  %544 = vmatpush1.bf16.msra.mxu0 %v534
  %545 = vmatprep.subr.bf16.mxu0 0
  %546 = vmatpush1.bf16.msra.mxu0 %v533
  %547 = vmatprep.subr.bf16.mxu0 0
  %548 = vmatpush1.bf16.msra.mxu0 %v532
  %549 = vmatprep.subr.bf16.mxu0 0
  %550 = vmatpush1.bf16.msra.mxu0 %v531
  %551 = vmatprep.subr.bf16.mxu0 0
  %552 = vmatpush1.bf16.msra.mxu0 %v530
  %553 = vmatprep.subr.bf16.mxu0 0
  %554 = vmatpush1.bf16.msra.mxu0 %v529
  %555 = vmatprep.subr.bf16.mxu0 0
  %556 = vmatpush1.bf16.msra.mxu0 %v528
  %557 = vmatprep.subr.bf16.mxu0 0
  %558 = vmatpush1.bf16.msra.mxu0 %v527
  %559 = vmatprep.subr.bf16.mxu0 0
  %560 = vmatpush2.bf16.msra.mxu0 0
  %561 = vmatprep.subr.bf16.mxu0 0
  %562 = vmatpush2.bf16.msra.mxu0 0
  %563 = vmatprep.subr.bf16.mxu0 0
  %564 = vmatpush2.bf16.msra.mxu0 0
  %565 = vmatprep.subr.bf16.mxu0 0
  %566 = vmatpush2.bf16.msra.mxu0 0
  %567 = vmatprep.subr.bf16.mxu0 0
  %568 = vmatpush2.bf16.msra.mxu0 0
  %569 = vmatprep.subr.bf16.mxu0 0
  %570 = vmatpush2.bf16.msra.mxu0 0
  %571 = vmatprep.subr.bf16.mxu0 0
  %572 = vmatpush2.bf16.msra.mxu0 0
  %573 = vmatprep.subr.bf16.mxu0 0
  %574 = vmatpush2.bf16.msra.mxu0 0
  %575 = vmatprep.mubr.bf16.mxu0 0
  %576 = vmatmul.mubr.bf16.gmra.mxu0 %v471
  %v577 = vpop.f32.mrf.mxu0
  %v578 = vadd.f32 %v493, %v577
  %v579 = vpop.f32.mrf.mxu0
  %v580 = vpop.f32.mrf.mxu0
  %v581 = vpop.f32.mrf.mxu0
  %582 = vdwg.mxu0
  %v583 = vlaneseq
  %v584 = vand.u32 %v583, 127
  %vm585 = vcmp.lt.s32.totalorder %v584, 10
  %v586 = vsel %vm585, %v578, -1e+30
  %587 = vmax.xlane.f32.xlu0 %v586
  %v588 = vpop.xlane.xlu0 %587
  %v589 = vsub.f32 %v586, %v588
  %v590 = vmul.f32 %v589, 1.442695
  %v591 = vpow.pop %v590
  %v592 = vsel %vm585, %v591, 0.0
  %593 = vadd.xlane.f32.xlu0 %v592
  %v594 = vpop.xlane.xlu0 %593
  %v595 = vlog2.pop %v594
  %v596 = vmul.f32 %v595, 0.6931472
  %v597 = vadd.f32 %v596, %v588
  %v598 = vsub.f32 %v578, %v597
  %599 = vst [vmem:[%s9] sm:$0xff] %v598
  // Predicated region
  $region38: #{lenet5_forward.5} parent=0 // pred_check
    _
  $region39: #{lenet5_forward.5} parent=0 // pred_check_branch
    %601 = sbr.rel (0) target = $region41
  $region40: #{lenet5_forward.5} parent=0 // pred_region
    _
  $region41: #{lenet5_forward.5} parent=0 // pred_fallthru
    _
  // Predicated region
  $region42: #{lenet5_forward.5} parent=0 // pred_check
    _
  $region43: #{lenet5_forward.5} parent=0 // pred_check_branch
    %603 = sbr.rel (0) target = $region45
  $region44: #{lenet5_forward.5} parent=0 // pred_region
    _
  $region45: #{lenet5_forward.5} parent=0 // pred_fallthru
    _

</llo_original>
